<compile_context>
chip_gen: v7x
topology: tpu7x:2x2x1
jax: 0.10.0
libtpu: 0.0.40
codegen_flags: <defaults>
</compile_context>

<pallas_src>
import numpy as np
import jax
import jax.numpy as jnp
from jax.experimental import pallas as pl
from jax.experimental.pallas import tpu as pltpu


def _build_structural_mats(H, W):
    """One-hot gather matrices: same-conv shifts, 2x2 max-pool corners, valid-conv shifts."""
    S = H * W
    Hp, Wp = H // 2, W // 2          # spatial size after 2x2 max pool
    S2 = Hp * Wp
    Ho, Wo = Hp - 2, Wp - 2          # spatial size after 3x3 'valid' conv
    S3 = Ho * Wo

    # 'same' conv: shifted (and zero-padded) copy of the flattened H*W grid per tap.
    t_same = np.zeros((9, S, S), np.float32)
    for ky in range(3):
        for kx in range(3):
            t = ky * 3 + kx
            dy, dx = ky - 1, kx - 1
            for i in range(H):
                for j in range(W):
                    ii, jj = i + dy, j + dx
                    if 0 <= ii < H and 0 <= jj < W:
                        t_same[t, ii * W + jj, i * W + j] = 1.0

    # 2x2 max pool: gather each of the four window corners.
    pool = np.zeros((4, S, S2), np.float32)
    for a in range(2):
        for b in range(2):
            k = a * 2 + b
            for pi in range(Hp):
                for pj in range(Wp):
                    pool[k, (2 * pi + a) * W + (2 * pj + b), pi * Wp + pj] = 1.0

    # 'valid' conv on the pooled grid.
    t_val = np.zeros((9, S2, S3), np.float32)
    for ky in range(3):
        for kx in range(3):
            t = ky * 3 + kx
            for i in range(Ho):
                for j in range(Wo):
                    t_val[t, (i + ky) * Wp + (j + kx), i * Wo + j] = 1.0

    return jnp.asarray(t_same), jnp.asarray(pool), jnp.asarray(t_val)


def cnn_feats_kernel(x_ref, w1_ref, b1_ref, w2_ref, b2_ref, w3_ref, b3_ref,
                     tsame_ref, pool_ref, tval_ref,
                     fc1w_ref, fc1b_ref, fc2w_ref, fc2b_ref, o_ref):
    f32 = jnp.float32
    x = x_ref[...]                                   # (C, S), lane dim = H*W

    def conv_same(a, wm_ref, b_ref):
        # im2col via one-hot shift matmuls, then a single fused (Cout, 9*Cin) dot.
        pieces = [jnp.dot(a, tsame_ref[t], preferred_element_type=f32)
                  for t in range(9)]
        patches = jnp.concatenate(pieces, axis=0)    # (9*Cin, S), 8-row aligned concat
        return jnp.dot(wm_ref[...], patches, preferred_element_type=f32) + b_ref[...]

    y = jnp.maximum(conv_same(x, w1_ref, b1_ref), 0.0)       # relu(conv1(x))
    z = conv_same(y, w2_ref, b2_ref) + x                     # conv2(y) + residual
    z = jnp.maximum(z, 0.0)                                  # relu

    # 2x2 max pool: four corner gathers, elementwise max.
    c00 = jnp.dot(z, pool_ref[0], preferred_element_type=f32)
    c01 = jnp.dot(z, pool_ref[1], preferred_element_type=f32)
    c10 = jnp.dot(z, pool_ref[2], preferred_element_type=f32)
    c11 = jnp.dot(z, pool_ref[3], preferred_element_type=f32)
    p = jnp.maximum(jnp.maximum(c00, c01), jnp.maximum(c10, c11))   # (C, S2)

    # conv3, 'valid' padding, C -> C//2.
    pieces3 = [jnp.dot(p, tval_ref[t], preferred_element_type=f32)
               for t in range(9)]
    patches3 = jnp.concatenate(pieces3, axis=0)       # (9*C, S3)
    q = jnp.dot(w3_ref[...], patches3, preferred_element_type=f32) + b3_ref[...]  # (C2, S3)

    # fc1: contract over (C2, S3) without any lane-merging reshape -
    # one (1, S3) x (S3, hidden) dot per conv3 output channel, accumulated.
    h = fc1b_ref[...]                                 # (1, hidden)
    for c in range(q.shape[0]):
        h = h + jnp.dot(q[c:c + 1, :], fc1w_ref[c], preferred_element_type=f32)
    h = jnp.maximum(h, 0.0)                           # relu(fc1)

    o_ref[...] = jnp.dot(h, fc2w_ref[...], preferred_element_type=f32) + fc2b_ref[...]


def cnn_feats(x, w1, b1, w2, b2, w3, b3, fc1_w, fc1_b, fc2_w, fc2_b):
    """x: (N, C, H, W) f32.  Conv weights HWIO (3,3,Cin,Cout); fc weights PyTorch (out, in)."""
    N, C, H, W = x.shape
    S = H * W
    Hp, Wp = H // 2, W // 2
    S2 = Hp * Wp
    S3 = (Hp - 2) * (Wp - 2)
    C2 = w3.shape[3]
    hidden = fc1_w.shape[0]
    n_cls = fc2_w.shape[0]

    t_same, pool, t_val = _build_structural_mats(H, W)

    def conv_w_mat(w):   # HWIO (3,3,Cin,Cout) -> (Cout, 9*Cin), tap-major to match im2col rows
        return jnp.transpose(w, (3, 0, 1, 2)).reshape(
            w.shape[3], 9 * w.shape[2]).astype(jnp.float32)

    x_flat = x.reshape(N, C, S).astype(jnp.float32)          # NCHW kept; free reshape
    w1m, w2m, w3m = conv_w_mat(w1), conv_w_mat(w2), conv_w_mat(w3)
    b1c = b1.reshape(C, 1).astype(jnp.float32)
    b2c = b2.reshape(C, 1).astype(jnp.float32)
    b3c = b3.reshape(C2, 1).astype(jnp.float32)
    # fc1 weight regrouped so the feature order (c2, i, j) matches PyTorch's .view(N, -1).
    fc1w = fc1_w.reshape(hidden, C2, S3).transpose(1, 2, 0).astype(jnp.float32)  # (C2, S3, hidden)
    fc1b = fc1_b.reshape(1, hidden).astype(jnp.float32)
    fc2w = fc2_w.T.astype(jnp.float32)                        # (hidden, n_cls)
    fc2b = fc2_b.reshape(1, n_cls).astype(jnp.float32)

    def const_map(rank):
        return lambda n: (0,) * rank

    out = pl.pallas_call(
        cnn_feats_kernel,
        out_shape=jax.ShapeDtypeStruct((N, 1, n_cls), jnp.float32),
        grid_spec=pltpu.PrefetchScalarGridSpec(
            num_scalar_prefetch=0,
            grid=(N,),
            in_specs=[
                pl.BlockSpec((None, C, S), lambda n: (n, 0, 0)),       # x, one image per step
                pl.BlockSpec((C, 9 * C), const_map(2)),                # conv1 weight (fused im2col)
                pl.BlockSpec((C, 1), const_map(2)),                    # conv1 bias
                pl.BlockSpec((C, 9 * C), const_map(2)),                # conv2 weight
                pl.BlockSpec((C, 1), const_map(2)),                    # conv2 bias
                pl.BlockSpec((C2, 9 * C), const_map(2)),               # conv3 weight
                pl.BlockSpec((C2, 1), const_map(2)),                   # conv3 bias
                pl.BlockSpec((9, S, S), const_map(3)),                 # same-conv shift gathers
                pl.BlockSpec((4, S, S2), const_map(3)),                # max-pool corner gathers
                pl.BlockSpec((9, S2, S3), const_map(3)),               # valid-conv shift gathers
                pl.BlockSpec((C2, S3, hidden), const_map(3)),          # fc1 weight
                pl.BlockSpec((1, hidden), const_map(2)),               # fc1 bias
                pl.BlockSpec((hidden, n_cls), const_map(2)),           # fc2 weight
                pl.BlockSpec((1, n_cls), const_map(2)),                # fc2 bias
            ],
            out_specs=pl.BlockSpec((None, 1, n_cls), lambda n: (n, 0, 0)),
        ),
        compiler_params=pltpu.CompilerParams(
            dimension_semantics=("parallel",),          # batch shards over v7x's 2 TCs
            vmem_limit_bytes=32 * 1024 * 1024),
    )(x_flat, w1m, b1c, w2m, b2c, w3m, b3c, t_same, pool, t_val,
      fc1w, fc1b, fc2w, fc2b)

    return out.reshape(N, n_cls)


def reference(x, w1, b1, w2, b2, w3, b3, fc1_w, fc1_b, fc2_w, fc2_b):
    """Pure-JAX reference matching the PyTorch CNNFeats forward."""
    def conv(v, w, b, padding):
        y = jax.lax.conv_general_dilated(
            v, w, window_strides=(1, 1), padding=padding,
            dimension_numbers=("NCHW", "HWIO", "NCHW"),
            precision=jax.lax.Precision.HIGHEST)
        return y + b.reshape(1, -1, 1, 1)

    inp = x
    y = jax.nn.relu(conv(x, w1, b1, "SAME"))
    z = jax.nn.relu(conv(y, w2, b2, "SAME") + inp)
    p = jax.lax.reduce_window(z, -jnp.inf, jax.lax.max,
                              (1, 1, 2, 2), (1, 1, 2, 2), "VALID")
    q = conv(p, w3, b3, "VALID")
    f = q.reshape(q.shape[0], -1)
    h = jax.nn.relu(f @ fc1_w.T + fc1_b)
    return h @ fc2_w.T + fc2_b


if __name__ == "__main__":
    # Shapes implied by the module: fc1 expects (h//2)*5*5 features, so the
    # input spatial size must be 14x14 (14 -> pool 7 -> 3x3 valid conv -> 5).
    N, C, H, W = 2, 8, 14, 14
    NUM_CLASSES = 10
    C2 = C // 2
    F = C2 * 5 * 5
    HIDDEN = 1024

    keys = jax.random.split(jax.random.PRNGKey(0), 11)
    x = jax.random.normal(keys[0], (N, C, H, W), dtype=jnp.float32)
    # Deterministic synthetic parameters (utils.Conv2d with bias, 'same' padding for
    # conv1/conv2 as required by the residual add; conv3 is padding='valid').
    w1 = 0.1 * jax.random.normal(keys[1], (3, 3, C, C), dtype=jnp.float32)    # HWIO
    b1 = 0.1 * jax.random.normal(keys[2], (C,), dtype=jnp.float32)
    w2 = 0.1 * jax.random.normal(keys[3], (3, 3, C, C), dtype=jnp.float32)
    b2 = 0.1 * jax.random.normal(keys[4], (C,), dtype=jnp.float32)
    w3 = 0.1 * jax.random.normal(keys[5], (3, 3, C, C2), dtype=jnp.float32)
    b3 = 0.1 * jax.random.normal(keys[6], (C2,), dtype=jnp.float32)
    fc1_w = 0.05 * jax.random.normal(keys[7], (HIDDEN, F), dtype=jnp.float32)
    fc1_b = 0.05 * jax.random.normal(keys[8], (HIDDEN,), dtype=jnp.float32)
    fc2_w = 0.05 * jax.random.normal(keys[9], (NUM_CLASSES, HIDDEN), dtype=jnp.float32)
    fc2_b = 0.05 * jax.random.normal(keys[10], (NUM_CLASSES,), dtype=jnp.float32)

    out = jax.block_until_ready(cnn_feats(x, w1, b1, w2, b2, w3, b3,
                                          fc1_w, fc1_b, fc2_w, fc2_b))
    ref = jax.block_until_ready(reference(x, w1, b1, w2, b2, w3, b3,
                                          fc1_w, fc1_b, fc2_w, fc2_b))
    assert out.shape == (N, NUM_CLASSES)
    np.testing.assert_allclose(np.asarray(out), np.asarray(ref),
                               rtol=2e-2, atol=2e-2)
    print("KERNEL_OK")
</pallas_src>

<mosaic_0001>
module attributes {stable_mosaic.version = 11 : i64} {
  func.func @cnn_feats_kernel(%arg0: i32, %arg1: memref<1x8x196xf32, #tpu.memory_space<vmem>>, %arg2: memref<8x72xf32, #tpu.memory_space<vmem>>, %arg3: memref<8x1xf32, #tpu.memory_space<vmem>>, %arg4: memref<8x72xf32, #tpu.memory_space<vmem>>, %arg5: memref<8x1xf32, #tpu.memory_space<vmem>>, %arg6: memref<4x72xf32, #tpu.memory_space<vmem>>, %arg7: memref<4x1xf32, #tpu.memory_space<vmem>>, %arg8: memref<9x196x196xf32, #tpu.memory_space<vmem>>, %arg9: memref<4x196x49xf32, #tpu.memory_space<vmem>>, %arg10: memref<9x49x25xf32, #tpu.memory_space<vmem>>, %arg11: memref<4x25x1024xf32, #tpu.memory_space<vmem>>, %arg12: memref<1x1024xf32, #tpu.memory_space<vmem>>, %arg13: memref<1024x10xf32, #tpu.memory_space<vmem>>, %arg14: memref<1x10xf32, #tpu.memory_space<vmem>>, %arg15: memref<1x1x10xf32, #tpu.memory_space<vmem>>) attributes {dimension_semantics = [#tpu.dimension_semantics<parallel>], iteration_bounds = array<i64: 2>, scalar_prefetch = 0 : i64, scratch_operands = 0 : i64, tpu.core_type = #tpu.core_type<tc>, window_params = [{transform_indices = @transform_0, window_bounds = array<i64: 1, 8, 196>}, {pipeline_mode = #tpu.pipeline_mode<synchronous>, transform_indices = @transform_1, window_bounds = array<i64: 8, 72>}, {pipeline_mode = #tpu.pipeline_mode<synchronous>, transform_indices = @transform_2, window_bounds = array<i64: 8, 1>}, {pipeline_mode = #tpu.pipeline_mode<synchronous>, transform_indices = @transform_3, window_bounds = array<i64: 8, 72>}, {pipeline_mode = #tpu.pipeline_mode<synchronous>, transform_indices = @transform_4, window_bounds = array<i64: 8, 1>}, {pipeline_mode = #tpu.pipeline_mode<synchronous>, transform_indices = @transform_5, window_bounds = array<i64: 4, 72>}, {pipeline_mode = #tpu.pipeline_mode<synchronous>, transform_indices = @transform_6, window_bounds = array<i64: 4, 1>}, {pipeline_mode = #tpu.pipeline_mode<synchronous>, transform_indices = @transform_7, window_bounds = array<i64: 9, 196, 196>}, {pipeline_mode = #tpu.pipeline_mode<synchronous>, transform_indices = @transform_8, window_bounds = array<i64: 4, 196, 49>}, {pipeline_mode = #tpu.pipeline_mode<synchronous>, transform_indices = @transform_9, window_bounds = array<i64: 9, 49, 25>}, {pipeline_mode = #tpu.pipeline_mode<synchronous>, transform_indices = @transform_10, window_bounds = array<i64: 4, 25, 1024>}, {pipeline_mode = #tpu.pipeline_mode<synchronous>, transform_indices = @transform_11, window_bounds = array<i64: 1, 1024>}, {pipeline_mode = #tpu.pipeline_mode<synchronous>, transform_indices = @transform_12, window_bounds = array<i64: 1024, 10>}, {pipeline_mode = #tpu.pipeline_mode<synchronous>, transform_indices = @transform_13, window_bounds = array<i64: 1, 10>}, {transform_indices = @transform_14, window_bounds = array<i64: 1, 1, 10>}]} {
    %c0 = arith.constant 0 : index
    %c0_0 = arith.constant 0 : index
    %c0_1 = arith.constant 0 : index
    %0 = vector.load %arg1[%c0, %c0_0, %c0_1] : memref<1x8x196xf32, #tpu.memory_space<vmem>>, vector<1x8x196xf32>
    %1 = vector.shape_cast %0 : vector<1x8x196xf32> to vector<8x196xf32>
    %c0_2 = arith.constant 0 : index
    %c0_3 = arith.constant 0 : index
    %c0_4 = arith.constant 0 : index
    %2 = vector.load %arg8[%c0_2, %c0_3, %c0_4] : memref<9x196x196xf32, #tpu.memory_space<vmem>>, vector<1x196x196xf32>
    %3 = vector.shape_cast %2 : vector<1x196x196xf32> to vector<196x196xf32>
    %cst = arith.constant dense<0.000000e+00> : vector<8x196xf32>
    %4 = tpu.matmul %1, %3, %cst {dimension_numbers = #tpu.dot_dimension_numbers<[1], [0], [0], [1], [0, 0, 1, 1], [], []>} : vector<8x196xf32>, vector<196x196xf32>, vector<8x196xf32> -> vector<8x196xf32>
    %c1 = arith.constant 1 : index
    %c0_5 = arith.constant 0 : index
    %c0_6 = arith.constant 0 : index
    %5 = vector.load %arg8[%c1, %c0_5, %c0_6] : memref<9x196x196xf32, #tpu.memory_space<vmem>>, vector<1x196x196xf32>
    %6 = vector.shape_cast %5 : vector<1x196x196xf32> to vector<196x196xf32>
    %cst_7 = arith.constant dense<0.000000e+00> : vector<8x196xf32>
    %7 = tpu.matmul %1, %6, %cst_7 {dimension_numbers = #tpu.dot_dimension_numbers<[1], [0], [0], [1], [0, 0, 1, 1], [], []>} : vector<8x196xf32>, vector<196x196xf32>, vector<8x196xf32> -> vector<8x196xf32>
    %c2 = arith.constant 2 : index
    %c0_8 = arith.constant 0 : index
    %c0_9 = arith.constant 0 : index
    %8 = vector.load %arg8[%c2, %c0_8, %c0_9] : memref<9x196x196xf32, #tpu.memory_space<vmem>>, vector<1x196x196xf32>
    %9 = vector.shape_cast %8 : vector<1x196x196xf32> to vector<196x196xf32>
    %cst_10 = arith.constant dense<0.000000e+00> : vector<8x196xf32>
    %10 = tpu.matmul %1, %9, %cst_10 {dimension_numbers = #tpu.dot_dimension_numbers<[1], [0], [0], [1], [0, 0, 1, 1], [], []>} : vector<8x196xf32>, vector<196x196xf32>, vector<8x196xf32> -> vector<8x196xf32>
    %c3 = arith.constant 3 : index
    %c0_11 = arith.constant 0 : index
    %c0_12 = arith.constant 0 : index
    %11 = vector.load %arg8[%c3, %c0_11, %c0_12] : memref<9x196x196xf32, #tpu.memory_space<vmem>>, vector<1x196x196xf32>
    %12 = vector.shape_cast %11 : vector<1x196x196xf32> to vector<196x196xf32>
    %cst_13 = arith.constant dense<0.000000e+00> : vector<8x196xf32>
    %13 = tpu.matmul %1, %12, %cst_13 {dimension_numbers = #tpu.dot_dimension_numbers<[1], [0], [0], [1], [0, 0, 1, 1], [], []>} : vector<8x196xf32>, vector<196x196xf32>, vector<8x196xf32> -> vector<8x196xf32>
    %c4 = arith.constant 4 : index
    %c0_14 = arith.constant 0 : index
    %c0_15 = arith.constant 0 : index
    %14 = vector.load %arg8[%c4, %c0_14, %c0_15] : memref<9x196x196xf32, #tpu.memory_space<vmem>>, vector<1x196x196xf32>
    %15 = vector.shape_cast %14 : vector<1x196x196xf32> to vector<196x196xf32>
    %cst_16 = arith.constant dense<0.000000e+00> : vector<8x196xf32>
    %16 = tpu.matmul %1, %15, %cst_16 {dimension_numbers = #tpu.dot_dimension_numbers<[1], [0], [0], [1], [0, 0, 1, 1], [], []>} : vector<8x196xf32>, vector<196x196xf32>, vector<8x196xf32> -> vector<8x196xf32>
    %c5 = arith.constant 5 : index
    %c0_17 = arith.constant 0 : index
    %c0_18 = arith.constant 0 : index
    %17 = vector.load %arg8[%c5, %c0_17, %c0_18] : memref<9x196x196xf32, #tpu.memory_space<vmem>>, vector<1x196x196xf32>
    %18 = vector.shape_cast %17 : vector<1x196x196xf32> to vector<196x196xf32>
    %cst_19 = arith.constant dense<0.000000e+00> : vector<8x196xf32>
    %19 = tpu.matmul %1, %18, %cst_19 {dimension_numbers = #tpu.dot_dimension_numbers<[1], [0], [0], [1], [0, 0, 1, 1], [], []>} : vector<8x196xf32>, vector<196x196xf32>, vector<8x196xf32> -> vector<8x196xf32>
    %c6 = arith.constant 6 : index
    %c0_20 = arith.constant 0 : index
    %c0_21 = arith.constant 0 : index
    %20 = vector.load %arg8[%c6, %c0_20, %c0_21] : memref<9x196x196xf32, #tpu.memory_space<vmem>>, vector<1x196x196xf32>
    %21 = vector.shape_cast %20 : vector<1x196x196xf32> to vector<196x196xf32>
    %cst_22 = arith.constant dense<0.000000e+00> : vector<8x196xf32>
    %22 = tpu.matmul %1, %21, %cst_22 {dimension_numbers = #tpu.dot_dimension_numbers<[1], [0], [0], [1], [0, 0, 1, 1], [], []>} : vector<8x196xf32>, vector<196x196xf32>, vector<8x196xf32> -> vector<8x196xf32>
    %c7 = arith.constant 7 : index
    %c0_23 = arith.constant 0 : index
    %c0_24 = arith.constant 0 : index
    %23 = vector.load %arg8[%c7, %c0_23, %c0_24] : memref<9x196x196xf32, #tpu.memory_space<vmem>>, vector<1x196x196xf32>
    %24 = vector.shape_cast %23 : vector<1x196x196xf32> to vector<196x196xf32>
    %cst_25 = arith.constant dense<0.000000e+00> : vector<8x196xf32>
    %25 = tpu.matmul %1, %24, %cst_25 {dimension_numbers = #tpu.dot_dimension_numbers<[1], [0], [0], [1], [0, 0, 1, 1], [], []>} : vector<8x196xf32>, vector<196x196xf32>, vector<8x196xf32> -> vector<8x196xf32>
    %c8 = arith.constant 8 : index
    %c0_26 = arith.constant 0 : index
    %c0_27 = arith.constant 0 : index
    %26 = vector.load %arg8[%c8, %c0_26, %c0_27] : memref<9x196x196xf32, #tpu.memory_space<vmem>>, vector<1x196x196xf32>
    %27 = vector.shape_cast %26 : vector<1x196x196xf32> to vector<196x196xf32>
    %cst_28 = arith.constant dense<0.000000e+00> : vector<8x196xf32>
    %28 = tpu.matmul %1, %27, %cst_28 {dimension_numbers = #tpu.dot_dimension_numbers<[1], [0], [0], [1], [0, 0, 1, 1], [], []>} : vector<8x196xf32>, vector<196x196xf32>, vector<8x196xf32> -> vector<8x196xf32>
    %29 = tpu.concatenate %4, %7, %10, %13, %16, %19, %22, %25, %28 in 0 : vector<8x196xf32>, vector<8x196xf32>, vector<8x196xf32>, vector<8x196xf32>, vector<8x196xf32>, vector<8x196xf32>, vector<8x196xf32>, vector<8x196xf32>, vector<8x196xf32> -> vector<72x196xf32>
    %c0_29 = arith.constant 0 : index
    %c0_30 = arith.constant 0 : index
    %30 = vector.load %arg2[%c0_29, %c0_30] : memref<8x72xf32, #tpu.memory_space<vmem>>, vector<8x72xf32>
    %cst_31 = arith.constant dense<0.000000e+00> : vector<8x196xf32>
    %31 = tpu.matmul %30, %29, %cst_31 {dimension_numbers = #tpu.dot_dimension_numbers<[1], [0], [0], [1], [0, 0, 1, 1], [], []>} : vector<8x72xf32>, vector<72x196xf32>, vector<8x196xf32> -> vector<8x196xf32>
    %c0_32 = arith.constant 0 : index
    %c0_33 = arith.constant 0 : index
    %32 = vector.load %arg3[%c0_32, %c0_33] : memref<8x1xf32, #tpu.memory_space<vmem>>, vector<8x1xf32>
    %33 = vector.broadcast %32 : vector<8x1xf32> to vector<8x196xf32>
    %34 = arith.addf %31, %33 : vector<8x196xf32>
    %cst_34 = arith.constant 0.000000e+00 : f32
    %35 = vector.broadcast %cst_34 : f32 to vector<8x196xf32>
    %36 = arith.maximumf %34, %35 : vector<8x196xf32>
    %c0_35 = arith.constant 0 : index
    %c0_36 = arith.constant 0 : index
    %c0_37 = arith.constant 0 : index
    %37 = vector.load %arg8[%c0_35, %c0_36, %c0_37] : memref<9x196x196xf32, #tpu.memory_space<vmem>>, vector<1x196x196xf32>
    %38 = vector.shape_cast %37 : vector<1x196x196xf32> to vector<196x196xf32>
    %cst_38 = arith.constant dense<0.000000e+00> : vector<8x196xf32>
    %39 = tpu.matmul %36, %38, %cst_38 {dimension_numbers = #tpu.dot_dimension_numbers<[1], [0], [0], [1], [0, 0, 1, 1], [], []>} : vector<8x196xf32>, vector<196x196xf32>, vector<8x196xf32> -> vector<8x196xf32>
    %c1_39 = arith.constant 1 : index
    %c0_40 = arith.constant 0 : index
    %c0_41 = arith.constant 0 : index
    %40 = vector.load %arg8[%c1_39, %c0_40, %c0_41] : memref<9x196x196xf32, #tpu.memory_space<vmem>>, vector<1x196x196xf32>
    %41 = vector.shape_cast %40 : vector<1x196x196xf32> to vector<196x196xf32>
    %cst_42 = arith.constant dense<0.000000e+00> : vector<8x196xf32>
    %42 = tpu.matmul %36, %41, %cst_42 {dimension_numbers = #tpu.dot_dimension_numbers<[1], [0], [0], [1], [0, 0, 1, 1], [], []>} : vector<8x196xf32>, vector<196x196xf32>, vector<8x196xf32> -> vector<8x196xf32>
    %c2_43 = arith.constant 2 : index
    %c0_44 = arith.constant 0 : index
    %c0_45 = arith.constant 0 : index
    %43 = vector.load %arg8[%c2_43, %c0_44, %c0_45] : memref<9x196x196xf32, #tpu.memory_space<vmem>>, vector<1x196x196xf32>
    %44 = vector.shape_cast %43 : vector<1x196x196xf32> to vector<196x196xf32>
    %cst_46 = arith.constant dense<0.000000e+00> : vector<8x196xf32>
    %45 = tpu.matmul %36, %44, %cst_46 {dimension_numbers = #tpu.dot_dimension_numbers<[1], [0], [0], [1], [0, 0, 1, 1], [], []>} : vector<8x196xf32>, vector<196x196xf32>, vector<8x196xf32> -> vector<8x196xf32>
    %c3_47 = arith.constant 3 : index
    %c0_48 = arith.constant 0 : index
    %c0_49 = arith.constant 0 : index
    %46 = vector.load %arg8[%c3_47, %c0_48, %c0_49] : memref<9x196x196xf32, #tpu.memory_space<vmem>>, vector<1x196x196xf32>
    %47 = vector.shape_cast %46 : vector<1x196x196xf32> to vector<196x196xf32>
    %cst_50 = arith.constant dense<0.000000e+00> : vector<8x196xf32>
    %48 = tpu.matmul %36, %47, %cst_50 {dimension_numbers = #tpu.dot_dimension_numbers<[1], [0], [0], [1], [0, 0, 1, 1], [], []>} : vector<8x196xf32>, vector<196x196xf32>, vector<8x196xf32> -> vector<8x196xf32>
    %c4_51 = arith.constant 4 : index
    %c0_52 = arith.constant 0 : index
    %c0_53 = arith.constant 0 : index
    %49 = vector.load %arg8[%c4_51, %c0_52, %c0_53] : memref<9x196x196xf32, #tpu.memory_space<vmem>>, vector<1x196x196xf32>
    %50 = vector.shape_cast %49 : vector<1x196x196xf32> to vector<196x196xf32>
    %cst_54 = arith.constant dense<0.000000e+00> : vector<8x196xf32>
    %51 = tpu.matmul %36, %50, %cst_54 {dimension_numbers = #tpu.dot_dimension_numbers<[1], [0], [0], [1], [0, 0, 1, 1], [], []>} : vector<8x196xf32>, vector<196x196xf32>, vector<8x196xf32> -> vector<8x196xf32>
    %c5_55 = arith.constant 5 : index
    %c0_56 = arith.constant 0 : index
    %c0_57 = arith.constant 0 : index
    %52 = vector.load %arg8[%c5_55, %c0_56, %c0_57] : memref<9x196x196xf32, #tpu.memory_space<vmem>>, vector<1x196x196xf32>
    %53 = vector.shape_cast %52 : vector<1x196x196xf32> to vector<196x196xf32>
    %cst_58 = arith.constant dense<0.000000e+00> : vector<8x196xf32>
    %54 = tpu.matmul %36, %53, %cst_58 {dimension_numbers = #tpu.dot_dimension_numbers<[1], [0], [0], [1], [0, 0, 1, 1], [], []>} : vector<8x196xf32>, vector<196x196xf32>, vector<8x196xf32> -> vector<8x196xf32>
    %c6_59 = arith.constant 6 : index
    %c0_60 = arith.constant 0 : index
    %c0_61 = arith.constant 0 : index
    %55 = vector.load %arg8[%c6_59, %c0_60, %c0_61] : memref<9x196x196xf32, #tpu.memory_space<vmem>>, vector<1x196x196xf32>
    %56 = vector.shape_cast %55 : vector<1x196x196xf32> to vector<196x196xf32>
    %cst_62 = arith.constant dense<0.000000e+00> : vector<8x196xf32>
    %57 = tpu.matmul %36, %56, %cst_62 {dimension_numbers = #tpu.dot_dimension_numbers<[1], [0], [0], [1], [0, 0, 1, 1], [], []>} : vector<8x196xf32>, vector<196x196xf32>, vector<8x196xf32> -> vector<8x196xf32>
    %c7_63 = arith.constant 7 : index
    %c0_64 = arith.constant 0 : index
    %c0_65 = arith.constant 0 : index
    %58 = vector.load %arg8[%c7_63, %c0_64, %c0_65] : memref<9x196x196xf32, #tpu.memory_space<vmem>>, vector<1x196x196xf32>
    %59 = vector.shape_cast %58 : vector<1x196x196xf32> to vector<196x196xf32>
    %cst_66 = arith.constant dense<0.000000e+00> : vector<8x196xf32>
    %60 = tpu.matmul %36, %59, %cst_66 {dimension_numbers = #tpu.dot_dimension_numbers<[1], [0], [0], [1], [0, 0, 1, 1], [], []>} : vector<8x196xf32>, vector<196x196xf32>, vector<8x196xf32> -> vector<8x196xf32>
    %c8_67 = arith.constant 8 : index
    %c0_68 = arith.constant 0 : index
    %c0_69 = arith.constant 0 : index
    %61 = vector.load %arg8[%c8_67, %c0_68, %c0_69] : memref<9x196x196xf32, #tpu.memory_space<vmem>>, vector<1x196x196xf32>
    %62 = vector.shape_cast %61 : vector<1x196x196xf32> to vector<196x196xf32>
    %cst_70 = arith.constant dense<0.000000e+00> : vector<8x196xf32>
    %63 = tpu.matmul %36, %62, %cst_70 {dimension_numbers = #tpu.dot_dimension_numbers<[1], [0], [0], [1], [0, 0, 1, 1], [], []>} : vector<8x196xf32>, vector<196x196xf32>, vector<8x196xf32> -> vector<8x196xf32>
    %64 = tpu.concatenate %39, %42, %45, %48, %51, %54, %57, %60, %63 in 0 : vector<8x196xf32>, vector<8x196xf32>, vector<8x196xf32>, vector<8x196xf32>, vector<8x196xf32>, vector<8x196xf32>, vector<8x196xf32>, vector<8x196xf32>, vector<8x196xf32> -> vector<72x196xf32>
    %c0_71 = arith.constant 0 : index
    %c0_72 = arith.constant 0 : index
    %65 = vector.load %arg4[%c0_71, %c0_72] : memref<8x72xf32, #tpu.memory_space<vmem>>, vector<8x72xf32>
    %cst_73 = arith.constant dense<0.000000e+00> : vector<8x196xf32>
    %66 = tpu.matmul %65, %64, %cst_73 {dimension_numbers = #tpu.dot_dimension_numbers<[1], [0], [0], [1], [0, 0, 1, 1], [], []>} : vector<8x72xf32>, vector<72x196xf32>, vector<8x196xf32> -> vector<8x196xf32>
    %c0_74 = arith.constant 0 : index
    %c0_75 = arith.constant 0 : index
    %67 = vector.load %arg5[%c0_74, %c0_75] : memref<8x1xf32, #tpu.memory_space<vmem>>, vector<8x1xf32>
    %68 = vector.broadcast %67 : vector<8x1xf32> to vector<8x196xf32>
    %69 = arith.addf %66, %68 : vector<8x196xf32>
    %70 = arith.addf %69, %1 : vector<8x196xf32>
    %cst_76 = arith.constant 0.000000e+00 : f32
    %71 = vector.broadcast %cst_76 : f32 to vector<8x196xf32>
    %72 = arith.maximumf %70, %71 : vector<8x196xf32>
    %c0_77 = arith.constant 0 : index
    %c0_78 = arith.constant 0 : index
    %c0_79 = arith.constant 0 : index
    %73 = vector.load %arg9[%c0_77, %c0_78, %c0_79] : memref<4x196x49xf32, #tpu.memory_space<vmem>>, vector<1x196x49xf32>
    %74 = vector.shape_cast %73 : vector<1x196x49xf32> to vector<196x49xf32>
    %cst_80 = arith.constant dense<0.000000e+00> : vector<8x49xf32>
    %75 = tpu.matmul %72, %74, %cst_80 {dimension_numbers = #tpu.dot_dimension_numbers<[1], [0], [0], [1], [0, 0, 1, 1], [], []>} : vector<8x196xf32>, vector<196x49xf32>, vector<8x49xf32> -> vector<8x49xf32>
    %c1_81 = arith.constant 1 : index
    %c0_82 = arith.constant 0 : index
    %c0_83 = arith.constant 0 : index
    %76 = vector.load %arg9[%c1_81, %c0_82, %c0_83] : memref<4x196x49xf32, #tpu.memory_space<vmem>>, vector<1x196x49xf32>
    %77 = vector.shape_cast %76 : vector<1x196x49xf32> to vector<196x49xf32>
    %cst_84 = arith.constant dense<0.000000e+00> : vector<8x49xf32>
    %78 = tpu.matmul %72, %77, %cst_84 {dimension_numbers = #tpu.dot_dimension_numbers<[1], [0], [0], [1], [0, 0, 1, 1], [], []>} : vector<8x196xf32>, vector<196x49xf32>, vector<8x49xf32> -> vector<8x49xf32>
    %c2_85 = arith.constant 2 : index
    %c0_86 = arith.constant 0 : index
    %c0_87 = arith.constant 0 : index
    %79 = vector.load %arg9[%c2_85, %c0_86, %c0_87] : memref<4x196x49xf32, #tpu.memory_space<vmem>>, vector<1x196x49xf32>
    %80 = vector.shape_cast %79 : vector<1x196x49xf32> to vector<196x49xf32>
    %cst_88 = arith.constant dense<0.000000e+00> : vector<8x49xf32>
    %81 = tpu.matmul %72, %80, %cst_88 {dimension_numbers = #tpu.dot_dimension_numbers<[1], [0], [0], [1], [0, 0, 1, 1], [], []>} : vector<8x196xf32>, vector<196x49xf32>, vector<8x49xf32> -> vector<8x49xf32>
    %c3_89 = arith.constant 3 : index
    %c0_90 = arith.constant 0 : index
    %c0_91 = arith.constant 0 : index
    %82 = vector.load %arg9[%c3_89, %c0_90, %c0_91] : memref<4x196x49xf32, #tpu.memory_space<vmem>>, vector<1x196x49xf32>
    %83 = vector.shape_cast %82 : vector<1x196x49xf32> to vector<196x49xf32>
    %cst_92 = arith.constant dense<0.000000e+00> : vector<8x49xf32>
    %84 = tpu.matmul %72, %83, %cst_92 {dimension_numbers = #tpu.dot_dimension_numbers<[1], [0], [0], [1], [0, 0, 1, 1], [], []>} : vector<8x196xf32>, vector<196x49xf32>, vector<8x49xf32> -> vector<8x49xf32>
    %85 = arith.maximumf %75, %78 : vector<8x49xf32>
    %86 = arith.maximumf %81, %84 : vector<8x49xf32>
    %87 = arith.maximumf %85, %86 : vector<8x49xf32>
    %c0_93 = arith.constant 0 : index
    %c0_94 = arith.constant 0 : index
    %c0_95 = arith.constant 0 : index
    %88 = vector.load %arg10[%c0_93, %c0_94, %c0_95] : memref<9x49x25xf32, #tpu.memory_space<vmem>>, vector<1x49x25xf32>
    %89 = vector.shape_cast %88 : vector<1x49x25xf32> to vector<49x25xf32>
    %cst_96 = arith.constant dense<0.000000e+00> : vector<8x25xf32>
    %90 = tpu.matmul %87, %89, %cst_96 {dimension_numbers = #tpu.dot_dimension_numbers<[1], [0], [0], [1], [0, 0, 1, 1], [], []>} : vector<8x49xf32>, vector<49x25xf32>, vector<8x25xf32> -> vector<8x25xf32>
    %c1_97 = arith.constant 1 : index
    %c0_98 = arith.constant 0 : index
    %c0_99 = arith.constant 0 : index
    %91 = vector.load %arg10[%c1_97, %c0_98, %c0_99] : memref<9x49x25xf32, #tpu.memory_space<vmem>>, vector<1x49x25xf32>
    %92 = vector.shape_cast %91 : vector<1x49x25xf32> to vector<49x25xf32>
    %cst_100 = arith.constant dense<0.000000e+00> : vector<8x25xf32>
    %93 = tpu.matmul %87, %92, %cst_100 {dimension_numbers = #tpu.dot_dimension_numbers<[1], [0], [0], [1], [0, 0, 1, 1], [], []>} : vector<8x49xf32>, vector<49x25xf32>, vector<8x25xf32> -> vector<8x25xf32>
    %c2_101 = arith.constant 2 : index
    %c0_102 = arith.constant 0 : index
    %c0_103 = arith.constant 0 : index
    %94 = vector.load %arg10[%c2_101, %c0_102, %c0_103] : memref<9x49x25xf32, #tpu.memory_space<vmem>>, vector<1x49x25xf32>
    %95 = vector.shape_cast %94 : vector<1x49x25xf32> to vector<49x25xf32>
    %cst_104 = arith.constant dense<0.000000e+00> : vector<8x25xf32>
    %96 = tpu.matmul %87, %95, %cst_104 {dimension_numbers = #tpu.dot_dimension_numbers<[1], [0], [0], [1], [0, 0, 1, 1], [], []>} : vector<8x49xf32>, vector<49x25xf32>, vector<8x25xf32> -> vector<8x25xf32>
    %c3_105 = arith.constant 3 : index
    %c0_106 = arith.constant 0 : index
    %c0_107 = arith.constant 0 : index
    %97 = vector.load %arg10[%c3_105, %c0_106, %c0_107] : memref<9x49x25xf32, #tpu.memory_space<vmem>>, vector<1x49x25xf32>
    %98 = vector.shape_cast %97 : vector<1x49x25xf32> to vector<49x25xf32>
    %cst_108 = arith.constant dense<0.000000e+00> : vector<8x25xf32>
    %99 = tpu.matmul %87, %98, %cst_108 {dimension_numbers = #tpu.dot_dimension_numbers<[1], [0], [0], [1], [0, 0, 1, 1], [], []>} : vector<8x49xf32>, vector<49x25xf32>, vector<8x25xf32> -> vector<8x25xf32>
    %c4_109 = arith.constant 4 : index
    %c0_110 = arith.constant 0 : index
    %c0_111 = arith.constant 0 : index
    %100 = vector.load %arg10[%c4_109, %c0_110, %c0_111] : memref<9x49x25xf32, #tpu.memory_space<vmem>>, vector<1x49x25xf32>
    %101 = vector.shape_cast %100 : vector<1x49x25xf32> to vector<49x25xf32>
    %cst_112 = arith.constant dense<0.000000e+00> : vector<8x25xf32>
    %102 = tpu.matmul %87, %101, %cst_112 {dimension_numbers = #tpu.dot_dimension_numbers<[1], [0], [0], [1], [0, 0, 1, 1], [], []>} : vector<8x49xf32>, vector<49x25xf32>, vector<8x25xf32> -> vector<8x25xf32>
    %c5_113 = arith.constant 5 : index
    %c0_114 = arith.constant 0 : index
    %c0_115 = arith.constant 0 : index
    %103 = vector.load %arg10[%c5_113, %c0_114, %c0_115] : memref<9x49x25xf32, #tpu.memory_space<vmem>>, vector<1x49x25xf32>
    %104 = vector.shape_cast %103 : vector<1x49x25xf32> to vector<49x25xf32>
    %cst_116 = arith.constant dense<0.000000e+00> : vector<8x25xf32>
    %105 = tpu.matmul %87, %104, %cst_116 {dimension_numbers = #tpu.dot_dimension_numbers<[1], [0], [0], [1], [0, 0, 1, 1], [], []>} : vector<8x49xf32>, vector<49x25xf32>, vector<8x25xf32> -> vector<8x25xf32>
    %c6_117 = arith.constant 6 : index
    %c0_118 = arith.constant 0 : index
    %c0_119 = arith.constant 0 : index
    %106 = vector.load %arg10[%c6_117, %c0_118, %c0_119] : memref<9x49x25xf32, #tpu.memory_space<vmem>>, vector<1x49x25xf32>
    %107 = vector.shape_cast %106 : vector<1x49x25xf32> to vector<49x25xf32>
    %cst_120 = arith.constant dense<0.000000e+00> : vector<8x25xf32>
    %108 = tpu.matmul %87, %107, %cst_120 {dimension_numbers = #tpu.dot_dimension_numbers<[1], [0], [0], [1], [0, 0, 1, 1], [], []>} : vector<8x49xf32>, vector<49x25xf32>, vector<8x25xf32> -> vector<8x25xf32>
    %c7_121 = arith.constant 7 : index
    %c0_122 = arith.constant 0 : index
    %c0_123 = arith.constant 0 : index
    %109 = vector.load %arg10[%c7_121, %c0_122, %c0_123] : memref<9x49x25xf32, #tpu.memory_space<vmem>>, vector<1x49x25xf32>
    %110 = vector.shape_cast %109 : vector<1x49x25xf32> to vector<49x25xf32>
    %cst_124 = arith.constant dense<0.000000e+00> : vector<8x25xf32>
    %111 = tpu.matmul %87, %110, %cst_124 {dimension_numbers = #tpu.dot_dimension_numbers<[1], [0], [0], [1], [0, 0, 1, 1], [], []>} : vector<8x49xf32>, vector<49x25xf32>, vector<8x25xf32> -> vector<8x25xf32>
    %c8_125 = arith.constant 8 : index
    %c0_126 = arith.constant 0 : index
    %c0_127 = arith.constant 0 : index
    %112 = vector.load %arg10[%c8_125, %c0_126, %c0_127] : memref<9x49x25xf32, #tpu.memory_space<vmem>>, vector<1x49x25xf32>
    %113 = vector.shape_cast %112 : vector<1x49x25xf32> to vector<49x25xf32>
    %cst_128 = arith.constant dense<0.000000e+00> : vector<8x25xf32>
    %114 = tpu.matmul %87, %113, %cst_128 {dimension_numbers = #tpu.dot_dimension_numbers<[1], [0], [0], [1], [0, 0, 1, 1], [], []>} : vector<8x49xf32>, vector<49x25xf32>, vector<8x25xf32> -> vector<8x25xf32>
    %115 = tpu.concatenate %90, %93, %96, %99, %102, %105, %108, %111, %114 in 0 : vector<8x25xf32>, vector<8x25xf32>, vector<8x25xf32>, vector<8x25xf32>, vector<8x25xf32>, vector<8x25xf32>, vector<8x25xf32>, vector<8x25xf32>, vector<8x25xf32> -> vector<72x25xf32>
    %c0_129 = arith.constant 0 : index
    %c0_130 = arith.constant 0 : index
    %116 = vector.load %arg6[%c0_129, %c0_130] : memref<4x72xf32, #tpu.memory_space<vmem>>, vector<4x72xf32>
    %cst_131 = arith.constant dense<0.000000e+00> : vector<4x25xf32>
    %117 = tpu.matmul %116, %115, %cst_131 {dimension_numbers = #tpu.dot_dimension_numbers<[1], [0], [0], [1], [0, 0, 1, 1], [], []>} : vector<4x72xf32>, vector<72x25xf32>, vector<4x25xf32> -> vector<4x25xf32>
    %c0_132 = arith.constant 0 : index
    %c0_133 = arith.constant 0 : index
    %118 = vector.load %arg7[%c0_132, %c0_133] : memref<4x1xf32, #tpu.memory_space<vmem>>, vector<4x1xf32>
    %119 = vector.broadcast %118 : vector<4x1xf32> to vector<4x25xf32>
    %120 = arith.addf %117, %119 : vector<4x25xf32>
    %c0_134 = arith.constant 0 : index
    %c0_135 = arith.constant 0 : index
    %121 = vector.load %arg12[%c0_134, %c0_135] : memref<1x1024xf32, #tpu.memory_space<vmem>>, vector<1x1024xf32>
    %122 = vector.extract_strided_slice %120 {offsets = [0, 0], sizes = [1, 25], strides = [1, 1]} : vector<4x25xf32> to vector<1x25xf32>
    %c0_136 = arith.constant 0 : index
    %c0_137 = arith.constant 0 : index
    %c0_138 = arith.constant 0 : index
    %123 = vector.load %arg11[%c0_136, %c0_137, %c0_138] : memref<4x25x1024xf32, #tpu.memory_space<vmem>>, vector<1x25x1024xf32>
    %124 = vector.shape_cast %123 : vector<1x25x1024xf32> to vector<25x1024xf32>
    %cst_139 = arith.constant dense<0.000000e+00> : vector<1x1024xf32>
    %125 = tpu.matmul %122, %124, %cst_139 {dimension_numbers = #tpu.dot_dimension_numbers<[1], [0], [0], [1], [0, 0, 1, 1], [], []>} : vector<1x25xf32>, vector<25x1024xf32>, vector<1x1024xf32> -> vector<1x1024xf32>
    %126 = arith.addf %121, %125 : vector<1x1024xf32>
    %127 = vector.extract_strided_slice %120 {offsets = [1, 0], sizes = [1, 25], strides = [1, 1]} : vector<4x25xf32> to vector<1x25xf32>
    %c1_140 = arith.constant 1 : index
    %c0_141 = arith.constant 0 : index
    %c0_142 = arith.constant 0 : index
    %128 = vector.load %arg11[%c1_140, %c0_141, %c0_142] : memref<4x25x1024xf32, #tpu.memory_space<vmem>>, vector<1x25x1024xf32>
    %129 = vector.shape_cast %128 : vector<1x25x1024xf32> to vector<25x1024xf32>
    %cst_143 = arith.constant dense<0.000000e+00> : vector<1x1024xf32>
    %130 = tpu.matmul %127, %129, %cst_143 {dimension_numbers = #tpu.dot_dimension_numbers<[1], [0], [0], [1], [0, 0, 1, 1], [], []>} : vector<1x25xf32>, vector<25x1024xf32>, vector<1x1024xf32> -> vector<1x1024xf32>
    %131 = arith.addf %126, %130 : vector<1x1024xf32>
    %132 = vector.extract_strided_slice %120 {offsets = [2, 0], sizes = [1, 25], strides = [1, 1]} : vector<4x25xf32> to vector<1x25xf32>
    %c2_144 = arith.constant 2 : index
    %c0_145 = arith.constant 0 : index
    %c0_146 = arith.constant 0 : index
    %133 = vector.load %arg11[%c2_144, %c0_145, %c0_146] : memref<4x25x1024xf32, #tpu.memory_space<vmem>>, vector<1x25x1024xf32>
    %134 = vector.shape_cast %133 : vector<1x25x1024xf32> to vector<25x1024xf32>
    %cst_147 = arith.constant dense<0.000000e+00> : vector<1x1024xf32>
    %135 = tpu.matmul %132, %134, %cst_147 {dimension_numbers = #tpu.dot_dimension_numbers<[1], [0], [0], [1], [0, 0, 1, 1], [], []>} : vector<1x25xf32>, vector<25x1024xf32>, vector<1x1024xf32> -> vector<1x1024xf32>
    %136 = arith.addf %131, %135 : vector<1x1024xf32>
    %137 = vector.extract_strided_slice %120 {offsets = [3, 0], sizes = [1, 25], strides = [1, 1]} : vector<4x25xf32> to vector<1x25xf32>
    %c3_148 = arith.constant 3 : index
    %c0_149 = arith.constant 0 : index
    %c0_150 = arith.constant 0 : index
    %138 = vector.load %arg11[%c3_148, %c0_149, %c0_150] : memref<4x25x1024xf32, #tpu.memory_space<vmem>>, vector<1x25x1024xf32>
    %139 = vector.shape_cast %138 : vector<1x25x1024xf32> to vector<25x1024xf32>
    %cst_151 = arith.constant dense<0.000000e+00> : vector<1x1024xf32>
    %140 = tpu.matmul %137, %139, %cst_151 {dimension_numbers = #tpu.dot_dimension_numbers<[1], [0], [0], [1], [0, 0, 1, 1], [], []>} : vector<1x25xf32>, vector<25x1024xf32>, vector<1x1024xf32> -> vector<1x1024xf32>
    %141 = arith.addf %136, %140 : vector<1x1024xf32>
    %cst_152 = arith.constant 0.000000e+00 : f32
    %142 = vector.broadcast %cst_152 : f32 to vector<1x1024xf32>
    %143 = arith.maximumf %141, %142 : vector<1x1024xf32>
    %c0_153 = arith.constant 0 : index
    %c0_154 = arith.constant 0 : index
    %144 = vector.load %arg13[%c0_153, %c0_154] : memref<1024x10xf32, #tpu.memory_space<vmem>>, vector<1024x10xf32>
    %cst_155 = arith.constant dense<0.000000e+00> : vector<1x10xf32>
    %145 = tpu.matmul %143, %144, %cst_155 {dimension_numbers = #tpu.dot_dimension_numbers<[1], [0], [0], [1], [0, 0, 1, 1], [], []>} : vector<1x1024xf32>, vector<1024x10xf32>, vector<1x10xf32> -> vector<1x10xf32>
    %c0_156 = arith.constant 0 : index
    %c0_157 = arith.constant 0 : index
    %146 = vector.load %arg14[%c0_156, %c0_157] : memref<1x10xf32, #tpu.memory_space<vmem>>, vector<1x10xf32>
    %147 = arith.addf %145, %146 : vector<1x10xf32>
    %c0_158 = arith.constant 0 : index
    %c0_159 = arith.constant 0 : index
    %c0_160 = arith.constant 0 : index
    %148 = vector.load %arg15[%c0_158, %c0_159, %c0_160] : memref<1x1x10xf32, #tpu.memory_space<vmem>>, vector<1x1x10xf32>
    %149 = vector.shape_cast %148 : vector<1x1x10xf32> to vector<1x10xf32>
    %150 = vector.shape_cast %147 : vector<1x10xf32> to vector<1x1x10xf32>
    tpu.vector_store %arg15[%c0_158, %c0_159, %c0_160], %150 {strides = array<i32>} : memref<1x1x10xf32, #tpu.memory_space<vmem>>, vector<1x1x10xf32>,
    return
  }
  func.func @transform_0(%arg0: i32) -> (i32, i32, i32) {
    %c0_i32 = arith.constant 0 : i32
    %c0_i32_0 = arith.constant 0 : i32
    %c0_i32_1 = arith.constant 0 : i32
    return %arg0, %c0_i32, %c0_i32_0 : i32, i32, i32
  }
  func.func @transform_1(%arg0: i32) -> (i32, i32) {
    %c0_i32 = arith.constant 0 : i32
    %c0_i32_0 = arith.constant 0 : i32
    %c0_i32_1 = arith.constant 0 : i32
    return %c0_i32, %c0_i32_0 : i32, i32
  }
  func.func @transform_2(%arg0: i32) -> (i32, i32) {
    %c0_i32 = arith.constant 0 : i32
    %c0_i32_0 = arith.constant 0 : i32
    %c0_i32_1 = arith.constant 0 : i32
    return %c0_i32, %c0_i32_0 : i32, i32
  }
  func.func @transform_3(%arg0: i32) -> (i32, i32) {
    %c0_i32 = arith.constant 0 : i32
    %c0_i32_0 = arith.constant 0 : i32
    %c0_i32_1 = arith.constant 0 : i32
    return %c0_i32, %c0_i32_0 : i32, i32
  }
  func.func @transform_4(%arg0: i32) -> (i32, i32) {
    %c0_i32 = arith.constant 0 : i32
    %c0_i32_0 = arith.constant 0 : i32
    %c0_i32_1 = arith.constant 0 : i32
    return %c0_i32, %c0_i32_0 : i32, i32
  }
  func.func @transform_5(%arg0: i32) -> (i32, i32) {
    %c0_i32 = arith.constant 0 : i32
    %c0_i32_0 = arith.constant 0 : i32
    %c0_i32_1 = arith.constant 0 : i32
    return %c0_i32, %c0_i32_0 : i32, i32
  }
  func.func @transform_6(%arg0: i32) -> (i32, i32) {
    %c0_i32 = arith.constant 0 : i32
    %c0_i32_0 = arith.constant 0 : i32
    %c0_i32_1 = arith.constant 0 : i32
    return %c0_i32, %c0_i32_0 : i32, i32
  }
  func.func @transform_7(%arg0: i32) -> (i32, i32, i32) {
    %c0_i32 = arith.constant 0 : i32
    %c0_i32_0 = arith.constant 0 : i32
    %c0_i32_1 = arith.constant 0 : i32
    %c0_i32_2 = arith.constant 0 : i32
    return %c0_i32, %c0_i32_0, %c0_i32_1 : i32, i32, i32
  }
  func.func @transform_8(%arg0: i32) -> (i32, i32, i32) {
    %c0_i32 = arith.constant 0 : i32
    %c0_i32_0 = arith.constant 0 : i32
    %c0_i32_1 = arith.constant 0 : i32
    %c0_i32_2 = arith.constant 0 : i32
    return %c0_i32, %c0_i32_0, %c0_i32_1 : i32, i32, i32
  }
  func.func @transform_9(%arg0: i32) -> (i32, i32, i32) {
    %c0_i32 = arith.constant 0 : i32
    %c0_i32_0 = arith.constant 0 : i32
    %c0_i32_1 = arith.constant 0 : i32
    %c0_i32_2 = arith.constant 0 : i32
    return %c0_i32, %c0_i32_0, %c0_i32_1 : i32, i32, i32
  }
  func.func @transform_10(%arg0: i32) -> (i32, i32, i32) {
    %c0_i32 = arith.constant 0 : i32
    %c0_i32_0 = arith.constant 0 : i32
    %c0_i32_1 = arith.constant 0 : i32
    %c0_i32_2 = arith.constant 0 : i32
    return %c0_i32, %c0_i32_0, %c0_i32_1 : i32, i32, i32
  }
  func.func @transform_11(%arg0: i32) -> (i32, i32) {
    %c0_i32 = arith.constant 0 : i32
    %c0_i32_0 = arith.constant 0 : i32
    %c0_i32_1 = arith.constant 0 : i32
    return %c0_i32, %c0_i32_0 : i32, i32
  }
  func.func @transform_12(%arg0: i32) -> (i32, i32) {
    %c0_i32 = arith.constant 0 : i32
    %c0_i32_0 = arith.constant 0 : i32
    %c0_i32_1 = arith.constant 0 : i32
    return %c0_i32, %c0_i32_0 : i32, i32
  }
  func.func @transform_13(%arg0: i32) -> (i32, i32) {
    %c0_i32 = arith.constant 0 : i32
    %c0_i32_0 = arith.constant 0 : i32
    %c0_i32_1 = arith.constant 0 : i32
    return %c0_i32, %c0_i32_0 : i32, i32
  }
  func.func @transform_14(%arg0: i32) -> (i32, i32, i32) {
    %c0_i32 = arith.constant 0 : i32
    %c0_i32_0 = arith.constant 0 : i32
    %c0_i32_1 = arith.constant 0 : i32
    return %arg0, %c0_i32, %c0_i32_0 : i32, i32, i32
  }
}

</mosaic_0001>

<llo_original>
// kernel: tpu_custom_call.1
$region0: #{tpu_custom_call.1}
  #allocation0 [shape = 'u32[]', space=smem, size = 0x4, offset = 0x4, fixed_abs, tag = 'smem constant byte address 0x4 - core index']
  #allocation1 [shape = 'u32[144,128]{1,0:T(1,128)}', space=vmem, size = 0x12000, scoped, tag = 'internal scratch']
  %s0 = inlined_call_operand.vmem [shape: f32[2,8,196], index: 0, kind: input, shape index: {}]
  %s1 = inlined_call_operand.vmem [shape: f32[8,72], index: 1, kind: input, shape index: {}]
  %s2 = inlined_call_operand.vmem [shape: f32[8,1], index: 2, kind: input, shape index: {}]
  %s3 = inlined_call_operand.vmem [shape: f32[8,72], index: 3, kind: input, shape index: {}]
  %s4 = inlined_call_operand.vmem [shape: f32[8,1], index: 4, kind: input, shape index: {}]
  %s5 = inlined_call_operand.vmem [shape: f32[4,72], index: 5, kind: input, shape index: {}]
  %s6 = inlined_call_operand.vmem [shape: f32[4,1], index: 6, kind: input, shape index: {}]
  %s7 = inlined_call_operand.vmem [shape: f32[9,196,196], index: 7, kind: input, shape index: {}]
  %s8 = inlined_call_operand.vmem [shape: f32[4,196,49], index: 8, kind: input, shape index: {}]
  %s9 = inlined_call_operand.vmem [shape: f32[9,49,25], index: 9, kind: input, shape index: {}]
  %s10 = inlined_call_operand.vmem [shape: f32[4,25,1024], index: 10, kind: input, shape index: {}]
  %s11 = inlined_call_operand.vmem [shape: f32[1,1024], index: 11, kind: input, shape index: {}]
  %s12 = inlined_call_operand.vmem [shape: f32[1024,10], index: 12, kind: input, shape index: {}]
  %s13 = inlined_call_operand.vmem [shape: f32[1,10], index: 13, kind: input, shape index: {}]
  %s14 = inlined_call_operand.hbm [shape: f32[2,1,10], index: 14, kind: output, shape index: {}]
  %s15 = sld [smem:[#allocation0]]
  $region89: #{tpu_custom_call.1} parent=0
    _
  %s17 = ssub.s32 1, %s15
  %s18 = scalar_select 0, %s17, %s15
  $region1: #{tpu_custom_call.1} parent=0
    #allocation2 [shape = 'u8[1024]{0}', space=vmem, size = 0x400, scoped, tag = 'output window, operand 0']
    #allocation3 [shape = 's32[2]{0}', space=sflag, size = 0x8, scoped, tag = 'scoped memory for tpu_custom_call.1']
    %19 = vsyncpa [#allocation3], 0
    %s20 = scalar_lea.sflag [#allocation3], 1
    %21 = vsyncpa %s20, 0
    loop: start=0, step=1, limit=4
    $region2: #{tpu_custom_call.1} parent=1 // loop_pre_header
      _
    $region3: #{tpu_custom_call.1} parent=1 // loop_header
      %s23 = sphi 0, %s27
      %p24 = scmp.ge.s32.totalorder %s23, 4
      %s33 = sphi 0, %s35
      %s36 = sphi 0, %s33
      %s37 = sphi 0, %s36
      %s53 = sphi 0, %s37
      %s57 = sphi 0, %s57
      %s59 = sphi 0, %s57
      %s60 = sphi 0, %s59
      %s74 = sphi 0, %s60
      %s78 = sphi 0, %s78
      %s80 = sphi 0, %s78
      %s81 = sphi 0, %s80
      %s95 = sphi 0, %s81
      %s99 = sphi 0, %s99
      %s101 = sphi 0, %s99
      %s102 = sphi 0, %s101
      %s116 = sphi 0, %s102
      %s120 = sphi 0, %s120
      %s122 = sphi 0, %s120
      %s123 = sphi 0, %s122
      %s137 = sphi 0, %s123
      %s141 = sphi 0, %s141
      %s143 = sphi 0, %s141
      %s144 = sphi 0, %s143
      %s158 = sphi 0, %s144
      %s162 = sphi 0, %s162
      %s164 = sphi 0, %s162
      %s165 = sphi 0, %s164
      %s179 = sphi 0, %s165
      %s183 = sphi 0, %s183
      %s185 = sphi 0, %s183
      %s186 = sphi 0, %s185
      %s200 = sphi 0, %s186
      %s204 = sphi 0, %s204
      %s206 = sphi 0, %s204
      %s207 = sphi 0, %s206
      %s221 = sphi 0, %s207
      %s225 = sphi 0, %s225
      %s227 = sphi 0, %s225
      %s228 = sphi 0, %s227
      %s242 = sphi 0, %s228
      %s246 = sphi 0, %s246
      %s248 = sphi 0, %s246
      %s249 = sphi 0, %s248
      %s263 = sphi 0, %s249
      %s267 = sphi 0, %s267
      %s269 = sphi 0, %s267
      %s270 = sphi 0, %s269
      %s284 = sphi 0, %s270
      %s288 = sphi 0, %s288
      %s290 = sphi 0, %s288
      %s291 = sphi 0, %s290
      %s305 = sphi 0, %s291
      %s309 = sphi 0, %s309
      %s311 = sphi 0, %s309
      %s312 = sphi 0, %s311
      %s326 = sphi 0, %s312
      %s332 = sphi 0, %s334
      %s335 = sphi 0, %s332
      %s336 = sphi 0, %s335
      %s352 = sphi 0, %s336
    $region4: #{tpu_custom_call.1} parent=1 // loop_header_branch
      %26 = sbr.rel (%p24) target = $region8
    $region5: #{tpu_custom_call.1} parent=1 // loop_body
      %s28 = ssub.s32 %s23, 1
      %s29 = ssub.s32 %s23, 2
      %s30 = sadd.s32 %s23, 1
      %s31 = ssub.s32 %s23, %s30
      %p32 = scmp.eq.s32.totalorder %s31, 0
      %s34 = sadd.s32 %s33, 1
      %s35 = scalar_select %p32, %s33, %s34
      %p38 = pneg %p32
      %p39 = scmp.eq.s32.totalorder %s23, 1
      %p40 = por %p38, %p39
      %p41 = scmp.ne.s32.totalorder %s33, %s36
      %p42 = scmp.eq.s32.totalorder %s23, 0
      %p43 = por %p41, %p42
      %p44 = scmp.ne.s32.totalorder %s33, %s36
      %p45 = scmp.eq.s32.totalorder %s28, 1
      %p46 = por %p44, %p45
      %p47 = scmp.ne.s32.totalorder %s36, %s37
      %p48 = scmp.eq.s32.totalorder %s28, 0
      %p49 = por %p47, %p48
      %p50 = scmp.ne.s32.totalorder %s36, %s37
      %p51 = scmp.eq.s32.totalorder %s29, 1
      %p52 = por %p50, %p51
      %p54 = scmp.ne.s32.totalorder %s37, %s53
      %p55 = scmp.eq.s32.totalorder %s29, 0
      %p56 = por %p54, %p55
      %s58 = sadd.s32 %s57, 1
      %p61 = scmp.eq.s32.totalorder %s23, 1
      %p62 = scmp.ne.s32.totalorder %s57, %s59
      %p63 = scmp.eq.s32.totalorder %s23, 0
      %p64 = por %p62, %p63
      %p65 = scmp.ne.s32.totalorder %s57, %s59
      %p66 = scmp.eq.s32.totalorder %s28, 1
      %p67 = por %p65, %p66
      %p68 = scmp.ne.s32.totalorder %s59, %s60
      %p69 = scmp.eq.s32.totalorder %s28, 0
      %p70 = por %p68, %p69
      %p71 = scmp.ne.s32.totalorder %s59, %s60
      %p72 = scmp.eq.s32.totalorder %s29, 1
      %p73 = por %p71, %p72
      %p75 = scmp.ne.s32.totalorder %s60, %s74
      %p76 = scmp.eq.s32.totalorder %s29, 0
      %p77 = por %p75, %p76
      %s79 = sadd.s32 %s78, 1
      %p82 = scmp.eq.s32.totalorder %s23, 1
      %p83 = scmp.ne.s32.totalorder %s78, %s80
      %p84 = scmp.eq.s32.totalorder %s23, 0
      %p85 = por %p83, %p84
      %p86 = scmp.ne.s32.totalorder %s78, %s80
      %p87 = scmp.eq.s32.totalorder %s28, 1
      %p88 = por %p86, %p87
      %p89 = scmp.ne.s32.totalorder %s80, %s81
      %p90 = scmp.eq.s32.totalorder %s28, 0
      %p91 = por %p89, %p90
      %p92 = scmp.ne.s32.totalorder %s80, %s81
      %p93 = scmp.eq.s32.totalorder %s29, 1
      %p94 = por %p92, %p93
      %p96 = scmp.ne.s32.totalorder %s81, %s95
      %p97 = scmp.eq.s32.totalorder %s29, 0
      %p98 = por %p96, %p97
      %s100 = sadd.s32 %s99, 1
      %p103 = scmp.eq.s32.totalorder %s23, 1
      %p104 = scmp.ne.s32.totalorder %s99, %s101
      %p105 = scmp.eq.s32.totalorder %s23, 0
      %p106 = por %p104, %p105
      %p107 = scmp.ne.s32.totalorder %s99, %s101
      %p108 = scmp.eq.s32.totalorder %s28, 1
      %p109 = por %p107, %p108
      %p110 = scmp.ne.s32.totalorder %s101, %s102
      %p111 = scmp.eq.s32.totalorder %s28, 0
      %p112 = por %p110, %p111
      %p113 = scmp.ne.s32.totalorder %s101, %s102
      %p114 = scmp.eq.s32.totalorder %s29, 1
      %p115 = por %p113, %p114
      %p117 = scmp.ne.s32.totalorder %s102, %s116
      %p118 = scmp.eq.s32.totalorder %s29, 0
      %p119 = por %p117, %p118
      %s121 = sadd.s32 %s120, 1
      %p124 = scmp.eq.s32.totalorder %s23, 1
      %p125 = scmp.ne.s32.totalorder %s120, %s122
      %p126 = scmp.eq.s32.totalorder %s23, 0
      %p127 = por %p125, %p126
      %p128 = scmp.ne.s32.totalorder %s120, %s122
      %p129 = scmp.eq.s32.totalorder %s28, 1
      %p130 = por %p128, %p129
      %p131 = scmp.ne.s32.totalorder %s122, %s123
      %p132 = scmp.eq.s32.totalorder %s28, 0
      %p133 = por %p131, %p132
      %p134 = scmp.ne.s32.totalorder %s122, %s123
      %p135 = scmp.eq.s32.totalorder %s29, 1
      %p136 = por %p134, %p135
      %p138 = scmp.ne.s32.totalorder %s123, %s137
      %p139 = scmp.eq.s32.totalorder %s29, 0
      %p140 = por %p138, %p139
      %s142 = sadd.s32 %s141, 1
      %p145 = scmp.eq.s32.totalorder %s23, 1
      %p146 = scmp.ne.s32.totalorder %s141, %s143
      %p147 = scmp.eq.s32.totalorder %s23, 0
      %p148 = por %p146, %p147
      %p149 = scmp.ne.s32.totalorder %s141, %s143
      %p150 = scmp.eq.s32.totalorder %s28, 1
      %p151 = por %p149, %p150
      %p152 = scmp.ne.s32.totalorder %s143, %s144
      %p153 = scmp.eq.s32.totalorder %s28, 0
      %p154 = por %p152, %p153
      %p155 = scmp.ne.s32.totalorder %s143, %s144
      %p156 = scmp.eq.s32.totalorder %s29, 1
      %p157 = por %p155, %p156
      %p159 = scmp.ne.s32.totalorder %s144, %s158
      %p160 = scmp.eq.s32.totalorder %s29, 0
      %p161 = por %p159, %p160
      %s163 = sadd.s32 %s162, 1
      %p166 = scmp.eq.s32.totalorder %s23, 1
      %p167 = scmp.ne.s32.totalorder %s162, %s164
      %p168 = scmp.eq.s32.totalorder %s23, 0
      %p169 = por %p167, %p168
      %p170 = scmp.ne.s32.totalorder %s162, %s164
      %p171 = scmp.eq.s32.totalorder %s28, 1
      %p172 = por %p170, %p171
      %p173 = scmp.ne.s32.totalorder %s164, %s165
      %p174 = scmp.eq.s32.totalorder %s28, 0
      %p175 = por %p173, %p174
      %p176 = scmp.ne.s32.totalorder %s164, %s165
      %p177 = scmp.eq.s32.totalorder %s29, 1
      %p178 = por %p176, %p177
      %p180 = scmp.ne.s32.totalorder %s165, %s179
      %p181 = scmp.eq.s32.totalorder %s29, 0
      %p182 = por %p180, %p181
      %s184 = sadd.s32 %s183, 1
      %p187 = scmp.eq.s32.totalorder %s23, 1
      %p188 = scmp.ne.s32.totalorder %s183, %s185
      %p189 = scmp.eq.s32.totalorder %s23, 0
      %p190 = por %p188, %p189
      %p191 = scmp.ne.s32.totalorder %s183, %s185
      %p192 = scmp.eq.s32.totalorder %s28, 1
      %p193 = por %p191, %p192
      %p194 = scmp.ne.s32.totalorder %s185, %s186
      %p195 = scmp.eq.s32.totalorder %s28, 0
      %p196 = por %p194, %p195
      %p197 = scmp.ne.s32.totalorder %s185, %s186
      %p198 = scmp.eq.s32.totalorder %s29, 1
      %p199 = por %p197, %p198
      %p201 = scmp.ne.s32.totalorder %s186, %s200
      %p202 = scmp.eq.s32.totalorder %s29, 0
      %p203 = por %p201, %p202
      %s205 = sadd.s32 %s204, 1
      %p208 = scmp.eq.s32.totalorder %s23, 1
      %p209 = scmp.ne.s32.totalorder %s204, %s206
      %p210 = scmp.eq.s32.totalorder %s23, 0
      %p211 = por %p209, %p210
      %p212 = scmp.ne.s32.totalorder %s204, %s206
      %p213 = scmp.eq.s32.totalorder %s28, 1
      %p214 = por %p212, %p213
      %p215 = scmp.ne.s32.totalorder %s206, %s207
      %p216 = scmp.eq.s32.totalorder %s28, 0
      %p217 = por %p215, %p216
      %p218 = scmp.ne.s32.totalorder %s206, %s207
      %p219 = scmp.eq.s32.totalorder %s29, 1
      %p220 = por %p218, %p219
      %p222 = scmp.ne.s32.totalorder %s207, %s221
      %p223 = scmp.eq.s32.totalorder %s29, 0
      %p224 = por %p222, %p223
      %s226 = sadd.s32 %s225, 1
      %p229 = scmp.eq.s32.totalorder %s23, 1
      %p230 = scmp.ne.s32.totalorder %s225, %s227
      %p231 = scmp.eq.s32.totalorder %s23, 0
      %p232 = por %p230, %p231
      %p233 = scmp.ne.s32.totalorder %s225, %s227
      %p234 = scmp.eq.s32.totalorder %s28, 1
      %p235 = por %p233, %p234
      %p236 = scmp.ne.s32.totalorder %s227, %s228
      %p237 = scmp.eq.s32.totalorder %s28, 0
      %p238 = por %p236, %p237
      %p239 = scmp.ne.s32.totalorder %s227, %s228
      %p240 = scmp.eq.s32.totalorder %s29, 1
      %p241 = por %p239, %p240
      %p243 = scmp.ne.s32.totalorder %s228, %s242
      %p244 = scmp.eq.s32.totalorder %s29, 0
      %p245 = por %p243, %p244
      %s247 = sadd.s32 %s246, 1
      %p250 = scmp.eq.s32.totalorder %s23, 1
      %p251 = scmp.ne.s32.totalorder %s246, %s248
      %p252 = scmp.eq.s32.totalorder %s23, 0
      %p253 = por %p251, %p252
      %p254 = scmp.ne.s32.totalorder %s246, %s248
      %p255 = scmp.eq.s32.totalorder %s28, 1
      %p256 = por %p254, %p255
      %p257 = scmp.ne.s32.totalorder %s248, %s249
      %p258 = scmp.eq.s32.totalorder %s28, 0
      %p259 = por %p257, %p258
      %p260 = scmp.ne.s32.totalorder %s248, %s249
      %p261 = scmp.eq.s32.totalorder %s29, 1
      %p262 = por %p260, %p261
      %p264 = scmp.ne.s32.totalorder %s249, %s263
      %p265 = scmp.eq.s32.totalorder %s29, 0
      %p266 = por %p264, %p265
      %s268 = sadd.s32 %s267, 1
      %p271 = scmp.eq.s32.totalorder %s23, 1
      %p272 = scmp.ne.s32.totalorder %s267, %s269
      %p273 = scmp.eq.s32.totalorder %s23, 0
      %p274 = por %p272, %p273
      %p275 = scmp.ne.s32.totalorder %s267, %s269
      %p276 = scmp.eq.s32.totalorder %s28, 1
      %p277 = por %p275, %p276
      %p278 = scmp.ne.s32.totalorder %s269, %s270
      %p279 = scmp.eq.s32.totalorder %s28, 0
      %p280 = por %p278, %p279
      %p281 = scmp.ne.s32.totalorder %s269, %s270
      %p282 = scmp.eq.s32.totalorder %s29, 1
      %p283 = por %p281, %p282
      %p285 = scmp.ne.s32.totalorder %s270, %s284
      %p286 = scmp.eq.s32.totalorder %s29, 0
      %p287 = por %p285, %p286
      %s289 = sadd.s32 %s288, 1
      %p292 = scmp.eq.s32.totalorder %s23, 1
      %p293 = scmp.ne.s32.totalorder %s288, %s290
      %p294 = scmp.eq.s32.totalorder %s23, 0
      %p295 = por %p293, %p294
      %p296 = scmp.ne.s32.totalorder %s288, %s290
      %p297 = scmp.eq.s32.totalorder %s28, 1
      %p298 = por %p296, %p297
      %p299 = scmp.ne.s32.totalorder %s290, %s291
      %p300 = scmp.eq.s32.totalorder %s28, 0
      %p301 = por %p299, %p300
      %p302 = scmp.ne.s32.totalorder %s290, %s291
      %p303 = scmp.eq.s32.totalorder %s29, 1
      %p304 = por %p302, %p303
      %p306 = scmp.ne.s32.totalorder %s291, %s305
      %p307 = scmp.eq.s32.totalorder %s29, 0
      %p308 = por %p306, %p307
      %s310 = sadd.s32 %s309, 1
      %p313 = scmp.eq.s32.totalorder %s23, 1
      %p314 = scmp.ne.s32.totalorder %s309, %s311
      %p315 = scmp.eq.s32.totalorder %s23, 0
      %p316 = por %p314, %p315
      %p317 = scmp.ne.s32.totalorder %s309, %s311
      %p318 = scmp.eq.s32.totalorder %s28, 1
      %p319 = por %p317, %p318
      %p320 = scmp.ne.s32.totalorder %s311, %s312
      %p321 = scmp.eq.s32.totalorder %s28, 0
      %p322 = por %p320, %p321
      %p323 = scmp.ne.s32.totalorder %s311, %s312
      %p324 = scmp.eq.s32.totalorder %s29, 1
      %p325 = por %p323, %p324
      %p327 = scmp.ne.s32.totalorder %s312, %s326
      %p328 = scmp.eq.s32.totalorder %s29, 0
      %p329 = por %p327, %p328
      %s330 = ssub.s32 %s23, %s30
      %p331 = scmp.eq.s32.totalorder %s330, 0
      %s333 = sadd.s32 %s332, 1
      %s334 = scalar_select %p331, %s332, %s333
      %p337 = pneg %p331
      %p338 = scmp.eq.s32.totalorder %s23, 1
      %p339 = por %p337, %p338
      %p340 = scmp.ne.s32.totalorder %s332, %s335
      %p341 = scmp.eq.s32.totalorder %s23, 0
      %p342 = por %p340, %p341
      %p343 = scmp.ne.s32.totalorder %s332, %s335
      %p344 = scmp.eq.s32.totalorder %s28, 1
      %p345 = por %p343, %p344
      %p346 = scmp.ne.s32.totalorder %s335, %s336
      %p347 = scmp.eq.s32.totalorder %s28, 0
      %p348 = por %p346, %p347
      %p349 = scmp.ne.s32.totalorder %s335, %s336
      %p350 = scmp.eq.s32.totalorder %s29, 1
      %p351 = por %p349, %p350
      %p353 = scmp.ne.s32.totalorder %s336, %s352
      %p354 = scmp.eq.s32.totalorder %s29, 0
      %p355 = por %p353, %p354
      %p356 = scmp.le.s32.totalorder 1, %s23
      %p357 = scmp.lt.s32.totalorder %s23, 3
      %p358 = pnand %p356, %p357
      %p359 = pneg %p358
      // Predicated region
      $region9: #{tpu_custom_call.1} parent=5 // pred_check
        _
      $region10: #{tpu_custom_call.1} parent=5 // pred_check_branch
        %361 = sbr.rel (%p358) target = $region12
      $region11: #{tpu_custom_call.1} parent=5 // pred_region
        %s362 = ssub.s32 %s23, 1
        // Predicated region
        $region13: #{tpu_custom_call.1} parent=11 // pred_check
          %p363 = pneg %p70
        $region14: #{tpu_custom_call.1} parent=11 // pred_check_branch
          %365 = sbr.rel (%p363) target = $region16
        $region15: #{tpu_custom_call.1} parent=11 // pred_region
          _
        $region16: #{tpu_custom_call.1} parent=11 // pred_fallthru
          _
        // Predicated region
        $region17: #{tpu_custom_call.1} parent=11 // pred_check
          %p366 = pneg %p91
        $region18: #{tpu_custom_call.1} parent=11 // pred_check_branch
          %368 = sbr.rel (%p366) target = $region20
        $region19: #{tpu_custom_call.1} parent=11 // pred_region
          _
        $region20: #{tpu_custom_call.1} parent=11 // pred_fallthru
          _
        // Predicated region
        $region21: #{tpu_custom_call.1} parent=11 // pred_check
          %p369 = pneg %p112
        $region22: #{tpu_custom_call.1} parent=11 // pred_check_branch
          %371 = sbr.rel (%p369) target = $region24
        $region23: #{tpu_custom_call.1} parent=11 // pred_region
          _
        $region24: #{tpu_custom_call.1} parent=11 // pred_fallthru
          _
        // Predicated region
        $region25: #{tpu_custom_call.1} parent=11 // pred_check
          %p372 = pneg %p133
        $region26: #{tpu_custom_call.1} parent=11 // pred_check_branch
          %374 = sbr.rel (%p372) target = $region28
        $region27: #{tpu_custom_call.1} parent=11 // pred_region
          _
        $region28: #{tpu_custom_call.1} parent=11 // pred_fallthru
          _
        // Predicated region
        $region29: #{tpu_custom_call.1} parent=11 // pred_check
          %p375 = pneg %p154
        $region30: #{tpu_custom_call.1} parent=11 // pred_check_branch
          %377 = sbr.rel (%p375) target = $region32
        $region31: #{tpu_custom_call.1} parent=11 // pred_region
          _
        $region32: #{tpu_custom_call.1} parent=11 // pred_fallthru
          _
        // Predicated region
        $region33: #{tpu_custom_call.1} parent=11 // pred_check
          %p378 = pneg %p175
        $region34: #{tpu_custom_call.1} parent=11 // pred_check_branch
          %380 = sbr.rel (%p378) target = $region36
        $region35: #{tpu_custom_call.1} parent=11 // pred_region
          _
        $region36: #{tpu_custom_call.1} parent=11 // pred_fallthru
          _
        // Predicated region
        $region37: #{tpu_custom_call.1} parent=11 // pred_check
          %p381 = pneg %p196
        $region38: #{tpu_custom_call.1} parent=11 // pred_check_branch
          %383 = sbr.rel (%p381) target = $region40
        $region39: #{tpu_custom_call.1} parent=11 // pred_region
          _
        $region40: #{tpu_custom_call.1} parent=11 // pred_fallthru
          _
        // Predicated region
        $region41: #{tpu_custom_call.1} parent=11 // pred_check
          %p384 = pneg %p217
        $region42: #{tpu_custom_call.1} parent=11 // pred_check_branch
          %386 = sbr.rel (%p384) target = $region44
        $region43: #{tpu_custom_call.1} parent=11 // pred_region
          _
        $region44: #{tpu_custom_call.1} parent=11 // pred_fallthru
          _
        // Predicated region
        $region45: #{tpu_custom_call.1} parent=11 // pred_check
          %p387 = pneg %p238
        $region46: #{tpu_custom_call.1} parent=11 // pred_check_branch
          %389 = sbr.rel (%p387) target = $region48
        $region47: #{tpu_custom_call.1} parent=11 // pred_region
          _
        $region48: #{tpu_custom_call.1} parent=11 // pred_fallthru
          _
        // Predicated region
        $region49: #{tpu_custom_call.1} parent=11 // pred_check
          %p390 = pneg %p259
        $region50: #{tpu_custom_call.1} parent=11 // pred_check_branch
          %392 = sbr.rel (%p390) target = $region52
        $region51: #{tpu_custom_call.1} parent=11 // pred_region
          _
        $region52: #{tpu_custom_call.1} parent=11 // pred_fallthru
          _
        // Predicated region
        $region53: #{tpu_custom_call.1} parent=11 // pred_check
          %p393 = pneg %p280
        $region54: #{tpu_custom_call.1} parent=11 // pred_check_branch
          %395 = sbr.rel (%p393) target = $region56
        $region55: #{tpu_custom_call.1} parent=11 // pred_region
          _
        $region56: #{tpu_custom_call.1} parent=11 // pred_fallthru
          _
        // Predicated region
        $region57: #{tpu_custom_call.1} parent=11 // pred_check
          %p396 = pneg %p301
        $region58: #{tpu_custom_call.1} parent=11 // pred_check_branch
          %398 = sbr.rel (%p396) target = $region60
        $region59: #{tpu_custom_call.1} parent=11 // pred_region
          _
        $region60: #{tpu_custom_call.1} parent=11 // pred_fallthru
          _
        // Predicated region
        $region61: #{tpu_custom_call.1} parent=11 // pred_check
          %p399 = pneg %p322
        $region62: #{tpu_custom_call.1} parent=11 // pred_check_branch
          %401 = sbr.rel (%p399) target = $region64
        $region63: #{tpu_custom_call.1} parent=11 // pred_region
          _
        $region64: #{tpu_custom_call.1} parent=11 // pred_fallthru
          _
      $region12: #{tpu_custom_call.1} parent=5 // pred_fallthru
        _
      %p402 = scmp.lt.s32.totalorder %s23, 2
      // Predicated region
      $region65: #{tpu_custom_call.1} parent=5 // pred_check
        %p403 = pneg %p402
      $region66: #{tpu_custom_call.1} parent=5 // pred_check_branch
        %405 = sbr.rel (%p403) target = $region68
      $region67: #{tpu_custom_call.1} parent=5 // pred_region
        // Predicated region
        $region69: #{tpu_custom_call.1} parent=67 // pred_check
          %p406 = pneg %p43
        $region70: #{tpu_custom_call.1} parent=67 // pred_check_branch
          %408 = sbr.rel (%p406) target = $region72
        $region71: #{tpu_custom_call.1} parent=67 // pred_region
          %p409 = scmp.lt.s32.totalorder %s23, 1
          %s410 = scalar_select %p409, %s23, 1
          %s411 = smul.addr %s410, 2
          %s412 = smul.addr %s411, 8
          %s413 = scalar_lea.vmem %s0, %s412
        $region72: #{tpu_custom_call.1} parent=67 // pred_fallthru
          _
      $region68: #{tpu_custom_call.1} parent=5 // pred_fallthru
        _
      %p414 = scmp.le.s32.totalorder 1, %s23
      %p415 = scmp.lt.s32.totalorder %s23, 3
      %p416 = pnand %p414, %p415
      %p417 = pneg %p416
      // Predicated region
      $region73: #{tpu_custom_call.1} parent=5 // pred_check
        _
      $region74: #{tpu_custom_call.1} parent=5 // pred_check_branch
        %419 = sbr.rel (%p416) target = $region76
      $region75: #{tpu_custom_call.1} parent=5 // pred_region
        %s420 = ssub.s32 %s23, 1
        %p421 = scmp.lt.s32.totalorder %s28, 1
        %s422 = scalar_select %p421, %s28, 1
        %s423 = smul.addr %s422, 2
        %s424 = smul.addr %s423, 8
        %s425 = scalar_lea.vmem %s0, %s424
        %p426 = pneg %p49
        %p427 = pneg %p46
        %p428 = pneg %p70
        %p429 = pneg %p67
        %p430 = pneg %p91
        %p431 = pneg %p88
        %p432 = pneg %p112
        %p433 = pneg %p109
        %p434 = pneg %p133
        %p435 = pneg %p130
        %p436 = pneg %p154
        %p437 = pneg %p151
        %p438 = pneg %p175
        %p439 = pneg %p172
        %p440 = pneg %p196
        %p441 = pneg %p193
        %p442 = pneg %p217
        %p443 = pneg %p214
        %p444 = pneg %p238
        %p445 = pneg %p235
        %p446 = pneg %p259
        %p447 = pneg %p256
        %p448 = pneg %p280
        %p449 = pneg %p277
        %p450 = pneg %p301
        %p451 = pneg %p298
        %p452 = pneg %p322
        %p453 = pneg %p319
        %p454 = pneg %p348
        %p455 = pneg %p345
        %s456 = sand.u32 %s335, 1
        %s457 = scalar_lea.sflag [#allocation3], %s456
        %s458 = sand.u32 %s335, 1
        %s459 = scalar_lea.vmem [#allocation2], %s458
        %p460 = scmp.lt.s32.totalorder %s28, 1
        %s461 = scalar_select %p460, %s28, 1
        %s462 = smul.addr %s461, 2
        %s463 = smul.addr %s462, 8
        %s464 = scalar_lea.vmem %s0, %s463
        %v465 = vld [vmem:[%s464] sm:$0xff]
        %v466 = vld [vmem:[%s464 + $0x8] sm:$0xff]
        %v467 = vld [vmem:[%s7] sm:$0xff]
        %v468 = vld [vmem:[%s7 + $0x8] sm:$0xff]
        %v469 = vld [vmem:[%s7 + $0x10] sm:$0xff]
        %v470 = vld [vmem:[%s7 + $0x18] sm:$0xff]
        %v471 = vld [vmem:[%s7 + $0x20] sm:$0xff]
        %v472 = vld [vmem:[%s7 + $0x28] sm:$0xff]
        %v473 = vld [vmem:[%s7 + $0x30] sm:$0xff]
        %v474 = vld [vmem:[%s7 + $0x38] sm:$0xff]
        %v475 = vld [vmem:[%s7 + $0x40] sm:$0xff]
        %v476 = vld [vmem:[%s7 + $0x48] sm:$0xff]
        %v477 = vld [vmem:[%s7 + $0x50] sm:$0xff]
        %v478 = vld [vmem:[%s7 + $0x58] sm:$0xff]
        %v479 = vld [vmem:[%s7 + $0x60] sm:$0xff]
        %v480 = vld [vmem:[%s7 + $0x68] sm:$0xff]
        %v481 = vld [vmem:[%s7 + $0x70] sm:$0xff]
        %v482 = vld [vmem:[%s7 + $0x78] sm:$0xff]
        %v483 = vld [vmem:[%s7 + $0x80] sm:$0xff]
        %v484 = vld [vmem:[%s7 + $0x88] sm:$0xff]
        %v485 = vld [vmem:[%s7 + $0x90] sm:$0xff]
        %v486 = vld [vmem:[%s7 + $0x98] sm:$0xff]
        %v487 = vld [vmem:[%s7 + $0xa0] sm:$0xff]
        %v488 = vld [vmem:[%s7 + $0xa8] sm:$0xff]
        %v489 = vld [vmem:[%s7 + $0xb0] sm:$0xff]
        %v490 = vld [vmem:[%s7 + $0xb8] sm:$0xff]
        %v491 = vld [vmem:[%s7 + $0xc0] sm:$0xff]
        %v492 = vld [vmem:[%s7 + $0xc8] sm:$0xff]
        %v493 = vld [vmem:[%s7 + $0xd0] sm:$0xff]
        %v494 = vld [vmem:[%s7 + $0xd8] sm:$0xff]
        %v495 = vld [vmem:[%s7 + $0xe0] sm:$0xff]
        %v496 = vld [vmem:[%s7 + $0xe8] sm:$0xff]
        %v497 = vld [vmem:[%s7 + $0xf0] sm:$0xff]
        %v498 = vld [vmem:[%s7 + $0xf8] sm:$0xff]
        %v499 = vld [vmem:[%s7 + $0x100] sm:$0xff]
        %v500 = vld [vmem:[%s7 + $0x108] sm:$0xff]
        %v501 = vld [vmem:[%s7 + $0x110] sm:$0xff]
        %v502 = vld [vmem:[%s7 + $0x118] sm:$0xff]
        %v503 = vld [vmem:[%s7 + $0x120] sm:$0xff]
        %v504 = vld [vmem:[%s7 + $0x128] sm:$0xff]
        %v505 = vld [vmem:[%s7 + $0x130] sm:$0xff]
        %v506 = vld [vmem:[%s7 + $0x138] sm:$0xff]
        %v507 = vld [vmem:[%s7 + $0x140] sm:$0xff]
        %v508 = vld [vmem:[%s7 + $0x148] sm:$0xff]
        %v509 = vld [vmem:[%s7 + $0x150] sm:$0xff]
        %v510 = vld [vmem:[%s7 + $0x158] sm:$0xff]
        %v511 = vld [vmem:[%s7 + $0x160] sm:$0xff]
        %v512 = vld [vmem:[%s7 + $0x168] sm:$0xff]
        %v513 = vld [vmem:[%s7 + $0x170] sm:$0xff]
        %v514 = vld [vmem:[%s7 + $0x178] sm:$0xff]
        %v515 = vld [vmem:[%s7 + $0x180] sm:$0xf]
        %v516 = vld [vmem:[%s7 + $0x188] sm:$0xf]
        %vm517 = vcmask 556032
        %v519 = vsel %vm517, %v466, 0
        %vm521 = vcmask 1043456
        %v523 = vsel %vm521, %v515, 0
        %v526 = vsel %vm521, %v516, 0
        %528 = vmatprep.subr.mxu0 %v468
        %529 = vmatpush1.msra.mxu0 %v467
        %530 = vmatprep.subr.mxu0 %v470
        %531 = vmatpush1.msra.mxu0 %v469
        %532 = vmatprep.subr.mxu0 %v472
        %533 = vmatpush1.msra.mxu0 %v471
        %534 = vmatprep.subr.mxu0 %v474
        %535 = vmatpush1.msra.mxu0 %v473
        %536 = vmatprep.subr.mxu0 %v476
        %537 = vmatpush1.msra.mxu0 %v475
        %538 = vmatprep.subr.mxu0 %v478
        %539 = vmatpush1.msra.mxu0 %v477
        %540 = vmatprep.subr.mxu0 %v480
        %541 = vmatpush1.msra.mxu0 %v479
        %542 = vmatprep.subr.mxu0 %v482
        %543 = vmatpush1.msra.mxu0 %v481
        %544 = vmatprep.subr.mxu0 %v484
        %545 = vmatpush1.msra.mxu0 %v483
        %546 = vmatprep.subr.mxu0 %v486
        %547 = vmatpush1.msra.mxu0 %v485
        %548 = vmatprep.subr.mxu0 %v488
        %549 = vmatpush1.msra.mxu0 %v487
        %550 = vmatprep.subr.mxu0 %v490
        %551 = vmatpush1.msra.mxu0 %v489
        %552 = vmatprep.subr.mxu0 %v492
        %553 = vmatpush1.msra.mxu0 %v491
        %554 = vmatprep.subr.mxu0 %v494
        %555 = vmatpush1.msra.mxu0 %v493
        %556 = vmatprep.subr.mxu0 %v496
        %557 = vmatpush1.msra.mxu0 %v495
        %558 = vmatprep.subr.mxu0 %v498
        %559 = vmatpush1.msra.mxu0 %v497
        %560 = vmatprep.subr.mxu0 %v500
        %561 = vmatpush1.msra.mxu0 %v499
        %562 = vmatprep.subr.mxu0 %v502
        %563 = vmatpush1.msra.mxu0 %v501
        %564 = vmatprep.subr.mxu0 %v504
        %565 = vmatpush1.msra.mxu0 %v503
        %566 = vmatprep.subr.mxu0 %v506
        %567 = vmatpush1.msra.mxu0 %v505
        %568 = vmatprep.subr.mxu0 %v508
        %569 = vmatpush1.msra.mxu0 %v507
        %570 = vmatprep.subr.mxu0 %v510
        %571 = vmatpush1.msra.mxu0 %v509
        %572 = vmatprep.subr.mxu0 %v512
        %573 = vmatpush1.msra.mxu0 %v511
        %574 = vmatprep.subr.mxu0 %v514
        %575 = vmatpush1.msra.mxu0 %v513
        %576 = vmatprep.subr.mxu0 %v526
        %577 = vmatpush1.msra.mxu0 %v523
        %578 = vmatprep.subr.mxu0 0.0
        %579 = vmatpush1.msra.mxu0 0.0
        %580 = vmatprep.subr.mxu0 0.0
        %581 = vmatpush1.msra.mxu0 0.0
        %582 = vmatprep.subr.mxu0 0.0
        %583 = vmatpush1.msra.mxu0 0.0
        %584 = vmatprep.subr.mxu0 0.0
        %585 = vmatpush1.msra.mxu0 0.0
        %586 = vmatprep.subr.mxu0 0.0
        %587 = vmatpush1.msra.mxu0 0.0
        %588 = vmatprep.subr.mxu0 0.0
        %589 = vmatpush1.msra.mxu0 0.0
        %590 = vmatprep.subr.mxu0 0.0
        %591 = vmatpush1.msra.mxu0 0.0
        %592 = vmatprep.mubr.f32.mxu0 %v519
        %593 = vmatmul.mubr.f32.gmra.mrb[0].mxu0 %v465
        %v594 = vpop.f32.mrb[0].mxu0
        %v595 = vadd.f32 0.0, %v594
        %v596 = vpop.f32.mrb[0].mxu0
        %v597 = vadd.f32 0.0, %v596
        %598 = vdwg.mxu0
        %s599 = scalar_lea.vmem %s7, 400
        %v600 = vld [vmem:[%s599] sm:$0xff]
        %v601 = vld [vmem:[%s599 + $0x8] sm:$0xff]
        %v602 = vld [vmem:[%s599 + $0x10] sm:$0xff]
        %v603 = vld [vmem:[%s599 + $0x18] sm:$0xff]
        %v604 = vld [vmem:[%s599 + $0x20] sm:$0xff]
        %v605 = vld [vmem:[%s599 + $0x28] sm:$0xff]
        %v606 = vld [vmem:[%s599 + $0x30] sm:$0xff]
        %v607 = vld [vmem:[%s599 + $0x38] sm:$0xff]
        %v608 = vld [vmem:[%s599 + $0x40] sm:$0xff]
        %v609 = vld [vmem:[%s599 + $0x48] sm:$0xff]
        %v610 = vld [vmem:[%s599 + $0x50] sm:$0xff]
        %v611 = vld [vmem:[%s599 + $0x58] sm:$0xff]
        %v612 = vld [vmem:[%s599 + $0x60] sm:$0xff]
        %v613 = vld [vmem:[%s599 + $0x68] sm:$0xff]
        %v614 = vld [vmem:[%s599 + $0x70] sm:$0xff]
        %v615 = vld [vmem:[%s599 + $0x78] sm:$0xff]
        %v616 = vld [vmem:[%s599 + $0x80] sm:$0xff]
        %v617 = vld [vmem:[%s599 + $0x88] sm:$0xff]
        %v618 = vld [vmem:[%s599 + $0x90] sm:$0xff]
        %v619 = vld [vmem:[%s599 + $0x98] sm:$0xff]
        %v620 = vld [vmem:[%s599 + $0xa0] sm:$0xff]
        %v621 = vld [vmem:[%s599 + $0xa8] sm:$0xff]
        %v622 = vld [vmem:[%s599 + $0xb0] sm:$0xff]
        %v623 = vld [vmem:[%s599 + $0xb8] sm:$0xff]
        %v624 = vld [vmem:[%s599 + $0xc0] sm:$0xff]
        %v625 = vld [vmem:[%s599 + $0xc8] sm:$0xff]
        %v626 = vld [vmem:[%s599 + $0xd0] sm:$0xff]
        %v627 = vld [vmem:[%s599 + $0xd8] sm:$0xff]
        %v628 = vld [vmem:[%s599 + $0xe0] sm:$0xff]
        %v629 = vld [vmem:[%s599 + $0xe8] sm:$0xff]
        %v630 = vld [vmem:[%s599 + $0xf0] sm:$0xff]
        %v631 = vld [vmem:[%s599 + $0xf8] sm:$0xff]
        %v632 = vld [vmem:[%s599 + $0x100] sm:$0xff]
        %v633 = vld [vmem:[%s599 + $0x108] sm:$0xff]
        %v634 = vld [vmem:[%s599 + $0x110] sm:$0xff]
        %v635 = vld [vmem:[%s599 + $0x118] sm:$0xff]
        %v636 = vld [vmem:[%s599 + $0x120] sm:$0xff]
        %v637 = vld [vmem:[%s599 + $0x128] sm:$0xff]
        %v638 = vld [vmem:[%s599 + $0x130] sm:$0xff]
        %v639 = vld [vmem:[%s599 + $0x138] sm:$0xff]
        %v640 = vld [vmem:[%s599 + $0x140] sm:$0xff]
        %v641 = vld [vmem:[%s599 + $0x148] sm:$0xff]
        %v642 = vld [vmem:[%s599 + $0x150] sm:$0xff]
        %v643 = vld [vmem:[%s599 + $0x158] sm:$0xff]
        %v644 = vld [vmem:[%s599 + $0x160] sm:$0xff]
        %v645 = vld [vmem:[%s599 + $0x168] sm:$0xff]
        %v646 = vld [vmem:[%s599 + $0x170] sm:$0xff]
        %v647 = vld [vmem:[%s599 + $0x178] sm:$0xff]
        %v648 = vld [vmem:[%s599 + $0x180] sm:$0xf]
        %v649 = vld [vmem:[%s599 + $0x188] sm:$0xf]
        %v651 = vsel %vm521, %v648, 0
        %v654 = vsel %vm521, %v649, 0
        %656 = vmatprep.subr.mxu0 %v601
        %657 = vmatpush1.msra.mxu0 %v600
        %658 = vmatprep.subr.mxu0 %v603
        %659 = vmatpush1.msra.mxu0 %v602
        %660 = vmatprep.subr.mxu0 %v605
        %661 = vmatpush1.msra.mxu0 %v604
        %662 = vmatprep.subr.mxu0 %v607
        %663 = vmatpush1.msra.mxu0 %v606
        %664 = vmatprep.subr.mxu0 %v609
        %665 = vmatpush1.msra.mxu0 %v608
        %666 = vmatprep.subr.mxu0 %v611
        %667 = vmatpush1.msra.mxu0 %v610
        %668 = vmatprep.subr.mxu0 %v613
        %669 = vmatpush1.msra.mxu0 %v612
        %670 = vmatprep.subr.mxu0 %v615
        %671 = vmatpush1.msra.mxu0 %v614
        %672 = vmatprep.subr.mxu0 %v617
        %673 = vmatpush1.msra.mxu0 %v616
        %674 = vmatprep.subr.mxu0 %v619
        %675 = vmatpush1.msra.mxu0 %v618
        %676 = vmatprep.subr.mxu0 %v621
        %677 = vmatpush1.msra.mxu0 %v620
        %678 = vmatprep.subr.mxu0 %v623
        %679 = vmatpush1.msra.mxu0 %v622
        %680 = vmatprep.subr.mxu0 %v625
        %681 = vmatpush1.msra.mxu0 %v624
        %682 = vmatprep.subr.mxu0 %v627
        %683 = vmatpush1.msra.mxu0 %v626
        %684 = vmatprep.subr.mxu0 %v629
        %685 = vmatpush1.msra.mxu0 %v628
        %686 = vmatprep.subr.mxu0 %v631
        %687 = vmatpush1.msra.mxu0 %v630
        %688 = vmatprep.subr.mxu0 %v633
        %689 = vmatpush1.msra.mxu0 %v632
        %690 = vmatprep.subr.mxu0 %v635
        %691 = vmatpush1.msra.mxu0 %v634
        %692 = vmatprep.subr.mxu0 %v637
        %693 = vmatpush1.msra.mxu0 %v636
        %694 = vmatprep.subr.mxu0 %v639
        %695 = vmatpush1.msra.mxu0 %v638
        %696 = vmatprep.subr.mxu0 %v641
        %697 = vmatpush1.msra.mxu0 %v640
        %698 = vmatprep.subr.mxu0 %v643
        %699 = vmatpush1.msra.mxu0 %v642
        %700 = vmatprep.subr.mxu0 %v645
        %701 = vmatpush1.msra.mxu0 %v644
        %702 = vmatprep.subr.mxu0 %v647
        %703 = vmatpush1.msra.mxu0 %v646
        %704 = vmatprep.subr.mxu0 %v654
        %705 = vmatpush1.msra.mxu0 %v651
        %706 = vmatprep.subr.mxu0 0.0
        %707 = vmatpush1.msra.mxu0 0.0
        %708 = vmatprep.subr.mxu0 0.0
        %709 = vmatpush1.msra.mxu0 0.0
        %710 = vmatprep.subr.mxu0 0.0
        %711 = vmatpush1.msra.mxu0 0.0
        %712 = vmatprep.subr.mxu0 0.0
        %713 = vmatpush1.msra.mxu0 0.0
        %714 = vmatprep.subr.mxu0 0.0
        %715 = vmatpush1.msra.mxu0 0.0
        %716 = vmatprep.subr.mxu0 0.0
        %717 = vmatpush1.msra.mxu0 0.0
        %718 = vmatprep.subr.mxu0 0.0
        %719 = vmatpush1.msra.mxu0 0.0
        %720 = vmatprep.mubr.f32.mxu0 %v519
        %721 = vmatmul.mubr.f32.gmra.mrb[0].mxu0 %v465
        %v722 = vpop.f32.mrb[0].mxu0
        %v723 = vadd.f32 0.0, %v722
        %v724 = vpop.f32.mrb[0].mxu0
        %v725 = vadd.f32 0.0, %v724
        %726 = vdwg.mxu0
        %s727 = scalar_lea.vmem %s7, 800
        %v728 = vld [vmem:[%s727] sm:$0xff]
        %v729 = vld [vmem:[%s727 + $0x8] sm:$0xff]
        %v730 = vld [vmem:[%s727 + $0x10] sm:$0xff]
        %v731 = vld [vmem:[%s727 + $0x18] sm:$0xff]
        %v732 = vld [vmem:[%s727 + $0x20] sm:$0xff]
        %v733 = vld [vmem:[%s727 + $0x28] sm:$0xff]
        %v734 = vld [vmem:[%s727 + $0x30] sm:$0xff]
        %v735 = vld [vmem:[%s727 + $0x38] sm:$0xff]
        %v736 = vld [vmem:[%s727 + $0x40] sm:$0xff]
        %v737 = vld [vmem:[%s727 + $0x48] sm:$0xff]
        %v738 = vld [vmem:[%s727 + $0x50] sm:$0xff]
        %v739 = vld [vmem:[%s727 + $0x58] sm:$0xff]
        %v740 = vld [vmem:[%s727 + $0x60] sm:$0xff]
        %v741 = vld [vmem:[%s727 + $0x68] sm:$0xff]
        %v742 = vld [vmem:[%s727 + $0x70] sm:$0xff]
        %v743 = vld [vmem:[%s727 + $0x78] sm:$0xff]
        %v744 = vld [vmem:[%s727 + $0x80] sm:$0xff]
        %v745 = vld [vmem:[%s727 + $0x88] sm:$0xff]
        %v746 = vld [vmem:[%s727 + $0x90] sm:$0xff]
        %v747 = vld [vmem:[%s727 + $0x98] sm:$0xff]
        %v748 = vld [vmem:[%s727 + $0xa0] sm:$0xff]
        %v749 = vld [vmem:[%s727 + $0xa8] sm:$0xff]
        %v750 = vld [vmem:[%s727 + $0xb0] sm:$0xff]
        %v751 = vld [vmem:[%s727 + $0xb8] sm:$0xff]
        %v752 = vld [vmem:[%s727 + $0xc0] sm:$0xff]
        %v753 = vld [vmem:[%s727 + $0xc8] sm:$0xff]
        %v754 = vld [vmem:[%s727 + $0xd0] sm:$0xff]
        %v755 = vld [vmem:[%s727 + $0xd8] sm:$0xff]
        %v756 = vld [vmem:[%s727 + $0xe0] sm:$0xff]
        %v757 = vld [vmem:[%s727 + $0xe8] sm:$0xff]
        %v758 = vld [vmem:[%s727 + $0xf0] sm:$0xff]
        %v759 = vld [vmem:[%s727 + $0xf8] sm:$0xff]
        %v760 = vld [vmem:[%s727 + $0x100] sm:$0xff]
        %v761 = vld [vmem:[%s727 + $0x108] sm:$0xff]
        %v762 = vld [vmem:[%s727 + $0x110] sm:$0xff]
        %v763 = vld [vmem:[%s727 + $0x118] sm:$0xff]
        %v764 = vld [vmem:[%s727 + $0x120] sm:$0xff]
        %v765 = vld [vmem:[%s727 + $0x128] sm:$0xff]
        %v766 = vld [vmem:[%s727 + $0x130] sm:$0xff]
        %v767 = vld [vmem:[%s727 + $0x138] sm:$0xff]
        %v768 = vld [vmem:[%s727 + $0x140] sm:$0xff]
        %v769 = vld [vmem:[%s727 + $0x148] sm:$0xff]
        %v770 = vld [vmem:[%s727 + $0x150] sm:$0xff]
        %v771 = vld [vmem:[%s727 + $0x158] sm:$0xff]
        %v772 = vld [vmem:[%s727 + $0x160] sm:$0xff]
        %v773 = vld [vmem:[%s727 + $0x168] sm:$0xff]
        %v774 = vld [vmem:[%s727 + $0x170] sm:$0xff]
        %v775 = vld [vmem:[%s727 + $0x178] sm:$0xff]
        %v776 = vld [vmem:[%s727 + $0x180] sm:$0xf]
        %v777 = vld [vmem:[%s727 + $0x188] sm:$0xf]
        %v779 = vsel %vm521, %v776, 0
        %v782 = vsel %vm521, %v777, 0
        %784 = vmatprep.subr.mxu0 %v729
        %785 = vmatpush1.msra.mxu0 %v728
        %786 = vmatprep.subr.mxu0 %v731
        %787 = vmatpush1.msra.mxu0 %v730
        %788 = vmatprep.subr.mxu0 %v733
        %789 = vmatpush1.msra.mxu0 %v732
        %790 = vmatprep.subr.mxu0 %v735
        %791 = vmatpush1.msra.mxu0 %v734
        %792 = vmatprep.subr.mxu0 %v737
        %793 = vmatpush1.msra.mxu0 %v736
        %794 = vmatprep.subr.mxu0 %v739
        %795 = vmatpush1.msra.mxu0 %v738
        %796 = vmatprep.subr.mxu0 %v741
        %797 = vmatpush1.msra.mxu0 %v740
        %798 = vmatprep.subr.mxu0 %v743
        %799 = vmatpush1.msra.mxu0 %v742
        %800 = vmatprep.subr.mxu0 %v745
        %801 = vmatpush1.msra.mxu0 %v744
        %802 = vmatprep.subr.mxu0 %v747
        %803 = vmatpush1.msra.mxu0 %v746
        %804 = vmatprep.subr.mxu0 %v749
        %805 = vmatpush1.msra.mxu0 %v748
        %806 = vmatprep.subr.mxu0 %v751
        %807 = vmatpush1.msra.mxu0 %v750
        %808 = vmatprep.subr.mxu0 %v753
        %809 = vmatpush1.msra.mxu0 %v752
        %810 = vmatprep.subr.mxu0 %v755
        %811 = vmatpush1.msra.mxu0 %v754
        %812 = vmatprep.subr.mxu0 %v757
        %813 = vmatpush1.msra.mxu0 %v756
        %814 = vmatprep.subr.mxu0 %v759
        %815 = vmatpush1.msra.mxu0 %v758
        %816 = vmatprep.subr.mxu0 %v761
        %817 = vmatpush1.msra.mxu0 %v760
        %818 = vmatprep.subr.mxu0 %v763
        %819 = vmatpush1.msra.mxu0 %v762
        %820 = vmatprep.subr.mxu0 %v765
        %821 = vmatpush1.msra.mxu0 %v764
        %822 = vmatprep.subr.mxu0 %v767
        %823 = vmatpush1.msra.mxu0 %v766
        %824 = vmatprep.subr.mxu0 %v769
        %825 = vmatpush1.msra.mxu0 %v768
        %826 = vmatprep.subr.mxu0 %v771
        %827 = vmatpush1.msra.mxu0 %v770
        %828 = vmatprep.subr.mxu0 %v773
        %829 = vmatpush1.msra.mxu0 %v772
        %830 = vmatprep.subr.mxu0 %v775
        %831 = vmatpush1.msra.mxu0 %v774
        %832 = vmatprep.subr.mxu0 %v782
        %833 = vmatpush1.msra.mxu0 %v779
        %834 = vmatprep.subr.mxu0 0.0
        %835 = vmatpush1.msra.mxu0 0.0
        %836 = vmatprep.subr.mxu0 0.0
        %837 = vmatpush1.msra.mxu0 0.0
        %838 = vmatprep.subr.mxu0 0.0
        %839 = vmatpush1.msra.mxu0 0.0
        %840 = vmatprep.subr.mxu0 0.0
        %841 = vmatpush1.msra.mxu0 0.0
        %842 = vmatprep.subr.mxu0 0.0
        %843 = vmatpush1.msra.mxu0 0.0
        %844 = vmatprep.subr.mxu0 0.0
        %845 = vmatpush1.msra.mxu0 0.0
        %846 = vmatprep.subr.mxu0 0.0
        %847 = vmatpush1.msra.mxu0 0.0
        %848 = vmatprep.mubr.f32.mxu0 %v519
        %849 = vmatmul.mubr.f32.gmra.mrb[0].mxu0 %v465
        %v850 = vpop.f32.mrb[0].mxu0
        %v851 = vadd.f32 0.0, %v850
        %v852 = vpop.f32.mrb[0].mxu0
        %v853 = vadd.f32 0.0, %v852
        %854 = vdwg.mxu0
        %s855 = scalar_lea.vmem %s7, 1200
        %v856 = vld [vmem:[%s855] sm:$0xff]
        %v857 = vld [vmem:[%s855 + $0x8] sm:$0xff]
        %v858 = vld [vmem:[%s855 + $0x10] sm:$0xff]
        %v859 = vld [vmem:[%s855 + $0x18] sm:$0xff]
        %v860 = vld [vmem:[%s855 + $0x20] sm:$0xff]
        %v861 = vld [vmem:[%s855 + $0x28] sm:$0xff]
        %v862 = vld [vmem:[%s855 + $0x30] sm:$0xff]
        %v863 = vld [vmem:[%s855 + $0x38] sm:$0xff]
        %v864 = vld [vmem:[%s855 + $0x40] sm:$0xff]
        %v865 = vld [vmem:[%s855 + $0x48] sm:$0xff]
        %v866 = vld [vmem:[%s855 + $0x50] sm:$0xff]
        %v867 = vld [vmem:[%s855 + $0x58] sm:$0xff]
        %v868 = vld [vmem:[%s855 + $0x60] sm:$0xff]
        %v869 = vld [vmem:[%s855 + $0x68] sm:$0xff]
        %v870 = vld [vmem:[%s855 + $0x70] sm:$0xff]
        %v871 = vld [vmem:[%s855 + $0x78] sm:$0xff]
        %v872 = vld [vmem:[%s855 + $0x80] sm:$0xff]
        %v873 = vld [vmem:[%s855 + $0x88] sm:$0xff]
        %v874 = vld [vmem:[%s855 + $0x90] sm:$0xff]
        %v875 = vld [vmem:[%s855 + $0x98] sm:$0xff]
        %v876 = vld [vmem:[%s855 + $0xa0] sm:$0xff]
        %v877 = vld [vmem:[%s855 + $0xa8] sm:$0xff]
        %v878 = vld [vmem:[%s855 + $0xb0] sm:$0xff]
        %v879 = vld [vmem:[%s855 + $0xb8] sm:$0xff]
        %v880 = vld [vmem:[%s855 + $0xc0] sm:$0xff]
        %v881 = vld [vmem:[%s855 + $0xc8] sm:$0xff]
        %v882 = vld [vmem:[%s855 + $0xd0] sm:$0xff]
        %v883 = vld [vmem:[%s855 + $0xd8] sm:$0xff]
        %v884 = vld [vmem:[%s855 + $0xe0] sm:$0xff]
        %v885 = vld [vmem:[%s855 + $0xe8] sm:$0xff]
        %v886 = vld [vmem:[%s855 + $0xf0] sm:$0xff]
        %v887 = vld [vmem:[%s855 + $0xf8] sm:$0xff]
        %v888 = vld [vmem:[%s855 + $0x100] sm:$0xff]
        %v889 = vld [vmem:[%s855 + $0x108] sm:$0xff]
        %v890 = vld [vmem:[%s855 + $0x110] sm:$0xff]
        %v891 = vld [vmem:[%s855 + $0x118] sm:$0xff]
        %v892 = vld [vmem:[%s855 + $0x120] sm:$0xff]
        %v893 = vld [vmem:[%s855 + $0x128] sm:$0xff]
        %v894 = vld [vmem:[%s855 + $0x130] sm:$0xff]
        %v895 = vld [vmem:[%s855 + $0x138] sm:$0xff]
        %v896 = vld [vmem:[%s855 + $0x140] sm:$0xff]
        %v897 = vld [vmem:[%s855 + $0x148] sm:$0xff]
        %v898 = vld [vmem:[%s855 + $0x150] sm:$0xff]
        %v899 = vld [vmem:[%s855 + $0x158] sm:$0xff]
        %v900 = vld [vmem:[%s855 + $0x160] sm:$0xff]
        %v901 = vld [vmem:[%s855 + $0x168] sm:$0xff]
        %v902 = vld [vmem:[%s855 + $0x170] sm:$0xff]
        %v903 = vld [vmem:[%s855 + $0x178] sm:$0xff]
        %v904 = vld [vmem:[%s855 + $0x180] sm:$0xf]
        %v905 = vld [vmem:[%s855 + $0x188] sm:$0xf]
        %v907 = vsel %vm521, %v904, 0
        %v910 = vsel %vm521, %v905, 0
        %912 = vmatprep.subr.mxu0 %v857
        %913 = vmatpush1.msra.mxu0 %v856
        %914 = vmatprep.subr.mxu0 %v859
        %915 = vmatpush1.msra.mxu0 %v858
        %916 = vmatprep.subr.mxu0 %v861
        %917 = vmatpush1.msra.mxu0 %v860
        %918 = vmatprep.subr.mxu0 %v863
        %919 = vmatpush1.msra.mxu0 %v862
        %920 = vmatprep.subr.mxu0 %v865
        %921 = vmatpush1.msra.mxu0 %v864
        %922 = vmatprep.subr.mxu0 %v867
        %923 = vmatpush1.msra.mxu0 %v866
        %924 = vmatprep.subr.mxu0 %v869
        %925 = vmatpush1.msra.mxu0 %v868
        %926 = vmatprep.subr.mxu0 %v871
        %927 = vmatpush1.msra.mxu0 %v870
        %928 = vmatprep.subr.mxu0 %v873
        %929 = vmatpush1.msra.mxu0 %v872
        %930 = vmatprep.subr.mxu0 %v875
        %931 = vmatpush1.msra.mxu0 %v874
        %932 = vmatprep.subr.mxu0 %v877
        %933 = vmatpush1.msra.mxu0 %v876
        %934 = vmatprep.subr.mxu0 %v879
        %935 = vmatpush1.msra.mxu0 %v878
        %936 = vmatprep.subr.mxu0 %v881
        %937 = vmatpush1.msra.mxu0 %v880
        %938 = vmatprep.subr.mxu0 %v883
        %939 = vmatpush1.msra.mxu0 %v882
        %940 = vmatprep.subr.mxu0 %v885
        %941 = vmatpush1.msra.mxu0 %v884
        %942 = vmatprep.subr.mxu0 %v887
        %943 = vmatpush1.msra.mxu0 %v886
        %944 = vmatprep.subr.mxu0 %v889
        %945 = vmatpush1.msra.mxu0 %v888
        %946 = vmatprep.subr.mxu0 %v891
        %947 = vmatpush1.msra.mxu0 %v890
        %948 = vmatprep.subr.mxu0 %v893
        %949 = vmatpush1.msra.mxu0 %v892
        %950 = vmatprep.subr.mxu0 %v895
        %951 = vmatpush1.msra.mxu0 %v894
        %952 = vmatprep.subr.mxu0 %v897
        %953 = vmatpush1.msra.mxu0 %v896
        %954 = vmatprep.subr.mxu0 %v899
        %955 = vmatpush1.msra.mxu0 %v898
        %956 = vmatprep.subr.mxu0 %v901
        %957 = vmatpush1.msra.mxu0 %v900
        %958 = vmatprep.subr.mxu0 %v903
        %959 = vmatpush1.msra.mxu0 %v902
        %960 = vmatprep.subr.mxu0 %v910
        %961 = vmatpush1.msra.mxu0 %v907
        %962 = vmatprep.subr.mxu0 0.0
        %963 = vmatpush1.msra.mxu0 0.0
        %964 = vmatprep.subr.mxu0 0.0
        %965 = vmatpush1.msra.mxu0 0.0
        %966 = vmatprep.subr.mxu0 0.0
        %967 = vmatpush1.msra.mxu0 0.0
        %968 = vmatprep.subr.mxu0 0.0
        %969 = vmatpush1.msra.mxu0 0.0
        %970 = vmatprep.subr.mxu0 0.0
        %971 = vmatpush1.msra.mxu0 0.0
        %972 = vmatprep.subr.mxu0 0.0
        %973 = vmatpush1.msra.mxu0 0.0
        %974 = vmatprep.subr.mxu0 0.0
        %975 = vmatpush1.msra.mxu0 0.0
        %976 = vmatprep.mubr.f32.mxu0 %v519
        %977 = vmatmul.mubr.f32.gmra.mrb[0].mxu0 %v465
        %v978 = vpop.f32.mrb[0].mxu0
        %v979 = vadd.f32 0.0, %v978
        %v980 = vpop.f32.mrb[0].mxu0
        %v981 = vadd.f32 0.0, %v980
        %982 = vdwg.mxu0
        %s983 = scalar_lea.vmem %s7, 1600
        %v984 = vld [vmem:[%s983] sm:$0xff]
        %v985 = vld [vmem:[%s983 + $0x8] sm:$0xff]
        %v986 = vld [vmem:[%s983 + $0x10] sm:$0xff]
        %v987 = vld [vmem:[%s983 + $0x18] sm:$0xff]
        %v988 = vld [vmem:[%s983 + $0x20] sm:$0xff]
        %v989 = vld [vmem:[%s983 + $0x28] sm:$0xff]
        %v990 = vld [vmem:[%s983 + $0x30] sm:$0xff]
        %v991 = vld [vmem:[%s983 + $0x38] sm:$0xff]
        %v992 = vld [vmem:[%s983 + $0x40] sm:$0xff]
        %v993 = vld [vmem:[%s983 + $0x48] sm:$0xff]
        %v994 = vld [vmem:[%s983 + $0x50] sm:$0xff]
        %v995 = vld [vmem:[%s983 + $0x58] sm:$0xff]
        %v996 = vld [vmem:[%s983 + $0x60] sm:$0xff]
        %v997 = vld [vmem:[%s983 + $0x68] sm:$0xff]
        %v998 = vld [vmem:[%s983 + $0x70] sm:$0xff]
        %v999 = vld [vmem:[%s983 + $0x78] sm:$0xff]
        %v1000 = vld [vmem:[%s983 + $0x80] sm:$0xff]
        %v1001 = vld [vmem:[%s983 + $0x88] sm:$0xff]
        %v1002 = vld [vmem:[%s983 + $0x90] sm:$0xff]
        %v1003 = vld [vmem:[%s983 + $0x98] sm:$0xff]
        %v1004 = vld [vmem:[%s983 + $0xa0] sm:$0xff]
        %v1005 = vld [vmem:[%s983 + $0xa8] sm:$0xff]
        %v1006 = vld [vmem:[%s983 + $0xb0] sm:$0xff]
        %v1007 = vld [vmem:[%s983 + $0xb8] sm:$0xff]
        %v1008 = vld [vmem:[%s983 + $0xc0] sm:$0xff]
        %v1009 = vld [vmem:[%s983 + $0xc8] sm:$0xff]
        %v1010 = vld [vmem:[%s983 + $0xd0] sm:$0xff]
        %v1011 = vld [vmem:[%s983 + $0xd8] sm:$0xff]
        %v1012 = vld [vmem:[%s983 + $0xe0] sm:$0xff]
        %v1013 = vld [vmem:[%s983 + $0xe8] sm:$0xff]
        %v1014 = vld [vmem:[%s983 + $0xf0] sm:$0xff]
        %v1015 = vld [vmem:[%s983 + $0xf8] sm:$0xff]
        %v1016 = vld [vmem:[%s983 + $0x100] sm:$0xff]
        %v1017 = vld [vmem:[%s983 + $0x108] sm:$0xff]
        %v1018 = vld [vmem:[%s983 + $0x110] sm:$0xff]
        %v1019 = vld [vmem:[%s983 + $0x118] sm:$0xff]
        %v1020 = vld [vmem:[%s983 + $0x120] sm:$0xff]
        %v1021 = vld [vmem:[%s983 + $0x128] sm:$0xff]
        %v1022 = vld [vmem:[%s983 + $0x130] sm:$0xff]
        %v1023 = vld [vmem:[%s983 + $0x138] sm:$0xff]
        %v1024 = vld [vmem:[%s983 + $0x140] sm:$0xff]
        %v1025 = vld [vmem:[%s983 + $0x148] sm:$0xff]
        %v1026 = vld [vmem:[%s983 + $0x150] sm:$0xff]
        %v1027 = vld [vmem:[%s983 + $0x158] sm:$0xff]
        %v1028 = vld [vmem:[%s983 + $0x160] sm:$0xff]
        %v1029 = vld [vmem:[%s983 + $0x168] sm:$0xff]
        %v1030 = vld [vmem:[%s983 + $0x170] sm:$0xff]
        %v1031 = vld [vmem:[%s983 + $0x178] sm:$0xff]
        %v1032 = vld [vmem:[%s983 + $0x180] sm:$0xf]
        %v1033 = vld [vmem:[%s983 + $0x188] sm:$0xf]
        %v1035 = vsel %vm521, %v1032, 0
        %v1038 = vsel %vm521, %v1033, 0
        %1040 = vmatprep.subr.mxu0 %v985
        %1041 = vmatpush1.msra.mxu0 %v984
        %1042 = vmatprep.subr.mxu0 %v987
        %1043 = vmatpush1.msra.mxu0 %v986
        %1044 = vmatprep.subr.mxu0 %v989
        %1045 = vmatpush1.msra.mxu0 %v988
        %1046 = vmatprep.subr.mxu0 %v991
        %1047 = vmatpush1.msra.mxu0 %v990
        %1048 = vmatprep.subr.mxu0 %v993
        %1049 = vmatpush1.msra.mxu0 %v992
        %1050 = vmatprep.subr.mxu0 %v995
        %1051 = vmatpush1.msra.mxu0 %v994
        %1052 = vmatprep.subr.mxu0 %v997
        %1053 = vmatpush1.msra.mxu0 %v996
        %1054 = vmatprep.subr.mxu0 %v999
        %1055 = vmatpush1.msra.mxu0 %v998
        %1056 = vmatprep.subr.mxu0 %v1001
        %1057 = vmatpush1.msra.mxu0 %v1000
        %1058 = vmatprep.subr.mxu0 %v1003
        %1059 = vmatpush1.msra.mxu0 %v1002
        %1060 = vmatprep.subr.mxu0 %v1005
        %1061 = vmatpush1.msra.mxu0 %v1004
        %1062 = vmatprep.subr.mxu0 %v1007
        %1063 = vmatpush1.msra.mxu0 %v1006
        %1064 = vmatprep.subr.mxu0 %v1009
        %1065 = vmatpush1.msra.mxu0 %v1008
        %1066 = vmatprep.subr.mxu0 %v1011
        %1067 = vmatpush1.msra.mxu0 %v1010
        %1068 = vmatprep.subr.mxu0 %v1013
        %1069 = vmatpush1.msra.mxu0 %v1012
        %1070 = vmatprep.subr.mxu0 %v1015
        %1071 = vmatpush1.msra.mxu0 %v1014
        %1072 = vmatprep.subr.mxu0 %v1017
        %1073 = vmatpush1.msra.mxu0 %v1016
        %1074 = vmatprep.subr.mxu0 %v1019
        %1075 = vmatpush1.msra.mxu0 %v1018
        %1076 = vmatprep.subr.mxu0 %v1021
        %1077 = vmatpush1.msra.mxu0 %v1020
        %1078 = vmatprep.subr.mxu0 %v1023
        %1079 = vmatpush1.msra.mxu0 %v1022
        %1080 = vmatprep.subr.mxu0 %v1025
        %1081 = vmatpush1.msra.mxu0 %v1024
        %1082 = vmatprep.subr.mxu0 %v1027
        %1083 = vmatpush1.msra.mxu0 %v1026
        %1084 = vmatprep.subr.mxu0 %v1029
        %1085 = vmatpush1.msra.mxu0 %v1028
        %1086 = vmatprep.subr.mxu0 %v1031
        %1087 = vmatpush1.msra.mxu0 %v1030
        %1088 = vmatprep.subr.mxu0 %v1038
        %1089 = vmatpush1.msra.mxu0 %v1035
        %1090 = vmatprep.subr.mxu0 0.0
        %1091 = vmatpush1.msra.mxu0 0.0
        %1092 = vmatprep.subr.mxu0 0.0
        %1093 = vmatpush1.msra.mxu0 0.0
        %1094 = vmatprep.subr.mxu0 0.0
        %1095 = vmatpush1.msra.mxu0 0.0
        %1096 = vmatprep.subr.mxu0 0.0
        %1097 = vmatpush1.msra.mxu0 0.0
        %1098 = vmatprep.subr.mxu0 0.0
        %1099 = vmatpush1.msra.mxu0 0.0
        %1100 = vmatprep.subr.mxu0 0.0
        %1101 = vmatpush1.msra.mxu0 0.0
        %1102 = vmatprep.subr.mxu0 0.0
        %1103 = vmatpush1.msra.mxu0 0.0
        %1104 = vmatprep.mubr.f32.mxu0 %v519
        %1105 = vmatmul.mubr.f32.gmra.mrb[0].mxu0 %v465
        %v1106 = vpop.f32.mrb[0].mxu0
        %v1107 = vadd.f32 0.0, %v1106
        %v1108 = vpop.f32.mrb[0].mxu0
        %v1109 = vadd.f32 0.0, %v1108
        %1110 = vdwg.mxu0
        %s1111 = scalar_lea.vmem %s7, 2000
        %v1112 = vld [vmem:[%s1111] sm:$0xff]
        %v1113 = vld [vmem:[%s1111 + $0x8] sm:$0xff]
        %v1114 = vld [vmem:[%s1111 + $0x10] sm:$0xff]
        %v1115 = vld [vmem:[%s1111 + $0x18] sm:$0xff]
        %v1116 = vld [vmem:[%s1111 + $0x20] sm:$0xff]
        %v1117 = vld [vmem:[%s1111 + $0x28] sm:$0xff]
        %v1118 = vld [vmem:[%s1111 + $0x30] sm:$0xff]
        %v1119 = vld [vmem:[%s1111 + $0x38] sm:$0xff]
        %v1120 = vld [vmem:[%s1111 + $0x40] sm:$0xff]
        %v1121 = vld [vmem:[%s1111 + $0x48] sm:$0xff]
        %v1122 = vld [vmem:[%s1111 + $0x50] sm:$0xff]
        %v1123 = vld [vmem:[%s1111 + $0x58] sm:$0xff]
        %v1124 = vld [vmem:[%s1111 + $0x60] sm:$0xff]
        %v1125 = vld [vmem:[%s1111 + $0x68] sm:$0xff]
        %v1126 = vld [vmem:[%s1111 + $0x70] sm:$0xff]
        %v1127 = vld [vmem:[%s1111 + $0x78] sm:$0xff]
        %v1128 = vld [vmem:[%s1111 + $0x80] sm:$0xff]
        %v1129 = vld [vmem:[%s1111 + $0x88] sm:$0xff]
        %v1130 = vld [vmem:[%s1111 + $0x90] sm:$0xff]
        %v1131 = vld [vmem:[%s1111 + $0x98] sm:$0xff]
        %v1132 = vld [vmem:[%s1111 + $0xa0] sm:$0xff]
        %v1133 = vld [vmem:[%s1111 + $0xa8] sm:$0xff]
        %v1134 = vld [vmem:[%s1111 + $0xb0] sm:$0xff]
        %v1135 = vld [vmem:[%s1111 + $0xb8] sm:$0xff]
        %v1136 = vld [vmem:[%s1111 + $0xc0] sm:$0xff]
        %v1137 = vld [vmem:[%s1111 + $0xc8] sm:$0xff]
        %v1138 = vld [vmem:[%s1111 + $0xd0] sm:$0xff]
        %v1139 = vld [vmem:[%s1111 + $0xd8] sm:$0xff]
        %v1140 = vld [vmem:[%s1111 + $0xe0] sm:$0xff]
        %v1141 = vld [vmem:[%s1111 + $0xe8] sm:$0xff]
        %v1142 = vld [vmem:[%s1111 + $0xf0] sm:$0xff]
        %v1143 = vld [vmem:[%s1111 + $0xf8] sm:$0xff]
        %v1144 = vld [vmem:[%s1111 + $0x100] sm:$0xff]
        %v1145 = vld [vmem:[%s1111 + $0x108] sm:$0xff]
        %v1146 = vld [vmem:[%s1111 + $0x110] sm:$0xff]
        %v1147 = vld [vmem:[%s1111 + $0x118] sm:$0xff]
        %v1148 = vld [vmem:[%s1111 + $0x120] sm:$0xff]
        %v1149 = vld [vmem:[%s1111 + $0x128] sm:$0xff]
        %v1150 = vld [vmem:[%s1111 + $0x130] sm:$0xff]
        %v1151 = vld [vmem:[%s1111 + $0x138] sm:$0xff]
        %v1152 = vld [vmem:[%s1111 + $0x140] sm:$0xff]
        %v1153 = vld [vmem:[%s1111 + $0x148] sm:$0xff]
        %v1154 = vld [vmem:[%s1111 + $0x150] sm:$0xff]
        %v1155 = vld [vmem:[%s1111 + $0x158] sm:$0xff]
        %v1156 = vld [vmem:[%s1111 + $0x160] sm:$0xff]
        %v1157 = vld [vmem:[%s1111 + $0x168] sm:$0xff]
        %v1158 = vld [vmem:[%s1111 + $0x170] sm:$0xff]
        %v1159 = vld [vmem:[%s1111 + $0x178] sm:$0xff]
        %v1160 = vld [vmem:[%s1111 + $0x180] sm:$0xf]
        %v1161 = vld [vmem:[%s1111 + $0x188] sm:$0xf]
        %v1163 = vsel %vm521, %v1160, 0
        %v1166 = vsel %vm521, %v1161, 0
        %1168 = vmatprep.subr.mxu0 %v1113
        %1169 = vmatpush1.msra.mxu0 %v1112
        %1170 = vmatprep.subr.mxu0 %v1115
        %1171 = vmatpush1.msra.mxu0 %v1114
        %1172 = vmatprep.subr.mxu0 %v1117
        %1173 = vmatpush1.msra.mxu0 %v1116
        %1174 = vmatprep.subr.mxu0 %v1119
        %1175 = vmatpush1.msra.mxu0 %v1118
        %1176 = vmatprep.subr.mxu0 %v1121
        %1177 = vmatpush1.msra.mxu0 %v1120
        %1178 = vmatprep.subr.mxu0 %v1123
        %1179 = vmatpush1.msra.mxu0 %v1122
        %1180 = vmatprep.subr.mxu0 %v1125
        %1181 = vmatpush1.msra.mxu0 %v1124
        %1182 = vmatprep.subr.mxu0 %v1127
        %1183 = vmatpush1.msra.mxu0 %v1126
        %1184 = vmatprep.subr.mxu0 %v1129
        %1185 = vmatpush1.msra.mxu0 %v1128
        %1186 = vmatprep.subr.mxu0 %v1131
        %1187 = vmatpush1.msra.mxu0 %v1130
        %1188 = vmatprep.subr.mxu0 %v1133
        %1189 = vmatpush1.msra.mxu0 %v1132
        %1190 = vmatprep.subr.mxu0 %v1135
        %1191 = vmatpush1.msra.mxu0 %v1134
        %1192 = vmatprep.subr.mxu0 %v1137
        %1193 = vmatpush1.msra.mxu0 %v1136
        %1194 = vmatprep.subr.mxu0 %v1139
        %1195 = vmatpush1.msra.mxu0 %v1138
        %1196 = vmatprep.subr.mxu0 %v1141
        %1197 = vmatpush1.msra.mxu0 %v1140
        %1198 = vmatprep.subr.mxu0 %v1143
        %1199 = vmatpush1.msra.mxu0 %v1142
        %1200 = vmatprep.subr.mxu0 %v1145
        %1201 = vmatpush1.msra.mxu0 %v1144
        %1202 = vmatprep.subr.mxu0 %v1147
        %1203 = vmatpush1.msra.mxu0 %v1146
        %1204 = vmatprep.subr.mxu0 %v1149
        %1205 = vmatpush1.msra.mxu0 %v1148
        %1206 = vmatprep.subr.mxu0 %v1151
        %1207 = vmatpush1.msra.mxu0 %v1150
        %1208 = vmatprep.subr.mxu0 %v1153
        %1209 = vmatpush1.msra.mxu0 %v1152
        %1210 = vmatprep.subr.mxu0 %v1155
        %1211 = vmatpush1.msra.mxu0 %v1154
        %1212 = vmatprep.subr.mxu0 %v1157
        %1213 = vmatpush1.msra.mxu0 %v1156
        %1214 = vmatprep.subr.mxu0 %v1159
        %1215 = vmatpush1.msra.mxu0 %v1158
        %1216 = vmatprep.subr.mxu0 %v1166
        %1217 = vmatpush1.msra.mxu0 %v1163
        %1218 = vmatprep.subr.mxu0 0.0
        %1219 = vmatpush1.msra.mxu0 0.0
        %1220 = vmatprep.subr.mxu0 0.0
        %1221 = vmatpush1.msra.mxu0 0.0
        %1222 = vmatprep.subr.mxu0 0.0
        %1223 = vmatpush1.msra.mxu0 0.0
        %1224 = vmatprep.subr.mxu0 0.0
        %1225 = vmatpush1.msra.mxu0 0.0
        %1226 = vmatprep.subr.mxu0 0.0
        %1227 = vmatpush1.msra.mxu0 0.0
        %1228 = vmatprep.subr.mxu0 0.0
        %1229 = vmatpush1.msra.mxu0 0.0
        %1230 = vmatprep.subr.mxu0 0.0
        %1231 = vmatpush1.msra.mxu0 0.0
        %1232 = vmatprep.mubr.f32.mxu0 %v519
        %1233 = vmatmul.mubr.f32.gmra.mrb[0].mxu0 %v465
        %v1234 = vpop.f32.mrb[0].mxu0
        %v1235 = vadd.f32 0.0, %v1234
        %v1236 = vpop.f32.mrb[0].mxu0
        %v1237 = vadd.f32 0.0, %v1236
        %1238 = vdwg.mxu0
        %s1239 = scalar_lea.vmem %s7, 2400
        %v1240 = vld [vmem:[%s1239] sm:$0xff]
        %v1241 = vld [vmem:[%s1239 + $0x8] sm:$0xff]
        %v1242 = vld [vmem:[%s1239 + $0x10] sm:$0xff]
        %v1243 = vld [vmem:[%s1239 + $0x18] sm:$0xff]
        %v1244 = vld [vmem:[%s1239 + $0x20] sm:$0xff]
        %v1245 = vld [vmem:[%s1239 + $0x28] sm:$0xff]
        %v1246 = vld [vmem:[%s1239 + $0x30] sm:$0xff]
        %v1247 = vld [vmem:[%s1239 + $0x38] sm:$0xff]
        %v1248 = vld [vmem:[%s1239 + $0x40] sm:$0xff]
        %v1249 = vld [vmem:[%s1239 + $0x48] sm:$0xff]
        %v1250 = vld [vmem:[%s1239 + $0x50] sm:$0xff]
        %v1251 = vld [vmem:[%s1239 + $0x58] sm:$0xff]
        %v1252 = vld [vmem:[%s1239 + $0x60] sm:$0xff]
        %v1253 = vld [vmem:[%s1239 + $0x68] sm:$0xff]
        %v1254 = vld [vmem:[%s1239 + $0x70] sm:$0xff]
        %v1255 = vld [vmem:[%s1239 + $0x78] sm:$0xff]
        %v1256 = vld [vmem:[%s1239 + $0x80] sm:$0xff]
        %v1257 = vld [vmem:[%s1239 + $0x88] sm:$0xff]
        %v1258 = vld [vmem:[%s1239 + $0x90] sm:$0xff]
        %v1259 = vld [vmem:[%s1239 + $0x98] sm:$0xff]
        %v1260 = vld [vmem:[%s1239 + $0xa0] sm:$0xff]
        %v1261 = vld [vmem:[%s1239 + $0xa8] sm:$0xff]
        %v1262 = vld [vmem:[%s1239 + $0xb0] sm:$0xff]
        %v1263 = vld [vmem:[%s1239 + $0xb8] sm:$0xff]
        %v1264 = vld [vmem:[%s1239 + $0xc0] sm:$0xff]
        %v1265 = vld [vmem:[%s1239 + $0xc8] sm:$0xff]
        %v1266 = vld [vmem:[%s1239 + $0xd0] sm:$0xff]
        %v1267 = vld [vmem:[%s1239 + $0xd8] sm:$0xff]
        %v1268 = vld [vmem:[%s1239 + $0xe0] sm:$0xff]
        %v1269 = vld [vmem:[%s1239 + $0xe8] sm:$0xff]
        %v1270 = vld [vmem:[%s1239 + $0xf0] sm:$0xff]
        %v1271 = vld [vmem:[%s1239 + $0xf8] sm:$0xff]
        %v1272 = vld [vmem:[%s1239 + $0x100] sm:$0xff]
        %v1273 = vld [vmem:[%s1239 + $0x108] sm:$0xff]
        %v1274 = vld [vmem:[%s1239 + $0x110] sm:$0xff]
        %v1275 = vld [vmem:[%s1239 + $0x118] sm:$0xff]
        %v1276 = vld [vmem:[%s1239 + $0x120] sm:$0xff]
        %v1277 = vld [vmem:[%s1239 + $0x128] sm:$0xff]
        %v1278 = vld [vmem:[%s1239 + $0x130] sm:$0xff]
        %v1279 = vld [vmem:[%s1239 + $0x138] sm:$0xff]
        %v1280 = vld [vmem:[%s1239 + $0x140] sm:$0xff]
        %v1281 = vld [vmem:[%s1239 + $0x148] sm:$0xff]
        %v1282 = vld [vmem:[%s1239 + $0x150] sm:$0xff]
        %v1283 = vld [vmem:[%s1239 + $0x158] sm:$0xff]
        %v1284 = vld [vmem:[%s1239 + $0x160] sm:$0xff]
        %v1285 = vld [vmem:[%s1239 + $0x168] sm:$0xff]
        %v1286 = vld [vmem:[%s1239 + $0x170] sm:$0xff]
        %v1287 = vld [vmem:[%s1239 + $0x178] sm:$0xff]
        %v1288 = vld [vmem:[%s1239 + $0x180] sm:$0xf]
        %v1289 = vld [vmem:[%s1239 + $0x188] sm:$0xf]
        %v1291 = vsel %vm521, %v1288, 0
        %v1294 = vsel %vm521, %v1289, 0
        %1296 = vmatprep.subr.mxu0 %v1241
        %1297 = vmatpush1.msra.mxu0 %v1240
        %1298 = vmatprep.subr.mxu0 %v1243
        %1299 = vmatpush1.msra.mxu0 %v1242
        %1300 = vmatprep.subr.mxu0 %v1245
        %1301 = vmatpush1.msra.mxu0 %v1244
        %1302 = vmatprep.subr.mxu0 %v1247
        %1303 = vmatpush1.msra.mxu0 %v1246
        %1304 = vmatprep.subr.mxu0 %v1249
        %1305 = vmatpush1.msra.mxu0 %v1248
        %1306 = vmatprep.subr.mxu0 %v1251
        %1307 = vmatpush1.msra.mxu0 %v1250
        %1308 = vmatprep.subr.mxu0 %v1253
        %1309 = vmatpush1.msra.mxu0 %v1252
        %1310 = vmatprep.subr.mxu0 %v1255
        %1311 = vmatpush1.msra.mxu0 %v1254
        %1312 = vmatprep.subr.mxu0 %v1257
        %1313 = vmatpush1.msra.mxu0 %v1256
        %1314 = vmatprep.subr.mxu0 %v1259
        %1315 = vmatpush1.msra.mxu0 %v1258
        %1316 = vmatprep.subr.mxu0 %v1261
        %1317 = vmatpush1.msra.mxu0 %v1260
        %1318 = vmatprep.subr.mxu0 %v1263
        %1319 = vmatpush1.msra.mxu0 %v1262
        %1320 = vmatprep.subr.mxu0 %v1265
        %1321 = vmatpush1.msra.mxu0 %v1264
        %1322 = vmatprep.subr.mxu0 %v1267
        %1323 = vmatpush1.msra.mxu0 %v1266
        %1324 = vmatprep.subr.mxu0 %v1269
        %1325 = vmatpush1.msra.mxu0 %v1268
        %1326 = vmatprep.subr.mxu0 %v1271
        %1327 = vmatpush1.msra.mxu0 %v1270
        %1328 = vmatprep.subr.mxu0 %v1273
        %1329 = vmatpush1.msra.mxu0 %v1272
        %1330 = vmatprep.subr.mxu0 %v1275
        %1331 = vmatpush1.msra.mxu0 %v1274
        %1332 = vmatprep.subr.mxu0 %v1277
        %1333 = vmatpush1.msra.mxu0 %v1276
        %1334 = vmatprep.subr.mxu0 %v1279
        %1335 = vmatpush1.msra.mxu0 %v1278
        %1336 = vmatprep.subr.mxu0 %v1281
        %1337 = vmatpush1.msra.mxu0 %v1280
        %1338 = vmatprep.subr.mxu0 %v1283
        %1339 = vmatpush1.msra.mxu0 %v1282
        %1340 = vmatprep.subr.mxu0 %v1285
        %1341 = vmatpush1.msra.mxu0 %v1284
        %1342 = vmatprep.subr.mxu0 %v1287
        %1343 = vmatpush1.msra.mxu0 %v1286
        %1344 = vmatprep.subr.mxu0 %v1294
        %1345 = vmatpush1.msra.mxu0 %v1291
        %1346 = vmatprep.subr.mxu0 0.0
        %1347 = vmatpush1.msra.mxu0 0.0
        %1348 = vmatprep.subr.mxu0 0.0
        %1349 = vmatpush1.msra.mxu0 0.0
        %1350 = vmatprep.subr.mxu0 0.0
        %1351 = vmatpush1.msra.mxu0 0.0
        %1352 = vmatprep.subr.mxu0 0.0
        %1353 = vmatpush1.msra.mxu0 0.0
        %1354 = vmatprep.subr.mxu0 0.0
        %1355 = vmatpush1.msra.mxu0 0.0
        %1356 = vmatprep.subr.mxu0 0.0
        %1357 = vmatpush1.msra.mxu0 0.0
        %1358 = vmatprep.subr.mxu0 0.0
        %1359 = vmatpush1.msra.mxu0 0.0
        %1360 = vmatprep.mubr.f32.mxu0 %v519
        %1361 = vmatmul.mubr.f32.gmra.mrb[0].mxu0 %v465
        %v1362 = vpop.f32.mrb[0].mxu0
        %v1363 = vadd.f32 0.0, %v1362
        %v1364 = vpop.f32.mrb[0].mxu0
        %v1365 = vadd.f32 0.0, %v1364
        %1366 = vdwg.mxu0
        %s1367 = scalar_lea.vmem %s7, 2800
        %v1368 = vld [vmem:[%s1367] sm:$0xff]
        %v1369 = vld [vmem:[%s1367 + $0x8] sm:$0xff]
        %v1370 = vld [vmem:[%s1367 + $0x10] sm:$0xff]
        %v1371 = vld [vmem:[%s1367 + $0x18] sm:$0xff]
        %v1372 = vld [vmem:[%s1367 + $0x20] sm:$0xff]
        %v1373 = vld [vmem:[%s1367 + $0x28] sm:$0xff]
        %v1374 = vld [vmem:[%s1367 + $0x30] sm:$0xff]
        %v1375 = vld [vmem:[%s1367 + $0x38] sm:$0xff]
        %v1376 = vld [vmem:[%s1367 + $0x40] sm:$0xff]
        %v1377 = vld [vmem:[%s1367 + $0x48] sm:$0xff]
        %v1378 = vld [vmem:[%s1367 + $0x50] sm:$0xff]
        %v1379 = vld [vmem:[%s1367 + $0x58] sm:$0xff]
        %v1380 = vld [vmem:[%s1367 + $0x60] sm:$0xff]
        %v1381 = vld [vmem:[%s1367 + $0x68] sm:$0xff]
        %v1382 = vld [vmem:[%s1367 + $0x70] sm:$0xff]
        %v1383 = vld [vmem:[%s1367 + $0x78] sm:$0xff]
        %v1384 = vld [vmem:[%s1367 + $0x80] sm:$0xff]
        %v1385 = vld [vmem:[%s1367 + $0x88] sm:$0xff]
        %v1386 = vld [vmem:[%s1367 + $0x90] sm:$0xff]
        %v1387 = vld [vmem:[%s1367 + $0x98] sm:$0xff]
        %v1388 = vld [vmem:[%s1367 + $0xa0] sm:$0xff]
        %v1389 = vld [vmem:[%s1367 + $0xa8] sm:$0xff]
        %v1390 = vld [vmem:[%s1367 + $0xb0] sm:$0xff]
        %v1391 = vld [vmem:[%s1367 + $0xb8] sm:$0xff]
        %v1392 = vld [vmem:[%s1367 + $0xc0] sm:$0xff]
        %v1393 = vld [vmem:[%s1367 + $0xc8] sm:$0xff]
        %v1394 = vld [vmem:[%s1367 + $0xd0] sm:$0xff]
        %v1395 = vld [vmem:[%s1367 + $0xd8] sm:$0xff]
        %v1396 = vld [vmem:[%s1367 + $0xe0] sm:$0xff]
        %v1397 = vld [vmem:[%s1367 + $0xe8] sm:$0xff]
        %v1398 = vld [vmem:[%s1367 + $0xf0] sm:$0xff]
        %v1399 = vld [vmem:[%s1367 + $0xf8] sm:$0xff]
        %v1400 = vld [vmem:[%s1367 + $0x100] sm:$0xff]
        %v1401 = vld [vmem:[%s1367 + $0x108] sm:$0xff]
        %v1402 = vld [vmem:[%s1367 + $0x110] sm:$0xff]
        %v1403 = vld [vmem:[%s1367 + $0x118] sm:$0xff]
        %v1404 = vld [vmem:[%s1367 + $0x120] sm:$0xff]
        %v1405 = vld [vmem:[%s1367 + $0x128] sm:$0xff]
        %v1406 = vld [vmem:[%s1367 + $0x130] sm:$0xff]
        %v1407 = vld [vmem:[%s1367 + $0x138] sm:$0xff]
        %v1408 = vld [vmem:[%s1367 + $0x140] sm:$0xff]
        %v1409 = vld [vmem:[%s1367 + $0x148] sm:$0xff]
        %v1410 = vld [vmem:[%s1367 + $0x150] sm:$0xff]
        %v1411 = vld [vmem:[%s1367 + $0x158] sm:$0xff]
        %v1412 = vld [vmem:[%s1367 + $0x160] sm:$0xff]
        %v1413 = vld [vmem:[%s1367 + $0x168] sm:$0xff]
        %v1414 = vld [vmem:[%s1367 + $0x170] sm:$0xff]
        %v1415 = vld [vmem:[%s1367 + $0x178] sm:$0xff]
        %v1416 = vld [vmem:[%s1367 + $0x180] sm:$0xf]
        %v1417 = vld [vmem:[%s1367 + $0x188] sm:$0xf]
        %v1419 = vsel %vm521, %v1416, 0
        %v1422 = vsel %vm521, %v1417, 0
        %1424 = vmatprep.subr.mxu0 %v1369
        %1425 = vmatpush1.msra.mxu0 %v1368
        %1426 = vmatprep.subr.mxu0 %v1371
        %1427 = vmatpush1.msra.mxu0 %v1370
        %1428 = vmatprep.subr.mxu0 %v1373
        %1429 = vmatpush1.msra.mxu0 %v1372
        %1430 = vmatprep.subr.mxu0 %v1375
        %1431 = vmatpush1.msra.mxu0 %v1374
        %1432 = vmatprep.subr.mxu0 %v1377
        %1433 = vmatpush1.msra.mxu0 %v1376
        %1434 = vmatprep.subr.mxu0 %v1379
        %1435 = vmatpush1.msra.mxu0 %v1378
        %1436 = vmatprep.subr.mxu0 %v1381
        %1437 = vmatpush1.msra.mxu0 %v1380
        %1438 = vmatprep.subr.mxu0 %v1383
        %1439 = vmatpush1.msra.mxu0 %v1382
        %1440 = vmatprep.subr.mxu0 %v1385
        %1441 = vmatpush1.msra.mxu0 %v1384
        %1442 = vmatprep.subr.mxu0 %v1387
        %1443 = vmatpush1.msra.mxu0 %v1386
        %1444 = vmatprep.subr.mxu0 %v1389
        %1445 = vmatpush1.msra.mxu0 %v1388
        %1446 = vmatprep.subr.mxu0 %v1391
        %1447 = vmatpush1.msra.mxu0 %v1390
        %1448 = vmatprep.subr.mxu0 %v1393
        %1449 = vmatpush1.msra.mxu0 %v1392
        %1450 = vmatprep.subr.mxu0 %v1395
        %1451 = vmatpush1.msra.mxu0 %v1394
        %1452 = vmatprep.subr.mxu0 %v1397
        %1453 = vmatpush1.msra.mxu0 %v1396
        %1454 = vmatprep.subr.mxu0 %v1399
        %1455 = vmatpush1.msra.mxu0 %v1398
        %1456 = vmatprep.subr.mxu0 %v1401
        %1457 = vmatpush1.msra.mxu0 %v1400
        %1458 = vmatprep.subr.mxu0 %v1403
        %1459 = vmatpush1.msra.mxu0 %v1402
        %1460 = vmatprep.subr.mxu0 %v1405
        %1461 = vmatpush1.msra.mxu0 %v1404
        %1462 = vmatprep.subr.mxu0 %v1407
        %1463 = vmatpush1.msra.mxu0 %v1406
        %1464 = vmatprep.subr.mxu0 %v1409
        %1465 = vmatpush1.msra.mxu0 %v1408
        %1466 = vmatprep.subr.mxu0 %v1411
        %1467 = vmatpush1.msra.mxu0 %v1410
        %1468 = vmatprep.subr.mxu0 %v1413
        %1469 = vmatpush1.msra.mxu0 %v1412
        %1470 = vmatprep.subr.mxu0 %v1415
        %1471 = vmatpush1.msra.mxu0 %v1414
        %1472 = vmatprep.subr.mxu0 %v1422
        %1473 = vmatpush1.msra.mxu0 %v1419
        %1474 = vmatprep.subr.mxu0 0.0
        %1475 = vmatpush1.msra.mxu0 0.0
        %1476 = vmatprep.subr.mxu0 0.0
        %1477 = vmatpush1.msra.mxu0 0.0
        %1478 = vmatprep.subr.mxu0 0.0
        %1479 = vmatpush1.msra.mxu0 0.0
        %1480 = vmatprep.subr.mxu0 0.0
        %1481 = vmatpush1.msra.mxu0 0.0
        %1482 = vmatprep.subr.mxu0 0.0
        %1483 = vmatpush1.msra.mxu0 0.0
        %1484 = vmatprep.subr.mxu0 0.0
        %1485 = vmatpush1.msra.mxu0 0.0
        %1486 = vmatprep.subr.mxu0 0.0
        %1487 = vmatpush1.msra.mxu0 0.0
        %1488 = vmatprep.mubr.f32.mxu0 %v519
        %1489 = vmatmul.mubr.f32.gmra.mrb[0].mxu0 %v465
        %v1490 = vpop.f32.mrb[0].mxu0
        %v1491 = vadd.f32 0.0, %v1490
        %v1492 = vpop.f32.mrb[0].mxu0
        %v1493 = vadd.f32 0.0, %v1492
        %1494 = vdwg.mxu0
        %s1495 = scalar_lea.vmem %s7, 3200
        %v1496 = vld [vmem:[%s1495] sm:$0xff]
        %v1497 = vld [vmem:[%s1495 + $0x8] sm:$0xff]
        %v1498 = vld [vmem:[%s1495 + $0x10] sm:$0xff]
        %v1499 = vld [vmem:[%s1495 + $0x18] sm:$0xff]
        %v1500 = vld [vmem:[%s1495 + $0x20] sm:$0xff]
        %v1501 = vld [vmem:[%s1495 + $0x28] sm:$0xff]
        %v1502 = vld [vmem:[%s1495 + $0x30] sm:$0xff]
        %v1503 = vld [vmem:[%s1495 + $0x38] sm:$0xff]
        %v1504 = vld [vmem:[%s1495 + $0x40] sm:$0xff]
        %v1505 = vld [vmem:[%s1495 + $0x48] sm:$0xff]
        %v1506 = vld [vmem:[%s1495 + $0x50] sm:$0xff]
        %v1507 = vld [vmem:[%s1495 + $0x58] sm:$0xff]
        %v1508 = vld [vmem:[%s1495 + $0x60] sm:$0xff]
        %v1509 = vld [vmem:[%s1495 + $0x68] sm:$0xff]
        %v1510 = vld [vmem:[%s1495 + $0x70] sm:$0xff]
        %v1511 = vld [vmem:[%s1495 + $0x78] sm:$0xff]
        %v1512 = vld [vmem:[%s1495 + $0x80] sm:$0xff]
        %v1513 = vld [vmem:[%s1495 + $0x88] sm:$0xff]
        %v1514 = vld [vmem:[%s1495 + $0x90] sm:$0xff]
        %v1515 = vld [vmem:[%s1495 + $0x98] sm:$0xff]
        %v1516 = vld [vmem:[%s1495 + $0xa0] sm:$0xff]
        %v1517 = vld [vmem:[%s1495 + $0xa8] sm:$0xff]
        %v1518 = vld [vmem:[%s1495 + $0xb0] sm:$0xff]
        %v1519 = vld [vmem:[%s1495 + $0xb8] sm:$0xff]
        %v1520 = vld [vmem:[%s1495 + $0xc0] sm:$0xff]
        %v1521 = vld [vmem:[%s1495 + $0xc8] sm:$0xff]
        %v1522 = vld [vmem:[%s1495 + $0xd0] sm:$0xff]
        %v1523 = vld [vmem:[%s1495 + $0xd8] sm:$0xff]
        %v1524 = vld [vmem:[%s1495 + $0xe0] sm:$0xff]
        %v1525 = vld [vmem:[%s1495 + $0xe8] sm:$0xff]
        %v1526 = vld [vmem:[%s1495 + $0xf0] sm:$0xff]
        %v1527 = vld [vmem:[%s1495 + $0xf8] sm:$0xff]
        %v1528 = vld [vmem:[%s1495 + $0x100] sm:$0xff]
        %v1529 = vld [vmem:[%s1495 + $0x108] sm:$0xff]
        %v1530 = vld [vmem:[%s1495 + $0x110] sm:$0xff]
        %v1531 = vld [vmem:[%s1495 + $0x118] sm:$0xff]
        %v1532 = vld [vmem:[%s1495 + $0x120] sm:$0xff]
        %v1533 = vld [vmem:[%s1495 + $0x128] sm:$0xff]
        %v1534 = vld [vmem:[%s1495 + $0x130] sm:$0xff]
        %v1535 = vld [vmem:[%s1495 + $0x138] sm:$0xff]
        %v1536 = vld [vmem:[%s1495 + $0x140] sm:$0xff]
        %v1537 = vld [vmem:[%s1495 + $0x148] sm:$0xff]
        %v1538 = vld [vmem:[%s1495 + $0x150] sm:$0xff]
        %v1539 = vld [vmem:[%s1495 + $0x158] sm:$0xff]
        %v1540 = vld [vmem:[%s1495 + $0x160] sm:$0xff]
        %v1541 = vld [vmem:[%s1495 + $0x168] sm:$0xff]
        %v1542 = vld [vmem:[%s1495 + $0x170] sm:$0xff]
        %v1543 = vld [vmem:[%s1495 + $0x178] sm:$0xff]
        %v1544 = vld [vmem:[%s1495 + $0x180] sm:$0xf]
        %v1545 = vld [vmem:[%s1495 + $0x188] sm:$0xf]
        %v1547 = vsel %vm521, %v1544, 0
        %v1550 = vsel %vm521, %v1545, 0
        %1552 = vmatprep.subr.mxu0 %v1497
        %1553 = vmatpush1.msra.mxu0 %v1496
        %1554 = vmatprep.subr.mxu0 %v1499
        %1555 = vmatpush1.msra.mxu0 %v1498
        %1556 = vmatprep.subr.mxu0 %v1501
        %1557 = vmatpush1.msra.mxu0 %v1500
        %1558 = vmatprep.subr.mxu0 %v1503
        %1559 = vmatpush1.msra.mxu0 %v1502
        %1560 = vmatprep.subr.mxu0 %v1505
        %1561 = vmatpush1.msra.mxu0 %v1504
        %1562 = vmatprep.subr.mxu0 %v1507
        %1563 = vmatpush1.msra.mxu0 %v1506
        %1564 = vmatprep.subr.mxu0 %v1509
        %1565 = vmatpush1.msra.mxu0 %v1508
        %1566 = vmatprep.subr.mxu0 %v1511
        %1567 = vmatpush1.msra.mxu0 %v1510
        %1568 = vmatprep.subr.mxu0 %v1513
        %1569 = vmatpush1.msra.mxu0 %v1512
        %1570 = vmatprep.subr.mxu0 %v1515
        %1571 = vmatpush1.msra.mxu0 %v1514
        %1572 = vmatprep.subr.mxu0 %v1517
        %1573 = vmatpush1.msra.mxu0 %v1516
        %1574 = vmatprep.subr.mxu0 %v1519
        %1575 = vmatpush1.msra.mxu0 %v1518
        %1576 = vmatprep.subr.mxu0 %v1521
        %1577 = vmatpush1.msra.mxu0 %v1520
        %1578 = vmatprep.subr.mxu0 %v1523
        %1579 = vmatpush1.msra.mxu0 %v1522
        %1580 = vmatprep.subr.mxu0 %v1525
        %1581 = vmatpush1.msra.mxu0 %v1524
        %1582 = vmatprep.subr.mxu0 %v1527
        %1583 = vmatpush1.msra.mxu0 %v1526
        %1584 = vmatprep.subr.mxu0 %v1529
        %1585 = vmatpush1.msra.mxu0 %v1528
        %1586 = vmatprep.subr.mxu0 %v1531
        %1587 = vmatpush1.msra.mxu0 %v1530
        %1588 = vmatprep.subr.mxu0 %v1533
        %1589 = vmatpush1.msra.mxu0 %v1532
        %1590 = vmatprep.subr.mxu0 %v1535
        %1591 = vmatpush1.msra.mxu0 %v1534
        %1592 = vmatprep.subr.mxu0 %v1537
        %1593 = vmatpush1.msra.mxu0 %v1536
        %1594 = vmatprep.subr.mxu0 %v1539
        %1595 = vmatpush1.msra.mxu0 %v1538
        %1596 = vmatprep.subr.mxu0 %v1541
        %1597 = vmatpush1.msra.mxu0 %v1540
        %1598 = vmatprep.subr.mxu0 %v1543
        %1599 = vmatpush1.msra.mxu0 %v1542
        %1600 = vmatprep.subr.mxu0 %v1550
        %1601 = vmatpush1.msra.mxu0 %v1547
        %1602 = vmatprep.subr.mxu0 0.0
        %1603 = vmatpush1.msra.mxu0 0.0
        %1604 = vmatprep.subr.mxu0 0.0
        %1605 = vmatpush1.msra.mxu0 0.0
        %1606 = vmatprep.subr.mxu0 0.0
        %1607 = vmatpush1.msra.mxu0 0.0
        %1608 = vmatprep.subr.mxu0 0.0
        %1609 = vmatpush1.msra.mxu0 0.0
        %1610 = vmatprep.subr.mxu0 0.0
        %1611 = vmatpush1.msra.mxu0 0.0
        %1612 = vmatprep.subr.mxu0 0.0
        %1613 = vmatpush1.msra.mxu0 0.0
        %1614 = vmatprep.subr.mxu0 0.0
        %1615 = vmatpush1.msra.mxu0 0.0
        %1616 = vmatprep.mubr.f32.mxu0 %v519
        %1617 = vmatmul.mubr.f32.gmra.mrb[0].mxu0 %v465
        %v1618 = vpop.f32.mrb[0].mxu0
        %v1619 = vadd.f32 0.0, %v1618
        %v1620 = vpop.f32.mrb[0].mxu0
        %v1621 = vadd.f32 0.0, %v1620
        %1622 = vdwg.mxu0
        %v1623 = vld [vmem:[%s1] sm:$0xff]
        %v1624 = vld [vmem:[%s2] sm:$0xff]
        %1626 = vset.pattern.permute.xlu0 0
        %1627 = vperm.xlu0 %1626, %v1624
        %v1628 = vpop.permute.xlu0 %1627
        %vm1630 = vcmask 588800
        %v1632 = vsel %vm1630, %v1623, 0
        %1634 = vmatprep.subr.mxu0 %v597
        %1635 = vmatpush1.msra.mxu0 %v595
        %1636 = vmatprep.subr.mxu0 %v725
        %1637 = vmatpush1.msra.mxu0 %v723
        %1638 = vmatprep.subr.mxu0 %v853
        %1639 = vmatpush1.msra.mxu0 %v851
        %1640 = vmatprep.subr.mxu0 %v981
        %1641 = vmatpush1.msra.mxu0 %v979
        %1642 = vmatprep.subr.mxu0 %v1109
        %1643 = vmatpush1.msra.mxu0 %v1107
        %1644 = vmatprep.subr.mxu0 %v1237
        %1645 = vmatpush1.msra.mxu0 %v1235
        %1646 = vmatprep.subr.mxu0 %v1365
        %1647 = vmatpush1.msra.mxu0 %v1363
        %1648 = vmatprep.subr.mxu0 %v1493
        %1649 = vmatpush1.msra.mxu0 %v1491
        %1650 = vmatprep.subr.mxu0 %v1621
        %1651 = vmatpush1.msra.mxu0 %v1619
        %1652 = vmatprep.subr.mxu0 0.0
        %1653 = vmatpush1.msra.mxu0 0.0
        %1654 = vmatprep.subr.mxu0 0.0
        %1655 = vmatpush1.msra.mxu0 0.0
        %1656 = vmatprep.subr.mxu0 0.0
        %1657 = vmatpush1.msra.mxu0 0.0
        %1658 = vmatprep.subr.mxu0 0.0
        %1659 = vmatpush1.msra.mxu0 0.0
        %1660 = vmatprep.subr.mxu0 0.0
        %1661 = vmatpush1.msra.mxu0 0.0
        %1662 = vmatprep.subr.mxu0 0.0
        %1663 = vmatpush1.msra.mxu0 0.0
        %1664 = vmatprep.subr.mxu0 0.0
        %1665 = vmatpush1.msra.mxu0 0.0
        %1666 = vmatprep.subr.mxu0 0.0
        %1667 = vmatpush1.msra.mxu0 0.0
        %1668 = vmatprep.subr.mxu0 0.0
        %1669 = vmatpush1.msra.mxu0 0.0
        %1670 = vmatprep.subr.mxu0 0.0
        %1671 = vmatpush1.msra.mxu0 0.0
        %1672 = vmatprep.subr.mxu0 0.0
        %1673 = vmatpush1.msra.mxu0 0.0
        %1674 = vmatprep.subr.mxu0 0.0
        %1675 = vmatpush1.msra.mxu0 0.0
        %1676 = vmatprep.subr.mxu0 0.0
        %1677 = vmatpush1.msra.mxu0 0.0
        %1678 = vmatprep.subr.mxu0 0.0
        %1679 = vmatpush1.msra.mxu0 0.0
        %1680 = vmatprep.subr.mxu0 0.0
        %1681 = vmatpush1.msra.mxu0 0.0
        %1682 = vmatprep.subr.mxu0 0.0
        %1683 = vmatpush1.msra.mxu0 0.0
        %1684 = vmatprep.subr.mxu0 0.0
        %1685 = vmatpush1.msra.mxu0 0.0
        %1686 = vmatprep.subr.mxu0 0.0
        %1687 = vmatpush1.msra.mxu0 0.0
        %1688 = vmatprep.subr.mxu0 0.0
        %1689 = vmatpush1.msra.mxu0 0.0
        %1690 = vmatprep.subr.mxu0 0.0
        %1691 = vmatpush1.msra.mxu0 0.0
        %1692 = vmatprep.subr.mxu0 0.0
        %1693 = vmatpush1.msra.mxu0 0.0
        %1694 = vmatprep.subr.mxu0 0.0
        %1695 = vmatpush1.msra.mxu0 0.0
        %1696 = vmatprep.subr.mxu0 0.0
        %1697 = vmatpush1.msra.mxu0 0.0
        %1698 = vmatprep.mubr.f32.mxu0 0.0
        %1699 = vmatmul.mubr.f32.gmra.mrb[0].mxu0 %v1632
        %v1700 = vpop.f32.mrb[0].mxu0
        %v1701 = vadd.f32 %v1628, %v1700
        %v1702 = vpop.f32.mrb[0].mxu0
        %v1703 = vadd.f32 %v1628, %v1702
        %1704 = vdwg.mxu0
        %v1705 = vmax.f32 %v1701, 0.0
        %v1706 = vmax.f32 %v1703, 0.0
        %v1708 = vsel %vm517, %v1706, 0
        %1710 = vmatprep.subr.mxu0 %v468
        %1711 = vmatpush1.msra.mxu0 %v467
        %1712 = vmatprep.subr.mxu0 %v470
        %1713 = vmatpush1.msra.mxu0 %v469
        %1714 = vmatprep.subr.mxu0 %v472
        %1715 = vmatpush1.msra.mxu0 %v471
        %1716 = vmatprep.subr.mxu0 %v474
        %1717 = vmatpush1.msra.mxu0 %v473
        %1718 = vmatprep.subr.mxu0 %v476
        %1719 = vmatpush1.msra.mxu0 %v475
        %1720 = vmatprep.subr.mxu0 %v478
        %1721 = vmatpush1.msra.mxu0 %v477
        %1722 = vmatprep.subr.mxu0 %v480
        %1723 = vmatpush1.msra.mxu0 %v479
        %1724 = vmatprep.subr.mxu0 %v482
        %1725 = vmatpush1.msra.mxu0 %v481
        %1726 = vmatprep.subr.mxu0 %v484
        %1727 = vmatpush1.msra.mxu0 %v483
        %1728 = vmatprep.subr.mxu0 %v486
        %1729 = vmatpush1.msra.mxu0 %v485
        %1730 = vmatprep.subr.mxu0 %v488
        %1731 = vmatpush1.msra.mxu0 %v487
        %1732 = vmatprep.subr.mxu0 %v490
        %1733 = vmatpush1.msra.mxu0 %v489
        %1734 = vmatprep.subr.mxu0 %v492
        %1735 = vmatpush1.msra.mxu0 %v491
        %1736 = vmatprep.subr.mxu0 %v494
        %1737 = vmatpush1.msra.mxu0 %v493
        %1738 = vmatprep.subr.mxu0 %v496
        %1739 = vmatpush1.msra.mxu0 %v495
        %1740 = vmatprep.subr.mxu0 %v498
        %1741 = vmatpush1.msra.mxu0 %v497
        %1742 = vmatprep.subr.mxu0 %v500
        %1743 = vmatpush1.msra.mxu0 %v499
        %1744 = vmatprep.subr.mxu0 %v502
        %1745 = vmatpush1.msra.mxu0 %v501
        %1746 = vmatprep.subr.mxu0 %v504
        %1747 = vmatpush1.msra.mxu0 %v503
        %1748 = vmatprep.subr.mxu0 %v506
        %1749 = vmatpush1.msra.mxu0 %v505
        %1750 = vmatprep.subr.mxu0 %v508
        %1751 = vmatpush1.msra.mxu0 %v507
        %1752 = vmatprep.subr.mxu0 %v510
        %1753 = vmatpush1.msra.mxu0 %v509
        %1754 = vmatprep.subr.mxu0 %v512
        %1755 = vmatpush1.msra.mxu0 %v511
        %1756 = vmatprep.subr.mxu0 %v514
        %1757 = vmatpush1.msra.mxu0 %v513
        %1758 = vmatprep.subr.mxu0 %v526
        %1759 = vmatpush1.msra.mxu0 %v523
        %1760 = vmatprep.subr.mxu0 0.0
        %1761 = vmatpush1.msra.mxu0 0.0
        %1762 = vmatprep.subr.mxu0 0.0
        %1763 = vmatpush1.msra.mxu0 0.0
        %1764 = vmatprep.subr.mxu0 0.0
        %1765 = vmatpush1.msra.mxu0 0.0
        %1766 = vmatprep.subr.mxu0 0.0
        %1767 = vmatpush1.msra.mxu0 0.0
        %1768 = vmatprep.subr.mxu0 0.0
        %1769 = vmatpush1.msra.mxu0 0.0
        %1770 = vmatprep.subr.mxu0 0.0
        %1771 = vmatpush1.msra.mxu0 0.0
        %1772 = vmatprep.subr.mxu0 0.0
        %1773 = vmatpush1.msra.mxu0 0.0
        %1774 = vmatprep.mubr.f32.mxu0 %v1708
        %1775 = vmatmul.mubr.f32.gmra.mrb[0].mxu0 %v1705
        %v1776 = vpop.f32.mrb[0].mxu0
        %v1777 = vadd.f32 0.0, %v1776
        %v1778 = vpop.f32.mrb[0].mxu0
        %v1779 = vadd.f32 0.0, %v1778
        %1780 = vdwg.mxu0
        %1781 = vmatprep.subr.mxu0 %v601
        %1782 = vmatpush1.msra.mxu0 %v600
        %1783 = vmatprep.subr.mxu0 %v603
        %1784 = vmatpush1.msra.mxu0 %v602
        %1785 = vmatprep.subr.mxu0 %v605
        %1786 = vmatpush1.msra.mxu0 %v604
        %1787 = vmatprep.subr.mxu0 %v607
        %1788 = vmatpush1.msra.mxu0 %v606
        %1789 = vmatprep.subr.mxu0 %v609
        %1790 = vmatpush1.msra.mxu0 %v608
        %1791 = vmatprep.subr.mxu0 %v611
        %1792 = vmatpush1.msra.mxu0 %v610
        %1793 = vmatprep.subr.mxu0 %v613
        %1794 = vmatpush1.msra.mxu0 %v612
        %1795 = vmatprep.subr.mxu0 %v615
        %1796 = vmatpush1.msra.mxu0 %v614
        %1797 = vmatprep.subr.mxu0 %v617
        %1798 = vmatpush1.msra.mxu0 %v616
        %1799 = vmatprep.subr.mxu0 %v619
        %1800 = vmatpush1.msra.mxu0 %v618
        %1801 = vmatprep.subr.mxu0 %v621
        %1802 = vmatpush1.msra.mxu0 %v620
        %1803 = vmatprep.subr.mxu0 %v623
        %1804 = vmatpush1.msra.mxu0 %v622
        %1805 = vmatprep.subr.mxu0 %v625
        %1806 = vmatpush1.msra.mxu0 %v624
        %1807 = vmatprep.subr.mxu0 %v627
        %1808 = vmatpush1.msra.mxu0 %v626
        %1809 = vmatprep.subr.mxu0 %v629
        %1810 = vmatpush1.msra.mxu0 %v628
        %1811 = vmatprep.subr.mxu0 %v631
        %1812 = vmatpush1.msra.mxu0 %v630
        %1813 = vmatprep.subr.mxu0 %v633
        %1814 = vmatpush1.msra.mxu0 %v632
        %1815 = vmatprep.subr.mxu0 %v635
        %1816 = vmatpush1.msra.mxu0 %v634
        %1817 = vmatprep.subr.mxu0 %v637
        %1818 = vmatpush1.msra.mxu0 %v636
        %1819 = vmatprep.subr.mxu0 %v639
        %1820 = vmatpush1.msra.mxu0 %v638
        %1821 = vmatprep.subr.mxu0 %v641
        %1822 = vmatpush1.msra.mxu0 %v640
        %1823 = vmatprep.subr.mxu0 %v643
        %1824 = vmatpush1.msra.mxu0 %v642
        %1825 = vmatprep.subr.mxu0 %v645
        %1826 = vmatpush1.msra.mxu0 %v644
        %1827 = vmatprep.subr.mxu0 %v647
        %1828 = vmatpush1.msra.mxu0 %v646
        %1829 = vmatprep.subr.mxu0 %v654
        %1830 = vmatpush1.msra.mxu0 %v651
        %1831 = vmatprep.subr.mxu0 0.0
        %1832 = vmatpush1.msra.mxu0 0.0
        %1833 = vmatprep.subr.mxu0 0.0
        %1834 = vmatpush1.msra.mxu0 0.0
        %1835 = vmatprep.subr.mxu0 0.0
        %1836 = vmatpush1.msra.mxu0 0.0
        %1837 = vmatprep.subr.mxu0 0.0
        %1838 = vmatpush1.msra.mxu0 0.0
        %1839 = vmatprep.subr.mxu0 0.0
        %1840 = vmatpush1.msra.mxu0 0.0
        %1841 = vmatprep.subr.mxu0 0.0
        %1842 = vmatpush1.msra.mxu0 0.0
        %1843 = vmatprep.subr.mxu0 0.0
        %1844 = vmatpush1.msra.mxu0 0.0
        %1845 = vmatprep.mubr.f32.mxu0 %v1708
        %1846 = vmatmul.mubr.f32.gmra.mrb[0].mxu0 %v1705
        %v1847 = vpop.f32.mrb[0].mxu0
        %v1848 = vadd.f32 0.0, %v1847
        %v1849 = vpop.f32.mrb[0].mxu0
        %v1850 = vadd.f32 0.0, %v1849
        %1851 = vdwg.mxu0
        %1852 = vmatprep.subr.mxu0 %v729
        %1853 = vmatpush1.msra.mxu0 %v728
        %1854 = vmatprep.subr.mxu0 %v731
        %1855 = vmatpush1.msra.mxu0 %v730
        %1856 = vmatprep.subr.mxu0 %v733
        %1857 = vmatpush1.msra.mxu0 %v732
        %1858 = vmatprep.subr.mxu0 %v735
        %1859 = vmatpush1.msra.mxu0 %v734
        %1860 = vmatprep.subr.mxu0 %v737
        %1861 = vmatpush1.msra.mxu0 %v736
        %1862 = vmatprep.subr.mxu0 %v739
        %1863 = vmatpush1.msra.mxu0 %v738
        %1864 = vmatprep.subr.mxu0 %v741
        %1865 = vmatpush1.msra.mxu0 %v740
        %1866 = vmatprep.subr.mxu0 %v743
        %1867 = vmatpush1.msra.mxu0 %v742
        %1868 = vmatprep.subr.mxu0 %v745
        %1869 = vmatpush1.msra.mxu0 %v744
        %1870 = vmatprep.subr.mxu0 %v747
        %1871 = vmatpush1.msra.mxu0 %v746
        %1872 = vmatprep.subr.mxu0 %v749
        %1873 = vmatpush1.msra.mxu0 %v748
        %1874 = vmatprep.subr.mxu0 %v751
        %1875 = vmatpush1.msra.mxu0 %v750
        %1876 = vmatprep.subr.mxu0 %v753
        %1877 = vmatpush1.msra.mxu0 %v752
        %1878 = vmatprep.subr.mxu0 %v755
        %1879 = vmatpush1.msra.mxu0 %v754
        %1880 = vmatprep.subr.mxu0 %v757
        %1881 = vmatpush1.msra.mxu0 %v756
        %1882 = vmatprep.subr.mxu0 %v759
        %1883 = vmatpush1.msra.mxu0 %v758
        %1884 = vmatprep.subr.mxu0 %v761
        %1885 = vmatpush1.msra.mxu0 %v760
        %1886 = vmatprep.subr.mxu0 %v763
        %1887 = vmatpush1.msra.mxu0 %v762
        %1888 = vmatprep.subr.mxu0 %v765
        %1889 = vmatpush1.msra.mxu0 %v764
        %1890 = vmatprep.subr.mxu0 %v767
        %1891 = vmatpush1.msra.mxu0 %v766
        %1892 = vmatprep.subr.mxu0 %v769
        %1893 = vmatpush1.msra.mxu0 %v768
        %1894 = vmatprep.subr.mxu0 %v771
        %1895 = vmatpush1.msra.mxu0 %v770
        %1896 = vmatprep.subr.mxu0 %v773
        %1897 = vmatpush1.msra.mxu0 %v772
        %1898 = vmatprep.subr.mxu0 %v775
        %1899 = vmatpush1.msra.mxu0 %v774
        %1900 = vmatprep.subr.mxu0 %v782
        %1901 = vmatpush1.msra.mxu0 %v779
        %1902 = vmatprep.subr.mxu0 0.0
        %1903 = vmatpush1.msra.mxu0 0.0
        %1904 = vmatprep.subr.mxu0 0.0
        %1905 = vmatpush1.msra.mxu0 0.0
        %1906 = vmatprep.subr.mxu0 0.0
        %1907 = vmatpush1.msra.mxu0 0.0
        %1908 = vmatprep.subr.mxu0 0.0
        %1909 = vmatpush1.msra.mxu0 0.0
        %1910 = vmatprep.subr.mxu0 0.0
        %1911 = vmatpush1.msra.mxu0 0.0
        %1912 = vmatprep.subr.mxu0 0.0
        %1913 = vmatpush1.msra.mxu0 0.0
        %1914 = vmatprep.subr.mxu0 0.0
        %1915 = vmatpush1.msra.mxu0 0.0
        %1916 = vmatprep.mubr.f32.mxu0 %v1708
        %1917 = vmatmul.mubr.f32.gmra.mrb[0].mxu0 %v1705
        %v1918 = vpop.f32.mrb[0].mxu0
        %v1919 = vadd.f32 0.0, %v1918
        %v1920 = vpop.f32.mrb[0].mxu0
        %v1921 = vadd.f32 0.0, %v1920
        %1922 = vdwg.mxu0
        %1923 = vmatprep.subr.mxu0 %v857
        %1924 = vmatpush1.msra.mxu0 %v856
        %1925 = vmatprep.subr.mxu0 %v859
        %1926 = vmatpush1.msra.mxu0 %v858
        %1927 = vmatprep.subr.mxu0 %v861
        %1928 = vmatpush1.msra.mxu0 %v860
        %1929 = vmatprep.subr.mxu0 %v863
        %1930 = vmatpush1.msra.mxu0 %v862
        %1931 = vmatprep.subr.mxu0 %v865
        %1932 = vmatpush1.msra.mxu0 %v864
        %1933 = vmatprep.subr.mxu0 %v867
        %1934 = vmatpush1.msra.mxu0 %v866
        %1935 = vmatprep.subr.mxu0 %v869
        %1936 = vmatpush1.msra.mxu0 %v868
        %1937 = vmatprep.subr.mxu0 %v871
        %1938 = vmatpush1.msra.mxu0 %v870
        %1939 = vmatprep.subr.mxu0 %v873
        %1940 = vmatpush1.msra.mxu0 %v872
        %1941 = vmatprep.subr.mxu0 %v875
        %1942 = vmatpush1.msra.mxu0 %v874
        %1943 = vmatprep.subr.mxu0 %v877
        %1944 = vmatpush1.msra.mxu0 %v876
        %1945 = vmatprep.subr.mxu0 %v879
        %1946 = vmatpush1.msra.mxu0 %v878
        %1947 = vmatprep.subr.mxu0 %v881
        %1948 = vmatpush1.msra.mxu0 %v880
        %1949 = vmatprep.subr.mxu0 %v883
        %1950 = vmatpush1.msra.mxu0 %v882
        %1951 = vmatprep.subr.mxu0 %v885
        %1952 = vmatpush1.msra.mxu0 %v884
        %1953 = vmatprep.subr.mxu0 %v887
        %1954 = vmatpush1.msra.mxu0 %v886
        %1955 = vmatprep.subr.mxu0 %v889
        %1956 = vmatpush1.msra.mxu0 %v888
        %1957 = vmatprep.subr.mxu0 %v891
        %1958 = vmatpush1.msra.mxu0 %v890
        %1959 = vmatprep.subr.mxu0 %v893
        %1960 = vmatpush1.msra.mxu0 %v892
        %1961 = vmatprep.subr.mxu0 %v895
        %1962 = vmatpush1.msra.mxu0 %v894
        %1963 = vmatprep.subr.mxu0 %v897
        %1964 = vmatpush1.msra.mxu0 %v896
        %1965 = vmatprep.subr.mxu0 %v899
        %1966 = vmatpush1.msra.mxu0 %v898
        %1967 = vmatprep.subr.mxu0 %v901
        %1968 = vmatpush1.msra.mxu0 %v900
        %1969 = vmatprep.subr.mxu0 %v903
        %1970 = vmatpush1.msra.mxu0 %v902
        %1971 = vmatprep.subr.mxu0 %v910
        %1972 = vmatpush1.msra.mxu0 %v907
        %1973 = vmatprep.subr.mxu0 0.0
        %1974 = vmatpush1.msra.mxu0 0.0
        %1975 = vmatprep.subr.mxu0 0.0
        %1976 = vmatpush1.msra.mxu0 0.0
        %1977 = vmatprep.subr.mxu0 0.0
        %1978 = vmatpush1.msra.mxu0 0.0
        %1979 = vmatprep.subr.mxu0 0.0
        %1980 = vmatpush1.msra.mxu0 0.0
        %1981 = vmatprep.subr.mxu0 0.0
        %1982 = vmatpush1.msra.mxu0 0.0
        %1983 = vmatprep.subr.mxu0 0.0
        %1984 = vmatpush1.msra.mxu0 0.0
        %1985 = vmatprep.subr.mxu0 0.0
        %1986 = vmatpush1.msra.mxu0 0.0
        %1987 = vmatprep.mubr.f32.mxu0 %v1708
        %1988 = vmatmul.mubr.f32.gmra.mrb[0].mxu0 %v1705
        %v1989 = vpop.f32.mrb[0].mxu0
        %v1990 = vadd.f32 0.0, %v1989
        %v1991 = vpop.f32.mrb[0].mxu0
        %v1992 = vadd.f32 0.0, %v1991
        %1993 = vdwg.mxu0
        %1994 = vmatprep.subr.mxu0 %v985
        %1995 = vmatpush1.msra.mxu0 %v984
        %1996 = vmatprep.subr.mxu0 %v987
        %1997 = vmatpush1.msra.mxu0 %v986
        %1998 = vmatprep.subr.mxu0 %v989
        %1999 = vmatpush1.msra.mxu0 %v988
        %2000 = vmatprep.subr.mxu0 %v991
        %2001 = vmatpush1.msra.mxu0 %v990
        %2002 = vmatprep.subr.mxu0 %v993
        %2003 = vmatpush1.msra.mxu0 %v992
        %2004 = vmatprep.subr.mxu0 %v995
        %2005 = vmatpush1.msra.mxu0 %v994
        %2006 = vmatprep.subr.mxu0 %v997
        %2007 = vmatpush1.msra.mxu0 %v996
        %2008 = vmatprep.subr.mxu0 %v999
        %2009 = vmatpush1.msra.mxu0 %v998
        %2010 = vmatprep.subr.mxu0 %v1001
        %2011 = vmatpush1.msra.mxu0 %v1000
        %2012 = vmatprep.subr.mxu0 %v1003
        %2013 = vmatpush1.msra.mxu0 %v1002
        %2014 = vmatprep.subr.mxu0 %v1005
        %2015 = vmatpush1.msra.mxu0 %v1004
        %2016 = vmatprep.subr.mxu0 %v1007
        %2017 = vmatpush1.msra.mxu0 %v1006
        %2018 = vmatprep.subr.mxu0 %v1009
        %2019 = vmatpush1.msra.mxu0 %v1008
        %2020 = vmatprep.subr.mxu0 %v1011
        %2021 = vmatpush1.msra.mxu0 %v1010
        %2022 = vmatprep.subr.mxu0 %v1013
        %2023 = vmatpush1.msra.mxu0 %v1012
        %2024 = vmatprep.subr.mxu0 %v1015
        %2025 = vmatpush1.msra.mxu0 %v1014
        %2026 = vmatprep.subr.mxu0 %v1017
        %2027 = vmatpush1.msra.mxu0 %v1016
        %2028 = vmatprep.subr.mxu0 %v1019
        %2029 = vmatpush1.msra.mxu0 %v1018
        %2030 = vmatprep.subr.mxu0 %v1021
        %2031 = vmatpush1.msra.mxu0 %v1020
        %2032 = vmatprep.subr.mxu0 %v1023
        %2033 = vmatpush1.msra.mxu0 %v1022
        %2034 = vmatprep.subr.mxu0 %v1025
        %2035 = vmatpush1.msra.mxu0 %v1024
        %2036 = vmatprep.subr.mxu0 %v1027
        %2037 = vmatpush1.msra.mxu0 %v1026
        %2038 = vmatprep.subr.mxu0 %v1029
        %2039 = vmatpush1.msra.mxu0 %v1028
        %2040 = vmatprep.subr.mxu0 %v1031
        %2041 = vmatpush1.msra.mxu0 %v1030
        %2042 = vmatprep.subr.mxu0 %v1038
        %2043 = vmatpush1.msra.mxu0 %v1035
        %2044 = vmatprep.subr.mxu0 0.0
        %2045 = vmatpush1.msra.mxu0 0.0
        %2046 = vmatprep.subr.mxu0 0.0
        %2047 = vmatpush1.msra.mxu0 0.0
        %2048 = vmatprep.subr.mxu0 0.0
        %2049 = vmatpush1.msra.mxu0 0.0
        %2050 = vmatprep.subr.mxu0 0.0
        %2051 = vmatpush1.msra.mxu0 0.0
        %2052 = vmatprep.subr.mxu0 0.0
        %2053 = vmatpush1.msra.mxu0 0.0
        %2054 = vmatprep.subr.mxu0 0.0
        %2055 = vmatpush1.msra.mxu0 0.0
        %2056 = vmatprep.subr.mxu0 0.0
        %2057 = vmatpush1.msra.mxu0 0.0
        %2058 = vmatprep.mubr.f32.mxu0 %v1708
        %2059 = vmatmul.mubr.f32.gmra.mrb[0].mxu0 %v1705
        %v2060 = vpop.f32.mrb[0].mxu0
        %v2061 = vadd.f32 0.0, %v2060
        %v2062 = vpop.f32.mrb[0].mxu0
        %v2063 = vadd.f32 0.0, %v2062
        %2064 = vdwg.mxu0
        %2065 = vmatprep.subr.mxu0 %v1113
        %2066 = vmatpush1.msra.mxu0 %v1112
        %2067 = vmatprep.subr.mxu0 %v1115
        %2068 = vmatpush1.msra.mxu0 %v1114
        %2069 = vmatprep.subr.mxu0 %v1117
        %2070 = vmatpush1.msra.mxu0 %v1116
        %2071 = vmatprep.subr.mxu0 %v1119
        %2072 = vmatpush1.msra.mxu0 %v1118
        %2073 = vmatprep.subr.mxu0 %v1121
        %2074 = vmatpush1.msra.mxu0 %v1120
        %2075 = vmatprep.subr.mxu0 %v1123
        %2076 = vmatpush1.msra.mxu0 %v1122
        %2077 = vmatprep.subr.mxu0 %v1125
        %2078 = vmatpush1.msra.mxu0 %v1124
        %2079 = vmatprep.subr.mxu0 %v1127
        %2080 = vmatpush1.msra.mxu0 %v1126
        %2081 = vmatprep.subr.mxu0 %v1129
        %2082 = vmatpush1.msra.mxu0 %v1128
        %2083 = vmatprep.subr.mxu0 %v1131
        %2084 = vmatpush1.msra.mxu0 %v1130
        %2085 = vmatprep.subr.mxu0 %v1133
        %2086 = vmatpush1.msra.mxu0 %v1132
        %2087 = vmatprep.subr.mxu0 %v1135
        %2088 = vmatpush1.msra.mxu0 %v1134
        %2089 = vmatprep.subr.mxu0 %v1137
        %2090 = vmatpush1.msra.mxu0 %v1136
        %2091 = vmatprep.subr.mxu0 %v1139
        %2092 = vmatpush1.msra.mxu0 %v1138
        %2093 = vmatprep.subr.mxu0 %v1141
        %2094 = vmatpush1.msra.mxu0 %v1140
        %2095 = vmatprep.subr.mxu0 %v1143
        %2096 = vmatpush1.msra.mxu0 %v1142
        %2097 = vmatprep.subr.mxu0 %v1145
        %2098 = vmatpush1.msra.mxu0 %v1144
        %2099 = vmatprep.subr.mxu0 %v1147
        %2100 = vmatpush1.msra.mxu0 %v1146
        %2101 = vmatprep.subr.mxu0 %v1149
        %2102 = vmatpush1.msra.mxu0 %v1148
        %2103 = vmatprep.subr.mxu0 %v1151
        %2104 = vmatpush1.msra.mxu0 %v1150
        %2105 = vmatprep.subr.mxu0 %v1153
        %2106 = vmatpush1.msra.mxu0 %v1152
        %2107 = vmatprep.subr.mxu0 %v1155
        %2108 = vmatpush1.msra.mxu0 %v1154
        %2109 = vmatprep.subr.mxu0 %v1157
        %2110 = vmatpush1.msra.mxu0 %v1156
        %2111 = vmatprep.subr.mxu0 %v1159
        %2112 = vmatpush1.msra.mxu0 %v1158
        %2113 = vmatprep.subr.mxu0 %v1166
        %2114 = vmatpush1.msra.mxu0 %v1163
        %2115 = vmatprep.subr.mxu0 0.0
        %2116 = vmatpush1.msra.mxu0 0.0
        %2117 = vmatprep.subr.mxu0 0.0
        %2118 = vmatpush1.msra.mxu0 0.0
        %2119 = vmatprep.subr.mxu0 0.0
        %2120 = vmatpush1.msra.mxu0 0.0
        %2121 = vmatprep.subr.mxu0 0.0
        %2122 = vmatpush1.msra.mxu0 0.0
        %2123 = vmatprep.subr.mxu0 0.0
        %2124 = vmatpush1.msra.mxu0 0.0
        %2125 = vmatprep.subr.mxu0 0.0
        %2126 = vmatpush1.msra.mxu0 0.0
        %2127 = vmatprep.subr.mxu0 0.0
        %2128 = vmatpush1.msra.mxu0 0.0
        %2129 = vmatprep.mubr.f32.mxu0 %v1708
        %2130 = vmatmul.mubr.f32.gmra.mrb[0].mxu0 %v1705
        %v2131 = vpop.f32.mrb[0].mxu0
        %v2132 = vadd.f32 0.0, %v2131
        %v2133 = vpop.f32.mrb[0].mxu0
        %v2134 = vadd.f32 0.0, %v2133
        %2135 = vdwg.mxu0
        %2136 = vmatprep.subr.mxu0 %v1241
        %2137 = vmatpush1.msra.mxu0 %v1240
        %2138 = vmatprep.subr.mxu0 %v1243
        %2139 = vmatpush1.msra.mxu0 %v1242
        %2140 = vmatprep.subr.mxu0 %v1245
        %2141 = vmatpush1.msra.mxu0 %v1244
        %2142 = vmatprep.subr.mxu0 %v1247
        %2143 = vmatpush1.msra.mxu0 %v1246
        %2144 = vmatprep.subr.mxu0 %v1249
        %2145 = vmatpush1.msra.mxu0 %v1248
        %2146 = vmatprep.subr.mxu0 %v1251
        %2147 = vmatpush1.msra.mxu0 %v1250
        %2148 = vmatprep.subr.mxu0 %v1253
        %2149 = vmatpush1.msra.mxu0 %v1252
        %2150 = vmatprep.subr.mxu0 %v1255
        %2151 = vmatpush1.msra.mxu0 %v1254
        %2152 = vmatprep.subr.mxu0 %v1257
        %2153 = vmatpush1.msra.mxu0 %v1256
        %2154 = vmatprep.subr.mxu0 %v1259
        %2155 = vmatpush1.msra.mxu0 %v1258
        %2156 = vmatprep.subr.mxu0 %v1261
        %2157 = vmatpush1.msra.mxu0 %v1260
        %2158 = vmatprep.subr.mxu0 %v1263
        %2159 = vmatpush1.msra.mxu0 %v1262
        %2160 = vmatprep.subr.mxu0 %v1265
        %2161 = vmatpush1.msra.mxu0 %v1264
        %2162 = vmatprep.subr.mxu0 %v1267
        %2163 = vmatpush1.msra.mxu0 %v1266
        %2164 = vmatprep.subr.mxu0 %v1269
        %2165 = vmatpush1.msra.mxu0 %v1268
        %2166 = vmatprep.subr.mxu0 %v1271
        %2167 = vmatpush1.msra.mxu0 %v1270
        %2168 = vmatprep.subr.mxu0 %v1273
        %2169 = vmatpush1.msra.mxu0 %v1272
        %2170 = vmatprep.subr.mxu0 %v1275
        %2171 = vmatpush1.msra.mxu0 %v1274
        %2172 = vmatprep.subr.mxu0 %v1277
        %2173 = vmatpush1.msra.mxu0 %v1276
        %2174 = vmatprep.subr.mxu0 %v1279
        %2175 = vmatpush1.msra.mxu0 %v1278
        %2176 = vmatprep.subr.mxu0 %v1281
        %2177 = vmatpush1.msra.mxu0 %v1280
        %2178 = vmatprep.subr.mxu0 %v1283
        %2179 = vmatpush1.msra.mxu0 %v1282
        %2180 = vmatprep.subr.mxu0 %v1285
        %2181 = vmatpush1.msra.mxu0 %v1284
        %2182 = vmatprep.subr.mxu0 %v1287
        %2183 = vmatpush1.msra.mxu0 %v1286
        %2184 = vmatprep.subr.mxu0 %v1294
        %2185 = vmatpush1.msra.mxu0 %v1291
        %2186 = vmatprep.subr.mxu0 0.0
        %2187 = vmatpush1.msra.mxu0 0.0
        %2188 = vmatprep.subr.mxu0 0.0
        %2189 = vmatpush1.msra.mxu0 0.0
        %2190 = vmatprep.subr.mxu0 0.0
        %2191 = vmatpush1.msra.mxu0 0.0
        %2192 = vmatprep.subr.mxu0 0.0
        %2193 = vmatpush1.msra.mxu0 0.0
        %2194 = vmatprep.subr.mxu0 0.0
        %2195 = vmatpush1.msra.mxu0 0.0
        %2196 = vmatprep.subr.mxu0 0.0
        %2197 = vmatpush1.msra.mxu0 0.0
        %2198 = vmatprep.subr.mxu0 0.0
        %2199 = vmatpush1.msra.mxu0 0.0
        %2200 = vmatprep.mubr.f32.mxu0 %v1708
        %2201 = vmatmul.mubr.f32.gmra.mrb[0].mxu0 %v1705
        %v2202 = vpop.f32.mrb[0].mxu0
        %v2203 = vadd.f32 0.0, %v2202
        %v2204 = vpop.f32.mrb[0].mxu0
        %v2205 = vadd.f32 0.0, %v2204
        %2206 = vdwg.mxu0
        %2207 = vmatprep.subr.mxu0 %v1369
        %2208 = vmatpush1.msra.mxu0 %v1368
        %2209 = vmatprep.subr.mxu0 %v1371
        %2210 = vmatpush1.msra.mxu0 %v1370
        %2211 = vmatprep.subr.mxu0 %v1373
        %2212 = vmatpush1.msra.mxu0 %v1372
        %2213 = vmatprep.subr.mxu0 %v1375
        %2214 = vmatpush1.msra.mxu0 %v1374
        %2215 = vmatprep.subr.mxu0 %v1377
        %2216 = vmatpush1.msra.mxu0 %v1376
        %2217 = vmatprep.subr.mxu0 %v1379
        %2218 = vmatpush1.msra.mxu0 %v1378
        %2219 = vmatprep.subr.mxu0 %v1381
        %2220 = vmatpush1.msra.mxu0 %v1380
        %2221 = vmatprep.subr.mxu0 %v1383
        %2222 = vmatpush1.msra.mxu0 %v1382
        %2223 = vmatprep.subr.mxu0 %v1385
        %2224 = vmatpush1.msra.mxu0 %v1384
        %2225 = vmatprep.subr.mxu0 %v1387
        %2226 = vmatpush1.msra.mxu0 %v1386
        %2227 = vmatprep.subr.mxu0 %v1389
        %2228 = vmatpush1.msra.mxu0 %v1388
        %2229 = vmatprep.subr.mxu0 %v1391
        %2230 = vmatpush1.msra.mxu0 %v1390
        %2231 = vmatprep.subr.mxu0 %v1393
        %2232 = vmatpush1.msra.mxu0 %v1392
        %2233 = vmatprep.subr.mxu0 %v1395
        %2234 = vmatpush1.msra.mxu0 %v1394
        %2235 = vmatprep.subr.mxu0 %v1397
        %2236 = vmatpush1.msra.mxu0 %v1396
        %2237 = vmatprep.subr.mxu0 %v1399
        %2238 = vmatpush1.msra.mxu0 %v1398
        %2239 = vmatprep.subr.mxu0 %v1401
        %2240 = vmatpush1.msra.mxu0 %v1400
        %2241 = vmatprep.subr.mxu0 %v1403
        %2242 = vmatpush1.msra.mxu0 %v1402
        %2243 = vmatprep.subr.mxu0 %v1405
        %2244 = vmatpush1.msra.mxu0 %v1404
        %2245 = vmatprep.subr.mxu0 %v1407
        %2246 = vmatpush1.msra.mxu0 %v1406
        %2247 = vmatprep.subr.mxu0 %v1409
        %2248 = vmatpush1.msra.mxu0 %v1408
        %2249 = vmatprep.subr.mxu0 %v1411
        %2250 = vmatpush1.msra.mxu0 %v1410
        %2251 = vmatprep.subr.mxu0 %v1413
        %2252 = vmatpush1.msra.mxu0 %v1412
        %2253 = vmatprep.subr.mxu0 %v1415
        %2254 = vmatpush1.msra.mxu0 %v1414
        %2255 = vmatprep.subr.mxu0 %v1422
        %2256 = vmatpush1.msra.mxu0 %v1419
        %2257 = vmatprep.subr.mxu0 0.0
        %2258 = vmatpush1.msra.mxu0 0.0
        %2259 = vmatprep.subr.mxu0 0.0
        %2260 = vmatpush1.msra.mxu0 0.0
        %2261 = vmatprep.subr.mxu0 0.0
        %2262 = vmatpush1.msra.mxu0 0.0
        %2263 = vmatprep.subr.mxu0 0.0
        %2264 = vmatpush1.msra.mxu0 0.0
        %2265 = vmatprep.subr.mxu0 0.0
        %2266 = vmatpush1.msra.mxu0 0.0
        %2267 = vmatprep.subr.mxu0 0.0
        %2268 = vmatpush1.msra.mxu0 0.0
        %2269 = vmatprep.subr.mxu0 0.0
        %2270 = vmatpush1.msra.mxu0 0.0
        %2271 = vmatprep.mubr.f32.mxu0 %v1708
        %2272 = vmatmul.mubr.f32.gmra.mrb[0].mxu0 %v1705
        %v2273 = vpop.f32.mrb[0].mxu0
        %v2274 = vadd.f32 0.0, %v2273
        %v2275 = vpop.f32.mrb[0].mxu0
        %v2276 = vadd.f32 0.0, %v2275
        %2277 = vdwg.mxu0
        %2278 = vmatprep.subr.mxu0 %v1497
        %2279 = vmatpush1.msra.mxu0 %v1496
        %2280 = vmatprep.subr.mxu0 %v1499
        %2281 = vmatpush1.msra.mxu0 %v1498
        %2282 = vmatprep.subr.mxu0 %v1501
        %2283 = vmatpush1.msra.mxu0 %v1500
        %2284 = vmatprep.subr.mxu0 %v1503
        %2285 = vmatpush1.msra.mxu0 %v1502
        %2286 = vmatprep.subr.mxu0 %v1505
        %2287 = vmatpush1.msra.mxu0 %v1504
        %2288 = vmatprep.subr.mxu0 %v1507
        %2289 = vmatpush1.msra.mxu0 %v1506
        %2290 = vmatprep.subr.mxu0 %v1509
        %2291 = vmatpush1.msra.mxu0 %v1508
        %2292 = vmatprep.subr.mxu0 %v1511
        %2293 = vmatpush1.msra.mxu0 %v1510
        %2294 = vmatprep.subr.mxu0 %v1513
        %2295 = vmatpush1.msra.mxu0 %v1512
        %2296 = vmatprep.subr.mxu0 %v1515
        %2297 = vmatpush1.msra.mxu0 %v1514
        %2298 = vmatprep.subr.mxu0 %v1517
        %2299 = vmatpush1.msra.mxu0 %v1516
        %2300 = vmatprep.subr.mxu0 %v1519
        %2301 = vmatpush1.msra.mxu0 %v1518
        %2302 = vmatprep.subr.mxu0 %v1521
        %2303 = vmatpush1.msra.mxu0 %v1520
        %2304 = vmatprep.subr.mxu0 %v1523
        %2305 = vmatpush1.msra.mxu0 %v1522
        %2306 = vmatprep.subr.mxu0 %v1525
        %2307 = vmatpush1.msra.mxu0 %v1524
        %2308 = vmatprep.subr.mxu0 %v1527
        %2309 = vmatpush1.msra.mxu0 %v1526
        %2310 = vmatprep.subr.mxu0 %v1529
        %2311 = vmatpush1.msra.mxu0 %v1528
        %2312 = vmatprep.subr.mxu0 %v1531
        %2313 = vmatpush1.msra.mxu0 %v1530
        %2314 = vmatprep.subr.mxu0 %v1533
        %2315 = vmatpush1.msra.mxu0 %v1532
        %2316 = vmatprep.subr.mxu0 %v1535
        %2317 = vmatpush1.msra.mxu0 %v1534
        %2318 = vmatprep.subr.mxu0 %v1537
        %2319 = vmatpush1.msra.mxu0 %v1536
        %2320 = vmatprep.subr.mxu0 %v1539
        %2321 = vmatpush1.msra.mxu0 %v1538
        %2322 = vmatprep.subr.mxu0 %v1541
        %2323 = vmatpush1.msra.mxu0 %v1540
        %2324 = vmatprep.subr.mxu0 %v1543
        %2325 = vmatpush1.msra.mxu0 %v1542
        %2326 = vmatprep.subr.mxu0 %v1550
        %2327 = vmatpush1.msra.mxu0 %v1547
        %2328 = vmatprep.subr.mxu0 0.0
        %2329 = vmatpush1.msra.mxu0 0.0
        %2330 = vmatprep.subr.mxu0 0.0
        %2331 = vmatpush1.msra.mxu0 0.0
        %2332 = vmatprep.subr.mxu0 0.0
        %2333 = vmatpush1.msra.mxu0 0.0
        %2334 = vmatprep.subr.mxu0 0.0
        %2335 = vmatpush1.msra.mxu0 0.0
        %2336 = vmatprep.subr.mxu0 0.0
        %2337 = vmatpush1.msra.mxu0 0.0
        %2338 = vmatprep.subr.mxu0 0.0
        %2339 = vmatpush1.msra.mxu0 0.0
        %2340 = vmatprep.subr.mxu0 0.0
        %2341 = vmatpush1.msra.mxu0 0.0
        %2342 = vmatprep.mubr.f32.mxu0 %v1708
        %2343 = vmatmul.mubr.f32.gmra.mrb[0].mxu0 %v1705
        %v2344 = vpop.f32.mrb[0].mxu0
        %v2345 = vadd.f32 0.0, %v2344
        %v2346 = vpop.f32.mrb[0].mxu0
        %v2347 = vadd.f32 0.0, %v2346
        %2348 = vdwg.mxu0
        %v2349 = vld [vmem:[%s3] sm:$0xff]
        %v2350 = vld [vmem:[%s4] sm:$0xff]
        %2352 = vset.pattern.permute.xlu0 0
        %2353 = vperm.xlu0 %2352, %v2350
        %v2354 = vpop.permute.xlu0 %2353
        %v2357 = vsel %vm1630, %v2349, 0
        %2359 = vmatprep.subr.mxu0 %v1779
        %2360 = vmatpush1.msra.mxu0 %v1777
        %2361 = vmatprep.subr.mxu0 %v1850
        %2362 = vmatpush1.msra.mxu0 %v1848
        %2363 = vmatprep.subr.mxu0 %v1921
        %2364 = vmatpush1.msra.mxu0 %v1919
        %2365 = vmatprep.subr.mxu0 %v1992
        %2366 = vmatpush1.msra.mxu0 %v1990
        %2367 = vmatprep.subr.mxu0 %v2063
        %2368 = vmatpush1.msra.mxu0 %v2061
        %2369 = vmatprep.subr.mxu0 %v2134
        %2370 = vmatpush1.msra.mxu0 %v2132
        %2371 = vmatprep.subr.mxu0 %v2205
        %2372 = vmatpush1.msra.mxu0 %v2203
        %2373 = vmatprep.subr.mxu0 %v2276
        %2374 = vmatpush1.msra.mxu0 %v2274
        %2375 = vmatprep.subr.mxu0 %v2347
        %2376 = vmatpush1.msra.mxu0 %v2345
        %2377 = vmatprep.subr.mxu0 0.0
        %2378 = vmatpush1.msra.mxu0 0.0
        %2379 = vmatprep.subr.mxu0 0.0
        %2380 = vmatpush1.msra.mxu0 0.0
        %2381 = vmatprep.subr.mxu0 0.0
        %2382 = vmatpush1.msra.mxu0 0.0
        %2383 = vmatprep.subr.mxu0 0.0
        %2384 = vmatpush1.msra.mxu0 0.0
        %2385 = vmatprep.subr.mxu0 0.0
        %2386 = vmatpush1.msra.mxu0 0.0
        %2387 = vmatprep.subr.mxu0 0.0
        %2388 = vmatpush1.msra.mxu0 0.0
        %2389 = vmatprep.subr.mxu0 0.0
        %2390 = vmatpush1.msra.mxu0 0.0
        %2391 = vmatprep.subr.mxu0 0.0
        %2392 = vmatpush1.msra.mxu0 0.0
        %2393 = vmatprep.subr.mxu0 0.0
        %2394 = vmatpush1.msra.mxu0 0.0
        %2395 = vmatprep.subr.mxu0 0.0
        %2396 = vmatpush1.msra.mxu0 0.0
        %2397 = vmatprep.subr.mxu0 0.0
        %2398 = vmatpush1.msra.mxu0 0.0
        %2399 = vmatprep.subr.mxu0 0.0
        %2400 = vmatpush1.msra.mxu0 0.0
        %2401 = vmatprep.subr.mxu0 0.0
        %2402 = vmatpush1.msra.mxu0 0.0
        %2403 = vmatprep.subr.mxu0 0.0
        %2404 = vmatpush1.msra.mxu0 0.0
        %2405 = vmatprep.subr.mxu0 0.0
        %2406 = vmatpush1.msra.mxu0 0.0
        %2407 = vmatprep.subr.mxu0 0.0
        %2408 = vmatpush1.msra.mxu0 0.0
        %2409 = vmatprep.subr.mxu0 0.0
        %2410 = vmatpush1.msra.mxu0 0.0
        %2411 = vmatprep.subr.mxu0 0.0
        %2412 = vmatpush1.msra.mxu0 0.0
        %2413 = vmatprep.subr.mxu0 0.0
        %2414 = vmatpush1.msra.mxu0 0.0
        %2415 = vmatprep.subr.mxu0 0.0
        %2416 = vmatpush1.msra.mxu0 0.0
        %2417 = vmatprep.subr.mxu0 0.0
        %2418 = vmatpush1.msra.mxu0 0.0
        %2419 = vmatprep.subr.mxu0 0.0
        %2420 = vmatpush1.msra.mxu0 0.0
        %2421 = vmatprep.subr.mxu0 0.0
        %2422 = vmatpush1.msra.mxu0 0.0
        %2423 = vmatprep.mubr.f32.mxu0 0.0
        %2424 = vmatmul.mubr.f32.gmra.mrb[0].mxu0 %v2357
        %v2425 = vpop.f32.mrb[0].mxu0
        %v2426 = vadd.f32 %v2354, %v2425
        %v2427 = vpop.f32.mrb[0].mxu0
        %v2428 = vadd.f32 %v2354, %v2427
        %2429 = vdwg.mxu0
        %v2430 = vadd.f32 %v2426, %v465
        %v2431 = vadd.f32 %v2428, %v466
        %v2432 = vmax.f32 %v2430, 0.0
        %v2433 = vmax.f32 %v2431, 0.0
        %v2434 = vld [vmem:[%s8] sm:$0xff]
        %v2435 = vld [vmem:[%s8 + $0x8] sm:$0xff]
        %v2436 = vld [vmem:[%s8 + $0x10] sm:$0xff]
        %v2437 = vld [vmem:[%s8 + $0x18] sm:$0xff]
        %v2438 = vld [vmem:[%s8 + $0x20] sm:$0xff]
        %v2439 = vld [vmem:[%s8 + $0x28] sm:$0xff]
        %v2440 = vld [vmem:[%s8 + $0x30] sm:$0xff]
        %v2441 = vld [vmem:[%s8 + $0x38] sm:$0xff]
        %v2442 = vld [vmem:[%s8 + $0x40] sm:$0xff]
        %v2443 = vld [vmem:[%s8 + $0x48] sm:$0xff]
        %v2444 = vld [vmem:[%s8 + $0x50] sm:$0xff]
        %v2445 = vld [vmem:[%s8 + $0x58] sm:$0xff]
        %v2446 = vld [vmem:[%s8 + $0x60] sm:$0xff]
        %v2447 = vld [vmem:[%s8 + $0x68] sm:$0xff]
        %v2448 = vld [vmem:[%s8 + $0x70] sm:$0xff]
        %v2449 = vld [vmem:[%s8 + $0x78] sm:$0xff]
        %v2450 = vld [vmem:[%s8 + $0x80] sm:$0xff]
        %v2451 = vld [vmem:[%s8 + $0x88] sm:$0xff]
        %v2452 = vld [vmem:[%s8 + $0x90] sm:$0xff]
        %v2453 = vld [vmem:[%s8 + $0x98] sm:$0xff]
        %v2454 = vld [vmem:[%s8 + $0xa0] sm:$0xff]
        %v2455 = vld [vmem:[%s8 + $0xa8] sm:$0xff]
        %v2456 = vld [vmem:[%s8 + $0xb0] sm:$0xff]
        %v2457 = vld [vmem:[%s8 + $0xb8] sm:$0xff]
        %v2458 = vld [vmem:[%s8 + $0xc0] sm:$0xf]
        %v2460 = vsel %vm517, %v2433, 0
        %v2463 = vsel %vm521, %v2458, 0
        %2465 = vmatprep.subr.mxu0 0.0
        %2466 = vmatpush1.msra.mxu0 %v2434
        %2467 = vmatprep.subr.mxu0 0.0
        %2468 = vmatpush1.msra.mxu0 %v2435
        %2469 = vmatprep.subr.mxu0 0.0
        %2470 = vmatpush1.msra.mxu0 %v2436
        %2471 = vmatprep.subr.mxu0 0.0
        %2472 = vmatpush1.msra.mxu0 %v2437
        %2473 = vmatprep.subr.mxu0 0.0
        %2474 = vmatpush1.msra.mxu0 %v2438
        %2475 = vmatprep.subr.mxu0 0.0
        %2476 = vmatpush1.msra.mxu0 %v2439
        %2477 = vmatprep.subr.mxu0 0.0
        %2478 = vmatpush1.msra.mxu0 %v2440
        %2479 = vmatprep.subr.mxu0 0.0
        %2480 = vmatpush1.msra.mxu0 %v2441
        %2481 = vmatprep.subr.mxu0 0.0
        %2482 = vmatpush1.msra.mxu0 %v2442
        %2483 = vmatprep.subr.mxu0 0.0
        %2484 = vmatpush1.msra.mxu0 %v2443
        %2485 = vmatprep.subr.mxu0 0.0
        %2486 = vmatpush1.msra.mxu0 %v2444
        %2487 = vmatprep.subr.mxu0 0.0
        %2488 = vmatpush1.msra.mxu0 %v2445
        %2489 = vmatprep.subr.mxu0 0.0
        %2490 = vmatpush1.msra.mxu0 %v2446
        %2491 = vmatprep.subr.mxu0 0.0
        %2492 = vmatpush1.msra.mxu0 %v2447
        %2493 = vmatprep.subr.mxu0 0.0
        %2494 = vmatpush1.msra.mxu0 %v2448
        %2495 = vmatprep.subr.mxu0 0.0
        %2496 = vmatpush1.msra.mxu0 %v2449
        %2497 = vmatprep.subr.mxu0 0.0
        %2498 = vmatpush1.msra.mxu0 %v2450
        %2499 = vmatprep.subr.mxu0 0.0
        %2500 = vmatpush1.msra.mxu0 %v2451
        %2501 = vmatprep.subr.mxu0 0.0
        %2502 = vmatpush1.msra.mxu0 %v2452
        %2503 = vmatprep.subr.mxu0 0.0
        %2504 = vmatpush1.msra.mxu0 %v2453
        %2505 = vmatprep.subr.mxu0 0.0
        %2506 = vmatpush1.msra.mxu0 %v2454
        %2507 = vmatprep.subr.mxu0 0.0
        %2508 = vmatpush1.msra.mxu0 %v2455
        %2509 = vmatprep.subr.mxu0 0.0
        %2510 = vmatpush1.msra.mxu0 %v2456
        %2511 = vmatprep.subr.mxu0 0.0
        %2512 = vmatpush1.msra.mxu0 %v2457
        %2513 = vmatprep.subr.mxu0 0.0
        %2514 = vmatpush1.msra.mxu0 %v2463
        %2515 = vmatprep.subr.mxu0 0.0
        %2516 = vmatpush1.msra.mxu0 0.0
        %2517 = vmatprep.subr.mxu0 0.0
        %2518 = vmatpush1.msra.mxu0 0.0
        %2519 = vmatprep.subr.mxu0 0.0
        %2520 = vmatpush1.msra.mxu0 0.0
        %2521 = vmatprep.subr.mxu0 0.0
        %2522 = vmatpush1.msra.mxu0 0.0
        %2523 = vmatprep.subr.mxu0 0.0
        %2524 = vmatpush1.msra.mxu0 0.0
        %2525 = vmatprep.subr.mxu0 0.0
        %2526 = vmatpush1.msra.mxu0 0.0
        %2527 = vmatprep.subr.mxu0 0.0
        %2528 = vmatpush1.msra.mxu0 0.0
        %2529 = vmatprep.mubr.f32.mxu0 %v2460
        %2530 = vmatmul.mubr.f32.gmra.mrb[0].mxu0 %v2432
        %v2531 = vpop.f32.mrb[0].mxu0
        %v2532 = vadd.f32 0.0, %v2531
        %v2533 = vpop.f32.mrb[0].mxu0
        %2534 = vdwg.mxu0
        %s2535 = scalar_lea.vmem %s8, 200
        %v2536 = vld [vmem:[%s2535] sm:$0xff]
        %v2537 = vld [vmem:[%s2535 + $0x8] sm:$0xff]
        %v2538 = vld [vmem:[%s2535 + $0x10] sm:$0xff]
        %v2539 = vld [vmem:[%s2535 + $0x18] sm:$0xff]
        %v2540 = vld [vmem:[%s2535 + $0x20] sm:$0xff]
        %v2541 = vld [vmem:[%s2535 + $0x28] sm:$0xff]
        %v2542 = vld [vmem:[%s2535 + $0x30] sm:$0xff]
        %v2543 = vld [vmem:[%s2535 + $0x38] sm:$0xff]
        %v2544 = vld [vmem:[%s2535 + $0x40] sm:$0xff]
        %v2545 = vld [vmem:[%s2535 + $0x48] sm:$0xff]
        %v2546 = vld [vmem:[%s2535 + $0x50] sm:$0xff]
        %v2547 = vld [vmem:[%s2535 + $0x58] sm:$0xff]
        %v2548 = vld [vmem:[%s2535 + $0x60] sm:$0xff]
        %v2549 = vld [vmem:[%s2535 + $0x68] sm:$0xff]
        %v2550 = vld [vmem:[%s2535 + $0x70] sm:$0xff]
        %v2551 = vld [vmem:[%s2535 + $0x78] sm:$0xff]
        %v2552 = vld [vmem:[%s2535 + $0x80] sm:$0xff]
        %v2553 = vld [vmem:[%s2535 + $0x88] sm:$0xff]
        %v2554 = vld [vmem:[%s2535 + $0x90] sm:$0xff]
        %v2555 = vld [vmem:[%s2535 + $0x98] sm:$0xff]
        %v2556 = vld [vmem:[%s2535 + $0xa0] sm:$0xff]
        %v2557 = vld [vmem:[%s2535 + $0xa8] sm:$0xff]
        %v2558 = vld [vmem:[%s2535 + $0xb0] sm:$0xff]
        %v2559 = vld [vmem:[%s2535 + $0xb8] sm:$0xff]
        %v2560 = vld [vmem:[%s2535 + $0xc0] sm:$0xf]
        %v2562 = vsel %vm521, %v2560, 0
        %2564 = vmatprep.subr.mxu0 0.0
        %2565 = vmatpush1.msra.mxu0 %v2536
        %2566 = vmatprep.subr.mxu0 0.0
        %2567 = vmatpush1.msra.mxu0 %v2537
        %2568 = vmatprep.subr.mxu0 0.0
        %2569 = vmatpush1.msra.mxu0 %v2538
        %2570 = vmatprep.subr.mxu0 0.0
        %2571 = vmatpush1.msra.mxu0 %v2539
        %2572 = vmatprep.subr.mxu0 0.0
        %2573 = vmatpush1.msra.mxu0 %v2540
        %2574 = vmatprep.subr.mxu0 0.0
        %2575 = vmatpush1.msra.mxu0 %v2541
        %2576 = vmatprep.subr.mxu0 0.0
        %2577 = vmatpush1.msra.mxu0 %v2542
        %2578 = vmatprep.subr.mxu0 0.0
        %2579 = vmatpush1.msra.mxu0 %v2543
        %2580 = vmatprep.subr.mxu0 0.0
        %2581 = vmatpush1.msra.mxu0 %v2544
        %2582 = vmatprep.subr.mxu0 0.0
        %2583 = vmatpush1.msra.mxu0 %v2545
        %2584 = vmatprep.subr.mxu0 0.0
        %2585 = vmatpush1.msra.mxu0 %v2546
        %2586 = vmatprep.subr.mxu0 0.0
        %2587 = vmatpush1.msra.mxu0 %v2547
        %2588 = vmatprep.subr.mxu0 0.0
        %2589 = vmatpush1.msra.mxu0 %v2548
        %2590 = vmatprep.subr.mxu0 0.0
        %2591 = vmatpush1.msra.mxu0 %v2549
        %2592 = vmatprep.subr.mxu0 0.0
        %2593 = vmatpush1.msra.mxu0 %v2550
        %2594 = vmatprep.subr.mxu0 0.0
        %2595 = vmatpush1.msra.mxu0 %v2551
        %2596 = vmatprep.subr.mxu0 0.0
        %2597 = vmatpush1.msra.mxu0 %v2552
        %2598 = vmatprep.subr.mxu0 0.0
        %2599 = vmatpush1.msra.mxu0 %v2553
        %2600 = vmatprep.subr.mxu0 0.0
        %2601 = vmatpush1.msra.mxu0 %v2554
        %2602 = vmatprep.subr.mxu0 0.0
        %2603 = vmatpush1.msra.mxu0 %v2555
        %2604 = vmatprep.subr.mxu0 0.0
        %2605 = vmatpush1.msra.mxu0 %v2556
        %2606 = vmatprep.subr.mxu0 0.0
        %2607 = vmatpush1.msra.mxu0 %v2557
        %2608 = vmatprep.subr.mxu0 0.0
        %2609 = vmatpush1.msra.mxu0 %v2558
        %2610 = vmatprep.subr.mxu0 0.0
        %2611 = vmatpush1.msra.mxu0 %v2559
        %2612 = vmatprep.subr.mxu0 0.0
        %2613 = vmatpush1.msra.mxu0 %v2562
        %2614 = vmatprep.subr.mxu0 0.0
        %2615 = vmatpush1.msra.mxu0 0.0
        %2616 = vmatprep.subr.mxu0 0.0
        %2617 = vmatpush1.msra.mxu0 0.0
        %2618 = vmatprep.subr.mxu0 0.0
        %2619 = vmatpush1.msra.mxu0 0.0
        %2620 = vmatprep.subr.mxu0 0.0
        %2621 = vmatpush1.msra.mxu0 0.0
        %2622 = vmatprep.subr.mxu0 0.0
        %2623 = vmatpush1.msra.mxu0 0.0
        %2624 = vmatprep.subr.mxu0 0.0
        %2625 = vmatpush1.msra.mxu0 0.0
        %2626 = vmatprep.subr.mxu0 0.0
        %2627 = vmatpush1.msra.mxu0 0.0
        %2628 = vmatprep.mubr.f32.mxu0 %v2460
        %2629 = vmatmul.mubr.f32.gmra.mrb[0].mxu0 %v2432
        %v2630 = vpop.f32.mrb[0].mxu0
        %v2631 = vadd.f32 0.0, %v2630
        %v2632 = vpop.f32.mrb[0].mxu0
        %2633 = vdwg.mxu0
        %s2634 = scalar_lea.vmem %s8, 400
        %v2635 = vld [vmem:[%s2634] sm:$0xff]
        %v2636 = vld [vmem:[%s2634 + $0x8] sm:$0xff]
        %v2637 = vld [vmem:[%s2634 + $0x10] sm:$0xff]
        %v2638 = vld [vmem:[%s2634 + $0x18] sm:$0xff]
        %v2639 = vld [vmem:[%s2634 + $0x20] sm:$0xff]
        %v2640 = vld [vmem:[%s2634 + $0x28] sm:$0xff]
        %v2641 = vld [vmem:[%s2634 + $0x30] sm:$0xff]
        %v2642 = vld [vmem:[%s2634 + $0x38] sm:$0xff]
        %v2643 = vld [vmem:[%s2634 + $0x40] sm:$0xff]
        %v2644 = vld [vmem:[%s2634 + $0x48] sm:$0xff]
        %v2645 = vld [vmem:[%s2634 + $0x50] sm:$0xff]
        %v2646 = vld [vmem:[%s2634 + $0x58] sm:$0xff]
        %v2647 = vld [vmem:[%s2634 + $0x60] sm:$0xff]
        %v2648 = vld [vmem:[%s2634 + $0x68] sm:$0xff]
        %v2649 = vld [vmem:[%s2634 + $0x70] sm:$0xff]
        %v2650 = vld [vmem:[%s2634 + $0x78] sm:$0xff]
        %v2651 = vld [vmem:[%s2634 + $0x80] sm:$0xff]
        %v2652 = vld [vmem:[%s2634 + $0x88] sm:$0xff]
        %v2653 = vld [vmem:[%s2634 + $0x90] sm:$0xff]
        %v2654 = vld [vmem:[%s2634 + $0x98] sm:$0xff]
        %v2655 = vld [vmem:[%s2634 + $0xa0] sm:$0xff]
        %v2656 = vld [vmem:[%s2634 + $0xa8] sm:$0xff]
        %v2657 = vld [vmem:[%s2634 + $0xb0] sm:$0xff]
        %v2658 = vld [vmem:[%s2634 + $0xb8] sm:$0xff]
        %v2659 = vld [vmem:[%s2634 + $0xc0] sm:$0xf]
        %v2661 = vsel %vm521, %v2659, 0
        %2663 = vmatprep.subr.mxu0 0.0
        %2664 = vmatpush1.msra.mxu0 %v2635
        %2665 = vmatprep.subr.mxu0 0.0
        %2666 = vmatpush1.msra.mxu0 %v2636
        %2667 = vmatprep.subr.mxu0 0.0
        %2668 = vmatpush1.msra.mxu0 %v2637
        %2669 = vmatprep.subr.mxu0 0.0
        %2670 = vmatpush1.msra.mxu0 %v2638
        %2671 = vmatprep.subr.mxu0 0.0
        %2672 = vmatpush1.msra.mxu0 %v2639
        %2673 = vmatprep.subr.mxu0 0.0
        %2674 = vmatpush1.msra.mxu0 %v2640
        %2675 = vmatprep.subr.mxu0 0.0
        %2676 = vmatpush1.msra.mxu0 %v2641
        %2677 = vmatprep.subr.mxu0 0.0
        %2678 = vmatpush1.msra.mxu0 %v2642
        %2679 = vmatprep.subr.mxu0 0.0
        %2680 = vmatpush1.msra.mxu0 %v2643
        %2681 = vmatprep.subr.mxu0 0.0
        %2682 = vmatpush1.msra.mxu0 %v2644
        %2683 = vmatprep.subr.mxu0 0.0
        %2684 = vmatpush1.msra.mxu0 %v2645
        %2685 = vmatprep.subr.mxu0 0.0
        %2686 = vmatpush1.msra.mxu0 %v2646
        %2687 = vmatprep.subr.mxu0 0.0
        %2688 = vmatpush1.msra.mxu0 %v2647
        %2689 = vmatprep.subr.mxu0 0.0
        %2690 = vmatpush1.msra.mxu0 %v2648
        %2691 = vmatprep.subr.mxu0 0.0
        %2692 = vmatpush1.msra.mxu0 %v2649
        %2693 = vmatprep.subr.mxu0 0.0
        %2694 = vmatpush1.msra.mxu0 %v2650
        %2695 = vmatprep.subr.mxu0 0.0
        %2696 = vmatpush1.msra.mxu0 %v2651
        %2697 = vmatprep.subr.mxu0 0.0
        %2698 = vmatpush1.msra.mxu0 %v2652
        %2699 = vmatprep.subr.mxu0 0.0
        %2700 = vmatpush1.msra.mxu0 %v2653
        %2701 = vmatprep.subr.mxu0 0.0
        %2702 = vmatpush1.msra.mxu0 %v2654
        %2703 = vmatprep.subr.mxu0 0.0
        %2704 = vmatpush1.msra.mxu0 %v2655
        %2705 = vmatprep.subr.mxu0 0.0
        %2706 = vmatpush1.msra.mxu0 %v2656
        %2707 = vmatprep.subr.mxu0 0.0
        %2708 = vmatpush1.msra.mxu0 %v2657
        %2709 = vmatprep.subr.mxu0 0.0
        %2710 = vmatpush1.msra.mxu0 %v2658
        %2711 = vmatprep.subr.mxu0 0.0
        %2712 = vmatpush1.msra.mxu0 %v2661
        %2713 = vmatprep.subr.mxu0 0.0
        %2714 = vmatpush1.msra.mxu0 0.0
        %2715 = vmatprep.subr.mxu0 0.0
        %2716 = vmatpush1.msra.mxu0 0.0
        %2717 = vmatprep.subr.mxu0 0.0
        %2718 = vmatpush1.msra.mxu0 0.0
        %2719 = vmatprep.subr.mxu0 0.0
        %2720 = vmatpush1.msra.mxu0 0.0
        %2721 = vmatprep.subr.mxu0 0.0
        %2722 = vmatpush1.msra.mxu0 0.0
        %2723 = vmatprep.subr.mxu0 0.0
        %2724 = vmatpush1.msra.mxu0 0.0
        %2725 = vmatprep.subr.mxu0 0.0
        %2726 = vmatpush1.msra.mxu0 0.0
        %2727 = vmatprep.mubr.f32.mxu0 %v2460
        %2728 = vmatmul.mubr.f32.gmra.mrb[0].mxu0 %v2432
        %v2729 = vpop.f32.mrb[0].mxu0
        %v2730 = vadd.f32 0.0, %v2729
        %v2731 = vpop.f32.mrb[0].mxu0
        %2732 = vdwg.mxu0
        %s2733 = scalar_lea.vmem %s8, 600
        %v2734 = vld [vmem:[%s2733] sm:$0xff]
        %v2735 = vld [vmem:[%s2733 + $0x8] sm:$0xff]
        %v2736 = vld [vmem:[%s2733 + $0x10] sm:$0xff]
        %v2737 = vld [vmem:[%s2733 + $0x18] sm:$0xff]
        %v2738 = vld [vmem:[%s2733 + $0x20] sm:$0xff]
        %v2739 = vld [vmem:[%s2733 + $0x28] sm:$0xff]
        %v2740 = vld [vmem:[%s2733 + $0x30] sm:$0xff]
        %v2741 = vld [vmem:[%s2733 + $0x38] sm:$0xff]
        %v2742 = vld [vmem:[%s2733 + $0x40] sm:$0xff]
        %v2743 = vld [vmem:[%s2733 + $0x48] sm:$0xff]
        %v2744 = vld [vmem:[%s2733 + $0x50] sm:$0xff]
        %v2745 = vld [vmem:[%s2733 + $0x58] sm:$0xff]
        %v2746 = vld [vmem:[%s2733 + $0x60] sm:$0xff]
        %v2747 = vld [vmem:[%s2733 + $0x68] sm:$0xff]
        %v2748 = vld [vmem:[%s2733 + $0x70] sm:$0xff]
        %v2749 = vld [vmem:[%s2733 + $0x78] sm:$0xff]
        %v2750 = vld [vmem:[%s2733 + $0x80] sm:$0xff]
        %v2751 = vld [vmem:[%s2733 + $0x88] sm:$0xff]
        %v2752 = vld [vmem:[%s2733 + $0x90] sm:$0xff]
        %v2753 = vld [vmem:[%s2733 + $0x98] sm:$0xff]
        %v2754 = vld [vmem:[%s2733 + $0xa0] sm:$0xff]
        %v2755 = vld [vmem:[%s2733 + $0xa8] sm:$0xff]
        %v2756 = vld [vmem:[%s2733 + $0xb0] sm:$0xff]
        %v2757 = vld [vmem:[%s2733 + $0xb8] sm:$0xff]
        %v2758 = vld [vmem:[%s2733 + $0xc0] sm:$0xf]
        %v2760 = vsel %vm521, %v2758, 0
        %2762 = vmatprep.subr.mxu0 0.0
        %2763 = vmatpush1.msra.mxu0 %v2734
        %2764 = vmatprep.subr.mxu0 0.0
        %2765 = vmatpush1.msra.mxu0 %v2735
        %2766 = vmatprep.subr.mxu0 0.0
        %2767 = vmatpush1.msra.mxu0 %v2736
        %2768 = vmatprep.subr.mxu0 0.0
        %2769 = vmatpush1.msra.mxu0 %v2737
        %2770 = vmatprep.subr.mxu0 0.0
        %2771 = vmatpush1.msra.mxu0 %v2738
        %2772 = vmatprep.subr.mxu0 0.0
        %2773 = vmatpush1.msra.mxu0 %v2739
        %2774 = vmatprep.subr.mxu0 0.0
        %2775 = vmatpush1.msra.mxu0 %v2740
        %2776 = vmatprep.subr.mxu0 0.0
        %2777 = vmatpush1.msra.mxu0 %v2741
        %2778 = vmatprep.subr.mxu0 0.0
        %2779 = vmatpush1.msra.mxu0 %v2742
        %2780 = vmatprep.subr.mxu0 0.0
        %2781 = vmatpush1.msra.mxu0 %v2743
        %2782 = vmatprep.subr.mxu0 0.0
        %2783 = vmatpush1.msra.mxu0 %v2744
        %2784 = vmatprep.subr.mxu0 0.0
        %2785 = vmatpush1.msra.mxu0 %v2745
        %2786 = vmatprep.subr.mxu0 0.0
        %2787 = vmatpush1.msra.mxu0 %v2746
        %2788 = vmatprep.subr.mxu0 0.0
        %2789 = vmatpush1.msra.mxu0 %v2747
        %2790 = vmatprep.subr.mxu0 0.0
        %2791 = vmatpush1.msra.mxu0 %v2748
        %2792 = vmatprep.subr.mxu0 0.0
        %2793 = vmatpush1.msra.mxu0 %v2749
        %2794 = vmatprep.subr.mxu0 0.0
        %2795 = vmatpush1.msra.mxu0 %v2750
        %2796 = vmatprep.subr.mxu0 0.0
        %2797 = vmatpush1.msra.mxu0 %v2751
        %2798 = vmatprep.subr.mxu0 0.0
        %2799 = vmatpush1.msra.mxu0 %v2752
        %2800 = vmatprep.subr.mxu0 0.0
        %2801 = vmatpush1.msra.mxu0 %v2753
        %2802 = vmatprep.subr.mxu0 0.0
        %2803 = vmatpush1.msra.mxu0 %v2754
        %2804 = vmatprep.subr.mxu0 0.0
        %2805 = vmatpush1.msra.mxu0 %v2755
        %2806 = vmatprep.subr.mxu0 0.0
        %2807 = vmatpush1.msra.mxu0 %v2756
        %2808 = vmatprep.subr.mxu0 0.0
        %2809 = vmatpush1.msra.mxu0 %v2757
        %2810 = vmatprep.subr.mxu0 0.0
        %2811 = vmatpush1.msra.mxu0 %v2760
        %2812 = vmatprep.subr.mxu0 0.0
        %2813 = vmatpush1.msra.mxu0 0.0
        %2814 = vmatprep.subr.mxu0 0.0
        %2815 = vmatpush1.msra.mxu0 0.0
        %2816 = vmatprep.subr.mxu0 0.0
        %2817 = vmatpush1.msra.mxu0 0.0
        %2818 = vmatprep.subr.mxu0 0.0
        %2819 = vmatpush1.msra.mxu0 0.0
        %2820 = vmatprep.subr.mxu0 0.0
        %2821 = vmatpush1.msra.mxu0 0.0
        %2822 = vmatprep.subr.mxu0 0.0
        %2823 = vmatpush1.msra.mxu0 0.0
        %2824 = vmatprep.subr.mxu0 0.0
        %2825 = vmatpush1.msra.mxu0 0.0
        %2826 = vmatprep.mubr.f32.mxu0 %v2460
        %2827 = vmatmul.mubr.f32.gmra.mrb[0].mxu0 %v2432
        %v2828 = vpop.f32.mrb[0].mxu0
        %v2829 = vadd.f32 0.0, %v2828
        %v2830 = vpop.f32.mrb[0].mxu0
        %2831 = vdwg.mxu0
        %v2832 = vmax.f32 %v2532, %v2631
        %v2833 = vmax.f32 %v2730, %v2829
        %v2834 = vmax.f32 %v2832, %v2833
        %v2835 = vld [vmem:[%s9] sm:$0xff]
        %v2836 = vld [vmem:[%s9 + $0x8] sm:$0xff]
        %v2837 = vld [vmem:[%s9 + $0x10] sm:$0xff]
        %v2838 = vld [vmem:[%s9 + $0x18] sm:$0xff]
        %v2839 = vld [vmem:[%s9 + $0x20] sm:$0xff]
        %v2840 = vld [vmem:[%s9 + $0x28] sm:$0xff]
        %v2841 = vld [vmem:[%s9 + $0x30] sm:$0x1]
        %vm2842 = vcmask 400384
        %v2844 = vsel %vm2842, %v2834, 0
        %vm2846 = vcmask 1040384
        %v2848 = vsel %vm2846, %v2841, 0
        %2850 = vmatprep.subr.mxu0 0.0
        %2851 = vmatpush1.msra.mxu0 %v2835
        %2852 = vmatprep.subr.mxu0 0.0
        %2853 = vmatpush1.msra.mxu0 %v2836
        %2854 = vmatprep.subr.mxu0 0.0
        %2855 = vmatpush1.msra.mxu0 %v2837
        %2856 = vmatprep.subr.mxu0 0.0
        %2857 = vmatpush1.msra.mxu0 %v2838
        %2858 = vmatprep.subr.mxu0 0.0
        %2859 = vmatpush1.msra.mxu0 %v2839
        %2860 = vmatprep.subr.mxu0 0.0
        %2861 = vmatpush1.msra.mxu0 %v2840
        %2862 = vmatprep.subr.mxu0 0.0
        %2863 = vmatpush1.msra.mxu0 %v2848
        %2864 = vmatprep.subr.mxu0 0.0
        %2865 = vmatpush1.msra.mxu0 0.0
        %2866 = vmatprep.subr.mxu0 0.0
        %2867 = vmatpush1.msra.mxu0 0.0
        %2868 = vmatprep.subr.mxu0 0.0
        %2869 = vmatpush1.msra.mxu0 0.0
        %2870 = vmatprep.subr.mxu0 0.0
        %2871 = vmatpush1.msra.mxu0 0.0
        %2872 = vmatprep.subr.mxu0 0.0
        %2873 = vmatpush1.msra.mxu0 0.0
        %2874 = vmatprep.subr.mxu0 0.0
        %2875 = vmatpush1.msra.mxu0 0.0
        %2876 = vmatprep.subr.mxu0 0.0
        %2877 = vmatpush1.msra.mxu0 0.0
        %2878 = vmatprep.subr.mxu0 0.0
        %2879 = vmatpush1.msra.mxu0 0.0
        %2880 = vmatprep.subr.mxu0 0.0
        %2881 = vmatpush1.msra.mxu0 0.0
        %2882 = vmatprep.subr.mxu0 0.0
        %2883 = vmatpush1.msra.mxu0 0.0
        %2884 = vmatprep.subr.mxu0 0.0
        %2885 = vmatpush1.msra.mxu0 0.0
        %2886 = vmatprep.subr.mxu0 0.0
        %2887 = vmatpush1.msra.mxu0 0.0
        %2888 = vmatprep.subr.mxu0 0.0
        %2889 = vmatpush1.msra.mxu0 0.0
        %2890 = vmatprep.subr.mxu0 0.0
        %2891 = vmatpush1.msra.mxu0 0.0
        %2892 = vmatprep.subr.mxu0 0.0
        %2893 = vmatpush1.msra.mxu0 0.0
        %2894 = vmatprep.subr.mxu0 0.0
        %2895 = vmatpush1.msra.mxu0 0.0
        %2896 = vmatprep.subr.mxu0 0.0
        %2897 = vmatpush1.msra.mxu0 0.0
        %2898 = vmatprep.subr.mxu0 0.0
        %2899 = vmatpush1.msra.mxu0 0.0
        %2900 = vmatprep.subr.mxu0 0.0
        %2901 = vmatpush1.msra.mxu0 0.0
        %2902 = vmatprep.subr.mxu0 0.0
        %2903 = vmatpush1.msra.mxu0 0.0
        %2904 = vmatprep.subr.mxu0 0.0
        %2905 = vmatpush1.msra.mxu0 0.0
        %2906 = vmatprep.subr.mxu0 0.0
        %2907 = vmatpush1.msra.mxu0 0.0
        %2908 = vmatprep.subr.mxu0 0.0
        %2909 = vmatpush1.msra.mxu0 0.0
        %2910 = vmatprep.subr.mxu0 0.0
        %2911 = vmatpush1.msra.mxu0 0.0
        %2912 = vmatprep.subr.mxu0 0.0
        %2913 = vmatpush1.msra.mxu0 0.0
        %2914 = vmatprep.mubr.f32.mxu0 0.0
        %2915 = vmatmul.mubr.f32.gmra.mrb[0].mxu0 %v2844
        %v2916 = vpop.f32.mrb[0].mxu0
        %v2917 = vadd.f32 0.0, %v2916
        %v2918 = vpop.f32.mrb[0].mxu0
        %2919 = vdwg.mxu0
        %s2920 = scalar_lea.vmem %s9, 56
        %v2921 = vld [vmem:[%s2920] sm:$0xff]
        %v2922 = vld [vmem:[%s2920 + $0x8] sm:$0xff]
        %v2923 = vld [vmem:[%s2920 + $0x10] sm:$0xff]
        %v2924 = vld [vmem:[%s2920 + $0x18] sm:$0xff]
        %v2925 = vld [vmem:[%s2920 + $0x20] sm:$0xff]
        %v2926 = vld [vmem:[%s2920 + $0x28] sm:$0xff]
        %v2927 = vld [vmem:[%s2920 + $0x30] sm:$0x1]
        %v2929 = vsel %vm2846, %v2927, 0
        %2931 = vmatprep.subr.mxu0 0.0
        %2932 = vmatpush1.msra.mxu0 %v2921
        %2933 = vmatprep.subr.mxu0 0.0
        %2934 = vmatpush1.msra.mxu0 %v2922
        %2935 = vmatprep.subr.mxu0 0.0
        %2936 = vmatpush1.msra.mxu0 %v2923
        %2937 = vmatprep.subr.mxu0 0.0
        %2938 = vmatpush1.msra.mxu0 %v2924
        %2939 = vmatprep.subr.mxu0 0.0
        %2940 = vmatpush1.msra.mxu0 %v2925
        %2941 = vmatprep.subr.mxu0 0.0
        %2942 = vmatpush1.msra.mxu0 %v2926
        %2943 = vmatprep.subr.mxu0 0.0
        %2944 = vmatpush1.msra.mxu0 %v2929
        %2945 = vmatprep.subr.mxu0 0.0
        %2946 = vmatpush1.msra.mxu0 0.0
        %2947 = vmatprep.subr.mxu0 0.0
        %2948 = vmatpush1.msra.mxu0 0.0
        %2949 = vmatprep.subr.mxu0 0.0
        %2950 = vmatpush1.msra.mxu0 0.0
        %2951 = vmatprep.subr.mxu0 0.0
        %2952 = vmatpush1.msra.mxu0 0.0
        %2953 = vmatprep.subr.mxu0 0.0
        %2954 = vmatpush1.msra.mxu0 0.0
        %2955 = vmatprep.subr.mxu0 0.0
        %2956 = vmatpush1.msra.mxu0 0.0
        %2957 = vmatprep.subr.mxu0 0.0
        %2958 = vmatpush1.msra.mxu0 0.0
        %2959 = vmatprep.subr.mxu0 0.0
        %2960 = vmatpush1.msra.mxu0 0.0
        %2961 = vmatprep.subr.mxu0 0.0
        %2962 = vmatpush1.msra.mxu0 0.0
        %2963 = vmatprep.subr.mxu0 0.0
        %2964 = vmatpush1.msra.mxu0 0.0
        %2965 = vmatprep.subr.mxu0 0.0
        %2966 = vmatpush1.msra.mxu0 0.0
        %2967 = vmatprep.subr.mxu0 0.0
        %2968 = vmatpush1.msra.mxu0 0.0
        %2969 = vmatprep.subr.mxu0 0.0
        %2970 = vmatpush1.msra.mxu0 0.0
        %2971 = vmatprep.subr.mxu0 0.0
        %2972 = vmatpush1.msra.mxu0 0.0
        %2973 = vmatprep.subr.mxu0 0.0
        %2974 = vmatpush1.msra.mxu0 0.0
        %2975 = vmatprep.subr.mxu0 0.0
        %2976 = vmatpush1.msra.mxu0 0.0
        %2977 = vmatprep.subr.mxu0 0.0
        %2978 = vmatpush1.msra.mxu0 0.0
        %2979 = vmatprep.subr.mxu0 0.0
        %2980 = vmatpush1.msra.mxu0 0.0
        %2981 = vmatprep.subr.mxu0 0.0
        %2982 = vmatpush1.msra.mxu0 0.0
        %2983 = vmatprep.subr.mxu0 0.0
        %2984 = vmatpush1.msra.mxu0 0.0
        %2985 = vmatprep.subr.mxu0 0.0
        %2986 = vmatpush1.msra.mxu0 0.0
        %2987 = vmatprep.subr.mxu0 0.0
        %2988 = vmatpush1.msra.mxu0 0.0
        %2989 = vmatprep.subr.mxu0 0.0
        %2990 = vmatpush1.msra.mxu0 0.0
        %2991 = vmatprep.subr.mxu0 0.0
        %2992 = vmatpush1.msra.mxu0 0.0
        %2993 = vmatprep.subr.mxu0 0.0
        %2994 = vmatpush1.msra.mxu0 0.0
        %2995 = vmatprep.mubr.f32.mxu0 0.0
        %2996 = vmatmul.mubr.f32.gmra.mrb[0].mxu0 %v2844
        %v2997 = vpop.f32.mrb[0].mxu0
        %v2998 = vadd.f32 0.0, %v2997
        %v2999 = vpop.f32.mrb[0].mxu0
        %3000 = vdwg.mxu0
        %s3001 = scalar_lea.vmem %s9, 112
        %v3002 = vld [vmem:[%s3001] sm:$0xff]
        %v3003 = vld [vmem:[%s3001 + $0x8] sm:$0xff]
        %v3004 = vld [vmem:[%s3001 + $0x10] sm:$0xff]
        %v3005 = vld [vmem:[%s3001 + $0x18] sm:$0xff]
        %v3006 = vld [vmem:[%s3001 + $0x20] sm:$0xff]
        %v3007 = vld [vmem:[%s3001 + $0x28] sm:$0xff]
        %v3008 = vld [vmem:[%s3001 + $0x30] sm:$0x1]
        %v3010 = vsel %vm2846, %v3008, 0
        %3012 = vmatprep.subr.mxu0 0.0
        %3013 = vmatpush1.msra.mxu0 %v3002
        %3014 = vmatprep.subr.mxu0 0.0
        %3015 = vmatpush1.msra.mxu0 %v3003
        %3016 = vmatprep.subr.mxu0 0.0
        %3017 = vmatpush1.msra.mxu0 %v3004
        %3018 = vmatprep.subr.mxu0 0.0
        %3019 = vmatpush1.msra.mxu0 %v3005
        %3020 = vmatprep.subr.mxu0 0.0
        %3021 = vmatpush1.msra.mxu0 %v3006
        %3022 = vmatprep.subr.mxu0 0.0
        %3023 = vmatpush1.msra.mxu0 %v3007
        %3024 = vmatprep.subr.mxu0 0.0
        %3025 = vmatpush1.msra.mxu0 %v3010
        %3026 = vmatprep.subr.mxu0 0.0
        %3027 = vmatpush1.msra.mxu0 0.0
        %3028 = vmatprep.subr.mxu0 0.0
        %3029 = vmatpush1.msra.mxu0 0.0
        %3030 = vmatprep.subr.mxu0 0.0
        %3031 = vmatpush1.msra.mxu0 0.0
        %3032 = vmatprep.subr.mxu0 0.0
        %3033 = vmatpush1.msra.mxu0 0.0
        %3034 = vmatprep.subr.mxu0 0.0
        %3035 = vmatpush1.msra.mxu0 0.0
        %3036 = vmatprep.subr.mxu0 0.0
        %3037 = vmatpush1.msra.mxu0 0.0
        %3038 = vmatprep.subr.mxu0 0.0
        %3039 = vmatpush1.msra.mxu0 0.0
        %3040 = vmatprep.subr.mxu0 0.0
        %3041 = vmatpush1.msra.mxu0 0.0
        %3042 = vmatprep.subr.mxu0 0.0
        %3043 = vmatpush1.msra.mxu0 0.0
        %3044 = vmatprep.subr.mxu0 0.0
        %3045 = vmatpush1.msra.mxu0 0.0
        %3046 = vmatprep.subr.mxu0 0.0
        %3047 = vmatpush1.msra.mxu0 0.0
        %3048 = vmatprep.subr.mxu0 0.0
        %3049 = vmatpush1.msra.mxu0 0.0
        %3050 = vmatprep.subr.mxu0 0.0
        %3051 = vmatpush1.msra.mxu0 0.0
        %3052 = vmatprep.subr.mxu0 0.0
        %3053 = vmatpush1.msra.mxu0 0.0
        %3054 = vmatprep.subr.mxu0 0.0
        %3055 = vmatpush1.msra.mxu0 0.0
        %3056 = vmatprep.subr.mxu0 0.0
        %3057 = vmatpush1.msra.mxu0 0.0
        %3058 = vmatprep.subr.mxu0 0.0
        %3059 = vmatpush1.msra.mxu0 0.0
        %3060 = vmatprep.subr.mxu0 0.0
        %3061 = vmatpush1.msra.mxu0 0.0
        %3062 = vmatprep.subr.mxu0 0.0
        %3063 = vmatpush1.msra.mxu0 0.0
        %3064 = vmatprep.subr.mxu0 0.0
        %3065 = vmatpush1.msra.mxu0 0.0
        %3066 = vmatprep.subr.mxu0 0.0
        %3067 = vmatpush1.msra.mxu0 0.0
        %3068 = vmatprep.subr.mxu0 0.0
        %3069 = vmatpush1.msra.mxu0 0.0
        %3070 = vmatprep.subr.mxu0 0.0
        %3071 = vmatpush1.msra.mxu0 0.0
        %3072 = vmatprep.subr.mxu0 0.0
        %3073 = vmatpush1.msra.mxu0 0.0
        %3074 = vmatprep.subr.mxu0 0.0
        %3075 = vmatpush1.msra.mxu0 0.0
        %3076 = vmatprep.mubr.f32.mxu0 0.0
        %3077 = vmatmul.mubr.f32.gmra.mrb[0].mxu0 %v2844
        %v3078 = vpop.f32.mrb[0].mxu0
        %v3079 = vadd.f32 0.0, %v3078
        %v3080 = vpop.f32.mrb[0].mxu0
        %3081 = vdwg.mxu0
        %s3082 = scalar_lea.vmem %s9, 168
        %v3083 = vld [vmem:[%s3082] sm:$0xff]
        %v3084 = vld [vmem:[%s3082 + $0x8] sm:$0xff]
        %v3085 = vld [vmem:[%s3082 + $0x10] sm:$0xff]
        %v3086 = vld [vmem:[%s3082 + $0x18] sm:$0xff]
        %v3087 = vld [vmem:[%s3082 + $0x20] sm:$0xff]
        %v3088 = vld [vmem:[%s3082 + $0x28] sm:$0xff]
        %v3089 = vld [vmem:[%s3082 + $0x30] sm:$0x1]
        %v3091 = vsel %vm2846, %v3089, 0
        %3093 = vmatprep.subr.mxu0 0.0
        %3094 = vmatpush1.msra.mxu0 %v3083
        %3095 = vmatprep.subr.mxu0 0.0
        %3096 = vmatpush1.msra.mxu0 %v3084
        %3097 = vmatprep.subr.mxu0 0.0
        %3098 = vmatpush1.msra.mxu0 %v3085
        %3099 = vmatprep.subr.mxu0 0.0
        %3100 = vmatpush1.msra.mxu0 %v3086
        %3101 = vmatprep.subr.mxu0 0.0
        %3102 = vmatpush1.msra.mxu0 %v3087
        %3103 = vmatprep.subr.mxu0 0.0
        %3104 = vmatpush1.msra.mxu0 %v3088
        %3105 = vmatprep.subr.mxu0 0.0
        %3106 = vmatpush1.msra.mxu0 %v3091
        %3107 = vmatprep.subr.mxu0 0.0
        %3108 = vmatpush1.msra.mxu0 0.0
        %3109 = vmatprep.subr.mxu0 0.0
        %3110 = vmatpush1.msra.mxu0 0.0
        %3111 = vmatprep.subr.mxu0 0.0
        %3112 = vmatpush1.msra.mxu0 0.0
        %3113 = vmatprep.subr.mxu0 0.0
        %3114 = vmatpush1.msra.mxu0 0.0
        %3115 = vmatprep.subr.mxu0 0.0
        %3116 = vmatpush1.msra.mxu0 0.0
        %3117 = vmatprep.subr.mxu0 0.0
        %3118 = vmatpush1.msra.mxu0 0.0
        %3119 = vmatprep.subr.mxu0 0.0
        %3120 = vmatpush1.msra.mxu0 0.0
        %3121 = vmatprep.subr.mxu0 0.0
        %3122 = vmatpush1.msra.mxu0 0.0
        %3123 = vmatprep.subr.mxu0 0.0
        %3124 = vmatpush1.msra.mxu0 0.0
        %3125 = vmatprep.subr.mxu0 0.0
        %3126 = vmatpush1.msra.mxu0 0.0
        %3127 = vmatprep.subr.mxu0 0.0
        %3128 = vmatpush1.msra.mxu0 0.0
        %3129 = vmatprep.subr.mxu0 0.0
        %3130 = vmatpush1.msra.mxu0 0.0
        %3131 = vmatprep.subr.mxu0 0.0
        %3132 = vmatpush1.msra.mxu0 0.0
        %3133 = vmatprep.subr.mxu0 0.0
        %3134 = vmatpush1.msra.mxu0 0.0
        %3135 = vmatprep.subr.mxu0 0.0
        %3136 = vmatpush1.msra.mxu0 0.0
        %3137 = vmatprep.subr.mxu0 0.0
        %3138 = vmatpush1.msra.mxu0 0.0
        %3139 = vmatprep.subr.mxu0 0.0
        %3140 = vmatpush1.msra.mxu0 0.0
        %3141 = vmatprep.subr.mxu0 0.0
        %3142 = vmatpush1.msra.mxu0 0.0
        %3143 = vmatprep.subr.mxu0 0.0
        %3144 = vmatpush1.msra.mxu0 0.0
        %3145 = vmatprep.subr.mxu0 0.0
        %3146 = vmatpush1.msra.mxu0 0.0
        %3147 = vmatprep.subr.mxu0 0.0
        %3148 = vmatpush1.msra.mxu0 0.0
        %3149 = vmatprep.subr.mxu0 0.0
        %3150 = vmatpush1.msra.mxu0 0.0
        %3151 = vmatprep.subr.mxu0 0.0
        %3152 = vmatpush1.msra.mxu0 0.0
        %3153 = vmatprep.subr.mxu0 0.0
        %3154 = vmatpush1.msra.mxu0 0.0
        %3155 = vmatprep.subr.mxu0 0.0
        %3156 = vmatpush1.msra.mxu0 0.0
        %3157 = vmatprep.mubr.f32.mxu0 0.0
        %3158 = vmatmul.mubr.f32.gmra.mrb[0].mxu0 %v2844
        %v3159 = vpop.f32.mrb[0].mxu0
        %v3160 = vadd.f32 0.0, %v3159
        %v3161 = vpop.f32.mrb[0].mxu0
        %3162 = vdwg.mxu0
        %s3163 = scalar_lea.vmem %s9, 224
        %v3164 = vld [vmem:[%s3163] sm:$0xff]
        %v3165 = vld [vmem:[%s3163 + $0x8] sm:$0xff]
        %v3166 = vld [vmem:[%s3163 + $0x10] sm:$0xff]
        %v3167 = vld [vmem:[%s3163 + $0x18] sm:$0xff]
        %v3168 = vld [vmem:[%s3163 + $0x20] sm:$0xff]
        %v3169 = vld [vmem:[%s3163 + $0x28] sm:$0xff]
        %v3170 = vld [vmem:[%s3163 + $0x30] sm:$0x1]
        %v3172 = vsel %vm2846, %v3170, 0
        %3174 = vmatprep.subr.mxu0 0.0
        %3175 = vmatpush1.msra.mxu0 %v3164
        %3176 = vmatprep.subr.mxu0 0.0
        %3177 = vmatpush1.msra.mxu0 %v3165
        %3178 = vmatprep.subr.mxu0 0.0
        %3179 = vmatpush1.msra.mxu0 %v3166
        %3180 = vmatprep.subr.mxu0 0.0
        %3181 = vmatpush1.msra.mxu0 %v3167
        %3182 = vmatprep.subr.mxu0 0.0
        %3183 = vmatpush1.msra.mxu0 %v3168
        %3184 = vmatprep.subr.mxu0 0.0
        %3185 = vmatpush1.msra.mxu0 %v3169
        %3186 = vmatprep.subr.mxu0 0.0
        %3187 = vmatpush1.msra.mxu0 %v3172
        %3188 = vmatprep.subr.mxu0 0.0
        %3189 = vmatpush1.msra.mxu0 0.0
        %3190 = vmatprep.subr.mxu0 0.0
        %3191 = vmatpush1.msra.mxu0 0.0
        %3192 = vmatprep.subr.mxu0 0.0
        %3193 = vmatpush1.msra.mxu0 0.0
        %3194 = vmatprep.subr.mxu0 0.0
        %3195 = vmatpush1.msra.mxu0 0.0
        %3196 = vmatprep.subr.mxu0 0.0
        %3197 = vmatpush1.msra.mxu0 0.0
        %3198 = vmatprep.subr.mxu0 0.0
        %3199 = vmatpush1.msra.mxu0 0.0
        %3200 = vmatprep.subr.mxu0 0.0
        %3201 = vmatpush1.msra.mxu0 0.0
        %3202 = vmatprep.subr.mxu0 0.0
        %3203 = vmatpush1.msra.mxu0 0.0
        %3204 = vmatprep.subr.mxu0 0.0
        %3205 = vmatpush1.msra.mxu0 0.0
        %3206 = vmatprep.subr.mxu0 0.0
        %3207 = vmatpush1.msra.mxu0 0.0
        %3208 = vmatprep.subr.mxu0 0.0
        %3209 = vmatpush1.msra.mxu0 0.0
        %3210 = vmatprep.subr.mxu0 0.0
        %3211 = vmatpush1.msra.mxu0 0.0
        %3212 = vmatprep.subr.mxu0 0.0
        %3213 = vmatpush1.msra.mxu0 0.0
        %3214 = vmatprep.subr.mxu0 0.0
        %3215 = vmatpush1.msra.mxu0 0.0
        %3216 = vmatprep.subr.mxu0 0.0
        %3217 = vmatpush1.msra.mxu0 0.0
        %3218 = vmatprep.subr.mxu0 0.0
        %3219 = vmatpush1.msra.mxu0 0.0
        %3220 = vmatprep.subr.mxu0 0.0
        %3221 = vmatpush1.msra.mxu0 0.0
        %3222 = vmatprep.subr.mxu0 0.0
        %3223 = vmatpush1.msra.mxu0 0.0
        %3224 = vmatprep.subr.mxu0 0.0
        %3225 = vmatpush1.msra.mxu0 0.0
        %3226 = vmatprep.subr.mxu0 0.0
        %3227 = vmatpush1.msra.mxu0 0.0
        %3228 = vmatprep.subr.mxu0 0.0
        %3229 = vmatpush1.msra.mxu0 0.0
        %3230 = vmatprep.subr.mxu0 0.0
        %3231 = vmatpush1.msra.mxu0 0.0
        %3232 = vmatprep.subr.mxu0 0.0
        %3233 = vmatpush1.msra.mxu0 0.0
        %3234 = vmatprep.subr.mxu0 0.0
        %3235 = vmatpush1.msra.mxu0 0.0
        %3236 = vmatprep.subr.mxu0 0.0
        %3237 = vmatpush1.msra.mxu0 0.0
        %3238 = vmatprep.mubr.f32.mxu0 0.0
        %3239 = vmatmul.mubr.f32.gmra.mrb[0].mxu0 %v2844
        %v3240 = vpop.f32.mrb[0].mxu0
        %v3241 = vadd.f32 0.0, %v3240
        %v3242 = vpop.f32.mrb[0].mxu0
        %3243 = vdwg.mxu0
        %s3244 = scalar_lea.vmem %s9, 280
        %v3245 = vld [vmem:[%s3244] sm:$0xff]
        %v3246 = vld [vmem:[%s3244 + $0x8] sm:$0xff]
        %v3247 = vld [vmem:[%s3244 + $0x10] sm:$0xff]
        %v3248 = vld [vmem:[%s3244 + $0x18] sm:$0xff]
        %v3249 = vld [vmem:[%s3244 + $0x20] sm:$0xff]
        %v3250 = vld [vmem:[%s3244 + $0x28] sm:$0xff]
        %v3251 = vld [vmem:[%s3244 + $0x30] sm:$0x1]
        %v3253 = vsel %vm2846, %v3251, 0
        %3255 = vmatprep.subr.mxu0 0.0
        %3256 = vmatpush1.msra.mxu0 %v3245
        %3257 = vmatprep.subr.mxu0 0.0
        %3258 = vmatpush1.msra.mxu0 %v3246
        %3259 = vmatprep.subr.mxu0 0.0
        %3260 = vmatpush1.msra.mxu0 %v3247
        %3261 = vmatprep.subr.mxu0 0.0
        %3262 = vmatpush1.msra.mxu0 %v3248
        %3263 = vmatprep.subr.mxu0 0.0
        %3264 = vmatpush1.msra.mxu0 %v3249
        %3265 = vmatprep.subr.mxu0 0.0
        %3266 = vmatpush1.msra.mxu0 %v3250
        %3267 = vmatprep.subr.mxu0 0.0
        %3268 = vmatpush1.msra.mxu0 %v3253
        %3269 = vmatprep.subr.mxu0 0.0
        %3270 = vmatpush1.msra.mxu0 0.0
        %3271 = vmatprep.subr.mxu0 0.0
        %3272 = vmatpush1.msra.mxu0 0.0
        %3273 = vmatprep.subr.mxu0 0.0
        %3274 = vmatpush1.msra.mxu0 0.0
        %3275 = vmatprep.subr.mxu0 0.0
        %3276 = vmatpush1.msra.mxu0 0.0
        %3277 = vmatprep.subr.mxu0 0.0
        %3278 = vmatpush1.msra.mxu0 0.0
        %3279 = vmatprep.subr.mxu0 0.0
        %3280 = vmatpush1.msra.mxu0 0.0
        %3281 = vmatprep.subr.mxu0 0.0
        %3282 = vmatpush1.msra.mxu0 0.0
        %3283 = vmatprep.subr.mxu0 0.0
        %3284 = vmatpush1.msra.mxu0 0.0
        %3285 = vmatprep.subr.mxu0 0.0
        %3286 = vmatpush1.msra.mxu0 0.0
        %3287 = vmatprep.subr.mxu0 0.0
        %3288 = vmatpush1.msra.mxu0 0.0
        %3289 = vmatprep.subr.mxu0 0.0
        %3290 = vmatpush1.msra.mxu0 0.0
        %3291 = vmatprep.subr.mxu0 0.0
        %3292 = vmatpush1.msra.mxu0 0.0
        %3293 = vmatprep.subr.mxu0 0.0
        %3294 = vmatpush1.msra.mxu0 0.0
        %3295 = vmatprep.subr.mxu0 0.0
        %3296 = vmatpush1.msra.mxu0 0.0
        %3297 = vmatprep.subr.mxu0 0.0
        %3298 = vmatpush1.msra.mxu0 0.0
        %3299 = vmatprep.subr.mxu0 0.0
        %3300 = vmatpush1.msra.mxu0 0.0
        %3301 = vmatprep.subr.mxu0 0.0
        %3302 = vmatpush1.msra.mxu0 0.0
        %3303 = vmatprep.subr.mxu0 0.0
        %3304 = vmatpush1.msra.mxu0 0.0
        %3305 = vmatprep.subr.mxu0 0.0
        %3306 = vmatpush1.msra.mxu0 0.0
        %3307 = vmatprep.subr.mxu0 0.0
        %3308 = vmatpush1.msra.mxu0 0.0
        %3309 = vmatprep.subr.mxu0 0.0
        %3310 = vmatpush1.msra.mxu0 0.0
        %3311 = vmatprep.subr.mxu0 0.0
        %3312 = vmatpush1.msra.mxu0 0.0
        %3313 = vmatprep.subr.mxu0 0.0
        %3314 = vmatpush1.msra.mxu0 0.0
        %3315 = vmatprep.subr.mxu0 0.0
        %3316 = vmatpush1.msra.mxu0 0.0
        %3317 = vmatprep.subr.mxu0 0.0
        %3318 = vmatpush1.msra.mxu0 0.0
        %3319 = vmatprep.mubr.f32.mxu0 0.0
        %3320 = vmatmul.mubr.f32.gmra.mrb[0].mxu0 %v2844
        %v3321 = vpop.f32.mrb[0].mxu0
        %v3322 = vadd.f32 0.0, %v3321
        %v3323 = vpop.f32.mrb[0].mxu0
        %3324 = vdwg.mxu0
        %s3325 = scalar_lea.vmem %s9, 336
        %v3326 = vld [vmem:[%s3325] sm:$0xff]
        %v3327 = vld [vmem:[%s3325 + $0x8] sm:$0xff]
        %v3328 = vld [vmem:[%s3325 + $0x10] sm:$0xff]
        %v3329 = vld [vmem:[%s3325 + $0x18] sm:$0xff]
        %v3330 = vld [vmem:[%s3325 + $0x20] sm:$0xff]
        %v3331 = vld [vmem:[%s3325 + $0x28] sm:$0xff]
        %v3332 = vld [vmem:[%s3325 + $0x30] sm:$0x1]
        %v3334 = vsel %vm2846, %v3332, 0
        %3336 = vmatprep.subr.mxu0 0.0
        %3337 = vmatpush1.msra.mxu0 %v3326
        %3338 = vmatprep.subr.mxu0 0.0
        %3339 = vmatpush1.msra.mxu0 %v3327
        %3340 = vmatprep.subr.mxu0 0.0
        %3341 = vmatpush1.msra.mxu0 %v3328
        %3342 = vmatprep.subr.mxu0 0.0
        %3343 = vmatpush1.msra.mxu0 %v3329
        %3344 = vmatprep.subr.mxu0 0.0
        %3345 = vmatpush1.msra.mxu0 %v3330
        %3346 = vmatprep.subr.mxu0 0.0
        %3347 = vmatpush1.msra.mxu0 %v3331
        %3348 = vmatprep.subr.mxu0 0.0
        %3349 = vmatpush1.msra.mxu0 %v3334
        %3350 = vmatprep.subr.mxu0 0.0
        %3351 = vmatpush1.msra.mxu0 0.0
        %3352 = vmatprep.subr.mxu0 0.0
        %3353 = vmatpush1.msra.mxu0 0.0
        %3354 = vmatprep.subr.mxu0 0.0
        %3355 = vmatpush1.msra.mxu0 0.0
        %3356 = vmatprep.subr.mxu0 0.0
        %3357 = vmatpush1.msra.mxu0 0.0
        %3358 = vmatprep.subr.mxu0 0.0
        %3359 = vmatpush1.msra.mxu0 0.0
        %3360 = vmatprep.subr.mxu0 0.0
        %3361 = vmatpush1.msra.mxu0 0.0
        %3362 = vmatprep.subr.mxu0 0.0
        %3363 = vmatpush1.msra.mxu0 0.0
        %3364 = vmatprep.subr.mxu0 0.0
        %3365 = vmatpush1.msra.mxu0 0.0
        %3366 = vmatprep.subr.mxu0 0.0
        %3367 = vmatpush1.msra.mxu0 0.0
        %3368 = vmatprep.subr.mxu0 0.0
        %3369 = vmatpush1.msra.mxu0 0.0
        %3370 = vmatprep.subr.mxu0 0.0
        %3371 = vmatpush1.msra.mxu0 0.0
        %3372 = vmatprep.subr.mxu0 0.0
        %3373 = vmatpush1.msra.mxu0 0.0
        %3374 = vmatprep.subr.mxu0 0.0
        %3375 = vmatpush1.msra.mxu0 0.0
        %3376 = vmatprep.subr.mxu0 0.0
        %3377 = vmatpush1.msra.mxu0 0.0
        %3378 = vmatprep.subr.mxu0 0.0
        %3379 = vmatpush1.msra.mxu0 0.0
        %3380 = vmatprep.subr.mxu0 0.0
        %3381 = vmatpush1.msra.mxu0 0.0
        %3382 = vmatprep.subr.mxu0 0.0
        %3383 = vmatpush1.msra.mxu0 0.0
        %3384 = vmatprep.subr.mxu0 0.0
        %3385 = vmatpush1.msra.mxu0 0.0
        %3386 = vmatprep.subr.mxu0 0.0
        %3387 = vmatpush1.msra.mxu0 0.0
        %3388 = vmatprep.subr.mxu0 0.0
        %3389 = vmatpush1.msra.mxu0 0.0
        %3390 = vmatprep.subr.mxu0 0.0
        %3391 = vmatpush1.msra.mxu0 0.0
        %3392 = vmatprep.subr.mxu0 0.0
        %3393 = vmatpush1.msra.mxu0 0.0
        %3394 = vmatprep.subr.mxu0 0.0
        %3395 = vmatpush1.msra.mxu0 0.0
        %3396 = vmatprep.subr.mxu0 0.0
        %3397 = vmatpush1.msra.mxu0 0.0
        %3398 = vmatprep.subr.mxu0 0.0
        %3399 = vmatpush1.msra.mxu0 0.0
        %3400 = vmatprep.mubr.f32.mxu0 0.0
        %3401 = vmatmul.mubr.f32.gmra.mrb[0].mxu0 %v2844
        %v3402 = vpop.f32.mrb[0].mxu0
        %v3403 = vadd.f32 0.0, %v3402
        %v3404 = vpop.f32.mrb[0].mxu0
        %3405 = vdwg.mxu0
        %s3406 = scalar_lea.vmem %s9, 392
        %v3407 = vld [vmem:[%s3406] sm:$0xff]
        %v3408 = vld [vmem:[%s3406 + $0x8] sm:$0xff]
        %v3409 = vld [vmem:[%s3406 + $0x10] sm:$0xff]
        %v3410 = vld [vmem:[%s3406 + $0x18] sm:$0xff]
        %v3411 = vld [vmem:[%s3406 + $0x20] sm:$0xff]
        %v3412 = vld [vmem:[%s3406 + $0x28] sm:$0xff]
        %v3413 = vld [vmem:[%s3406 + $0x30] sm:$0x1]
        %v3415 = vsel %vm2846, %v3413, 0
        %3417 = vmatprep.subr.mxu0 0.0
        %3418 = vmatpush1.msra.mxu0 %v3407
        %3419 = vmatprep.subr.mxu0 0.0
        %3420 = vmatpush1.msra.mxu0 %v3408
        %3421 = vmatprep.subr.mxu0 0.0
        %3422 = vmatpush1.msra.mxu0 %v3409
        %3423 = vmatprep.subr.mxu0 0.0
        %3424 = vmatpush1.msra.mxu0 %v3410
        %3425 = vmatprep.subr.mxu0 0.0
        %3426 = vmatpush1.msra.mxu0 %v3411
        %3427 = vmatprep.subr.mxu0 0.0
        %3428 = vmatpush1.msra.mxu0 %v3412
        %3429 = vmatprep.subr.mxu0 0.0
        %3430 = vmatpush1.msra.mxu0 %v3415
        %3431 = vmatprep.subr.mxu0 0.0
        %3432 = vmatpush1.msra.mxu0 0.0
        %3433 = vmatprep.subr.mxu0 0.0
        %3434 = vmatpush1.msra.mxu0 0.0
        %3435 = vmatprep.subr.mxu0 0.0
        %3436 = vmatpush1.msra.mxu0 0.0
        %3437 = vmatprep.subr.mxu0 0.0
        %3438 = vmatpush1.msra.mxu0 0.0
        %3439 = vmatprep.subr.mxu0 0.0
        %3440 = vmatpush1.msra.mxu0 0.0
        %3441 = vmatprep.subr.mxu0 0.0
        %3442 = vmatpush1.msra.mxu0 0.0
        %3443 = vmatprep.subr.mxu0 0.0
        %3444 = vmatpush1.msra.mxu0 0.0
        %3445 = vmatprep.subr.mxu0 0.0
        %3446 = vmatpush1.msra.mxu0 0.0
        %3447 = vmatprep.subr.mxu0 0.0
        %3448 = vmatpush1.msra.mxu0 0.0
        %3449 = vmatprep.subr.mxu0 0.0
        %3450 = vmatpush1.msra.mxu0 0.0
        %3451 = vmatprep.subr.mxu0 0.0
        %3452 = vmatpush1.msra.mxu0 0.0
        %3453 = vmatprep.subr.mxu0 0.0
        %3454 = vmatpush1.msra.mxu0 0.0
        %3455 = vmatprep.subr.mxu0 0.0
        %3456 = vmatpush1.msra.mxu0 0.0
        %3457 = vmatprep.subr.mxu0 0.0
        %3458 = vmatpush1.msra.mxu0 0.0
        %3459 = vmatprep.subr.mxu0 0.0
        %3460 = vmatpush1.msra.mxu0 0.0
        %3461 = vmatprep.subr.mxu0 0.0
        %3462 = vmatpush1.msra.mxu0 0.0
        %3463 = vmatprep.subr.mxu0 0.0
        %3464 = vmatpush1.msra.mxu0 0.0
        %3465 = vmatprep.subr.mxu0 0.0
        %3466 = vmatpush1.msra.mxu0 0.0
        %3467 = vmatprep.subr.mxu0 0.0
        %3468 = vmatpush1.msra.mxu0 0.0
        %3469 = vmatprep.subr.mxu0 0.0
        %3470 = vmatpush1.msra.mxu0 0.0
        %3471 = vmatprep.subr.mxu0 0.0
        %3472 = vmatpush1.msra.mxu0 0.0
        %3473 = vmatprep.subr.mxu0 0.0
        %3474 = vmatpush1.msra.mxu0 0.0
        %3475 = vmatprep.subr.mxu0 0.0
        %3476 = vmatpush1.msra.mxu0 0.0
        %3477 = vmatprep.subr.mxu0 0.0
        %3478 = vmatpush1.msra.mxu0 0.0
        %3479 = vmatprep.subr.mxu0 0.0
        %3480 = vmatpush1.msra.mxu0 0.0
        %3481 = vmatprep.mubr.f32.mxu0 0.0
        %3482 = vmatmul.mubr.f32.gmra.mrb[0].mxu0 %v2844
        %v3483 = vpop.f32.mrb[0].mxu0
        %v3484 = vadd.f32 0.0, %v3483
        %v3485 = vpop.f32.mrb[0].mxu0
        %3486 = vdwg.mxu0
        %s3487 = scalar_lea.vmem %s9, 448
        %v3488 = vld [vmem:[%s3487] sm:$0xff]
        %v3489 = vld [vmem:[%s3487 + $0x8] sm:$0xff]
        %v3490 = vld [vmem:[%s3487 + $0x10] sm:$0xff]
        %v3491 = vld [vmem:[%s3487 + $0x18] sm:$0xff]
        %v3492 = vld [vmem:[%s3487 + $0x20] sm:$0xff]
        %v3493 = vld [vmem:[%s3487 + $0x28] sm:$0xff]
        %v3494 = vld [vmem:[%s3487 + $0x30] sm:$0x1]
        %v3496 = vsel %vm2846, %v3494, 0
        %3498 = vmatprep.subr.mxu0 0.0
        %3499 = vmatpush1.msra.mxu0 %v3488
        %3500 = vmatprep.subr.mxu0 0.0
        %3501 = vmatpush1.msra.mxu0 %v3489
        %3502 = vmatprep.subr.mxu0 0.0
        %3503 = vmatpush1.msra.mxu0 %v3490
        %3504 = vmatprep.subr.mxu0 0.0
        %3505 = vmatpush1.msra.mxu0 %v3491
        %3506 = vmatprep.subr.mxu0 0.0
        %3507 = vmatpush1.msra.mxu0 %v3492
        %3508 = vmatprep.subr.mxu0 0.0
        %3509 = vmatpush1.msra.mxu0 %v3493
        %3510 = vmatprep.subr.mxu0 0.0
        %3511 = vmatpush1.msra.mxu0 %v3496
        %3512 = vmatprep.subr.mxu0 0.0
        %3513 = vmatpush1.msra.mxu0 0.0
        %3514 = vmatprep.subr.mxu0 0.0
        %3515 = vmatpush1.msra.mxu0 0.0
        %3516 = vmatprep.subr.mxu0 0.0
        %3517 = vmatpush1.msra.mxu0 0.0
        %3518 = vmatprep.subr.mxu0 0.0
        %3519 = vmatpush1.msra.mxu0 0.0
        %3520 = vmatprep.subr.mxu0 0.0
        %3521 = vmatpush1.msra.mxu0 0.0
        %3522 = vmatprep.subr.mxu0 0.0
        %3523 = vmatpush1.msra.mxu0 0.0
        %3524 = vmatprep.subr.mxu0 0.0
        %3525 = vmatpush1.msra.mxu0 0.0
        %3526 = vmatprep.subr.mxu0 0.0
        %3527 = vmatpush1.msra.mxu0 0.0
        %3528 = vmatprep.subr.mxu0 0.0
        %3529 = vmatpush1.msra.mxu0 0.0
        %3530 = vmatprep.subr.mxu0 0.0
        %3531 = vmatpush1.msra.mxu0 0.0
        %3532 = vmatprep.subr.mxu0 0.0
        %3533 = vmatpush1.msra.mxu0 0.0
        %3534 = vmatprep.subr.mxu0 0.0
        %3535 = vmatpush1.msra.mxu0 0.0
        %3536 = vmatprep.subr.mxu0 0.0
        %3537 = vmatpush1.msra.mxu0 0.0
        %3538 = vmatprep.subr.mxu0 0.0
        %3539 = vmatpush1.msra.mxu0 0.0
        %3540 = vmatprep.subr.mxu0 0.0
        %3541 = vmatpush1.msra.mxu0 0.0
        %3542 = vmatprep.subr.mxu0 0.0
        %3543 = vmatpush1.msra.mxu0 0.0
        %3544 = vmatprep.subr.mxu0 0.0
        %3545 = vmatpush1.msra.mxu0 0.0
        %3546 = vmatprep.subr.mxu0 0.0
        %3547 = vmatpush1.msra.mxu0 0.0
        %3548 = vmatprep.subr.mxu0 0.0
        %3549 = vmatpush1.msra.mxu0 0.0
        %3550 = vmatprep.subr.mxu0 0.0
        %3551 = vmatpush1.msra.mxu0 0.0
        %3552 = vmatprep.subr.mxu0 0.0
        %3553 = vmatpush1.msra.mxu0 0.0
        %3554 = vmatprep.subr.mxu0 0.0
        %3555 = vmatpush1.msra.mxu0 0.0
        %3556 = vmatprep.subr.mxu0 0.0
        %3557 = vmatpush1.msra.mxu0 0.0
        %3558 = vmatprep.subr.mxu0 0.0
        %3559 = vmatpush1.msra.mxu0 0.0
        %3560 = vmatprep.subr.mxu0 0.0
        %3561 = vmatpush1.msra.mxu0 0.0
        %3562 = vmatprep.mubr.f32.mxu0 0.0
        %3563 = vmatmul.mubr.f32.gmra.mrb[0].mxu0 %v2844
        %v3564 = vpop.f32.mrb[0].mxu0
        %v3565 = vadd.f32 0.0, %v3564
        %v3566 = vpop.f32.mrb[0].mxu0
        %3567 = vdwg.mxu0
        %v3568 = vld [vmem:[%s5] sm:$0xf]
        %v3569 = vld [vmem:[%s6] sm:$0xf]
        %3571 = vset.pattern.permute.xlu0 0
        %3572 = vperm.xlu0 %3571, %v3569
        %v3573 = vpop.permute.xlu0 %3572
        %v3576 = vsel %vm1630, %v3568, 0
        %3578 = vmatprep.subr.mxu0 0.0
        %3579 = vmatpush1.msra.mxu0 %v2917
        %3580 = vmatprep.subr.mxu0 0.0
        %3581 = vmatpush1.msra.mxu0 %v2998
        %3582 = vmatprep.subr.mxu0 0.0
        %3583 = vmatpush1.msra.mxu0 %v3079
        %3584 = vmatprep.subr.mxu0 0.0
        %3585 = vmatpush1.msra.mxu0 %v3160
        %3586 = vmatprep.subr.mxu0 0.0
        %3587 = vmatpush1.msra.mxu0 %v3241
        %3588 = vmatprep.subr.mxu0 0.0
        %3589 = vmatpush1.msra.mxu0 %v3322
        %3590 = vmatprep.subr.mxu0 0.0
        %3591 = vmatpush1.msra.mxu0 %v3403
        %3592 = vmatprep.subr.mxu0 0.0
        %3593 = vmatpush1.msra.mxu0 %v3484
        %3594 = vmatprep.subr.mxu0 0.0
        %3595 = vmatpush1.msra.mxu0 %v3565
        %3596 = vmatprep.subr.mxu0 0.0
        %3597 = vmatpush1.msra.mxu0 0.0
        %3598 = vmatprep.subr.mxu0 0.0
        %3599 = vmatpush1.msra.mxu0 0.0
        %3600 = vmatprep.subr.mxu0 0.0
        %3601 = vmatpush1.msra.mxu0 0.0
        %3602 = vmatprep.subr.mxu0 0.0
        %3603 = vmatpush1.msra.mxu0 0.0
        %3604 = vmatprep.subr.mxu0 0.0
        %3605 = vmatpush1.msra.mxu0 0.0
        %3606 = vmatprep.subr.mxu0 0.0
        %3607 = vmatpush1.msra.mxu0 0.0
        %3608 = vmatprep.subr.mxu0 0.0
        %3609 = vmatpush1.msra.mxu0 0.0
        %3610 = vmatprep.subr.mxu0 0.0
        %3611 = vmatpush1.msra.mxu0 0.0
        %3612 = vmatprep.subr.mxu0 0.0
        %3613 = vmatpush1.msra.mxu0 0.0
        %3614 = vmatprep.subr.mxu0 0.0
        %3615 = vmatpush1.msra.mxu0 0.0
        %3616 = vmatprep.subr.mxu0 0.0
        %3617 = vmatpush1.msra.mxu0 0.0
        %3618 = vmatprep.subr.mxu0 0.0
        %3619 = vmatpush1.msra.mxu0 0.0
        %3620 = vmatprep.subr.mxu0 0.0
        %3621 = vmatpush1.msra.mxu0 0.0
        %3622 = vmatprep.subr.mxu0 0.0
        %3623 = vmatpush1.msra.mxu0 0.0
        %3624 = vmatprep.subr.mxu0 0.0
        %3625 = vmatpush1.msra.mxu0 0.0
        %3626 = vmatprep.subr.mxu0 0.0
        %3627 = vmatpush1.msra.mxu0 0.0
        %3628 = vmatprep.subr.mxu0 0.0
        %3629 = vmatpush1.msra.mxu0 0.0
        %3630 = vmatprep.subr.mxu0 0.0
        %3631 = vmatpush1.msra.mxu0 0.0
        %3632 = vmatprep.subr.mxu0 0.0
        %3633 = vmatpush1.msra.mxu0 0.0
        %3634 = vmatprep.subr.mxu0 0.0
        %3635 = vmatpush1.msra.mxu0 0.0
        %3636 = vmatprep.subr.mxu0 0.0
        %3637 = vmatpush1.msra.mxu0 0.0
        %3638 = vmatprep.subr.mxu0 0.0
        %3639 = vmatpush1.msra.mxu0 0.0
        %3640 = vmatprep.subr.mxu0 0.0
        %3641 = vmatpush1.msra.mxu0 0.0
        %3642 = vmatprep.mubr.f32.mxu0 0.0
        %3643 = vmatmul.mubr.f32.gmra.mrb[0].mxu0 %v3576
        %v3644 = vpop.f32.mrb[0].mxu0
        %v3645 = vadd.f32 %v3573, %v3644
        %v3646 = vpop.f32.mrb[0].mxu0
        %3647 = vdwg.mxu0
        %v3648 = vld [vmem:[%s11] sm:$0xff]
        %v3649 = vld [vmem:[%s10] sm:$0xff]
        %v3650 = vld [vmem:[%s10 + $0x8] sm:$0xff]
        %v3651 = vld [vmem:[%s10 + $0x10] sm:$0xff]
        %v3652 = vld [vmem:[%s10 + $0x18] sm:$0xff]
        %v3653 = vld [vmem:[%s10 + $0x20] sm:$0xff]
        %v3654 = vld [vmem:[%s10 + $0x28] sm:$0xff]
        %v3655 = vld [vmem:[%s10 + $0x30] sm:$0xff]
        %v3656 = vld [vmem:[%s10 + $0x38] sm:$0xff]
        %v3657 = vld [vmem:[%s10 + $0x40] sm:$0xff]
        %v3658 = vld [vmem:[%s10 + $0x48] sm:$0xff]
        %v3659 = vld [vmem:[%s10 + $0x50] sm:$0xff]
        %v3660 = vld [vmem:[%s10 + $0x58] sm:$0xff]
        %v3661 = vld [vmem:[%s10 + $0x60] sm:$0xff]
        %v3662 = vld [vmem:[%s10 + $0x68] sm:$0xff]
        %v3663 = vld [vmem:[%s10 + $0x70] sm:$0xff]
        %v3664 = vld [vmem:[%s10 + $0x78] sm:$0xff]
        %v3665 = vld [vmem:[%s10 + $0x80] sm:$0xff]
        %v3666 = vld [vmem:[%s10 + $0x88] sm:$0xff]
        %v3667 = vld [vmem:[%s10 + $0x90] sm:$0xff]
        %v3668 = vld [vmem:[%s10 + $0x98] sm:$0xff]
        %v3669 = vld [vmem:[%s10 + $0xa0] sm:$0xff]
        %v3670 = vld [vmem:[%s10 + $0xa8] sm:$0xff]
        %v3671 = vld [vmem:[%s10 + $0xb0] sm:$0xff]
        %v3672 = vld [vmem:[%s10 + $0xb8] sm:$0xff]
        %v3673 = vld [vmem:[%s10 + $0xc0] sm:$0x1]
        %v3674 = vld [vmem:[%s10 + $0xc8] sm:$0x1]
        %v3675 = vld [vmem:[%s10 + $0xd0] sm:$0x1]
        %v3676 = vld [vmem:[%s10 + $0xd8] sm:$0x1]
        %v3677 = vld [vmem:[%s10 + $0xe0] sm:$0x1]
        %v3678 = vld [vmem:[%s10 + $0xe8] sm:$0x1]
        %v3679 = vld [vmem:[%s10 + $0xf0] sm:$0x1]
        %v3680 = vld [vmem:[%s10 + $0xf8] sm:$0x1]
        %vm3681 = vcmask 203776
        %v3683 = vsel %vm3681, %v3645, 0
        %v3686 = vsel %vm2846, %v3673, 0
        %v3689 = vsel %vm2846, %v3674, 0
        %v3692 = vsel %vm2846, %v3675, 0
        %v3695 = vsel %vm2846, %v3676, 0
        %v3698 = vsel %vm2846, %v3677, 0
        %v3701 = vsel %vm2846, %v3678, 0
        %v3704 = vsel %vm2846, %v3679, 0
        %v3707 = vsel %vm2846, %v3680, 0
        %3709 = vmatprep.subr.mxu0 %v3650
        %3710 = vmatpush1.msra.mxu0 %v3649
        %3711 = vmatprep.subr.mxu0 %v3658
        %3712 = vmatpush1.msra.mxu0 %v3657
        %3713 = vmatprep.subr.mxu0 %v3666
        %3714 = vmatpush1.msra.mxu0 %v3665
        %3715 = vmatprep.subr.mxu0 %v3689
        %3716 = vmatpush1.msra.mxu0 %v3686
        %3717 = vmatprep.subr.mxu0 0.0
        %3718 = vmatpush1.msra.mxu0 0.0
        %3719 = vmatprep.subr.mxu0 0.0
        %3720 = vmatpush1.msra.mxu0 0.0
        %3721 = vmatprep.subr.mxu0 0.0
        %3722 = vmatpush1.msra.mxu0 0.0
        %3723 = vmatprep.subr.mxu0 0.0
        %3724 = vmatpush1.msra.mxu0 0.0
        %3725 = vmatprep.subr.mxu0 0.0
        %3726 = vmatpush1.msra.mxu0 0.0
        %3727 = vmatprep.subr.mxu0 0.0
        %3728 = vmatpush1.msra.mxu0 0.0
        %3729 = vmatprep.subr.mxu0 0.0
        %3730 = vmatpush1.msra.mxu0 0.0
        %3731 = vmatprep.subr.mxu0 0.0
        %3732 = vmatpush1.msra.mxu0 0.0
        %3733 = vmatprep.subr.mxu0 0.0
        %3734 = vmatpush1.msra.mxu0 0.0
        %3735 = vmatprep.subr.mxu0 0.0
        %3736 = vmatpush1.msra.mxu0 0.0
        %3737 = vmatprep.subr.mxu0 0.0
        %3738 = vmatpush1.msra.mxu0 0.0
        %3739 = vmatprep.subr.mxu0 0.0
        %3740 = vmatpush1.msra.mxu0 0.0
        %3741 = vmatprep.subr.mxu0 0.0
        %3742 = vmatpush1.msra.mxu0 0.0
        %3743 = vmatprep.subr.mxu0 0.0
        %3744 = vmatpush1.msra.mxu0 0.0
        %3745 = vmatprep.subr.mxu0 0.0
        %3746 = vmatpush1.msra.mxu0 0.0
        %3747 = vmatprep.subr.mxu0 0.0
        %3748 = vmatpush1.msra.mxu0 0.0
        %3749 = vmatprep.subr.mxu0 0.0
        %3750 = vmatpush1.msra.mxu0 0.0
        %3751 = vmatprep.subr.mxu0 0.0
        %3752 = vmatpush1.msra.mxu0 0.0
        %3753 = vmatprep.subr.mxu0 0.0
        %3754 = vmatpush1.msra.mxu0 0.0
        %3755 = vmatprep.subr.mxu0 0.0
        %3756 = vmatpush1.msra.mxu0 0.0
        %3757 = vmatprep.subr.mxu0 0.0
        %3758 = vmatpush1.msra.mxu0 0.0
        %3759 = vmatprep.subr.mxu0 0.0
        %3760 = vmatpush1.msra.mxu0 0.0
        %3761 = vmatprep.subr.mxu0 0.0
        %3762 = vmatpush1.msra.mxu0 0.0
        %3763 = vmatprep.subr.mxu0 0.0
        %3764 = vmatpush1.msra.mxu0 0.0
        %3765 = vmatprep.subr.mxu0 0.0
        %3766 = vmatpush1.msra.mxu0 0.0
        %3767 = vmatprep.subr.mxu0 0.0
        %3768 = vmatpush1.msra.mxu0 0.0
        %3769 = vmatprep.subr.mxu0 0.0
        %3770 = vmatpush1.msra.mxu0 0.0
        %3771 = vmatprep.subr.mxu0 0.0
        %3772 = vmatpush1.msra.mxu0 0.0
        %3773 = vmatprep.mubr.f32.mxu0 0.0
        %3774 = vmatmul.mubr.f32.gmra.mrb[0].mxu0 %v3683
        %v3775 = vpop.f32.mrb[0].mxu0
        %v3776 = vadd.f32 0.0, %v3775
        %v3777 = vpop.f32.mrb[0].mxu0
        %v3778 = vadd.f32 0.0, %v3777
        %3779 = vdwg.mxu0
        %3780 = vmatprep.subr.mxu0 %v3652
        %3781 = vmatpush1.msra.mxu0 %v3651
        %3782 = vmatprep.subr.mxu0 %v3660
        %3783 = vmatpush1.msra.mxu0 %v3659
        %3784 = vmatprep.subr.mxu0 %v3668
        %3785 = vmatpush1.msra.mxu0 %v3667
        %3786 = vmatprep.subr.mxu0 %v3695
        %3787 = vmatpush1.msra.mxu0 %v3692
        %3788 = vmatprep.subr.mxu0 0.0
        %3789 = vmatpush1.msra.mxu0 0.0
        %3790 = vmatprep.subr.mxu0 0.0
        %3791 = vmatpush1.msra.mxu0 0.0
        %3792 = vmatprep.subr.mxu0 0.0
        %3793 = vmatpush1.msra.mxu0 0.0
        %3794 = vmatprep.subr.mxu0 0.0
        %3795 = vmatpush1.msra.mxu0 0.0
        %3796 = vmatprep.subr.mxu0 0.0
        %3797 = vmatpush1.msra.mxu0 0.0
        %3798 = vmatprep.subr.mxu0 0.0
        %3799 = vmatpush1.msra.mxu0 0.0
        %3800 = vmatprep.subr.mxu0 0.0
        %3801 = vmatpush1.msra.mxu0 0.0
        %3802 = vmatprep.subr.mxu0 0.0
        %3803 = vmatpush1.msra.mxu0 0.0
        %3804 = vmatprep.subr.mxu0 0.0
        %3805 = vmatpush1.msra.mxu0 0.0
        %3806 = vmatprep.subr.mxu0 0.0
        %3807 = vmatpush1.msra.mxu0 0.0
        %3808 = vmatprep.subr.mxu0 0.0
        %3809 = vmatpush1.msra.mxu0 0.0
        %3810 = vmatprep.subr.mxu0 0.0
        %3811 = vmatpush1.msra.mxu0 0.0
        %3812 = vmatprep.subr.mxu0 0.0
        %3813 = vmatpush1.msra.mxu0 0.0
        %3814 = vmatprep.subr.mxu0 0.0
        %3815 = vmatpush1.msra.mxu0 0.0
        %3816 = vmatprep.subr.mxu0 0.0
        %3817 = vmatpush1.msra.mxu0 0.0
        %3818 = vmatprep.subr.mxu0 0.0
        %3819 = vmatpush1.msra.mxu0 0.0
        %3820 = vmatprep.subr.mxu0 0.0
        %3821 = vmatpush1.msra.mxu0 0.0
        %3822 = vmatprep.subr.mxu0 0.0
        %3823 = vmatpush1.msra.mxu0 0.0
        %3824 = vmatprep.subr.mxu0 0.0
        %3825 = vmatpush1.msra.mxu0 0.0
        %3826 = vmatprep.subr.mxu0 0.0
        %3827 = vmatpush1.msra.mxu0 0.0
        %3828 = vmatprep.subr.mxu0 0.0
        %3829 = vmatpush1.msra.mxu0 0.0
        %3830 = vmatprep.subr.mxu0 0.0
        %3831 = vmatpush1.msra.mxu0 0.0
        %3832 = vmatprep.subr.mxu0 0.0
        %3833 = vmatpush1.msra.mxu0 0.0
        %3834 = vmatprep.subr.mxu0 0.0
        %3835 = vmatpush1.msra.mxu0 0.0
        %3836 = vmatprep.subr.mxu0 0.0
        %3837 = vmatpush1.msra.mxu0 0.0
        %3838 = vmatprep.subr.mxu0 0.0
        %3839 = vmatpush1.msra.mxu0 0.0
        %3840 = vmatprep.subr.mxu0 0.0
        %3841 = vmatpush1.msra.mxu0 0.0
        %3842 = vmatprep.subr.mxu0 0.0
        %3843 = vmatpush1.msra.mxu0 0.0
        %3844 = vmatprep.mubr.f32.mxu0 0.0
        %3845 = vmatmul.mubr.f32.gmra.mrb[0].mxu0 %v3683
        %v3846 = vpop.f32.mrb[0].mxu0
        %v3847 = vadd.f32 0.0, %v3846
        %v3848 = vpop.f32.mrb[0].mxu0
        %v3849 = vadd.f32 0.0, %v3848
        %3850 = vdwg.mxu0
        %3851 = vmatprep.subr.mxu0 %v3654
        %3852 = vmatpush1.msra.mxu0 %v3653
        %3853 = vmatprep.subr.mxu0 %v3662
        %3854 = vmatpush1.msra.mxu0 %v3661
        %3855 = vmatprep.subr.mxu0 %v3670
        %3856 = vmatpush1.msra.mxu0 %v3669
        %3857 = vmatprep.subr.mxu0 %v3701
        %3858 = vmatpush1.msra.mxu0 %v3698
        %3859 = vmatprep.subr.mxu0 0.0
        %3860 = vmatpush1.msra.mxu0 0.0
        %3861 = vmatprep.subr.mxu0 0.0
        %3862 = vmatpush1.msra.mxu0 0.0
        %3863 = vmatprep.subr.mxu0 0.0
        %3864 = vmatpush1.msra.mxu0 0.0
        %3865 = vmatprep.subr.mxu0 0.0
        %3866 = vmatpush1.msra.mxu0 0.0
        %3867 = vmatprep.subr.mxu0 0.0
        %3868 = vmatpush1.msra.mxu0 0.0
        %3869 = vmatprep.subr.mxu0 0.0
        %3870 = vmatpush1.msra.mxu0 0.0
        %3871 = vmatprep.subr.mxu0 0.0
        %3872 = vmatpush1.msra.mxu0 0.0
        %3873 = vmatprep.subr.mxu0 0.0
        %3874 = vmatpush1.msra.mxu0 0.0
        %3875 = vmatprep.subr.mxu0 0.0
        %3876 = vmatpush1.msra.mxu0 0.0
        %3877 = vmatprep.subr.mxu0 0.0
        %3878 = vmatpush1.msra.mxu0 0.0
        %3879 = vmatprep.subr.mxu0 0.0
        %3880 = vmatpush1.msra.mxu0 0.0
        %3881 = vmatprep.subr.mxu0 0.0
        %3882 = vmatpush1.msra.mxu0 0.0
        %3883 = vmatprep.subr.mxu0 0.0
        %3884 = vmatpush1.msra.mxu0 0.0
        %3885 = vmatprep.subr.mxu0 0.0
        %3886 = vmatpush1.msra.mxu0 0.0
        %3887 = vmatprep.subr.mxu0 0.0
        %3888 = vmatpush1.msra.mxu0 0.0
        %3889 = vmatprep.subr.mxu0 0.0
        %3890 = vmatpush1.msra.mxu0 0.0
        %3891 = vmatprep.subr.mxu0 0.0
        %3892 = vmatpush1.msra.mxu0 0.0
        %3893 = vmatprep.subr.mxu0 0.0
        %3894 = vmatpush1.msra.mxu0 0.0
        %3895 = vmatprep.subr.mxu0 0.0
        %3896 = vmatpush1.msra.mxu0 0.0
        %3897 = vmatprep.subr.mxu0 0.0
        %3898 = vmatpush1.msra.mxu0 0.0
        %3899 = vmatprep.subr.mxu0 0.0
        %3900 = vmatpush1.msra.mxu0 0.0
        %3901 = vmatprep.subr.mxu0 0.0
        %3902 = vmatpush1.msra.mxu0 0.0
        %3903 = vmatprep.subr.mxu0 0.0
        %3904 = vmatpush1.msra.mxu0 0.0
        %3905 = vmatprep.subr.mxu0 0.0
        %3906 = vmatpush1.msra.mxu0 0.0
        %3907 = vmatprep.subr.mxu0 0.0
        %3908 = vmatpush1.msra.mxu0 0.0
        %3909 = vmatprep.subr.mxu0 0.0
        %3910 = vmatpush1.msra.mxu0 0.0
        %3911 = vmatprep.subr.mxu0 0.0
        %3912 = vmatpush1.msra.mxu0 0.0
        %3913 = vmatprep.subr.mxu0 0.0
        %3914 = vmatpush1.msra.mxu0 0.0
        %3915 = vmatprep.mubr.f32.mxu0 0.0
        %3916 = vmatmul.mubr.f32.gmra.mrb[0].mxu0 %v3683
        %v3917 = vpop.f32.mrb[0].mxu0
        %v3918 = vadd.f32 0.0, %v3917
        %v3919 = vpop.f32.mrb[0].mxu0
        %v3920 = vadd.f32 0.0, %v3919
        %3921 = vdwg.mxu0
        %3922 = vmatprep.subr.mxu0 %v3656
        %3923 = vmatpush1.msra.mxu0 %v3655
        %3924 = vmatprep.subr.mxu0 %v3664
        %3925 = vmatpush1.msra.mxu0 %v3663
        %3926 = vmatprep.subr.mxu0 %v3672
        %3927 = vmatpush1.msra.mxu0 %v3671
        %3928 = vmatprep.subr.mxu0 %v3707
        %3929 = vmatpush1.msra.mxu0 %v3704
        %3930 = vmatprep.subr.mxu0 0.0
        %3931 = vmatpush1.msra.mxu0 0.0
        %3932 = vmatprep.subr.mxu0 0.0
        %3933 = vmatpush1.msra.mxu0 0.0
        %3934 = vmatprep.subr.mxu0 0.0
        %3935 = vmatpush1.msra.mxu0 0.0
        %3936 = vmatprep.subr.mxu0 0.0
        %3937 = vmatpush1.msra.mxu0 0.0
        %3938 = vmatprep.subr.mxu0 0.0
        %3939 = vmatpush1.msra.mxu0 0.0
        %3940 = vmatprep.subr.mxu0 0.0
        %3941 = vmatpush1.msra.mxu0 0.0
        %3942 = vmatprep.subr.mxu0 0.0
        %3943 = vmatpush1.msra.mxu0 0.0
        %3944 = vmatprep.subr.mxu0 0.0
        %3945 = vmatpush1.msra.mxu0 0.0
        %3946 = vmatprep.subr.mxu0 0.0
        %3947 = vmatpush1.msra.mxu0 0.0
        %3948 = vmatprep.subr.mxu0 0.0
        %3949 = vmatpush1.msra.mxu0 0.0
        %3950 = vmatprep.subr.mxu0 0.0
        %3951 = vmatpush1.msra.mxu0 0.0
        %3952 = vmatprep.subr.mxu0 0.0
        %3953 = vmatpush1.msra.mxu0 0.0
        %3954 = vmatprep.subr.mxu0 0.0
        %3955 = vmatpush1.msra.mxu0 0.0
        %3956 = vmatprep.subr.mxu0 0.0
        %3957 = vmatpush1.msra.mxu0 0.0
        %3958 = vmatprep.subr.mxu0 0.0
        %3959 = vmatpush1.msra.mxu0 0.0
        %3960 = vmatprep.subr.mxu0 0.0
        %3961 = vmatpush1.msra.mxu0 0.0
        %3962 = vmatprep.subr.mxu0 0.0
        %3963 = vmatpush1.msra.mxu0 0.0
        %3964 = vmatprep.subr.mxu0 0.0
        %3965 = vmatpush1.msra.mxu0 0.0
        %3966 = vmatprep.subr.mxu0 0.0
        %3967 = vmatpush1.msra.mxu0 0.0
        %3968 = vmatprep.subr.mxu0 0.0
        %3969 = vmatpush1.msra.mxu0 0.0
        %3970 = vmatprep.subr.mxu0 0.0
        %3971 = vmatpush1.msra.mxu0 0.0
        %3972 = vmatprep.subr.mxu0 0.0
        %3973 = vmatpush1.msra.mxu0 0.0
        %3974 = vmatprep.subr.mxu0 0.0
        %3975 = vmatpush1.msra.mxu0 0.0
        %3976 = vmatprep.subr.mxu0 0.0
        %3977 = vmatpush1.msra.mxu0 0.0
        %3978 = vmatprep.subr.mxu0 0.0
        %3979 = vmatpush1.msra.mxu0 0.0
        %3980 = vmatprep.subr.mxu0 0.0
        %3981 = vmatpush1.msra.mxu0 0.0
        %3982 = vmatprep.subr.mxu0 0.0
        %3983 = vmatpush1.msra.mxu0 0.0
        %3984 = vmatprep.subr.mxu0 0.0
        %3985 = vmatpush1.msra.mxu0 0.0
        %3986 = vmatprep.mubr.f32.mxu0 0.0
        %3987 = vmatmul.mubr.f32.gmra.mrb[0].mxu0 %v3683
        %v3988 = vpop.f32.mrb[0].mxu0
        %v3989 = vadd.f32 0.0, %v3988
        %v3990 = vpop.f32.mrb[0].mxu0
        %v3991 = vadd.f32 0.0, %v3990
        %3992 = vdwg.mxu0
        %v4001 = vcombine.low %v3776, %v3778
        %v4002 = vcombine.low %v3847, %v3849
        %v4003 = vcombine.low %v3918, %v3920
        %v4004 = vcombine.low %v3989, %v3991
        %v4006 = vunpack.c.l.s4 1966171168
        %v4007 = vunpack.c.0.s8 %v4006
        %v4008 = vlaneseq
        %v4009 = vshrl.u32 %v4008, 7
        %v4010 = vsub.s32 %v4007, %v4009
        %v4011 = vrot.slane %v4001, %v4010
        %v4013 = vunpack.c.l.s4 1966171168
        %v4014 = vunpack.c.0.s8 %v4013
        %v4015 = vlaneseq
        %v4016 = vshrl.u32 %v4015, 7
        %v4017 = vsub.s32 %v4014, %v4016
        %v4018 = vrot.slane %v4002, %v4017
        %v4020 = vunpack.c.l.s4 1966171168
        %v4021 = vunpack.c.0.s8 %v4020
        %v4022 = vlaneseq
        %v4023 = vshrl.u32 %v4022, 7
        %v4024 = vsub.s32 %v4021, %v4023
        %v4025 = vrot.slane %v4003, %v4024
        %v4027 = vunpack.c.l.s4 1966171168
        %v4028 = vunpack.c.0.s8 %v4027
        %v4029 = vlaneseq
        %v4030 = vshrl.u32 %v4029, 7
        %v4031 = vsub.s32 %v4028, %v4030
        %v4032 = vrot.slane %v4004, %v4031
        %v4033 = vcombine.low %v4011, %v4018
        %v4034 = vcombine.low %v4025, %v4032
        %v4036 = vunpack.c.l.s4 1966171168
        %v4037 = vunpack.c.0.s8 %v4036
        %v4038 = vlaneseq
        %v4039 = vshrl.u32 %v4038, 7
        %v4040 = vsub.s32 %v4037, %v4039
        %v4041 = vrot.slane %v4033, %v4040
        %v4043 = vunpack.c.l.s4 1966171168
        %v4044 = vunpack.c.0.s8 %v4043
        %v4045 = vlaneseq
        %v4046 = vshrl.u32 %v4045, 7
        %v4047 = vsub.s32 %v4044, %v4046
        %v4048 = vrot.slane %v4034, %v4047
        %v4049 = vcombine.low %v4041, %v4048
        %v4051 = vadd.f32 %v3648, %v4049
        %s4052 = scalar_lea.vmem %s10, 256
        %v4053 = vld [vmem:[%s4052] sm:$0xff]
        %v4054 = vld [vmem:[%s4052 + $0x8] sm:$0xff]
        %v4055 = vld [vmem:[%s4052 + $0x10] sm:$0xff]
        %v4056 = vld [vmem:[%s4052 + $0x18] sm:$0xff]
        %v4057 = vld [vmem:[%s4052 + $0x20] sm:$0xff]
        %v4058 = vld [vmem:[%s4052 + $0x28] sm:$0xff]
        %v4059 = vld [vmem:[%s4052 + $0x30] sm:$0xff]
        %v4060 = vld [vmem:[%s4052 + $0x38] sm:$0xff]
        %v4061 = vld [vmem:[%s4052 + $0x40] sm:$0xff]
        %v4062 = vld [vmem:[%s4052 + $0x48] sm:$0xff]
        %v4063 = vld [vmem:[%s4052 + $0x50] sm:$0xff]
        %v4064 = vld [vmem:[%s4052 + $0x58] sm:$0xff]
        %v4065 = vld [vmem:[%s4052 + $0x60] sm:$0xff]
        %v4066 = vld [vmem:[%s4052 + $0x68] sm:$0xff]
        %v4067 = vld [vmem:[%s4052 + $0x70] sm:$0xff]
        %v4068 = vld [vmem:[%s4052 + $0x78] sm:$0xff]
        %v4069 = vld [vmem:[%s4052 + $0x80] sm:$0xff]
        %v4070 = vld [vmem:[%s4052 + $0x88] sm:$0xff]
        %v4071 = vld [vmem:[%s4052 + $0x90] sm:$0xff]
        %v4072 = vld [vmem:[%s4052 + $0x98] sm:$0xff]
        %v4073 = vld [vmem:[%s4052 + $0xa0] sm:$0xff]
        %v4074 = vld [vmem:[%s4052 + $0xa8] sm:$0xff]
        %v4075 = vld [vmem:[%s4052 + $0xb0] sm:$0xff]
        %v4076 = vld [vmem:[%s4052 + $0xb8] sm:$0xff]
        %v4077 = vld [vmem:[%s4052 + $0xc0] sm:$0x1]
        %v4078 = vld [vmem:[%s4052 + $0xc8] sm:$0x1]
        %v4079 = vld [vmem:[%s4052 + $0xd0] sm:$0x1]
        %v4080 = vld [vmem:[%s4052 + $0xd8] sm:$0x1]
        %v4081 = vld [vmem:[%s4052 + $0xe0] sm:$0x1]
        %v4082 = vld [vmem:[%s4052 + $0xe8] sm:$0x1]
        %v4083 = vld [vmem:[%s4052 + $0xf0] sm:$0x1]
        %v4084 = vld [vmem:[%s4052 + $0xf8] sm:$0x1]
        %v4085 = vrot.slane %v3645, 1
        %v4086 = vsel %vm3681, %v4085, 0
        %v4089 = vsel %vm2846, %v4077, 0
        %v4092 = vsel %vm2846, %v4078, 0
        %v4095 = vsel %vm2846, %v4079, 0
        %v4098 = vsel %vm2846, %v4080, 0
        %v4101 = vsel %vm2846, %v4081, 0
        %v4104 = vsel %vm2846, %v4082, 0
        %v4107 = vsel %vm2846, %v4083, 0
        %v4110 = vsel %vm2846, %v4084, 0
        %4112 = vmatprep.subr.mxu0 %v4054
        %4113 = vmatpush1.msra.mxu0 %v4053
        %4114 = vmatprep.subr.mxu0 %v4062
        %4115 = vmatpush1.msra.mxu0 %v4061
        %4116 = vmatprep.subr.mxu0 %v4070
        %4117 = vmatpush1.msra.mxu0 %v4069
        %4118 = vmatprep.subr.mxu0 %v4092
        %4119 = vmatpush1.msra.mxu0 %v4089
        %4120 = vmatprep.subr.mxu0 0.0
        %4121 = vmatpush1.msra.mxu0 0.0
        %4122 = vmatprep.subr.mxu0 0.0
        %4123 = vmatpush1.msra.mxu0 0.0
        %4124 = vmatprep.subr.mxu0 0.0
        %4125 = vmatpush1.msra.mxu0 0.0
        %4126 = vmatprep.subr.mxu0 0.0
        %4127 = vmatpush1.msra.mxu0 0.0
        %4128 = vmatprep.subr.mxu0 0.0
        %4129 = vmatpush1.msra.mxu0 0.0
        %4130 = vmatprep.subr.mxu0 0.0
        %4131 = vmatpush1.msra.mxu0 0.0
        %4132 = vmatprep.subr.mxu0 0.0
        %4133 = vmatpush1.msra.mxu0 0.0
        %4134 = vmatprep.subr.mxu0 0.0
        %4135 = vmatpush1.msra.mxu0 0.0
        %4136 = vmatprep.subr.mxu0 0.0
        %4137 = vmatpush1.msra.mxu0 0.0
        %4138 = vmatprep.subr.mxu0 0.0
        %4139 = vmatpush1.msra.mxu0 0.0
        %4140 = vmatprep.subr.mxu0 0.0
        %4141 = vmatpush1.msra.mxu0 0.0
        %4142 = vmatprep.subr.mxu0 0.0
        %4143 = vmatpush1.msra.mxu0 0.0
        %4144 = vmatprep.subr.mxu0 0.0
        %4145 = vmatpush1.msra.mxu0 0.0
        %4146 = vmatprep.subr.mxu0 0.0
        %4147 = vmatpush1.msra.mxu0 0.0
        %4148 = vmatprep.subr.mxu0 0.0
        %4149 = vmatpush1.msra.mxu0 0.0
        %4150 = vmatprep.subr.mxu0 0.0
        %4151 = vmatpush1.msra.mxu0 0.0
        %4152 = vmatprep.subr.mxu0 0.0
        %4153 = vmatpush1.msra.mxu0 0.0
        %4154 = vmatprep.subr.mxu0 0.0
        %4155 = vmatpush1.msra.mxu0 0.0
        %4156 = vmatprep.subr.mxu0 0.0
        %4157 = vmatpush1.msra.mxu0 0.0
        %4158 = vmatprep.subr.mxu0 0.0
        %4159 = vmatpush1.msra.mxu0 0.0
        %4160 = vmatprep.subr.mxu0 0.0
        %4161 = vmatpush1.msra.mxu0 0.0
        %4162 = vmatprep.subr.mxu0 0.0
        %4163 = vmatpush1.msra.mxu0 0.0
        %4164 = vmatprep.subr.mxu0 0.0
        %4165 = vmatpush1.msra.mxu0 0.0
        %4166 = vmatprep.subr.mxu0 0.0
        %4167 = vmatpush1.msra.mxu0 0.0
        %4168 = vmatprep.subr.mxu0 0.0
        %4169 = vmatpush1.msra.mxu0 0.0
        %4170 = vmatprep.subr.mxu0 0.0
        %4171 = vmatpush1.msra.mxu0 0.0
        %4172 = vmatprep.subr.mxu0 0.0
        %4173 = vmatpush1.msra.mxu0 0.0
        %4174 = vmatprep.subr.mxu0 0.0
        %4175 = vmatpush1.msra.mxu0 0.0
        %4176 = vmatprep.mubr.f32.mxu0 0.0
        %4177 = vmatmul.mubr.f32.gmra.mrb[0].mxu0 %v4086
        %v4178 = vpop.f32.mrb[0].mxu0
        %v4179 = vadd.f32 0.0, %v4178
        %v4180 = vpop.f32.mrb[0].mxu0
        %v4181 = vadd.f32 0.0, %v4180
        %4182 = vdwg.mxu0
        %4183 = vmatprep.subr.mxu0 %v4056
        %4184 = vmatpush1.msra.mxu0 %v4055
        %4185 = vmatprep.subr.mxu0 %v4064
        %4186 = vmatpush1.msra.mxu0 %v4063
        %4187 = vmatprep.subr.mxu0 %v4072
        %4188 = vmatpush1.msra.mxu0 %v4071
        %4189 = vmatprep.subr.mxu0 %v4098
        %4190 = vmatpush1.msra.mxu0 %v4095
        %4191 = vmatprep.subr.mxu0 0.0
        %4192 = vmatpush1.msra.mxu0 0.0
        %4193 = vmatprep.subr.mxu0 0.0
        %4194 = vmatpush1.msra.mxu0 0.0
        %4195 = vmatprep.subr.mxu0 0.0
        %4196 = vmatpush1.msra.mxu0 0.0
        %4197 = vmatprep.subr.mxu0 0.0
        %4198 = vmatpush1.msra.mxu0 0.0
        %4199 = vmatprep.subr.mxu0 0.0
        %4200 = vmatpush1.msra.mxu0 0.0
        %4201 = vmatprep.subr.mxu0 0.0
        %4202 = vmatpush1.msra.mxu0 0.0
        %4203 = vmatprep.subr.mxu0 0.0
        %4204 = vmatpush1.msra.mxu0 0.0
        %4205 = vmatprep.subr.mxu0 0.0
        %4206 = vmatpush1.msra.mxu0 0.0
        %4207 = vmatprep.subr.mxu0 0.0
        %4208 = vmatpush1.msra.mxu0 0.0
        %4209 = vmatprep.subr.mxu0 0.0
        %4210 = vmatpush1.msra.mxu0 0.0
        %4211 = vmatprep.subr.mxu0 0.0
        %4212 = vmatpush1.msra.mxu0 0.0
        %4213 = vmatprep.subr.mxu0 0.0
        %4214 = vmatpush1.msra.mxu0 0.0
        %4215 = vmatprep.subr.mxu0 0.0
        %4216 = vmatpush1.msra.mxu0 0.0
        %4217 = vmatprep.subr.mxu0 0.0
        %4218 = vmatpush1.msra.mxu0 0.0
        %4219 = vmatprep.subr.mxu0 0.0
        %4220 = vmatpush1.msra.mxu0 0.0
        %4221 = vmatprep.subr.mxu0 0.0
        %4222 = vmatpush1.msra.mxu0 0.0
        %4223 = vmatprep.subr.mxu0 0.0
        %4224 = vmatpush1.msra.mxu0 0.0
        %4225 = vmatprep.subr.mxu0 0.0
        %4226 = vmatpush1.msra.mxu0 0.0
        %4227 = vmatprep.subr.mxu0 0.0
        %4228 = vmatpush1.msra.mxu0 0.0
        %4229 = vmatprep.subr.mxu0 0.0
        %4230 = vmatpush1.msra.mxu0 0.0
        %4231 = vmatprep.subr.mxu0 0.0
        %4232 = vmatpush1.msra.mxu0 0.0
        %4233 = vmatprep.subr.mxu0 0.0
        %4234 = vmatpush1.msra.mxu0 0.0
        %4235 = vmatprep.subr.mxu0 0.0
        %4236 = vmatpush1.msra.mxu0 0.0
        %4237 = vmatprep.subr.mxu0 0.0
        %4238 = vmatpush1.msra.mxu0 0.0
        %4239 = vmatprep.subr.mxu0 0.0
        %4240 = vmatpush1.msra.mxu0 0.0
        %4241 = vmatprep.subr.mxu0 0.0
        %4242 = vmatpush1.msra.mxu0 0.0
        %4243 = vmatprep.subr.mxu0 0.0
        %4244 = vmatpush1.msra.mxu0 0.0
        %4245 = vmatprep.subr.mxu0 0.0
        %4246 = vmatpush1.msra.mxu0 0.0
        %4247 = vmatprep.mubr.f32.mxu0 0.0
        %4248 = vmatmul.mubr.f32.gmra.mrb[0].mxu0 %v4086
        %v4249 = vpop.f32.mrb[0].mxu0
        %v4250 = vadd.f32 0.0, %v4249
        %v4251 = vpop.f32.mrb[0].mxu0
        %v4252 = vadd.f32 0.0, %v4251
        %4253 = vdwg.mxu0
        %4254 = vmatprep.subr.mxu0 %v4058
        %4255 = vmatpush1.msra.mxu0 %v4057
        %4256 = vmatprep.subr.mxu0 %v4066
        %4257 = vmatpush1.msra.mxu0 %v4065
        %4258 = vmatprep.subr.mxu0 %v4074
        %4259 = vmatpush1.msra.mxu0 %v4073
        %4260 = vmatprep.subr.mxu0 %v4104
        %4261 = vmatpush1.msra.mxu0 %v4101
        %4262 = vmatprep.subr.mxu0 0.0
        %4263 = vmatpush1.msra.mxu0 0.0
        %4264 = vmatprep.subr.mxu0 0.0
        %4265 = vmatpush1.msra.mxu0 0.0
        %4266 = vmatprep.subr.mxu0 0.0
        %4267 = vmatpush1.msra.mxu0 0.0
        %4268 = vmatprep.subr.mxu0 0.0
        %4269 = vmatpush1.msra.mxu0 0.0
        %4270 = vmatprep.subr.mxu0 0.0
        %4271 = vmatpush1.msra.mxu0 0.0
        %4272 = vmatprep.subr.mxu0 0.0
        %4273 = vmatpush1.msra.mxu0 0.0
        %4274 = vmatprep.subr.mxu0 0.0
        %4275 = vmatpush1.msra.mxu0 0.0
        %4276 = vmatprep.subr.mxu0 0.0
        %4277 = vmatpush1.msra.mxu0 0.0
        %4278 = vmatprep.subr.mxu0 0.0
        %4279 = vmatpush1.msra.mxu0 0.0
        %4280 = vmatprep.subr.mxu0 0.0
        %4281 = vmatpush1.msra.mxu0 0.0
        %4282 = vmatprep.subr.mxu0 0.0
        %4283 = vmatpush1.msra.mxu0 0.0
        %4284 = vmatprep.subr.mxu0 0.0
        %4285 = vmatpush1.msra.mxu0 0.0
        %4286 = vmatprep.subr.mxu0 0.0
        %4287 = vmatpush1.msra.mxu0 0.0
        %4288 = vmatprep.subr.mxu0 0.0
        %4289 = vmatpush1.msra.mxu0 0.0
        %4290 = vmatprep.subr.mxu0 0.0
        %4291 = vmatpush1.msra.mxu0 0.0
        %4292 = vmatprep.subr.mxu0 0.0
        %4293 = vmatpush1.msra.mxu0 0.0
        %4294 = vmatprep.subr.mxu0 0.0
        %4295 = vmatpush1.msra.mxu0 0.0
        %4296 = vmatprep.subr.mxu0 0.0
        %4297 = vmatpush1.msra.mxu0 0.0
        %4298 = vmatprep.subr.mxu0 0.0
        %4299 = vmatpush1.msra.mxu0 0.0
        %4300 = vmatprep.subr.mxu0 0.0
        %4301 = vmatpush1.msra.mxu0 0.0
        %4302 = vmatprep.subr.mxu0 0.0
        %4303 = vmatpush1.msra.mxu0 0.0
        %4304 = vmatprep.subr.mxu0 0.0
        %4305 = vmatpush1.msra.mxu0 0.0
        %4306 = vmatprep.subr.mxu0 0.0
        %4307 = vmatpush1.msra.mxu0 0.0
        %4308 = vmatprep.subr.mxu0 0.0
        %4309 = vmatpush1.msra.mxu0 0.0
        %4310 = vmatprep.subr.mxu0 0.0
        %4311 = vmatpush1.msra.mxu0 0.0
        %4312 = vmatprep.subr.mxu0 0.0
        %4313 = vmatpush1.msra.mxu0 0.0
        %4314 = vmatprep.subr.mxu0 0.0
        %4315 = vmatpush1.msra.mxu0 0.0
        %4316 = vmatprep.subr.mxu0 0.0
        %4317 = vmatpush1.msra.mxu0 0.0
        %4318 = vmatprep.mubr.f32.mxu0 0.0
        %4319 = vmatmul.mubr.f32.gmra.mrb[0].mxu0 %v4086
        %v4320 = vpop.f32.mrb[0].mxu0
        %v4321 = vadd.f32 0.0, %v4320
        %v4322 = vpop.f32.mrb[0].mxu0
        %v4323 = vadd.f32 0.0, %v4322
        %4324 = vdwg.mxu0
        %4325 = vmatprep.subr.mxu0 %v4060
        %4326 = vmatpush1.msra.mxu0 %v4059
        %4327 = vmatprep.subr.mxu0 %v4068
        %4328 = vmatpush1.msra.mxu0 %v4067
        %4329 = vmatprep.subr.mxu0 %v4076
        %4330 = vmatpush1.msra.mxu0 %v4075
        %4331 = vmatprep.subr.mxu0 %v4110
        %4332 = vmatpush1.msra.mxu0 %v4107
        %4333 = vmatprep.subr.mxu0 0.0
        %4334 = vmatpush1.msra.mxu0 0.0
        %4335 = vmatprep.subr.mxu0 0.0
        %4336 = vmatpush1.msra.mxu0 0.0
        %4337 = vmatprep.subr.mxu0 0.0
        %4338 = vmatpush1.msra.mxu0 0.0
        %4339 = vmatprep.subr.mxu0 0.0
        %4340 = vmatpush1.msra.mxu0 0.0
        %4341 = vmatprep.subr.mxu0 0.0
        %4342 = vmatpush1.msra.mxu0 0.0
        %4343 = vmatprep.subr.mxu0 0.0
        %4344 = vmatpush1.msra.mxu0 0.0
        %4345 = vmatprep.subr.mxu0 0.0
        %4346 = vmatpush1.msra.mxu0 0.0
        %4347 = vmatprep.subr.mxu0 0.0
        %4348 = vmatpush1.msra.mxu0 0.0
        %4349 = vmatprep.subr.mxu0 0.0
        %4350 = vmatpush1.msra.mxu0 0.0
        %4351 = vmatprep.subr.mxu0 0.0
        %4352 = vmatpush1.msra.mxu0 0.0
        %4353 = vmatprep.subr.mxu0 0.0
        %4354 = vmatpush1.msra.mxu0 0.0
        %4355 = vmatprep.subr.mxu0 0.0
        %4356 = vmatpush1.msra.mxu0 0.0
        %4357 = vmatprep.subr.mxu0 0.0
        %4358 = vmatpush1.msra.mxu0 0.0
        %4359 = vmatprep.subr.mxu0 0.0
        %4360 = vmatpush1.msra.mxu0 0.0
        %4361 = vmatprep.subr.mxu0 0.0
        %4362 = vmatpush1.msra.mxu0 0.0
        %4363 = vmatprep.subr.mxu0 0.0
        %4364 = vmatpush1.msra.mxu0 0.0
        %4365 = vmatprep.subr.mxu0 0.0
        %4366 = vmatpush1.msra.mxu0 0.0
        %4367 = vmatprep.subr.mxu0 0.0
        %4368 = vmatpush1.msra.mxu0 0.0
        %4369 = vmatprep.subr.mxu0 0.0
        %4370 = vmatpush1.msra.mxu0 0.0
        %4371 = vmatprep.subr.mxu0 0.0
        %4372 = vmatpush1.msra.mxu0 0.0
        %4373 = vmatprep.subr.mxu0 0.0
        %4374 = vmatpush1.msra.mxu0 0.0
        %4375 = vmatprep.subr.mxu0 0.0
        %4376 = vmatpush1.msra.mxu0 0.0
        %4377 = vmatprep.subr.mxu0 0.0
        %4378 = vmatpush1.msra.mxu0 0.0
        %4379 = vmatprep.subr.mxu0 0.0
        %4380 = vmatpush1.msra.mxu0 0.0
        %4381 = vmatprep.subr.mxu0 0.0
        %4382 = vmatpush1.msra.mxu0 0.0
        %4383 = vmatprep.subr.mxu0 0.0
        %4384 = vmatpush1.msra.mxu0 0.0
        %4385 = vmatprep.subr.mxu0 0.0
        %4386 = vmatpush1.msra.mxu0 0.0
        %4387 = vmatprep.subr.mxu0 0.0
        %4388 = vmatpush1.msra.mxu0 0.0
        %4389 = vmatprep.mubr.f32.mxu0 0.0
        %4390 = vmatmul.mubr.f32.gmra.mrb[0].mxu0 %v4086
        %v4391 = vpop.f32.mrb[0].mxu0
        %v4392 = vadd.f32 0.0, %v4391
        %v4393 = vpop.f32.mrb[0].mxu0
        %v4394 = vadd.f32 0.0, %v4393
        %4395 = vdwg.mxu0
        %v4404 = vcombine.low %v4179, %v4181
        %v4405 = vcombine.low %v4250, %v4252
        %v4406 = vcombine.low %v4321, %v4323
        %v4407 = vcombine.low %v4392, %v4394
        %v4409 = vunpack.c.l.s4 1966171168
        %v4410 = vunpack.c.0.s8 %v4409
        %v4411 = vlaneseq
        %v4412 = vshrl.u32 %v4411, 7
        %v4413 = vsub.s32 %v4410, %v4412
        %v4414 = vrot.slane %v4404, %v4413
        %v4416 = vunpack.c.l.s4 1966171168
        %v4417 = vunpack.c.0.s8 %v4416
        %v4418 = vlaneseq
        %v4419 = vshrl.u32 %v4418, 7
        %v4420 = vsub.s32 %v4417, %v4419
        %v4421 = vrot.slane %v4405, %v4420
        %v4423 = vunpack.c.l.s4 1966171168
        %v4424 = vunpack.c.0.s8 %v4423
        %v4425 = vlaneseq
        %v4426 = vshrl.u32 %v4425, 7
        %v4427 = vsub.s32 %v4424, %v4426
        %v4428 = vrot.slane %v4406, %v4427
        %v4430 = vunpack.c.l.s4 1966171168
        %v4431 = vunpack.c.0.s8 %v4430
        %v4432 = vlaneseq
        %v4433 = vshrl.u32 %v4432, 7
        %v4434 = vsub.s32 %v4431, %v4433
        %v4435 = vrot.slane %v4407, %v4434
        %v4436 = vcombine.low %v4414, %v4421
        %v4437 = vcombine.low %v4428, %v4435
        %v4439 = vunpack.c.l.s4 1966171168
        %v4440 = vunpack.c.0.s8 %v4439
        %v4441 = vlaneseq
        %v4442 = vshrl.u32 %v4441, 7
        %v4443 = vsub.s32 %v4440, %v4442
        %v4444 = vrot.slane %v4436, %v4443
        %v4446 = vunpack.c.l.s4 1966171168
        %v4447 = vunpack.c.0.s8 %v4446
        %v4448 = vlaneseq
        %v4449 = vshrl.u32 %v4448, 7
        %v4450 = vsub.s32 %v4447, %v4449
        %v4451 = vrot.slane %v4437, %v4450
        %v4452 = vcombine.low %v4444, %v4451
        %v4454 = vadd.f32 %v4051, %v4452
        %s4455 = scalar_lea.vmem %s10, 512
        %v4456 = vld [vmem:[%s4455] sm:$0xff]
        %v4457 = vld [vmem:[%s4455 + $0x8] sm:$0xff]
        %v4458 = vld [vmem:[%s4455 + $0x10] sm:$0xff]
        %v4459 = vld [vmem:[%s4455 + $0x18] sm:$0xff]
        %v4460 = vld [vmem:[%s4455 + $0x20] sm:$0xff]
        %v4461 = vld [vmem:[%s4455 + $0x28] sm:$0xff]
        %v4462 = vld [vmem:[%s4455 + $0x30] sm:$0xff]
        %v4463 = vld [vmem:[%s4455 + $0x38] sm:$0xff]
        %v4464 = vld [vmem:[%s4455 + $0x40] sm:$0xff]
        %v4465 = vld [vmem:[%s4455 + $0x48] sm:$0xff]
        %v4466 = vld [vmem:[%s4455 + $0x50] sm:$0xff]
        %v4467 = vld [vmem:[%s4455 + $0x58] sm:$0xff]
        %v4468 = vld [vmem:[%s4455 + $0x60] sm:$0xff]
        %v4469 = vld [vmem:[%s4455 + $0x68] sm:$0xff]
        %v4470 = vld [vmem:[%s4455 + $0x70] sm:$0xff]
        %v4471 = vld [vmem:[%s4455 + $0x78] sm:$0xff]
        %v4472 = vld [vmem:[%s4455 + $0x80] sm:$0xff]
        %v4473 = vld [vmem:[%s4455 + $0x88] sm:$0xff]
        %v4474 = vld [vmem:[%s4455 + $0x90] sm:$0xff]
        %v4475 = vld [vmem:[%s4455 + $0x98] sm:$0xff]
        %v4476 = vld [vmem:[%s4455 + $0xa0] sm:$0xff]
        %v4477 = vld [vmem:[%s4455 + $0xa8] sm:$0xff]
        %v4478 = vld [vmem:[%s4455 + $0xb0] sm:$0xff]
        %v4479 = vld [vmem:[%s4455 + $0xb8] sm:$0xff]
        %v4480 = vld [vmem:[%s4455 + $0xc0] sm:$0x1]
        %v4481 = vld [vmem:[%s4455 + $0xc8] sm:$0x1]
        %v4482 = vld [vmem:[%s4455 + $0xd0] sm:$0x1]
        %v4483 = vld [vmem:[%s4455 + $0xd8] sm:$0x1]
        %v4484 = vld [vmem:[%s4455 + $0xe0] sm:$0x1]
        %v4485 = vld [vmem:[%s4455 + $0xe8] sm:$0x1]
        %v4486 = vld [vmem:[%s4455 + $0xf0] sm:$0x1]
        %v4487 = vld [vmem:[%s4455 + $0xf8] sm:$0x1]
        %v4488 = vrot.slane %v3645, 2
        %v4489 = vsel %vm3681, %v4488, 0
        %v4492 = vsel %vm2846, %v4480, 0
        %v4495 = vsel %vm2846, %v4481, 0
        %v4498 = vsel %vm2846, %v4482, 0
        %v4501 = vsel %vm2846, %v4483, 0
        %v4504 = vsel %vm2846, %v4484, 0
        %v4507 = vsel %vm2846, %v4485, 0
        %v4510 = vsel %vm2846, %v4486, 0
        %v4513 = vsel %vm2846, %v4487, 0
        %4515 = vmatprep.subr.mxu0 %v4457
        %4516 = vmatpush1.msra.mxu0 %v4456
        %4517 = vmatprep.subr.mxu0 %v4465
        %4518 = vmatpush1.msra.mxu0 %v4464
        %4519 = vmatprep.subr.mxu0 %v4473
        %4520 = vmatpush1.msra.mxu0 %v4472
        %4521 = vmatprep.subr.mxu0 %v4495
        %4522 = vmatpush1.msra.mxu0 %v4492
        %4523 = vmatprep.subr.mxu0 0.0
        %4524 = vmatpush1.msra.mxu0 0.0
        %4525 = vmatprep.subr.mxu0 0.0
        %4526 = vmatpush1.msra.mxu0 0.0
        %4527 = vmatprep.subr.mxu0 0.0
        %4528 = vmatpush1.msra.mxu0 0.0
        %4529 = vmatprep.subr.mxu0 0.0
        %4530 = vmatpush1.msra.mxu0 0.0
        %4531 = vmatprep.subr.mxu0 0.0
        %4532 = vmatpush1.msra.mxu0 0.0
        %4533 = vmatprep.subr.mxu0 0.0
        %4534 = vmatpush1.msra.mxu0 0.0
        %4535 = vmatprep.subr.mxu0 0.0
        %4536 = vmatpush1.msra.mxu0 0.0
        %4537 = vmatprep.subr.mxu0 0.0
        %4538 = vmatpush1.msra.mxu0 0.0
        %4539 = vmatprep.subr.mxu0 0.0
        %4540 = vmatpush1.msra.mxu0 0.0
        %4541 = vmatprep.subr.mxu0 0.0
        %4542 = vmatpush1.msra.mxu0 0.0
        %4543 = vmatprep.subr.mxu0 0.0
        %4544 = vmatpush1.msra.mxu0 0.0
        %4545 = vmatprep.subr.mxu0 0.0
        %4546 = vmatpush1.msra.mxu0 0.0
        %4547 = vmatprep.subr.mxu0 0.0
        %4548 = vmatpush1.msra.mxu0 0.0
        %4549 = vmatprep.subr.mxu0 0.0
        %4550 = vmatpush1.msra.mxu0 0.0
        %4551 = vmatprep.subr.mxu0 0.0
        %4552 = vmatpush1.msra.mxu0 0.0
        %4553 = vmatprep.subr.mxu0 0.0
        %4554 = vmatpush1.msra.mxu0 0.0
        %4555 = vmatprep.subr.mxu0 0.0
        %4556 = vmatpush1.msra.mxu0 0.0
        %4557 = vmatprep.subr.mxu0 0.0
        %4558 = vmatpush1.msra.mxu0 0.0
        %4559 = vmatprep.subr.mxu0 0.0
        %4560 = vmatpush1.msra.mxu0 0.0
        %4561 = vmatprep.subr.mxu0 0.0
        %4562 = vmatpush1.msra.mxu0 0.0
        %4563 = vmatprep.subr.mxu0 0.0
        %4564 = vmatpush1.msra.mxu0 0.0
        %4565 = vmatprep.subr.mxu0 0.0
        %4566 = vmatpush1.msra.mxu0 0.0
        %4567 = vmatprep.subr.mxu0 0.0
        %4568 = vmatpush1.msra.mxu0 0.0
        %4569 = vmatprep.subr.mxu0 0.0
        %4570 = vmatpush1.msra.mxu0 0.0
        %4571 = vmatprep.subr.mxu0 0.0
        %4572 = vmatpush1.msra.mxu0 0.0
        %4573 = vmatprep.subr.mxu0 0.0
        %4574 = vmatpush1.msra.mxu0 0.0
        %4575 = vmatprep.subr.mxu0 0.0
        %4576 = vmatpush1.msra.mxu0 0.0
        %4577 = vmatprep.subr.mxu0 0.0
        %4578 = vmatpush1.msra.mxu0 0.0
        %4579 = vmatprep.mubr.f32.mxu0 0.0
        %4580 = vmatmul.mubr.f32.gmra.mrb[0].mxu0 %v4489
        %v4581 = vpop.f32.mrb[0].mxu0
        %v4582 = vadd.f32 0.0, %v4581
        %v4583 = vpop.f32.mrb[0].mxu0
        %v4584 = vadd.f32 0.0, %v4583
        %4585 = vdwg.mxu0
        %4586 = vmatprep.subr.mxu0 %v4459
        %4587 = vmatpush1.msra.mxu0 %v4458
        %4588 = vmatprep.subr.mxu0 %v4467
        %4589 = vmatpush1.msra.mxu0 %v4466
        %4590 = vmatprep.subr.mxu0 %v4475
        %4591 = vmatpush1.msra.mxu0 %v4474
        %4592 = vmatprep.subr.mxu0 %v4501
        %4593 = vmatpush1.msra.mxu0 %v4498
        %4594 = vmatprep.subr.mxu0 0.0
        %4595 = vmatpush1.msra.mxu0 0.0
        %4596 = vmatprep.subr.mxu0 0.0
        %4597 = vmatpush1.msra.mxu0 0.0
        %4598 = vmatprep.subr.mxu0 0.0
        %4599 = vmatpush1.msra.mxu0 0.0
        %4600 = vmatprep.subr.mxu0 0.0
        %4601 = vmatpush1.msra.mxu0 0.0
        %4602 = vmatprep.subr.mxu0 0.0
        %4603 = vmatpush1.msra.mxu0 0.0
        %4604 = vmatprep.subr.mxu0 0.0
        %4605 = vmatpush1.msra.mxu0 0.0
        %4606 = vmatprep.subr.mxu0 0.0
        %4607 = vmatpush1.msra.mxu0 0.0
        %4608 = vmatprep.subr.mxu0 0.0
        %4609 = vmatpush1.msra.mxu0 0.0
        %4610 = vmatprep.subr.mxu0 0.0
        %4611 = vmatpush1.msra.mxu0 0.0
        %4612 = vmatprep.subr.mxu0 0.0
        %4613 = vmatpush1.msra.mxu0 0.0
        %4614 = vmatprep.subr.mxu0 0.0
        %4615 = vmatpush1.msra.mxu0 0.0
        %4616 = vmatprep.subr.mxu0 0.0
        %4617 = vmatpush1.msra.mxu0 0.0
        %4618 = vmatprep.subr.mxu0 0.0
        %4619 = vmatpush1.msra.mxu0 0.0
        %4620 = vmatprep.subr.mxu0 0.0
        %4621 = vmatpush1.msra.mxu0 0.0
        %4622 = vmatprep.subr.mxu0 0.0
        %4623 = vmatpush1.msra.mxu0 0.0
        %4624 = vmatprep.subr.mxu0 0.0
        %4625 = vmatpush1.msra.mxu0 0.0
        %4626 = vmatprep.subr.mxu0 0.0
        %4627 = vmatpush1.msra.mxu0 0.0
        %4628 = vmatprep.subr.mxu0 0.0
        %4629 = vmatpush1.msra.mxu0 0.0
        %4630 = vmatprep.subr.mxu0 0.0
        %4631 = vmatpush1.msra.mxu0 0.0
        %4632 = vmatprep.subr.mxu0 0.0
        %4633 = vmatpush1.msra.mxu0 0.0
        %4634 = vmatprep.subr.mxu0 0.0
        %4635 = vmatpush1.msra.mxu0 0.0
        %4636 = vmatprep.subr.mxu0 0.0
        %4637 = vmatpush1.msra.mxu0 0.0
        %4638 = vmatprep.subr.mxu0 0.0
        %4639 = vmatpush1.msra.mxu0 0.0
        %4640 = vmatprep.subr.mxu0 0.0
        %4641 = vmatpush1.msra.mxu0 0.0
        %4642 = vmatprep.subr.mxu0 0.0
        %4643 = vmatpush1.msra.mxu0 0.0
        %4644 = vmatprep.subr.mxu0 0.0
        %4645 = vmatpush1.msra.mxu0 0.0
        %4646 = vmatprep.subr.mxu0 0.0
        %4647 = vmatpush1.msra.mxu0 0.0
        %4648 = vmatprep.subr.mxu0 0.0
        %4649 = vmatpush1.msra.mxu0 0.0
        %4650 = vmatprep.mubr.f32.mxu0 0.0
        %4651 = vmatmul.mubr.f32.gmra.mrb[0].mxu0 %v4489
        %v4652 = vpop.f32.mrb[0].mxu0
        %v4653 = vadd.f32 0.0, %v4652
        %v4654 = vpop.f32.mrb[0].mxu0
        %v4655 = vadd.f32 0.0, %v4654
        %4656 = vdwg.mxu0
        %4657 = vmatprep.subr.mxu0 %v4461
        %4658 = vmatpush1.msra.mxu0 %v4460
        %4659 = vmatprep.subr.mxu0 %v4469
        %4660 = vmatpush1.msra.mxu0 %v4468
        %4661 = vmatprep.subr.mxu0 %v4477
        %4662 = vmatpush1.msra.mxu0 %v4476
        %4663 = vmatprep.subr.mxu0 %v4507
        %4664 = vmatpush1.msra.mxu0 %v4504
        %4665 = vmatprep.subr.mxu0 0.0
        %4666 = vmatpush1.msra.mxu0 0.0
        %4667 = vmatprep.subr.mxu0 0.0
        %4668 = vmatpush1.msra.mxu0 0.0
        %4669 = vmatprep.subr.mxu0 0.0
        %4670 = vmatpush1.msra.mxu0 0.0
        %4671 = vmatprep.subr.mxu0 0.0
        %4672 = vmatpush1.msra.mxu0 0.0
        %4673 = vmatprep.subr.mxu0 0.0
        %4674 = vmatpush1.msra.mxu0 0.0
        %4675 = vmatprep.subr.mxu0 0.0
        %4676 = vmatpush1.msra.mxu0 0.0
        %4677 = vmatprep.subr.mxu0 0.0
        %4678 = vmatpush1.msra.mxu0 0.0
        %4679 = vmatprep.subr.mxu0 0.0
        %4680 = vmatpush1.msra.mxu0 0.0
        %4681 = vmatprep.subr.mxu0 0.0
        %4682 = vmatpush1.msra.mxu0 0.0
        %4683 = vmatprep.subr.mxu0 0.0
        %4684 = vmatpush1.msra.mxu0 0.0
        %4685 = vmatprep.subr.mxu0 0.0
        %4686 = vmatpush1.msra.mxu0 0.0
        %4687 = vmatprep.subr.mxu0 0.0
        %4688 = vmatpush1.msra.mxu0 0.0
        %4689 = vmatprep.subr.mxu0 0.0
        %4690 = vmatpush1.msra.mxu0 0.0
        %4691 = vmatprep.subr.mxu0 0.0
        %4692 = vmatpush1.msra.mxu0 0.0
        %4693 = vmatprep.subr.mxu0 0.0
        %4694 = vmatpush1.msra.mxu0 0.0
        %4695 = vmatprep.subr.mxu0 0.0
        %4696 = vmatpush1.msra.mxu0 0.0
        %4697 = vmatprep.subr.mxu0 0.0
        %4698 = vmatpush1.msra.mxu0 0.0
        %4699 = vmatprep.subr.mxu0 0.0
        %4700 = vmatpush1.msra.mxu0 0.0
        %4701 = vmatprep.subr.mxu0 0.0
        %4702 = vmatpush1.msra.mxu0 0.0
        %4703 = vmatprep.subr.mxu0 0.0
        %4704 = vmatpush1.msra.mxu0 0.0
        %4705 = vmatprep.subr.mxu0 0.0
        %4706 = vmatpush1.msra.mxu0 0.0
        %4707 = vmatprep.subr.mxu0 0.0
        %4708 = vmatpush1.msra.mxu0 0.0
        %4709 = vmatprep.subr.mxu0 0.0
        %4710 = vmatpush1.msra.mxu0 0.0
        %4711 = vmatprep.subr.mxu0 0.0
        %4712 = vmatpush1.msra.mxu0 0.0
        %4713 = vmatprep.subr.mxu0 0.0
        %4714 = vmatpush1.msra.mxu0 0.0
        %4715 = vmatprep.subr.mxu0 0.0
        %4716 = vmatpush1.msra.mxu0 0.0
        %4717 = vmatprep.subr.mxu0 0.0
        %4718 = vmatpush1.msra.mxu0 0.0
        %4719 = vmatprep.subr.mxu0 0.0
        %4720 = vmatpush1.msra.mxu0 0.0
        %4721 = vmatprep.mubr.f32.mxu0 0.0
        %4722 = vmatmul.mubr.f32.gmra.mrb[0].mxu0 %v4489
        %v4723 = vpop.f32.mrb[0].mxu0
        %v4724 = vadd.f32 0.0, %v4723
        %v4725 = vpop.f32.mrb[0].mxu0
        %v4726 = vadd.f32 0.0, %v4725
        %4727 = vdwg.mxu0
        %4728 = vmatprep.subr.mxu0 %v4463
        %4729 = vmatpush1.msra.mxu0 %v4462
        %4730 = vmatprep.subr.mxu0 %v4471
        %4731 = vmatpush1.msra.mxu0 %v4470
        %4732 = vmatprep.subr.mxu0 %v4479
        %4733 = vmatpush1.msra.mxu0 %v4478
        %4734 = vmatprep.subr.mxu0 %v4513
        %4735 = vmatpush1.msra.mxu0 %v4510
        %4736 = vmatprep.subr.mxu0 0.0
        %4737 = vmatpush1.msra.mxu0 0.0
        %4738 = vmatprep.subr.mxu0 0.0
        %4739 = vmatpush1.msra.mxu0 0.0
        %4740 = vmatprep.subr.mxu0 0.0
        %4741 = vmatpush1.msra.mxu0 0.0
        %4742 = vmatprep.subr.mxu0 0.0
        %4743 = vmatpush1.msra.mxu0 0.0
        %4744 = vmatprep.subr.mxu0 0.0
        %4745 = vmatpush1.msra.mxu0 0.0
        %4746 = vmatprep.subr.mxu0 0.0
        %4747 = vmatpush1.msra.mxu0 0.0
        %4748 = vmatprep.subr.mxu0 0.0
        %4749 = vmatpush1.msra.mxu0 0.0
        %4750 = vmatprep.subr.mxu0 0.0
        %4751 = vmatpush1.msra.mxu0 0.0
        %4752 = vmatprep.subr.mxu0 0.0
        %4753 = vmatpush1.msra.mxu0 0.0
        %4754 = vmatprep.subr.mxu0 0.0
        %4755 = vmatpush1.msra.mxu0 0.0
        %4756 = vmatprep.subr.mxu0 0.0
        %4757 = vmatpush1.msra.mxu0 0.0
        %4758 = vmatprep.subr.mxu0 0.0
        %4759 = vmatpush1.msra.mxu0 0.0
        %4760 = vmatprep.subr.mxu0 0.0
        %4761 = vmatpush1.msra.mxu0 0.0
        %4762 = vmatprep.subr.mxu0 0.0
        %4763 = vmatpush1.msra.mxu0 0.0
        %4764 = vmatprep.subr.mxu0 0.0
        %4765 = vmatpush1.msra.mxu0 0.0
        %4766 = vmatprep.subr.mxu0 0.0
        %4767 = vmatpush1.msra.mxu0 0.0
        %4768 = vmatprep.subr.mxu0 0.0
        %4769 = vmatpush1.msra.mxu0 0.0
        %4770 = vmatprep.subr.mxu0 0.0
        %4771 = vmatpush1.msra.mxu0 0.0
        %4772 = vmatprep.subr.mxu0 0.0
        %4773 = vmatpush1.msra.mxu0 0.0
        %4774 = vmatprep.subr.mxu0 0.0
        %4775 = vmatpush1.msra.mxu0 0.0
        %4776 = vmatprep.subr.mxu0 0.0
        %4777 = vmatpush1.msra.mxu0 0.0
        %4778 = vmatprep.subr.mxu0 0.0
        %4779 = vmatpush1.msra.mxu0 0.0
        %4780 = vmatprep.subr.mxu0 0.0
        %4781 = vmatpush1.msra.mxu0 0.0
        %4782 = vmatprep.subr.mxu0 0.0
        %4783 = vmatpush1.msra.mxu0 0.0
        %4784 = vmatprep.subr.mxu0 0.0
        %4785 = vmatpush1.msra.mxu0 0.0
        %4786 = vmatprep.subr.mxu0 0.0
        %4787 = vmatpush1.msra.mxu0 0.0
        %4788 = vmatprep.subr.mxu0 0.0
        %4789 = vmatpush1.msra.mxu0 0.0
        %4790 = vmatprep.subr.mxu0 0.0
        %4791 = vmatpush1.msra.mxu0 0.0
        %4792 = vmatprep.mubr.f32.mxu0 0.0
        %4793 = vmatmul.mubr.f32.gmra.mrb[0].mxu0 %v4489
        %v4794 = vpop.f32.mrb[0].mxu0
        %v4795 = vadd.f32 0.0, %v4794
        %v4796 = vpop.f32.mrb[0].mxu0
        %v4797 = vadd.f32 0.0, %v4796
        %4798 = vdwg.mxu0
        %v4807 = vcombine.low %v4582, %v4584
        %v4808 = vcombine.low %v4653, %v4655
        %v4809 = vcombine.low %v4724, %v4726
        %v4810 = vcombine.low %v4795, %v4797
        %v4812 = vunpack.c.l.s4 1966171168
        %v4813 = vunpack.c.0.s8 %v4812
        %v4814 = vlaneseq
        %v4815 = vshrl.u32 %v4814, 7
        %v4816 = vsub.s32 %v4813, %v4815
        %v4817 = vrot.slane %v4807, %v4816
        %v4819 = vunpack.c.l.s4 1966171168
        %v4820 = vunpack.c.0.s8 %v4819
        %v4821 = vlaneseq
        %v4822 = vshrl.u32 %v4821, 7
        %v4823 = vsub.s32 %v4820, %v4822
        %v4824 = vrot.slane %v4808, %v4823
        %v4826 = vunpack.c.l.s4 1966171168
        %v4827 = vunpack.c.0.s8 %v4826
        %v4828 = vlaneseq
        %v4829 = vshrl.u32 %v4828, 7
        %v4830 = vsub.s32 %v4827, %v4829
        %v4831 = vrot.slane %v4809, %v4830
        %v4833 = vunpack.c.l.s4 1966171168
        %v4834 = vunpack.c.0.s8 %v4833
        %v4835 = vlaneseq
        %v4836 = vshrl.u32 %v4835, 7
        %v4837 = vsub.s32 %v4834, %v4836
        %v4838 = vrot.slane %v4810, %v4837
        %v4839 = vcombine.low %v4817, %v4824
        %v4840 = vcombine.low %v4831, %v4838
        %v4842 = vunpack.c.l.s4 1966171168
        %v4843 = vunpack.c.0.s8 %v4842
        %v4844 = vlaneseq
        %v4845 = vshrl.u32 %v4844, 7
        %v4846 = vsub.s32 %v4843, %v4845
        %v4847 = vrot.slane %v4839, %v4846
        %v4849 = vunpack.c.l.s4 1966171168
        %v4850 = vunpack.c.0.s8 %v4849
        %v4851 = vlaneseq
        %v4852 = vshrl.u32 %v4851, 7
        %v4853 = vsub.s32 %v4850, %v4852
        %v4854 = vrot.slane %v4840, %v4853
        %v4855 = vcombine.low %v4847, %v4854
        %v4857 = vadd.f32 %v4454, %v4855
        %s4858 = scalar_lea.vmem %s10, 768
        %v4859 = vld [vmem:[%s4858] sm:$0xff]
        %v4860 = vld [vmem:[%s4858 + $0x8] sm:$0xff]
        %v4861 = vld [vmem:[%s4858 + $0x10] sm:$0xff]
        %v4862 = vld [vmem:[%s4858 + $0x18] sm:$0xff]
        %v4863 = vld [vmem:[%s4858 + $0x20] sm:$0xff]
        %v4864 = vld [vmem:[%s4858 + $0x28] sm:$0xff]
        %v4865 = vld [vmem:[%s4858 + $0x30] sm:$0xff]
        %v4866 = vld [vmem:[%s4858 + $0x38] sm:$0xff]
        %v4867 = vld [vmem:[%s4858 + $0x40] sm:$0xff]
        %v4868 = vld [vmem:[%s4858 + $0x48] sm:$0xff]
        %v4869 = vld [vmem:[%s4858 + $0x50] sm:$0xff]
        %v4870 = vld [vmem:[%s4858 + $0x58] sm:$0xff]
        %v4871 = vld [vmem:[%s4858 + $0x60] sm:$0xff]
        %v4872 = vld [vmem:[%s4858 + $0x68] sm:$0xff]
        %v4873 = vld [vmem:[%s4858 + $0x70] sm:$0xff]
        %v4874 = vld [vmem:[%s4858 + $0x78] sm:$0xff]
        %v4875 = vld [vmem:[%s4858 + $0x80] sm:$0xff]
        %v4876 = vld [vmem:[%s4858 + $0x88] sm:$0xff]
        %v4877 = vld [vmem:[%s4858 + $0x90] sm:$0xff]
        %v4878 = vld [vmem:[%s4858 + $0x98] sm:$0xff]
        %v4879 = vld [vmem:[%s4858 + $0xa0] sm:$0xff]
        %v4880 = vld [vmem:[%s4858 + $0xa8] sm:$0xff]
        %v4881 = vld [vmem:[%s4858 + $0xb0] sm:$0xff]
        %v4882 = vld [vmem:[%s4858 + $0xb8] sm:$0xff]
        %v4883 = vld [vmem:[%s4858 + $0xc0] sm:$0x1]
        %v4884 = vld [vmem:[%s4858 + $0xc8] sm:$0x1]
        %v4885 = vld [vmem:[%s4858 + $0xd0] sm:$0x1]
        %v4886 = vld [vmem:[%s4858 + $0xd8] sm:$0x1]
        %v4887 = vld [vmem:[%s4858 + $0xe0] sm:$0x1]
        %v4888 = vld [vmem:[%s4858 + $0xe8] sm:$0x1]
        %v4889 = vld [vmem:[%s4858 + $0xf0] sm:$0x1]
        %v4890 = vld [vmem:[%s4858 + $0xf8] sm:$0x1]
        %v4891 = vrot.slane %v3645, 3
        %v4892 = vsel %vm3681, %v4891, 0
        %v4895 = vsel %vm2846, %v4883, 0
        %v4898 = vsel %vm2846, %v4884, 0
        %v4901 = vsel %vm2846, %v4885, 0
        %v4904 = vsel %vm2846, %v4886, 0
        %v4907 = vsel %vm2846, %v4887, 0
        %v4910 = vsel %vm2846, %v4888, 0
        %v4913 = vsel %vm2846, %v4889, 0
        %v4916 = vsel %vm2846, %v4890, 0
        %4918 = vmatprep.subr.mxu0 %v4860
        %4919 = vmatpush1.msra.mxu0 %v4859
        %4920 = vmatprep.subr.mxu0 %v4868
        %4921 = vmatpush1.msra.mxu0 %v4867
        %4922 = vmatprep.subr.mxu0 %v4876
        %4923 = vmatpush1.msra.mxu0 %v4875
        %4924 = vmatprep.subr.mxu0 %v4898
        %4925 = vmatpush1.msra.mxu0 %v4895
        %4926 = vmatprep.subr.mxu0 0.0
        %4927 = vmatpush1.msra.mxu0 0.0
        %4928 = vmatprep.subr.mxu0 0.0
        %4929 = vmatpush1.msra.mxu0 0.0
        %4930 = vmatprep.subr.mxu0 0.0
        %4931 = vmatpush1.msra.mxu0 0.0
        %4932 = vmatprep.subr.mxu0 0.0
        %4933 = vmatpush1.msra.mxu0 0.0
        %4934 = vmatprep.subr.mxu0 0.0
        %4935 = vmatpush1.msra.mxu0 0.0
        %4936 = vmatprep.subr.mxu0 0.0
        %4937 = vmatpush1.msra.mxu0 0.0
        %4938 = vmatprep.subr.mxu0 0.0
        %4939 = vmatpush1.msra.mxu0 0.0
        %4940 = vmatprep.subr.mxu0 0.0
        %4941 = vmatpush1.msra.mxu0 0.0
        %4942 = vmatprep.subr.mxu0 0.0
        %4943 = vmatpush1.msra.mxu0 0.0
        %4944 = vmatprep.subr.mxu0 0.0
        %4945 = vmatpush1.msra.mxu0 0.0
        %4946 = vmatprep.subr.mxu0 0.0
        %4947 = vmatpush1.msra.mxu0 0.0
        %4948 = vmatprep.subr.mxu0 0.0
        %4949 = vmatpush1.msra.mxu0 0.0
        %4950 = vmatprep.subr.mxu0 0.0
        %4951 = vmatpush1.msra.mxu0 0.0
        %4952 = vmatprep.subr.mxu0 0.0
        %4953 = vmatpush1.msra.mxu0 0.0
        %4954 = vmatprep.subr.mxu0 0.0
        %4955 = vmatpush1.msra.mxu0 0.0
        %4956 = vmatprep.subr.mxu0 0.0
        %4957 = vmatpush1.msra.mxu0 0.0
        %4958 = vmatprep.subr.mxu0 0.0
        %4959 = vmatpush1.msra.mxu0 0.0
        %4960 = vmatprep.subr.mxu0 0.0
        %4961 = vmatpush1.msra.mxu0 0.0
        %4962 = vmatprep.subr.mxu0 0.0
        %4963 = vmatpush1.msra.mxu0 0.0
        %4964 = vmatprep.subr.mxu0 0.0
        %4965 = vmatpush1.msra.mxu0 0.0
        %4966 = vmatprep.subr.mxu0 0.0
        %4967 = vmatpush1.msra.mxu0 0.0
        %4968 = vmatprep.subr.mxu0 0.0
        %4969 = vmatpush1.msra.mxu0 0.0
        %4970 = vmatprep.subr.mxu0 0.0
        %4971 = vmatpush1.msra.mxu0 0.0
        %4972 = vmatprep.subr.mxu0 0.0
        %4973 = vmatpush1.msra.mxu0 0.0
        %4974 = vmatprep.subr.mxu0 0.0
        %4975 = vmatpush1.msra.mxu0 0.0
        %4976 = vmatprep.subr.mxu0 0.0
        %4977 = vmatpush1.msra.mxu0 0.0
        %4978 = vmatprep.subr.mxu0 0.0
        %4979 = vmatpush1.msra.mxu0 0.0
        %4980 = vmatprep.subr.mxu0 0.0
        %4981 = vmatpush1.msra.mxu0 0.0
        %4982 = vmatprep.mubr.f32.mxu0 0.0
        %4983 = vmatmul.mubr.f32.gmra.mrb[0].mxu0 %v4892
        %v4984 = vpop.f32.mrb[0].mxu0
        %v4985 = vadd.f32 0.0, %v4984
        %v4986 = vpop.f32.mrb[0].mxu0
        %v4987 = vadd.f32 0.0, %v4986
        %4988 = vdwg.mxu0
        %4989 = vmatprep.subr.mxu0 %v4862
        %4990 = vmatpush1.msra.mxu0 %v4861
        %4991 = vmatprep.subr.mxu0 %v4870
        %4992 = vmatpush1.msra.mxu0 %v4869
        %4993 = vmatprep.subr.mxu0 %v4878
        %4994 = vmatpush1.msra.mxu0 %v4877
        %4995 = vmatprep.subr.mxu0 %v4904
        %4996 = vmatpush1.msra.mxu0 %v4901
        %4997 = vmatprep.subr.mxu0 0.0
        %4998 = vmatpush1.msra.mxu0 0.0
        %4999 = vmatprep.subr.mxu0 0.0
        %5000 = vmatpush1.msra.mxu0 0.0
        %5001 = vmatprep.subr.mxu0 0.0
        %5002 = vmatpush1.msra.mxu0 0.0
        %5003 = vmatprep.subr.mxu0 0.0
        %5004 = vmatpush1.msra.mxu0 0.0
        %5005 = vmatprep.subr.mxu0 0.0
        %5006 = vmatpush1.msra.mxu0 0.0
        %5007 = vmatprep.subr.mxu0 0.0
        %5008 = vmatpush1.msra.mxu0 0.0
        %5009 = vmatprep.subr.mxu0 0.0
        %5010 = vmatpush1.msra.mxu0 0.0
        %5011 = vmatprep.subr.mxu0 0.0
        %5012 = vmatpush1.msra.mxu0 0.0
        %5013 = vmatprep.subr.mxu0 0.0
        %5014 = vmatpush1.msra.mxu0 0.0
        %5015 = vmatprep.subr.mxu0 0.0
        %5016 = vmatpush1.msra.mxu0 0.0
        %5017 = vmatprep.subr.mxu0 0.0
        %5018 = vmatpush1.msra.mxu0 0.0
        %5019 = vmatprep.subr.mxu0 0.0
        %5020 = vmatpush1.msra.mxu0 0.0
        %5021 = vmatprep.subr.mxu0 0.0
        %5022 = vmatpush1.msra.mxu0 0.0
        %5023 = vmatprep.subr.mxu0 0.0
        %5024 = vmatpush1.msra.mxu0 0.0
        %5025 = vmatprep.subr.mxu0 0.0
        %5026 = vmatpush1.msra.mxu0 0.0
        %5027 = vmatprep.subr.mxu0 0.0
        %5028 = vmatpush1.msra.mxu0 0.0
        %5029 = vmatprep.subr.mxu0 0.0
        %5030 = vmatpush1.msra.mxu0 0.0
        %5031 = vmatprep.subr.mxu0 0.0
        %5032 = vmatpush1.msra.mxu0 0.0
        %5033 = vmatprep.subr.mxu0 0.0
        %5034 = vmatpush1.msra.mxu0 0.0
        %5035 = vmatprep.subr.mxu0 0.0
        %5036 = vmatpush1.msra.mxu0 0.0
        %5037 = vmatprep.subr.mxu0 0.0
        %5038 = vmatpush1.msra.mxu0 0.0
        %5039 = vmatprep.subr.mxu0 0.0
        %5040 = vmatpush1.msra.mxu0 0.0
        %5041 = vmatprep.subr.mxu0 0.0
        %5042 = vmatpush1.msra.mxu0 0.0
        %5043 = vmatprep.subr.mxu0 0.0
        %5044 = vmatpush1.msra.mxu0 0.0
        %5045 = vmatprep.subr.mxu0 0.0
        %5046 = vmatpush1.msra.mxu0 0.0
        %5047 = vmatprep.subr.mxu0 0.0
        %5048 = vmatpush1.msra.mxu0 0.0
        %5049 = vmatprep.subr.mxu0 0.0
        %5050 = vmatpush1.msra.mxu0 0.0
        %5051 = vmatprep.subr.mxu0 0.0
        %5052 = vmatpush1.msra.mxu0 0.0
        %5053 = vmatprep.mubr.f32.mxu0 0.0
        %5054 = vmatmul.mubr.f32.gmra.mrb[0].mxu0 %v4892
        %v5055 = vpop.f32.mrb[0].mxu0
        %v5056 = vadd.f32 0.0, %v5055
        %v5057 = vpop.f32.mrb[0].mxu0
        %v5058 = vadd.f32 0.0, %v5057
        %5059 = vdwg.mxu0
        %5060 = vmatprep.subr.mxu0 %v4864
        %5061 = vmatpush1.msra.mxu0 %v4863
        %5062 = vmatprep.subr.mxu0 %v4872
        %5063 = vmatpush1.msra.mxu0 %v4871
        %5064 = vmatprep.subr.mxu0 %v4880
        %5065 = vmatpush1.msra.mxu0 %v4879
        %5066 = vmatprep.subr.mxu0 %v4910
        %5067 = vmatpush1.msra.mxu0 %v4907
        %5068 = vmatprep.subr.mxu0 0.0
        %5069 = vmatpush1.msra.mxu0 0.0
        %5070 = vmatprep.subr.mxu0 0.0
        %5071 = vmatpush1.msra.mxu0 0.0
        %5072 = vmatprep.subr.mxu0 0.0
        %5073 = vmatpush1.msra.mxu0 0.0
        %5074 = vmatprep.subr.mxu0 0.0
        %5075 = vmatpush1.msra.mxu0 0.0
        %5076 = vmatprep.subr.mxu0 0.0
        %5077 = vmatpush1.msra.mxu0 0.0
        %5078 = vmatprep.subr.mxu0 0.0
        %5079 = vmatpush1.msra.mxu0 0.0
        %5080 = vmatprep.subr.mxu0 0.0
        %5081 = vmatpush1.msra.mxu0 0.0
        %5082 = vmatprep.subr.mxu0 0.0
        %5083 = vmatpush1.msra.mxu0 0.0
        %5084 = vmatprep.subr.mxu0 0.0
        %5085 = vmatpush1.msra.mxu0 0.0
        %5086 = vmatprep.subr.mxu0 0.0
        %5087 = vmatpush1.msra.mxu0 0.0
        %5088 = vmatprep.subr.mxu0 0.0
        %5089 = vmatpush1.msra.mxu0 0.0
        %5090 = vmatprep.subr.mxu0 0.0
        %5091 = vmatpush1.msra.mxu0 0.0
        %5092 = vmatprep.subr.mxu0 0.0
        %5093 = vmatpush1.msra.mxu0 0.0
        %5094 = vmatprep.subr.mxu0 0.0
        %5095 = vmatpush1.msra.mxu0 0.0
        %5096 = vmatprep.subr.mxu0 0.0
        %5097 = vmatpush1.msra.mxu0 0.0
        %5098 = vmatprep.subr.mxu0 0.0
        %5099 = vmatpush1.msra.mxu0 0.0
        %5100 = vmatprep.subr.mxu0 0.0
        %5101 = vmatpush1.msra.mxu0 0.0
        %5102 = vmatprep.subr.mxu0 0.0
        %5103 = vmatpush1.msra.mxu0 0.0
        %5104 = vmatprep.subr.mxu0 0.0
        %5105 = vmatpush1.msra.mxu0 0.0
        %5106 = vmatprep.subr.mxu0 0.0
        %5107 = vmatpush1.msra.mxu0 0.0
        %5108 = vmatprep.subr.mxu0 0.0
        %5109 = vmatpush1.msra.mxu0 0.0
        %5110 = vmatprep.subr.mxu0 0.0
        %5111 = vmatpush1.msra.mxu0 0.0
        %5112 = vmatprep.subr.mxu0 0.0
        %5113 = vmatpush1.msra.mxu0 0.0
        %5114 = vmatprep.subr.mxu0 0.0
        %5115 = vmatpush1.msra.mxu0 0.0
        %5116 = vmatprep.subr.mxu0 0.0
        %5117 = vmatpush1.msra.mxu0 0.0
        %5118 = vmatprep.subr.mxu0 0.0
        %5119 = vmatpush1.msra.mxu0 0.0
        %5120 = vmatprep.subr.mxu0 0.0
        %5121 = vmatpush1.msra.mxu0 0.0
        %5122 = vmatprep.subr.mxu0 0.0
        %5123 = vmatpush1.msra.mxu0 0.0
        %5124 = vmatprep.mubr.f32.mxu0 0.0
        %5125 = vmatmul.mubr.f32.gmra.mrb[0].mxu0 %v4892
        %v5126 = vpop.f32.mrb[0].mxu0
        %v5127 = vadd.f32 0.0, %v5126
        %v5128 = vpop.f32.mrb[0].mxu0
        %v5129 = vadd.f32 0.0, %v5128
        %5130 = vdwg.mxu0
        %5131 = vmatprep.subr.mxu0 %v4866
        %5132 = vmatpush1.msra.mxu0 %v4865
        %5133 = vmatprep.subr.mxu0 %v4874
        %5134 = vmatpush1.msra.mxu0 %v4873
        %5135 = vmatprep.subr.mxu0 %v4882
        %5136 = vmatpush1.msra.mxu0 %v4881
        %5137 = vmatprep.subr.mxu0 %v4916
        %5138 = vmatpush1.msra.mxu0 %v4913
        %5139 = vmatprep.subr.mxu0 0.0
        %5140 = vmatpush1.msra.mxu0 0.0
        %5141 = vmatprep.subr.mxu0 0.0
        %5142 = vmatpush1.msra.mxu0 0.0
        %5143 = vmatprep.subr.mxu0 0.0
        %5144 = vmatpush1.msra.mxu0 0.0
        %5145 = vmatprep.subr.mxu0 0.0
        %5146 = vmatpush1.msra.mxu0 0.0
        %5147 = vmatprep.subr.mxu0 0.0
        %5148 = vmatpush1.msra.mxu0 0.0
        %5149 = vmatprep.subr.mxu0 0.0
        %5150 = vmatpush1.msra.mxu0 0.0
        %5151 = vmatprep.subr.mxu0 0.0
        %5152 = vmatpush1.msra.mxu0 0.0
        %5153 = vmatprep.subr.mxu0 0.0
        %5154 = vmatpush1.msra.mxu0 0.0
        %5155 = vmatprep.subr.mxu0 0.0
        %5156 = vmatpush1.msra.mxu0 0.0
        %5157 = vmatprep.subr.mxu0 0.0
        %5158 = vmatpush1.msra.mxu0 0.0
        %5159 = vmatprep.subr.mxu0 0.0
        %5160 = vmatpush1.msra.mxu0 0.0
        %5161 = vmatprep.subr.mxu0 0.0
        %5162 = vmatpush1.msra.mxu0 0.0
        %5163 = vmatprep.subr.mxu0 0.0
        %5164 = vmatpush1.msra.mxu0 0.0
        %5165 = vmatprep.subr.mxu0 0.0
        %5166 = vmatpush1.msra.mxu0 0.0
        %5167 = vmatprep.subr.mxu0 0.0
        %5168 = vmatpush1.msra.mxu0 0.0
        %5169 = vmatprep.subr.mxu0 0.0
        %5170 = vmatpush1.msra.mxu0 0.0
        %5171 = vmatprep.subr.mxu0 0.0
        %5172 = vmatpush1.msra.mxu0 0.0
        %5173 = vmatprep.subr.mxu0 0.0
        %5174 = vmatpush1.msra.mxu0 0.0
        %5175 = vmatprep.subr.mxu0 0.0
        %5176 = vmatpush1.msra.mxu0 0.0
        %5177 = vmatprep.subr.mxu0 0.0
        %5178 = vmatpush1.msra.mxu0 0.0
        %5179 = vmatprep.subr.mxu0 0.0
        %5180 = vmatpush1.msra.mxu0 0.0
        %5181 = vmatprep.subr.mxu0 0.0
        %5182 = vmatpush1.msra.mxu0 0.0
        %5183 = vmatprep.subr.mxu0 0.0
        %5184 = vmatpush1.msra.mxu0 0.0
        %5185 = vmatprep.subr.mxu0 0.0
        %5186 = vmatpush1.msra.mxu0 0.0
        %5187 = vmatprep.subr.mxu0 0.0
        %5188 = vmatpush1.msra.mxu0 0.0
        %5189 = vmatprep.subr.mxu0 0.0
        %5190 = vmatpush1.msra.mxu0 0.0
        %5191 = vmatprep.subr.mxu0 0.0
        %5192 = vmatpush1.msra.mxu0 0.0
        %5193 = vmatprep.subr.mxu0 0.0
        %5194 = vmatpush1.msra.mxu0 0.0
        %5195 = vmatprep.mubr.f32.mxu0 0.0
        %5196 = vmatmul.mubr.f32.gmra.mrb[0].mxu0 %v4892
        %v5197 = vpop.f32.mrb[0].mxu0
        %v5198 = vadd.f32 0.0, %v5197
        %v5199 = vpop.f32.mrb[0].mxu0
        %v5200 = vadd.f32 0.0, %v5199
        %5201 = vdwg.mxu0
        %v5210 = vcombine.low %v4985, %v4987
        %v5211 = vcombine.low %v5056, %v5058
        %v5212 = vcombine.low %v5127, %v5129
        %v5213 = vcombine.low %v5198, %v5200
        %v5215 = vunpack.c.l.s4 1966171168
        %v5216 = vunpack.c.0.s8 %v5215
        %v5217 = vlaneseq
        %v5218 = vshrl.u32 %v5217, 7
        %v5219 = vsub.s32 %v5216, %v5218
        %v5220 = vrot.slane %v5210, %v5219
        %v5222 = vunpack.c.l.s4 1966171168
        %v5223 = vunpack.c.0.s8 %v5222
        %v5224 = vlaneseq
        %v5225 = vshrl.u32 %v5224, 7
        %v5226 = vsub.s32 %v5223, %v5225
        %v5227 = vrot.slane %v5211, %v5226
        %v5229 = vunpack.c.l.s4 1966171168
        %v5230 = vunpack.c.0.s8 %v5229
        %v5231 = vlaneseq
        %v5232 = vshrl.u32 %v5231, 7
        %v5233 = vsub.s32 %v5230, %v5232
        %v5234 = vrot.slane %v5212, %v5233
        %v5236 = vunpack.c.l.s4 1966171168
        %v5237 = vunpack.c.0.s8 %v5236
        %v5238 = vlaneseq
        %v5239 = vshrl.u32 %v5238, 7
        %v5240 = vsub.s32 %v5237, %v5239
        %v5241 = vrot.slane %v5213, %v5240
        %v5242 = vcombine.low %v5220, %v5227
        %v5243 = vcombine.low %v5234, %v5241
        %v5245 = vunpack.c.l.s4 1966171168
        %v5246 = vunpack.c.0.s8 %v5245
        %v5247 = vlaneseq
        %v5248 = vshrl.u32 %v5247, 7
        %v5249 = vsub.s32 %v5246, %v5248
        %v5250 = vrot.slane %v5242, %v5249
        %v5252 = vunpack.c.l.s4 1966171168
        %v5253 = vunpack.c.0.s8 %v5252
        %v5254 = vlaneseq
        %v5255 = vshrl.u32 %v5254, 7
        %v5256 = vsub.s32 %v5253, %v5255
        %v5257 = vrot.slane %v5243, %v5256
        %v5258 = vcombine.low %v5250, %v5257
        %v5260 = vadd.f32 %v4857, %v5258
        %v5261 = vmax.f32 %v5260, 0.0
        %v5262 = vld [vmem:[%s12] sm:$0xff]
        %v5263 = vld [vmem:[%s12 + $0x8] sm:$0xff]
        %v5264 = vld [vmem:[%s12 + $0x10] sm:$0xff]
        %v5265 = vld [vmem:[%s12 + $0x18] sm:$0xff]
        %v5266 = vld [vmem:[%s12 + $0x20] sm:$0xff]
        %v5267 = vld [vmem:[%s12 + $0x28] sm:$0xff]
        %v5268 = vld [vmem:[%s12 + $0x30] sm:$0xff]
        %v5269 = vld [vmem:[%s12 + $0x38] sm:$0xff]
        %v5270 = vld [vmem:[%s12 + $0x40] sm:$0xff]
        %v5271 = vld [vmem:[%s12 + $0x48] sm:$0xff]
        %v5272 = vld [vmem:[%s12 + $0x50] sm:$0xff]
        %v5273 = vld [vmem:[%s12 + $0x58] sm:$0xff]
        %v5274 = vld [vmem:[%s12 + $0x60] sm:$0xff]
        %v5275 = vld [vmem:[%s12 + $0x68] sm:$0xff]
        %v5276 = vld [vmem:[%s12 + $0x70] sm:$0xff]
        %v5277 = vld [vmem:[%s12 + $0x78] sm:$0xff]
        %v5278 = vld [vmem:[%s12 + $0x80] sm:$0xff]
        %v5279 = vld [vmem:[%s12 + $0x88] sm:$0xff]
        %v5280 = vld [vmem:[%s12 + $0x90] sm:$0xff]
        %v5281 = vld [vmem:[%s12 + $0x98] sm:$0xff]
        %v5282 = vld [vmem:[%s12 + $0xa0] sm:$0xff]
        %v5283 = vld [vmem:[%s12 + $0xa8] sm:$0xff]
        %v5284 = vld [vmem:[%s12 + $0xb0] sm:$0xff]
        %v5285 = vld [vmem:[%s12 + $0xb8] sm:$0xff]
        %v5286 = vld [vmem:[%s12 + $0xc0] sm:$0xff]
        %v5287 = vld [vmem:[%s12 + $0xc8] sm:$0xff]
        %v5288 = vld [vmem:[%s12 + $0xd0] sm:$0xff]
        %v5289 = vld [vmem:[%s12 + $0xd8] sm:$0xff]
        %v5290 = vld [vmem:[%s12 + $0xe0] sm:$0xff]
        %v5291 = vld [vmem:[%s12 + $0xe8] sm:$0xff]
        %v5292 = vld [vmem:[%s12 + $0xf0] sm:$0xff]
        %v5293 = vld [vmem:[%s12 + $0xf8] sm:$0xff]
        %v5294 = vld [vmem:[%s12 + $0x100] sm:$0xff]
        %v5295 = vld [vmem:[%s12 + $0x108] sm:$0xff]
        %v5296 = vld [vmem:[%s12 + $0x110] sm:$0xff]
        %v5297 = vld [vmem:[%s12 + $0x118] sm:$0xff]
        %v5298 = vld [vmem:[%s12 + $0x120] sm:$0xff]
        %v5299 = vld [vmem:[%s12 + $0x128] sm:$0xff]
        %v5300 = vld [vmem:[%s12 + $0x130] sm:$0xff]
        %v5301 = vld [vmem:[%s12 + $0x138] sm:$0xff]
        %v5302 = vld [vmem:[%s12 + $0x140] sm:$0xff]
        %v5303 = vld [vmem:[%s12 + $0x148] sm:$0xff]
        %v5304 = vld [vmem:[%s12 + $0x150] sm:$0xff]
        %v5305 = vld [vmem:[%s12 + $0x158] sm:$0xff]
        %v5306 = vld [vmem:[%s12 + $0x160] sm:$0xff]
        %v5307 = vld [vmem:[%s12 + $0x168] sm:$0xff]
        %v5308 = vld [vmem:[%s12 + $0x170] sm:$0xff]
        %v5309 = vld [vmem:[%s12 + $0x178] sm:$0xff]
        %v5310 = vld [vmem:[%s12 + $0x180] sm:$0xff]
        %v5311 = vld [vmem:[%s12 + $0x188] sm:$0xff]
        %v5312 = vld [vmem:[%s12 + $0x190] sm:$0xff]
        %v5313 = vld [vmem:[%s12 + $0x198] sm:$0xff]
        %v5314 = vld [vmem:[%s12 + $0x1a0] sm:$0xff]
        %v5315 = vld [vmem:[%s12 + $0x1a8] sm:$0xff]
        %v5316 = vld [vmem:[%s12 + $0x1b0] sm:$0xff]
        %v5317 = vld [vmem:[%s12 + $0x1b8] sm:$0xff]
        %v5318 = vld [vmem:[%s12 + $0x1c0] sm:$0xff]
        %v5319 = vld [vmem:[%s12 + $0x1c8] sm:$0xff]
        %v5320 = vld [vmem:[%s12 + $0x1d0] sm:$0xff]
        %v5321 = vld [vmem:[%s12 + $0x1d8] sm:$0xff]
        %v5322 = vld [vmem:[%s12 + $0x1e0] sm:$0xff]
        %v5323 = vld [vmem:[%s12 + $0x1e8] sm:$0xff]
        %v5324 = vld [vmem:[%s12 + $0x1f0] sm:$0xff]
        %v5325 = vld [vmem:[%s12 + $0x1f8] sm:$0xff]
        %v5326 = vld [vmem:[%s12 + $0x200] sm:$0xff]
        %v5327 = vld [vmem:[%s12 + $0x208] sm:$0xff]
        %v5328 = vld [vmem:[%s12 + $0x210] sm:$0xff]
        %v5329 = vld [vmem:[%s12 + $0x218] sm:$0xff]
        %v5330 = vld [vmem:[%s12 + $0x220] sm:$0xff]
        %v5331 = vld [vmem:[%s12 + $0x228] sm:$0xff]
        %v5332 = vld [vmem:[%s12 + $0x230] sm:$0xff]
        %v5333 = vld [vmem:[%s12 + $0x238] sm:$0xff]
        %v5334 = vld [vmem:[%s12 + $0x240] sm:$0xff]
        %v5335 = vld [vmem:[%s12 + $0x248] sm:$0xff]
        %v5336 = vld [vmem:[%s12 + $0x250] sm:$0xff]
        %v5337 = vld [vmem:[%s12 + $0x258] sm:$0xff]
        %v5338 = vld [vmem:[%s12 + $0x260] sm:$0xff]
        %v5339 = vld [vmem:[%s12 + $0x268] sm:$0xff]
        %v5340 = vld [vmem:[%s12 + $0x270] sm:$0xff]
        %v5341 = vld [vmem:[%s12 + $0x278] sm:$0xff]
        %v5342 = vld [vmem:[%s12 + $0x280] sm:$0xff]
        %v5343 = vld [vmem:[%s12 + $0x288] sm:$0xff]
        %v5344 = vld [vmem:[%s12 + $0x290] sm:$0xff]
        %v5345 = vld [vmem:[%s12 + $0x298] sm:$0xff]
        %v5346 = vld [vmem:[%s12 + $0x2a0] sm:$0xff]
        %v5347 = vld [vmem:[%s12 + $0x2a8] sm:$0xff]
        %v5348 = vld [vmem:[%s12 + $0x2b0] sm:$0xff]
        %v5349 = vld [vmem:[%s12 + $0x2b8] sm:$0xff]
        %v5350 = vld [vmem:[%s12 + $0x2c0] sm:$0xff]
        %v5351 = vld [vmem:[%s12 + $0x2c8] sm:$0xff]
        %v5352 = vld [vmem:[%s12 + $0x2d0] sm:$0xff]
        %v5353 = vld [vmem:[%s12 + $0x2d8] sm:$0xff]
        %v5354 = vld [vmem:[%s12 + $0x2e0] sm:$0xff]
        %v5355 = vld [vmem:[%s12 + $0x2e8] sm:$0xff]
        %v5356 = vld [vmem:[%s12 + $0x2f0] sm:$0xff]
        %v5357 = vld [vmem:[%s12 + $0x2f8] sm:$0xff]
        %v5358 = vld [vmem:[%s12 + $0x300] sm:$0xff]
        %v5359 = vld [vmem:[%s12 + $0x308] sm:$0xff]
        %v5360 = vld [vmem:[%s12 + $0x310] sm:$0xff]
        %v5361 = vld [vmem:[%s12 + $0x318] sm:$0xff]
        %v5362 = vld [vmem:[%s12 + $0x320] sm:$0xff]
        %v5363 = vld [vmem:[%s12 + $0x328] sm:$0xff]
        %v5364 = vld [vmem:[%s12 + $0x330] sm:$0xff]
        %v5365 = vld [vmem:[%s12 + $0x338] sm:$0xff]
        %v5366 = vld [vmem:[%s12 + $0x340] sm:$0xff]
        %v5367 = vld [vmem:[%s12 + $0x348] sm:$0xff]
        %v5368 = vld [vmem:[%s12 + $0x350] sm:$0xff]
        %v5369 = vld [vmem:[%s12 + $0x358] sm:$0xff]
        %v5370 = vld [vmem:[%s12 + $0x360] sm:$0xff]
        %v5371 = vld [vmem:[%s12 + $0x368] sm:$0xff]
        %v5372 = vld [vmem:[%s12 + $0x370] sm:$0xff]
        %v5373 = vld [vmem:[%s12 + $0x378] sm:$0xff]
        %v5374 = vld [vmem:[%s12 + $0x380] sm:$0xff]
        %v5375 = vld [vmem:[%s12 + $0x388] sm:$0xff]
        %v5376 = vld [vmem:[%s12 + $0x390] sm:$0xff]
        %v5377 = vld [vmem:[%s12 + $0x398] sm:$0xff]
        %v5378 = vld [vmem:[%s12 + $0x3a0] sm:$0xff]
        %v5379 = vld [vmem:[%s12 + $0x3a8] sm:$0xff]
        %v5380 = vld [vmem:[%s12 + $0x3b0] sm:$0xff]
        %v5381 = vld [vmem:[%s12 + $0x3b8] sm:$0xff]
        %v5382 = vld [vmem:[%s12 + $0x3c0] sm:$0xff]
        %v5383 = vld [vmem:[%s12 + $0x3c8] sm:$0xff]
        %v5384 = vld [vmem:[%s12 + $0x3d0] sm:$0xff]
        %v5385 = vld [vmem:[%s12 + $0x3d8] sm:$0xff]
        %v5386 = vld [vmem:[%s12 + $0x3e0] sm:$0xff]
        %v5387 = vld [vmem:[%s12 + $0x3e8] sm:$0xff]
        %v5388 = vld [vmem:[%s12 + $0x3f0] sm:$0xff]
        %v5389 = vld [vmem:[%s12 + $0x3f8] sm:$0xff]
        %v5390 = vld [vmem:[%s13] sm:$0x1]
        %v5392 = vlaneseq
        %v5393 = vshrl.u32 %v5392, 7
        %v5394 = vsub.s32 0, %v5393
        %v5395 = vrot.slane %v5261, %v5394
        %v5396 = vlaneseq
        %v5397 = vshrl.u32 %v5396, 7
        %v5398 = vsub.s32 1, %v5397
        %v5399 = vrot.slane %v5261, %v5398
        %v5400 = vlaneseq
        %v5401 = vshrl.u32 %v5400, 7
        %v5402 = vsub.s32 2, %v5401
        %v5403 = vrot.slane %v5261, %v5402
        %v5404 = vlaneseq
        %v5405 = vshrl.u32 %v5404, 7
        %v5406 = vsub.s32 3, %v5405
        %v5407 = vrot.slane %v5261, %v5406
        %v5408 = vlaneseq
        %v5409 = vshrl.u32 %v5408, 7
        %v5410 = vsub.s32 4, %v5409
        %v5411 = vrot.slane %v5261, %v5410
        %v5412 = vlaneseq
        %v5413 = vshrl.u32 %v5412, 7
        %v5414 = vsub.s32 5, %v5413
        %v5415 = vrot.slane %v5261, %v5414
        %v5416 = vlaneseq
        %v5417 = vshrl.u32 %v5416, 7
        %v5418 = vsub.s32 6, %v5417
        %v5419 = vrot.slane %v5261, %v5418
        %v5420 = vlaneseq
        %v5421 = vshrl.u32 %v5420, 7
        %v5422 = vsub.s32 7, %v5421
        %v5423 = vrot.slane %v5261, %v5422
        %5432 = vmatprep.subr.mxu0 0.0
        %5433 = vmatpush1.msra.mxu0 %v5262
        %5434 = vmatprep.subr.mxu0 0.0
        %5435 = vmatpush1.msra.mxu0 %v5263
        %5436 = vmatprep.subr.mxu0 0.0
        %5437 = vmatpush1.msra.mxu0 %v5264
        %5438 = vmatprep.subr.mxu0 0.0
        %5439 = vmatpush1.msra.mxu0 %v5265
        %5440 = vmatprep.subr.mxu0 0.0
        %5441 = vmatpush1.msra.mxu0 %v5266
        %5442 = vmatprep.subr.mxu0 0.0
        %5443 = vmatpush1.msra.mxu0 %v5267
        %5444 = vmatprep.subr.mxu0 0.0
        %5445 = vmatpush1.msra.mxu0 %v5268
        %5446 = vmatprep.subr.mxu0 0.0
        %5447 = vmatpush1.msra.mxu0 %v5269
        %5448 = vmatprep.subr.mxu0 0.0
        %5449 = vmatpush1.msra.mxu0 %v5270
        %5450 = vmatprep.subr.mxu0 0.0
        %5451 = vmatpush1.msra.mxu0 %v5271
        %5452 = vmatprep.subr.mxu0 0.0
        %5453 = vmatpush1.msra.mxu0 %v5272
        %5454 = vmatprep.subr.mxu0 0.0
        %5455 = vmatpush1.msra.mxu0 %v5273
        %5456 = vmatprep.subr.mxu0 0.0
        %5457 = vmatpush1.msra.mxu0 %v5274
        %5458 = vmatprep.subr.mxu0 0.0
        %5459 = vmatpush1.msra.mxu0 %v5275
        %5460 = vmatprep.subr.mxu0 0.0
        %5461 = vmatpush1.msra.mxu0 %v5276
        %5462 = vmatprep.subr.mxu0 0.0
        %5463 = vmatpush1.msra.mxu0 %v5277
        %5464 = vmatprep.subr.mxu0 0.0
        %5465 = vmatpush1.msra.mxu0 %v5278
        %5466 = vmatprep.subr.mxu0 0.0
        %5467 = vmatpush1.msra.mxu0 %v5279
        %5468 = vmatprep.subr.mxu0 0.0
        %5469 = vmatpush1.msra.mxu0 %v5280
        %5470 = vmatprep.subr.mxu0 0.0
        %5471 = vmatpush1.msra.mxu0 %v5281
        %5472 = vmatprep.subr.mxu0 0.0
        %5473 = vmatpush1.msra.mxu0 %v5282
        %5474 = vmatprep.subr.mxu0 0.0
        %5475 = vmatpush1.msra.mxu0 %v5283
        %5476 = vmatprep.subr.mxu0 0.0
        %5477 = vmatpush1.msra.mxu0 %v5284
        %5478 = vmatprep.subr.mxu0 0.0
        %5479 = vmatpush1.msra.mxu0 %v5285
        %5480 = vmatprep.subr.mxu0 0.0
        %5481 = vmatpush1.msra.mxu0 %v5286
        %5482 = vmatprep.subr.mxu0 0.0
        %5483 = vmatpush1.msra.mxu0 %v5287
        %5484 = vmatprep.subr.mxu0 0.0
        %5485 = vmatpush1.msra.mxu0 %v5288
        %5486 = vmatprep.subr.mxu0 0.0
        %5487 = vmatpush1.msra.mxu0 %v5289
        %5488 = vmatprep.subr.mxu0 0.0
        %5489 = vmatpush1.msra.mxu0 %v5290
        %5490 = vmatprep.subr.mxu0 0.0
        %5491 = vmatpush1.msra.mxu0 %v5291
        %5492 = vmatprep.subr.mxu0 0.0
        %5493 = vmatpush1.msra.mxu0 %v5292
        %5494 = vmatprep.subr.mxu0 0.0
        %5495 = vmatpush1.msra.mxu0 %v5293
        %5496 = vmatprep.mubr.f32.mxu0 %v5399
        %5497 = vmatmul.mubr.f32.gmra.mrb[0].mxu0 %v5395
        %v5498 = vpop.f32.mrb[0].mxu0
        %v5499 = vadd.f32 %v5390, %v5498
        %v5500 = vpop.f32.mrb[0].mxu0
        %5501 = vdwg.mxu0
        %5502 = vmatprep.subr.mxu0 0.0
        %5503 = vmatpush1.msra.mxu0 %v5294
        %5504 = vmatprep.subr.mxu0 0.0
        %5505 = vmatpush1.msra.mxu0 %v5295
        %5506 = vmatprep.subr.mxu0 0.0
        %5507 = vmatpush1.msra.mxu0 %v5296
        %5508 = vmatprep.subr.mxu0 0.0
        %5509 = vmatpush1.msra.mxu0 %v5297
        %5510 = vmatprep.subr.mxu0 0.0
        %5511 = vmatpush1.msra.mxu0 %v5298
        %5512 = vmatprep.subr.mxu0 0.0
        %5513 = vmatpush1.msra.mxu0 %v5299
        %5514 = vmatprep.subr.mxu0 0.0
        %5515 = vmatpush1.msra.mxu0 %v5300
        %5516 = vmatprep.subr.mxu0 0.0
        %5517 = vmatpush1.msra.mxu0 %v5301
        %5518 = vmatprep.subr.mxu0 0.0
        %5519 = vmatpush1.msra.mxu0 %v5302
        %5520 = vmatprep.subr.mxu0 0.0
        %5521 = vmatpush1.msra.mxu0 %v5303
        %5522 = vmatprep.subr.mxu0 0.0
        %5523 = vmatpush1.msra.mxu0 %v5304
        %5524 = vmatprep.subr.mxu0 0.0
        %5525 = vmatpush1.msra.mxu0 %v5305
        %5526 = vmatprep.subr.mxu0 0.0
        %5527 = vmatpush1.msra.mxu0 %v5306
        %5528 = vmatprep.subr.mxu0 0.0
        %5529 = vmatpush1.msra.mxu0 %v5307
        %5530 = vmatprep.subr.mxu0 0.0
        %5531 = vmatpush1.msra.mxu0 %v5308
        %5532 = vmatprep.subr.mxu0 0.0
        %5533 = vmatpush1.msra.mxu0 %v5309
        %5534 = vmatprep.subr.mxu0 0.0
        %5535 = vmatpush1.msra.mxu0 %v5310
        %5536 = vmatprep.subr.mxu0 0.0
        %5537 = vmatpush1.msra.mxu0 %v5311
        %5538 = vmatprep.subr.mxu0 0.0
        %5539 = vmatpush1.msra.mxu0 %v5312
        %5540 = vmatprep.subr.mxu0 0.0
        %5541 = vmatpush1.msra.mxu0 %v5313
        %5542 = vmatprep.subr.mxu0 0.0
        %5543 = vmatpush1.msra.mxu0 %v5314
        %5544 = vmatprep.subr.mxu0 0.0
        %5545 = vmatpush1.msra.mxu0 %v5315
        %5546 = vmatprep.subr.mxu0 0.0
        %5547 = vmatpush1.msra.mxu0 %v5316
        %5548 = vmatprep.subr.mxu0 0.0
        %5549 = vmatpush1.msra.mxu0 %v5317
        %5550 = vmatprep.subr.mxu0 0.0
        %5551 = vmatpush1.msra.mxu0 %v5318
        %5552 = vmatprep.subr.mxu0 0.0
        %5553 = vmatpush1.msra.mxu0 %v5319
        %5554 = vmatprep.subr.mxu0 0.0
        %5555 = vmatpush1.msra.mxu0 %v5320
        %5556 = vmatprep.subr.mxu0 0.0
        %5557 = vmatpush1.msra.mxu0 %v5321
        %5558 = vmatprep.subr.mxu0 0.0
        %5559 = vmatpush1.msra.mxu0 %v5322
        %5560 = vmatprep.subr.mxu0 0.0
        %5561 = vmatpush1.msra.mxu0 %v5323
        %5562 = vmatprep.subr.mxu0 0.0
        %5563 = vmatpush1.msra.mxu0 %v5324
        %5564 = vmatprep.subr.mxu0 0.0
        %5565 = vmatpush1.msra.mxu0 %v5325
        %5566 = vmatprep.mubr.f32.mxu0 %v5407
        %5567 = vmatmul.mubr.f32.gmra.mrb[0].mxu0 %v5403
        %v5568 = vpop.f32.mrb[0].mxu0
        %v5569 = vadd.f32 %v5499, %v5568
        %v5570 = vpop.f32.mrb[0].mxu0
        %5571 = vdwg.mxu0
        %5572 = vmatprep.subr.mxu0 0.0
        %5573 = vmatpush1.msra.mxu0 %v5326
        %5574 = vmatprep.subr.mxu0 0.0
        %5575 = vmatpush1.msra.mxu0 %v5327
        %5576 = vmatprep.subr.mxu0 0.0
        %5577 = vmatpush1.msra.mxu0 %v5328
        %5578 = vmatprep.subr.mxu0 0.0
        %5579 = vmatpush1.msra.mxu0 %v5329
        %5580 = vmatprep.subr.mxu0 0.0
        %5581 = vmatpush1.msra.mxu0 %v5330
        %5582 = vmatprep.subr.mxu0 0.0
        %5583 = vmatpush1.msra.mxu0 %v5331
        %5584 = vmatprep.subr.mxu0 0.0
        %5585 = vmatpush1.msra.mxu0 %v5332
        %5586 = vmatprep.subr.mxu0 0.0
        %5587 = vmatpush1.msra.mxu0 %v5333
        %5588 = vmatprep.subr.mxu0 0.0
        %5589 = vmatpush1.msra.mxu0 %v5334
        %5590 = vmatprep.subr.mxu0 0.0
        %5591 = vmatpush1.msra.mxu0 %v5335
        %5592 = vmatprep.subr.mxu0 0.0
        %5593 = vmatpush1.msra.mxu0 %v5336
        %5594 = vmatprep.subr.mxu0 0.0
        %5595 = vmatpush1.msra.mxu0 %v5337
        %5596 = vmatprep.subr.mxu0 0.0
        %5597 = vmatpush1.msra.mxu0 %v5338
        %5598 = vmatprep.subr.mxu0 0.0
        %5599 = vmatpush1.msra.mxu0 %v5339
        %5600 = vmatprep.subr.mxu0 0.0
        %5601 = vmatpush1.msra.mxu0 %v5340
        %5602 = vmatprep.subr.mxu0 0.0
        %5603 = vmatpush1.msra.mxu0 %v5341
        %5604 = vmatprep.subr.mxu0 0.0
        %5605 = vmatpush1.msra.mxu0 %v5342
        %5606 = vmatprep.subr.mxu0 0.0
        %5607 = vmatpush1.msra.mxu0 %v5343
        %5608 = vmatprep.subr.mxu0 0.0
        %5609 = vmatpush1.msra.mxu0 %v5344
        %5610 = vmatprep.subr.mxu0 0.0
        %5611 = vmatpush1.msra.mxu0 %v5345
        %5612 = vmatprep.subr.mxu0 0.0
        %5613 = vmatpush1.msra.mxu0 %v5346
        %5614 = vmatprep.subr.mxu0 0.0
        %5615 = vmatpush1.msra.mxu0 %v5347
        %5616 = vmatprep.subr.mxu0 0.0
        %5617 = vmatpush1.msra.mxu0 %v5348
        %5618 = vmatprep.subr.mxu0 0.0
        %5619 = vmatpush1.msra.mxu0 %v5349
        %5620 = vmatprep.subr.mxu0 0.0
        %5621 = vmatpush1.msra.mxu0 %v5350
        %5622 = vmatprep.subr.mxu0 0.0
        %5623 = vmatpush1.msra.mxu0 %v5351
        %5624 = vmatprep.subr.mxu0 0.0
        %5625 = vmatpush1.msra.mxu0 %v5352
        %5626 = vmatprep.subr.mxu0 0.0
        %5627 = vmatpush1.msra.mxu0 %v5353
        %5628 = vmatprep.subr.mxu0 0.0
        %5629 = vmatpush1.msra.mxu0 %v5354
        %5630 = vmatprep.subr.mxu0 0.0
        %5631 = vmatpush1.msra.mxu0 %v5355
        %5632 = vmatprep.subr.mxu0 0.0
        %5633 = vmatpush1.msra.mxu0 %v5356
        %5634 = vmatprep.subr.mxu0 0.0
        %5635 = vmatpush1.msra.mxu0 %v5357
        %5636 = vmatprep.mubr.f32.mxu0 %v5415
        %5637 = vmatmul.mubr.f32.gmra.mrb[0].mxu0 %v5411
        %v5638 = vpop.f32.mrb[0].mxu0
        %v5639 = vadd.f32 %v5569, %v5638
        %v5640 = vpop.f32.mrb[0].mxu0
        %5641 = vdwg.mxu0
        %5642 = vmatprep.subr.mxu0 0.0
        %5643 = vmatpush1.msra.mxu0 %v5358
        %5644 = vmatprep.subr.mxu0 0.0
        %5645 = vmatpush1.msra.mxu0 %v5359
        %5646 = vmatprep.subr.mxu0 0.0
        %5647 = vmatpush1.msra.mxu0 %v5360
        %5648 = vmatprep.subr.mxu0 0.0
        %5649 = vmatpush1.msra.mxu0 %v5361
        %5650 = vmatprep.subr.mxu0 0.0
        %5651 = vmatpush1.msra.mxu0 %v5362
        %5652 = vmatprep.subr.mxu0 0.0
        %5653 = vmatpush1.msra.mxu0 %v5363
        %5654 = vmatprep.subr.mxu0 0.0
        %5655 = vmatpush1.msra.mxu0 %v5364
        %5656 = vmatprep.subr.mxu0 0.0
        %5657 = vmatpush1.msra.mxu0 %v5365
        %5658 = vmatprep.subr.mxu0 0.0
        %5659 = vmatpush1.msra.mxu0 %v5366
        %5660 = vmatprep.subr.mxu0 0.0
        %5661 = vmatpush1.msra.mxu0 %v5367
        %5662 = vmatprep.subr.mxu0 0.0
        %5663 = vmatpush1.msra.mxu0 %v5368
        %5664 = vmatprep.subr.mxu0 0.0
        %5665 = vmatpush1.msra.mxu0 %v5369
        %5666 = vmatprep.subr.mxu0 0.0
        %5667 = vmatpush1.msra.mxu0 %v5370
        %5668 = vmatprep.subr.mxu0 0.0
        %5669 = vmatpush1.msra.mxu0 %v5371
        %5670 = vmatprep.subr.mxu0 0.0
        %5671 = vmatpush1.msra.mxu0 %v5372
        %5672 = vmatprep.subr.mxu0 0.0
        %5673 = vmatpush1.msra.mxu0 %v5373
        %5674 = vmatprep.subr.mxu0 0.0
        %5675 = vmatpush1.msra.mxu0 %v5374
        %5676 = vmatprep.subr.mxu0 0.0
        %5677 = vmatpush1.msra.mxu0 %v5375
        %5678 = vmatprep.subr.mxu0 0.0
        %5679 = vmatpush1.msra.mxu0 %v5376
        %5680 = vmatprep.subr.mxu0 0.0
        %5681 = vmatpush1.msra.mxu0 %v5377
        %5682 = vmatprep.subr.mxu0 0.0
        %5683 = vmatpush1.msra.mxu0 %v5378
        %5684 = vmatprep.subr.mxu0 0.0
        %5685 = vmatpush1.msra.mxu0 %v5379
        %5686 = vmatprep.subr.mxu0 0.0
        %5687 = vmatpush1.msra.mxu0 %v5380
        %5688 = vmatprep.subr.mxu0 0.0
        %5689 = vmatpush1.msra.mxu0 %v5381
        %5690 = vmatprep.subr.mxu0 0.0
        %5691 = vmatpush1.msra.mxu0 %v5382
        %5692 = vmatprep.subr.mxu0 0.0
        %5693 = vmatpush1.msra.mxu0 %v5383
        %5694 = vmatprep.subr.mxu0 0.0
        %5695 = vmatpush1.msra.mxu0 %v5384
        %5696 = vmatprep.subr.mxu0 0.0
        %5697 = vmatpush1.msra.mxu0 %v5385
        %5698 = vmatprep.subr.mxu0 0.0
        %5699 = vmatpush1.msra.mxu0 %v5386
        %5700 = vmatprep.subr.mxu0 0.0
        %5701 = vmatpush1.msra.mxu0 %v5387
        %5702 = vmatprep.subr.mxu0 0.0
        %5703 = vmatpush1.msra.mxu0 %v5388
        %5704 = vmatprep.subr.mxu0 0.0
        %5705 = vmatpush1.msra.mxu0 %v5389
        %5706 = vmatprep.mubr.f32.mxu0 %v5423
        %5707 = vmatmul.mubr.f32.gmra.mrb[0].mxu0 %v5419
        %v5708 = vpop.f32.mrb[0].mxu0
        %v5709 = vadd.f32 %v5639, %v5708
        %v5710 = vpop.f32.mrb[0].mxu0
        %5711 = vdwg.mxu0
        %vm5712 = vcmask 73728
        %5713 = vst.msk [vmem:[%s459] sm:$0x1] %vm5712, %v5709
        %s5714 = sand.u32 %s335, 1
        %s5715 = scalar_lea.sflag [#allocation3], %s5714
        %s5716 = sand.u32 %s335, 1
        %s5717 = scalar_lea.vmem [#allocation2], %s5716
        // Predicated region
        $region77: #{tpu_custom_call.1} parent=75 // pred_check
          %p5718 = pneg %p345
        $region78: #{tpu_custom_call.1} parent=75 // pred_check_branch
          %5720 = sbr.rel (%p5718) target = $region80
        $region79: #{tpu_custom_call.1} parent=75 // pred_region
          %s5722 = ssub.s32 16, 16
          %5723 = vsyncadd %s5715, %s5722
          %s5724 = smul.addr %s28, 16
          %s5725 = scalar_lea.hbm %s14, %s5724
          %s5727 = sshll.u32 %s5717, 4
          %s5728 = int_to_ptr.vmem [resolvable:$true] %s5727
          %5730 = dma.vmem_to_hbm [thread:$0]  %s5728, 16, %s5725, %s5715
        $region80: #{tpu_custom_call.1} parent=75 // pred_fallthru
          _
      $region76: #{tpu_custom_call.1} parent=5 // pred_fallthru
        _
      %p5731 = scmp.le.s32.totalorder 2, %s23
      // Predicated region
      $region81: #{tpu_custom_call.1} parent=5 // pred_check
        %p5732 = pneg %p5731
      $region82: #{tpu_custom_call.1} parent=5 // pred_check_branch
        %5734 = sbr.rel (%p5732) target = $region84
      $region83: #{tpu_custom_call.1} parent=5 // pred_region
        %s5735 = ssub.s32 %s23, 2
        // Predicated region
        $region85: #{tpu_custom_call.1} parent=83 // pred_check
          %p5736 = pneg %p351
        $region86: #{tpu_custom_call.1} parent=83 // pred_check_branch
          %5738 = sbr.rel (%p5736) target = $region88
        $region87: #{tpu_custom_call.1} parent=83 // pred_region
          %s5739 = sand.u32 %s336, 1
          %s5740 = scalar_lea.sflag [#allocation3], %s5739
          %s5741 = sand.u32 %s336, 1
          %s5742 = scalar_lea.vmem [#allocation2], %s5741
          %5743 = dma.done %s5740, 16
        $region88: #{tpu_custom_call.1} parent=83 // pred_fallthru
          _
      $region84: #{tpu_custom_call.1} parent=5 // pred_fallthru
        _
    $region6: #{tpu_custom_call.1} parent=1 // loop_footer
      %s27 = sadd.s32 1, %s23
    $region7: #{tpu_custom_call.1} parent=1 // loop_footer_branch
      %22 = sbr.rel target = $region3
    $region8: #{tpu_custom_call.1} parent=1 // loop_exit
      _
    %5744 = vsyncpa [#allocation3], 1
    %s5745 = scalar_lea.sflag [#allocation3], 1
    %5746 = vsyncpa %s5745, 1

</llo_original>
